<compile_context>
chip_gen: v5e
topology: v5e:2x2
jax: 0.10.0
libtpu: 0.0.40
codegen_flags: <defaults>
</compile_context>

<pallas_src>
import numpy as np
import jax
import jax.numpy as jnp
from jax.experimental import pallas as pl
from jax.experimental.pallas import tpu as pltpu

_F32 = jnp.float32


# ----------------------------------------------------------------------------
# In-kernel helpers (values in, values out; weight args are refs)
# ----------------------------------------------------------------------------

def _lrelu(x):                       # PyTorch LeakyReLU default slope = 0.01
    return jnp.where(x > 0, x, 0.01 * x)


def _elu(x):
    return jnp.where(x > 0, x, jnp.exp(jnp.minimum(x, 0.0)) - 1.0)


def _masked_softmax(logits, mask):
    """Softmax over the last axis restricted to mask > 0.

    All-masked rows yield all-zero weights (DGL edge_softmax semantics for
    nodes without incoming edges)."""
    masked = jnp.where(mask > 0, logits, -1e30)
    m = jnp.max(masked, axis=-1, keepdims=True)
    ex = jnp.exp(masked - m) * mask
    denom = jnp.sum(ex, axis=-1, keepdims=True)
    return ex * pl.reciprocal(jnp.maximum(denom, 1e-20), approx=True)


def _gru(x, h, wir, wiz, win, whr, whz, whn, b_r, b_z, b_in, b_hn):
    """nn.GRUCell with gate weights pre-split into r / z / n."""
    r = jax.nn.sigmoid(jnp.dot(x, wir[...], preferred_element_type=_F32)
                       + jnp.dot(h, whr[...], preferred_element_type=_F32) + b_r[...])
    z = jax.nn.sigmoid(jnp.dot(x, wiz[...], preferred_element_type=_F32)
                       + jnp.dot(h, whz[...], preferred_element_type=_F32) + b_z[...])
    n = jnp.tanh(jnp.dot(x, win[...], preferred_element_type=_F32) + b_in[...]
                 + r * (jnp.dot(h, whn[...], preferred_element_type=_F32) + b_hn[...]))
    return (1.0 - z) * n + z * h


# ----------------------------------------------------------------------------
# Kernel A: AttentiveFPGNN GetContext (first layer), fused per graph.
# Edge axis is kept flattened as r = i*N + j (i = dst, j = src); per-edge
# gather/scatter is expressed as one-hot matmuls (T_src / T_dst^T) on the MXU.
# ----------------------------------------------------------------------------

def _get_context_kernel(node_ref, e_ref, adj_ref, mask_ref,
                        tsrc_ref, tsrct_ref, tdstt_ref,
                        pn_w, pn_b, w1n, w1e, pe1_b, w2d, w2e, pe2_b, et_w, et_b,
                        wir, wiz, win, whr, whz, whn, b_r, b_z, b_in, b_hn,
                        node_out_ref, gsum_ref):
    hv = node_ref[0]            # [N, NF]
    ef = e_ref[0]               # [N*N, EF]
    adj = adj_ref[0]            # [N, N]
    mask = mask_ref[0]          # [1, N]
    tsrc = tsrc_ref[...]        # [N*N, N]   one-hot of src(r)
    tsrct = tsrct_ref[...]      # [N, N*N]
    tdstt = tdstt_ref[...]      # [N, N*N]   one-hot (transposed) of dst(r)

    # project_node: hv_new = leaky_relu(hv @ W + b)
    hv_new = _lrelu(jnp.dot(hv, pn_w[...], preferred_element_type=_F32) + pn_b[...])

    # project_edge1(cat(src hv, edge feats)) with split weights (no concat):
    node_part = jnp.dot(hv, w1n[...], preferred_element_type=_F32)          # [N, G]
    node_part_f = jnp.dot(tsrc, node_part, preferred_element_type=_F32)     # [N*N, G] (src gather)
    he1 = _lrelu(jnp.dot(ef, w1e[...], preferred_element_type=_F32)
                 + node_part_f + pe1_b[...])                                 # [N*N, G]

    # AttentiveGRU1 edge_transform (messages) -- stays in VMEM, never hits HBM
    msg = jnp.dot(he1, et_w[...], preferred_element_type=_F32) + et_b[...]  # [N*N, G]

    # project_edge2(cat(dst hv_new, he1)) with split weights:
    el_f = jnp.dot(he1, w2e[...], preferred_element_type=_F32)              # [N*N, 1]
    el2d = jnp.dot(tdstt, el_f * tsrc, preferred_element_type=_F32)         # [N, N]  (scatter to dense)
    dst_p = jnp.dot(hv_new, w2d[...], preferred_element_type=_F32)          # [N, 1]
    logits = _lrelu(dst_p + el2d + pe2_b[...])                              # [N, N]

    # DGL edge_softmax over incoming edges of each destination node
    a = _masked_softmax(logits, adj)                                        # [N, N]

    # weighted message sum:  ctx[i] = sum_j a[i,j] * msg[i*N+j]
    a_exp = tdstt * jnp.dot(a, tsrct, preferred_element_type=_F32)          # [N, N*N]
    ctx = _elu(jnp.dot(a_exp, msg, preferred_element_type=_F32))            # [N, G]

    node_out = jnp.maximum(
        _gru(ctx, hv_new, wir, wiz, win, whr, whz, whn, b_r, b_z, b_in, b_hn), 0.0)
    node_out_ref[0] = node_out
    # masked graph sum (dgl.sum_nodes) folded in as a [1,N] @ [N,G] matmul
    gsum_ref[0] = jnp.dot(mask, node_out, preferred_element_type=_F32)


def _run_get_context(node_feats, e_flat, adj, mask3, t_src, t_src_t, t_dst_t, wts):
    B, N, NF = node_feats.shape
    NN, EF = e_flat.shape[1], e_flat.shape[2]
    G = wts[0].shape[1]
    d3 = lambda b: (b, 0, 0)
    c2 = lambda b: (0, 0)
    in_specs = [
        pl.BlockSpec((1, N, NF), d3),
        pl.BlockSpec((1, NN, EF), d3),
        pl.BlockSpec((1, N, N), d3),
        pl.BlockSpec((1, 1, N), d3),
        pl.BlockSpec((NN, N), c2),
        pl.BlockSpec((N, NN), c2),
        pl.BlockSpec((N, NN), c2),
    ] + [pl.BlockSpec(w.shape, c2) for w in wts]
    out_shape = (jax.ShapeDtypeStruct((B, N, G), _F32),
                 jax.ShapeDtypeStruct((B, 1, G), _F32))
    out_specs = (pl.BlockSpec((1, N, G), d3), pl.BlockSpec((1, 1, G), d3))
    return pl.pallas_call(
        _get_context_kernel,
        grid=(B,),
        in_specs=in_specs,
        out_specs=out_specs,
        out_shape=out_shape,
        compiler_params=pltpu.CompilerParams(dimension_semantics=("parallel",)),
    )(node_feats, e_flat, adj, mask3, t_src, t_src_t, t_dst_t, *wts)


# ----------------------------------------------------------------------------
# Kernel B: AttentiveFPGNN GNNLayer, fused per graph.
# logits[i,j] = leaky_relu(hv[i].w_dst + hv[j].w_src + b); aggregation = a @ proj.
# ----------------------------------------------------------------------------

def _gnn_layer_kernel(node_ref, adj_ref, mask_ref,
                      w_dst, w_src_row, pe_b, pn_w, pn_b,
                      wir, wiz, win, whr, whz, whn, b_r, b_z, b_in, b_hn,
                      node_out_ref, gsum_ref):
    hv = node_ref[0]            # [N, G]
    adj = adj_ref[0]            # [N, N]
    mask = mask_ref[0]          # [1, N]

    dst_p = jnp.dot(hv, w_dst[...], preferred_element_type=_F32)            # [N, 1]
    # src part as a lane-dense row: [1,G] x [N,G]^T -> [1,N]
    src_row = jax.lax.dot_general(w_src_row[...], hv, (((1,), (1,)), ((), ())),
                                  preferred_element_type=_F32)               # [1, N]
    logits = _lrelu(dst_p + src_row + pe_b[...])                             # [N, N]

    a = _masked_softmax(logits, adj)                                         # [N, N]
    proj = jnp.dot(hv, pn_w[...], preferred_element_type=_F32) + pn_b[...]   # [N, G]
    ctx = _elu(jnp.dot(a, proj, preferred_element_type=_F32))                # [N, G]  (MXU aggregation)

    node_out = jnp.maximum(
        _gru(ctx, hv, wir, wiz, win, whr, whz, whn, b_r, b_z, b_in, b_hn), 0.0)
    node_out_ref[0] = node_out
    gsum_ref[0] = jnp.dot(mask, node_out, preferred_element_type=_F32)


def _run_gnn_layer(node, adj, mask3, wts):
    B, N, G = node.shape
    d3 = lambda b: (b, 0, 0)
    c2 = lambda b: (0, 0)
    in_specs = [
        pl.BlockSpec((1, N, G), d3),
        pl.BlockSpec((1, N, N), d3),
        pl.BlockSpec((1, 1, N), d3),
    ] + [pl.BlockSpec(w.shape, c2) for w in wts]
    out_shape = (jax.ShapeDtypeStruct((B, N, G), _F32),
                 jax.ShapeDtypeStruct((B, 1, G), _F32))
    out_specs = (pl.BlockSpec((1, N, G), d3), pl.BlockSpec((1, 1, G), d3))
    return pl.pallas_call(
        _gnn_layer_kernel,
        grid=(B,),
        in_specs=in_specs,
        out_specs=out_specs,
        out_shape=out_shape,
        compiler_params=pltpu.CompilerParams(dimension_semantics=("parallel",)),
    )(node, adj, mask3, *wts)


# ----------------------------------------------------------------------------
# Kernel C: AttentiveFPReadout GlobalPool timestep, fused per graph.
# ----------------------------------------------------------------------------

def _readout_kernel(node_ref, mask_ref, g_ref,
                    cl_w_g, cl_w_node_row, cl_b, pn_w, pn_b,
                    wir, wiz, win, whr, whz, whn, b_r, b_z, b_in, b_hn,
                    g_out_ref):
    node = node_ref[0]          # [N, G]
    mask = mask_ref[0]          # [1, N]
    gf = g_ref[0]               # [1, G]

    z_g = jnp.dot(jnp.maximum(gf, 0.0), cl_w_g[...], preferred_element_type=_F32)   # [1, 1]
    z_node = jax.lax.dot_general(cl_w_node_row[...], node, (((1,), (1,)), ((), ())),
                                 preferred_element_type=_F32)                        # [1, N]
    z = _lrelu(z_g + z_node + cl_b[...])                                             # [1, N]

    a = _masked_softmax(z, mask)                                                     # [1, N]
    proj = jnp.dot(node, pn_w[...], preferred_element_type=_F32) + pn_b[...]         # [N, G]
    g_repr = jnp.dot(a, proj, preferred_element_type=_F32)                           # [1, G]
    ctx = jnp.maximum(g_repr, 0.0)        # relu(elu(x)) == relu(x)

    g_out_ref[0] = _gru(ctx, gf, wir, wiz, win, whr, whz, whn, b_r, b_z, b_in, b_hn)


def _run_readout(node, mask3, g_feats, wts):
    B, N, G = node.shape
    d3 = lambda b: (b, 0, 0)
    c2 = lambda b: (0, 0)
    in_specs = [
        pl.BlockSpec((1, N, G), d3),
        pl.BlockSpec((1, 1, N), d3),
        pl.BlockSpec((1, 1, G), d3),
    ] + [pl.BlockSpec(w.shape, c2) for w in wts]
    return pl.pallas_call(
        _readout_kernel,
        grid=(B,),
        in_specs=in_specs,
        out_specs=pl.BlockSpec((1, 1, G), d3),
        out_shape=jax.ShapeDtypeStruct((B, 1, G), _F32),
        compiler_params=pltpu.CompilerParams(dimension_semantics=("parallel",)),
    )(node, mask3, g_feats, *wts)


# ----------------------------------------------------------------------------
# Kernel D: fp_fc + predict head, fully fused (concat replaced by split weights)
# ----------------------------------------------------------------------------

def _head_kernel(gf_ref, fp_ref, w1, b1, w2, b2, w3g, w3f, b3, w4, b4, out_ref):
    h1 = jnp.maximum(jnp.dot(fp_ref[...], w1[...], preferred_element_type=_F32) + b1[...], 0.0)
    fpf = jnp.dot(h1, w2[...], preferred_element_type=_F32) + b2[...]
    h2 = jnp.maximum(jnp.dot(gf_ref[...], w3g[...], preferred_element_type=_F32)
                     + jnp.dot(fpf, w3f[...], preferred_element_type=_F32) + b3[...], 0.0)
    out_ref[...] = jnp.dot(h2, w4[...], preferred_element_type=_F32) + b4[...]


def _run_head(gf, fp, wts):
    B, G = gf.shape
    FP = fp.shape[-1]
    n_tasks = wts[-1].shape[-1]
    c2 = lambda i: (0, 0)
    in_specs = [pl.BlockSpec((B, G), c2), pl.BlockSpec((B, FP), c2)] + \
               [pl.BlockSpec(w.shape, c2) for w in wts]
    return pl.pallas_call(
        _head_kernel,
        grid=(1,),
        in_specs=in_specs,
        out_specs=pl.BlockSpec((B, n_tasks), c2),
        out_shape=jax.ShapeDtypeStruct((B, n_tasks), _F32),
    )(gf, fp, *wts)


# ----------------------------------------------------------------------------
# Parameter initialization (deterministic; matches module __init__ shapes)
# ----------------------------------------------------------------------------

def init_params(key, node_feat_size, edge_feat_size, fp_size,
                graph_feat_size, num_layers, num_timesteps, n_tasks):
    keys = iter(jax.random.split(key, 128))

    def lin(in_d, out_d):
        k1, k2 = next(keys), next(keys)
        bound = 1.0 / float(np.sqrt(in_d))
        w = jax.random.uniform(k1, (in_d, out_d), _F32, -bound, bound)
        b = jax.random.uniform(k2, (1, out_d), _F32, -bound, bound)
        return w, b

    def gru(in_d, h):
        w_ih, b_ih = lin(in_d, 3 * h)
        w_hh, b_hh = lin(h, 3 * h)
        return dict(w_ih=w_ih, w_hh=w_hh, b_ih=b_ih, b_hh=b_hh)

    G = graph_feat_size
    params = {}
    pn_w, pn_b = lin(node_feat_size, G)                      # project_node
    pe1_w, pe1_b = lin(node_feat_size + edge_feat_size, G)   # project_edge1
    pe2_w, pe2_b = lin(2 * G, 1)                             # project_edge2
    et_w, et_b = lin(G, G)                                   # AttentiveGRU1.edge_transform
    params["init_context"] = dict(pn_w=pn_w, pn_b=pn_b, pe1_w=pe1_w, pe1_b=pe1_b,
                                  pe2_w=pe2_w, pe2_b=pe2_b, et_w=et_w, et_b=et_b,
                                  gru=gru(G, G))
    layers = []
    for _ in range(num_layers - 1):
        pe_w, pe_b = lin(2 * G, 1)                           # project_edge
        pn2_w, pn2_b = lin(G, G)                             # AttentiveGRU2.project_node
        layers.append(dict(pe_w=pe_w, pe_b=pe_b, pn_w=pn2_w, pn_b=pn2_b, gru=gru(G, G)))
    params["gnn_layers"] = layers
    steps = []
    for _ in range(num_timesteps):
        cl_w, cl_b = lin(2 * G, 1)                           # compute_logits
        pn3_w, pn3_b = lin(G, G)                             # project_nodes
        steps.append(dict(cl_w=cl_w, cl_b=cl_b, pn_w=pn3_w, pn_b=pn3_b, gru=gru(G, G)))
    params["readout"] = steps
    w1, b1 = lin(fp_size, 256)
    w2, b2 = lin(256, G)
    params["fp_fc"] = dict(w1=w1, b1=b1, w2=w2, b2=b2)
    w3, b3 = lin(2 * G, 128)
    w4, b4 = lin(128, n_tasks)
    params["predict"] = dict(w1=w3, b1=b3, w2=w4, b2=b4)
    return params


def _split_gru(p, H):
    """Split PyTorch-style [r|z|n] GRU weights into per-gate matmul operands."""
    w_ih, w_hh, b_ih, b_hh = p["w_ih"], p["w_hh"], p["b_ih"], p["b_hh"]
    wir, wiz, win = w_ih[:, :H], w_ih[:, H:2 * H], w_ih[:, 2 * H:]
    whr, whz, whn = w_hh[:, :H], w_hh[:, H:2 * H], w_hh[:, 2 * H:]
    b_r = b_ih[:, :H] + b_hh[:, :H]
    b_z = b_ih[:, H:2 * H] + b_hh[:, H:2 * H]
    b_in = b_ih[:, 2 * H:]
    b_hn = b_hh[:, 2 * H:]
    return wir, wiz, win, whr, whz, whn, b_r, b_z, b_in, b_hn


# ----------------------------------------------------------------------------
# Forward pass: 1 kernel per GNN layer, 1 per readout step, 1 head kernel.
# ----------------------------------------------------------------------------

def graph_fingerprints_forward(params, node_feats, edge_feats, adj, node_mask, fingerprints):
    B, N, NF = node_feats.shape
    EF = edge_feats.shape[-1]
    G = params["init_context"]["pn_w"].shape[1]
    NN = N * N

    e_flat = edge_feats.reshape(B, NN, EF)               # edge (i,j) -> row i*N+j
    mask3 = node_mask[:, None, :]                        # [B, 1, N]

    # One-hot gather/scatter matrices for the flattened edge axis (constants).
    eye = np.eye(N, dtype=np.float32)
    t_src = jnp.asarray(np.tile(eye, (N, 1)))            # [NN, N]  T_src[i*N+j, j] = 1
    t_src_t = jnp.asarray(np.tile(eye, (N, 1)).T)        # [N, NN]
    t_dst_t = jnp.asarray(np.repeat(eye, N, axis=0).T)   # [N, NN]  T_dst^T[i, i*N+j] = 1

    # ---------------- GetContext (first GNN layer) ----------------
    ic = params["init_context"]
    wts_a = (ic["pn_w"], ic["pn_b"],
             ic["pe1_w"][:NF], ic["pe1_w"][NF:], ic["pe1_b"],
             ic["pe2_w"][:G], ic["pe2_w"][G:], ic["pe2_b"],
             ic["et_w"], ic["et_b"]) + _split_gru(ic["gru"], G)
    node, gsum = _run_get_context(node_feats, e_flat, adj, mask3,
                                  t_src, t_src_t, t_dst_t, wts_a)

    # ---------------- remaining GNN layers ----------------
    for lp in params["gnn_layers"]:
        wts_b = (lp["pe_w"][:G], lp["pe_w"][G:].T, lp["pe_b"],
                 lp["pn_w"], lp["pn_b"]) + _split_gru(lp["gru"], G)
        node, gsum = _run_gnn_layer(node, adj, mask3, wts_b)

    # ---------------- readout ----------------
    g_feats = gsum                                        # dgl.sum_nodes of final node feats
    for tp in params["readout"]:
        wts_c = (tp["cl_w"][:G], tp["cl_w"][G:].T, tp["cl_b"],
                 tp["pn_w"], tp["pn_b"]) + _split_gru(tp["gru"], G)
        g_feats = _run_readout(node, mask3, g_feats, wts_c)

    # ---------------- fingerprint MLP + prediction head ----------------
    fp = params["fp_fc"]
    pr = params["predict"]
    wts_d = (fp["w1"], fp["b1"], fp["w2"], fp["b2"],
             pr["w1"][:G], pr["w1"][G:], pr["b1"], pr["w2"], pr["b2"])
    return _run_head(g_feats[:, 0, :], fingerprints, wts_d)


# ----------------------------------------------------------------------------
# Example run
# ----------------------------------------------------------------------------

if __name__ == "__main__":
    B, N = 2, 8                 # 2 graphs, up to 8 nodes each
    NODE_FEAT = 16
    EDGE_FEAT = 8
    GRAPH_FEAT = 32             # graph_feat_size (small test; production = 256, lane-aligned)
    FP_SIZE = 24
    NUM_LAYERS = 3
    NUM_TIMESTEPS = 1
    N_TASKS = 1

    key = jax.random.PRNGKey(0)
    k_par, k_node, k_edge, k_fp = jax.random.split(key, 4)

    params = init_params(k_par, NODE_FEAT, EDGE_FEAT, FP_SIZE,
                         GRAPH_FEAT, NUM_LAYERS, NUM_TIMESTEPS, N_TASKS)

    # graph 0: 8-node ring (bidirectional), graph 1: 6-node chain + 2 padding nodes
    adj_np = np.zeros((B, N, N), dtype=np.float32)
    for i in range(8):
        j = (i + 1) % 8
        adj_np[0, i, j] = 1.0
        adj_np[0, j, i] = 1.0
    for i in range(5):
        adj_np[1, i, i + 1] = 1.0
        adj_np[1, i + 1, i] = 1.0
    node_mask_np = np.zeros((B, N), dtype=np.float32)
    node_mask_np[0, :8] = 1.0
    node_mask_np[1, :6] = 1.0

    adj = jnp.asarray(adj_np)
    node_mask = jnp.asarray(node_mask_np)

    node_feats = jax.random.normal(k_node, (B, N, NODE_FEAT), _F32)
    node_feats = node_feats * node_mask[:, :, None]
    edge_feats = jax.random.normal(k_edge, (B, N, N, EDGE_FEAT), _F32)
    edge_feats = edge_feats * adj[:, :, :, None]
    fingerprints = jax.random.uniform(k_fp, (B, FP_SIZE), _F32)

    fwd = jax.jit(graph_fingerprints_forward)
    out = fwd(params, node_feats, edge_feats, adj, node_mask, fingerprints)
    out = jax.block_until_ready(out)
    assert out.shape == (B, N_TASKS) and bool(jnp.all(jnp.isfinite(out)))
    print("KERNEL_OK")
</pallas_src>

<mosaic_0001>
module attributes {stable_mosaic.version = 11 : i64} {
  func.func @_gnn_layer_kernel(%arg0: i32, %arg1: memref<1x8x32xf32, #tpu.memory_space<vmem>>, %arg2: memref<1x8x8xf32, #tpu.memory_space<vmem>>, %arg3: memref<1x1x8xf32, #tpu.memory_space<vmem>>, %arg4: memref<32x1xf32, #tpu.memory_space<vmem>>, %arg5: memref<1x32xf32, #tpu.memory_space<vmem>>, %arg6: memref<1x1xf32, #tpu.memory_space<vmem>>, %arg7: memref<32x32xf32, #tpu.memory_space<vmem>>, %arg8: memref<1x32xf32, #tpu.memory_space<vmem>>, %arg9: memref<32x32xf32, #tpu.memory_space<vmem>>, %arg10: memref<32x32xf32, #tpu.memory_space<vmem>>, %arg11: memref<32x32xf32, #tpu.memory_space<vmem>>, %arg12: memref<32x32xf32, #tpu.memory_space<vmem>>, %arg13: memref<32x32xf32, #tpu.memory_space<vmem>>, %arg14: memref<32x32xf32, #tpu.memory_space<vmem>>, %arg15: memref<1x32xf32, #tpu.memory_space<vmem>>, %arg16: memref<1x32xf32, #tpu.memory_space<vmem>>, %arg17: memref<1x32xf32, #tpu.memory_space<vmem>>, %arg18: memref<1x32xf32, #tpu.memory_space<vmem>>, %arg19: memref<1x8x32xf32, #tpu.memory_space<vmem>>, %arg20: memref<1x1x32xf32, #tpu.memory_space<vmem>>) attributes {dimension_semantics = [#tpu.dimension_semantics<parallel>], iteration_bounds = array<i64: 2>, scalar_prefetch = 0 : i64, scratch_operands = 0 : i64, tpu.core_type = #tpu.core_type<tc>, window_params = [{transform_indices = @transform_0, window_bounds = array<i64: 1, 8, 32>}, {transform_indices = @transform_1, window_bounds = array<i64: 1, 8, 8>}, {transform_indices = @transform_2, window_bounds = array<i64: 1, 1, 8>}, {pipeline_mode = #tpu.pipeline_mode<synchronous>, transform_indices = @transform_3, window_bounds = array<i64: 32, 1>}, {pipeline_mode = #tpu.pipeline_mode<synchronous>, transform_indices = @transform_4, window_bounds = array<i64: 1, 32>}, {pipeline_mode = #tpu.pipeline_mode<synchronous>, transform_indices = @transform_5, window_bounds = array<i64: 1, 1>}, {pipeline_mode = #tpu.pipeline_mode<synchronous>, transform_indices = @transform_6, window_bounds = array<i64: 32, 32>}, {pipeline_mode = #tpu.pipeline_mode<synchronous>, transform_indices = @transform_7, window_bounds = array<i64: 1, 32>}, {pipeline_mode = #tpu.pipeline_mode<synchronous>, transform_indices = @transform_8, window_bounds = array<i64: 32, 32>}, {pipeline_mode = #tpu.pipeline_mode<synchronous>, transform_indices = @transform_9, window_bounds = array<i64: 32, 32>}, {pipeline_mode = #tpu.pipeline_mode<synchronous>, transform_indices = @transform_10, window_bounds = array<i64: 32, 32>}, {pipeline_mode = #tpu.pipeline_mode<synchronous>, transform_indices = @transform_11, window_bounds = array<i64: 32, 32>}, {pipeline_mode = #tpu.pipeline_mode<synchronous>, transform_indices = @transform_12, window_bounds = array<i64: 32, 32>}, {pipeline_mode = #tpu.pipeline_mode<synchronous>, transform_indices = @transform_13, window_bounds = array<i64: 32, 32>}, {pipeline_mode = #tpu.pipeline_mode<synchronous>, transform_indices = @transform_14, window_bounds = array<i64: 1, 32>}, {pipeline_mode = #tpu.pipeline_mode<synchronous>, transform_indices = @transform_15, window_bounds = array<i64: 1, 32>}, {pipeline_mode = #tpu.pipeline_mode<synchronous>, transform_indices = @transform_16, window_bounds = array<i64: 1, 32>}, {pipeline_mode = #tpu.pipeline_mode<synchronous>, transform_indices = @transform_17, window_bounds = array<i64: 1, 32>}, {transform_indices = @transform_18, window_bounds = array<i64: 1, 8, 32>}, {transform_indices = @transform_19, window_bounds = array<i64: 1, 1, 32>}]} {
    %c0 = arith.constant 0 : index
    %c0_0 = arith.constant 0 : index
    %c0_1 = arith.constant 0 : index
    %0 = vector.load %arg1[%c0, %c0_0, %c0_1] : memref<1x8x32xf32, #tpu.memory_space<vmem>>, vector<1x8x32xf32>
    %1 = vector.shape_cast %0 : vector<1x8x32xf32> to vector<8x32xf32>
    %c0_2 = arith.constant 0 : index
    %c0_3 = arith.constant 0 : index
    %c0_4 = arith.constant 0 : index
    %2 = vector.load %arg2[%c0_2, %c0_3, %c0_4] : memref<1x8x8xf32, #tpu.memory_space<vmem>>, vector<1x8x8xf32>
    %3 = vector.shape_cast %2 : vector<1x8x8xf32> to vector<8x8xf32>
    %c0_5 = arith.constant 0 : index
    %c0_6 = arith.constant 0 : index
    %c0_7 = arith.constant 0 : index
    %4 = vector.load %arg3[%c0_5, %c0_6, %c0_7] : memref<1x1x8xf32, #tpu.memory_space<vmem>>, vector<1x1x8xf32>
    %5 = vector.shape_cast %4 : vector<1x1x8xf32> to vector<1x8xf32>
    %c0_8 = arith.constant 0 : index
    %c0_9 = arith.constant 0 : index
    %6 = vector.load %arg4[%c0_8, %c0_9] : memref<32x1xf32, #tpu.memory_space<vmem>>, vector<32x1xf32>
    %cst = arith.constant dense<0.000000e+00> : vector<8x1xf32>
    %7 = tpu.matmul %1, %6, %cst {dimension_numbers = #tpu.dot_dimension_numbers<[1], [0], [0], [1], [0, 0, 1, 1], [], []>} : vector<8x32xf32>, vector<32x1xf32>, vector<8x1xf32> -> vector<8x1xf32>
    %c0_10 = arith.constant 0 : index
    %c0_11 = arith.constant 0 : index
    %8 = vector.load %arg5[%c0_10, %c0_11] : memref<1x32xf32, #tpu.memory_space<vmem>>, vector<1x32xf32>
    %cst_12 = arith.constant dense<0.000000e+00> : vector<1x8xf32>
    %9 = tpu.matmul %8, %1, %cst_12 {dimension_numbers = #tpu.dot_dimension_numbers<[1], [1], [0], [0], [0, 0, 1, 0], [], []>} : vector<1x32xf32>, vector<8x32xf32>, vector<1x8xf32> -> vector<1x8xf32>
    %10 = vector.broadcast %7 : vector<8x1xf32> to vector<8x8xf32>
    %11 = vector.broadcast %9 : vector<1x8xf32> to vector<8x8xf32>
    %12 = arith.addf %10, %11 : vector<8x8xf32>
    %c0_13 = arith.constant 0 : index
    %c0_14 = arith.constant 0 : index
    %13 = vector.load %arg6[%c0_13, %c0_14] : memref<1x1xf32, #tpu.memory_space<vmem>>, vector<1x1xf32>
    %14 = vector.broadcast %13 : vector<1x1xf32> to vector<8x8xf32>
    %15 = arith.addf %12, %14 : vector<8x8xf32>
    %cst_15 = arith.constant 0.000000e+00 : f32
    %16 = vector.broadcast %cst_15 : f32 to vector<8x8xf32>
    %17 = arith.cmpf ogt, %15, %16 : vector<8x8xf32>
    %cst_16 = arith.constant 0.00999999977 : f32
    %18 = vector.broadcast %cst_16 : f32 to vector<8x8xf32>
    %19 = arith.mulf %18, %15 : vector<8x8xf32>
    %20 = arith.select %17, %15, %19 : vector<8x8xi1>, vector<8x8xf32>
    %cst_17 = arith.constant 0.000000e+00 : f32
    %21 = vector.broadcast %cst_17 : f32 to vector<8x8xf32>
    %22 = arith.cmpf ogt, %3, %21 : vector<8x8xf32>
    %cst_18 = arith.constant -1.000000e+30 : f32
    %23 = vector.broadcast %cst_18 : f32 to vector<8x8xf32>
    %24 = arith.select %22, %20, %23 : vector<8x8xi1>, vector<8x8xf32>
    %cst_19 = arith.constant dense<0xFF800000> : vector<8xf32>
    %25 = vector.multi_reduction <maximumf>, %24, %cst_19 [1] : vector<8x8xf32> to vector<8xf32>
    %26 = vector.shape_cast %25 : vector<8xf32> to vector<8x1xf32>
    %27 = vector.broadcast %26 : vector<8x1xf32> to vector<8x8xf32>
    %28 = arith.subf %24, %27 : vector<8x8xf32>
    %29 = math.exp %28 : vector<8x8xf32>
    %30 = arith.mulf %29, %3 : vector<8x8xf32>
    %cst_20 = arith.constant dense<0.000000e+00> : vector<8xf32>
    %31 = vector.multi_reduction <add>, %30, %cst_20 [1] : vector<8x8xf32> to vector<8xf32>
    %32 = vector.shape_cast %31 : vector<8xf32> to vector<8x1xf32>
    %cst_21 = arith.constant 9.99999968E-21 : f32
    %33 = vector.broadcast %cst_21 : f32 to vector<8x1xf32>
    %34 = arith.maximumf %32, %33 : vector<8x1xf32>
    %35 = tpu.reciprocal %34 {approx = true} : vector<8x1xf32> -> vector<8x1xf32>
    %36 = vector.broadcast %35 : vector<8x1xf32> to vector<8x8xf32>
    %37 = arith.mulf %30, %36 : vector<8x8xf32>
    %c0_22 = arith.constant 0 : index
    %c0_23 = arith.constant 0 : index
    %38 = vector.load %arg7[%c0_22, %c0_23] : memref<32x32xf32, #tpu.memory_space<vmem>>, vector<32x32xf32>
    %cst_24 = arith.constant dense<0.000000e+00> : vector<8x32xf32>
    %39 = tpu.matmul %1, %38, %cst_24 {dimension_numbers = #tpu.dot_dimension_numbers<[1], [0], [0], [1], [0, 0, 1, 1], [], []>} : vector<8x32xf32>, vector<32x32xf32>, vector<8x32xf32> -> vector<8x32xf32>
    %c0_25 = arith.constant 0 : index
    %c0_26 = arith.constant 0 : index
    %40 = vector.load %arg8[%c0_25, %c0_26] : memref<1x32xf32, #tpu.memory_space<vmem>>, vector<1x32xf32>
    %41 = vector.broadcast %40 : vector<1x32xf32> to vector<8x32xf32>
    %42 = arith.addf %39, %41 : vector<8x32xf32>
    %cst_27 = arith.constant dense<0.000000e+00> : vector<8x32xf32>
    %43 = tpu.matmul %37, %42, %cst_27 {dimension_numbers = #tpu.dot_dimension_numbers<[1], [0], [0], [1], [0, 0, 1, 1], [], []>} : vector<8x8xf32>, vector<8x32xf32>, vector<8x32xf32> -> vector<8x32xf32>
    %cst_28 = arith.constant 0.000000e+00 : f32
    %44 = vector.broadcast %cst_28 : f32 to vector<8x32xf32>
    %45 = arith.cmpf ogt, %43, %44 : vector<8x32xf32>
    %cst_29 = arith.constant 0.000000e+00 : f32
    %46 = vector.broadcast %cst_29 : f32 to vector<8x32xf32>
    %47 = arith.minimumf %43, %46 : vector<8x32xf32>
    %48 = math.exp %47 : vector<8x32xf32>
    %cst_30 = arith.constant 1.000000e+00 : f32
    %49 = vector.broadcast %cst_30 : f32 to vector<8x32xf32>
    %50 = arith.subf %48, %49 : vector<8x32xf32>
    %51 = arith.select %45, %43, %50 : vector<8x32xi1>, vector<8x32xf32>
    %c0_31 = arith.constant 0 : index
    %c0_32 = arith.constant 0 : index
    %52 = vector.load %arg9[%c0_31, %c0_32] : memref<32x32xf32, #tpu.memory_space<vmem>>, vector<32x32xf32>
    %cst_33 = arith.constant dense<0.000000e+00> : vector<8x32xf32>
    %53 = tpu.matmul %51, %52, %cst_33 {dimension_numbers = #tpu.dot_dimension_numbers<[1], [0], [0], [1], [0, 0, 1, 1], [], []>} : vector<8x32xf32>, vector<32x32xf32>, vector<8x32xf32> -> vector<8x32xf32>
    %c0_34 = arith.constant 0 : index
    %c0_35 = arith.constant 0 : index
    %54 = vector.load %arg12[%c0_34, %c0_35] : memref<32x32xf32, #tpu.memory_space<vmem>>, vector<32x32xf32>
    %cst_36 = arith.constant dense<0.000000e+00> : vector<8x32xf32>
    %55 = tpu.matmul %1, %54, %cst_36 {dimension_numbers = #tpu.dot_dimension_numbers<[1], [0], [0], [1], [0, 0, 1, 1], [], []>} : vector<8x32xf32>, vector<32x32xf32>, vector<8x32xf32> -> vector<8x32xf32>
    %56 = arith.addf %53, %55 : vector<8x32xf32>
    %c0_37 = arith.constant 0 : index
    %c0_38 = arith.constant 0 : index
    %57 = vector.load %arg15[%c0_37, %c0_38] : memref<1x32xf32, #tpu.memory_space<vmem>>, vector<1x32xf32>
    %58 = vector.broadcast %57 : vector<1x32xf32> to vector<8x32xf32>
    %59 = arith.addf %56, %58 : vector<8x32xf32>
    %60 = arith.negf %59 : vector<8x32xf32>
    %61 = math.exp %60 : vector<8x32xf32>
    %cst_39 = arith.constant 1.000000e+00 : f32
    %62 = vector.broadcast %cst_39 : f32 to vector<8x32xf32>
    %63 = arith.addf %62, %61 : vector<8x32xf32>
    %64 = arith.divf %62, %63 : vector<8x32xf32>
    %c0_40 = arith.constant 0 : index
    %c0_41 = arith.constant 0 : index
    %65 = vector.load %arg10[%c0_40, %c0_41] : memref<32x32xf32, #tpu.memory_space<vmem>>, vector<32x32xf32>
    %cst_42 = arith.constant dense<0.000000e+00> : vector<8x32xf32>
    %66 = tpu.matmul %51, %65, %cst_42 {dimension_numbers = #tpu.dot_dimension_numbers<[1], [0], [0], [1], [0, 0, 1, 1], [], []>} : vector<8x32xf32>, vector<32x32xf32>, vector<8x32xf32> -> vector<8x32xf32>
    %c0_43 = arith.constant 0 : index
    %c0_44 = arith.constant 0 : index
    %67 = vector.load %arg13[%c0_43, %c0_44] : memref<32x32xf32, #tpu.memory_space<vmem>>, vector<32x32xf32>
    %cst_45 = arith.constant dense<0.000000e+00> : vector<8x32xf32>
    %68 = tpu.matmul %1, %67, %cst_45 {dimension_numbers = #tpu.dot_dimension_numbers<[1], [0], [0], [1], [0, 0, 1, 1], [], []>} : vector<8x32xf32>, vector<32x32xf32>, vector<8x32xf32> -> vector<8x32xf32>
    %69 = arith.addf %66, %68 : vector<8x32xf32>
    %c0_46 = arith.constant 0 : index
    %c0_47 = arith.constant 0 : index
    %70 = vector.load %arg16[%c0_46, %c0_47] : memref<1x32xf32, #tpu.memory_space<vmem>>, vector<1x32xf32>
    %71 = vector.broadcast %70 : vector<1x32xf32> to vector<8x32xf32>
    %72 = arith.addf %69, %71 : vector<8x32xf32>
    %73 = arith.negf %72 : vector<8x32xf32>
    %74 = math.exp %73 : vector<8x32xf32>
    %cst_48 = arith.constant 1.000000e+00 : f32
    %75 = vector.broadcast %cst_48 : f32 to vector<8x32xf32>
    %76 = arith.addf %75, %74 : vector<8x32xf32>
    %77 = arith.divf %75, %76 : vector<8x32xf32>
    %c0_49 = arith.constant 0 : index
    %c0_50 = arith.constant 0 : index
    %78 = vector.load %arg11[%c0_49, %c0_50] : memref<32x32xf32, #tpu.memory_space<vmem>>, vector<32x32xf32>
    %cst_51 = arith.constant dense<0.000000e+00> : vector<8x32xf32>
    %79 = tpu.matmul %51, %78, %cst_51 {dimension_numbers = #tpu.dot_dimension_numbers<[1], [0], [0], [1], [0, 0, 1, 1], [], []>} : vector<8x32xf32>, vector<32x32xf32>, vector<8x32xf32> -> vector<8x32xf32>
    %c0_52 = arith.constant 0 : index
    %c0_53 = arith.constant 0 : index
    %80 = vector.load %arg17[%c0_52, %c0_53] : memref<1x32xf32, #tpu.memory_space<vmem>>, vector<1x32xf32>
    %81 = vector.broadcast %80 : vector<1x32xf32> to vector<8x32xf32>
    %82 = arith.addf %79, %81 : vector<8x32xf32>
    %c0_54 = arith.constant 0 : index
    %c0_55 = arith.constant 0 : index
    %83 = vector.load %arg14[%c0_54, %c0_55] : memref<32x32xf32, #tpu.memory_space<vmem>>, vector<32x32xf32>
    %cst_56 = arith.constant dense<0.000000e+00> : vector<8x32xf32>
    %84 = tpu.matmul %1, %83, %cst_56 {dimension_numbers = #tpu.dot_dimension_numbers<[1], [0], [0], [1], [0, 0, 1, 1], [], []>} : vector<8x32xf32>, vector<32x32xf32>, vector<8x32xf32> -> vector<8x32xf32>
    %c0_57 = arith.constant 0 : index
    %c0_58 = arith.constant 0 : index
    %85 = vector.load %arg18[%c0_57, %c0_58] : memref<1x32xf32, #tpu.memory_space<vmem>>, vector<1x32xf32>
    %86 = vector.broadcast %85 : vector<1x32xf32> to vector<8x32xf32>
    %87 = arith.addf %84, %86 : vector<8x32xf32>
    %88 = arith.mulf %64, %87 : vector<8x32xf32>
    %89 = arith.addf %82, %88 : vector<8x32xf32>
    %90 = math.tanh %89 : vector<8x32xf32>
    %cst_59 = arith.constant 1.000000e+00 : f32
    %91 = vector.broadcast %cst_59 : f32 to vector<8x32xf32>
    %92 = arith.subf %91, %77 : vector<8x32xf32>
    %93 = arith.mulf %92, %90 : vector<8x32xf32>
    %94 = arith.mulf %77, %1 : vector<8x32xf32>
    %95 = arith.addf %93, %94 : vector<8x32xf32>
    %cst_60 = arith.constant 0.000000e+00 : f32
    %96 = vector.broadcast %cst_60 : f32 to vector<8x32xf32>
    %97 = arith.maximumf %95, %96 : vector<8x32xf32>
    %c0_61 = arith.constant 0 : index
    %c0_62 = arith.constant 0 : index
    %c0_63 = arith.constant 0 : index
    %98 = vector.load %arg19[%c0_61, %c0_62, %c0_63] : memref<1x8x32xf32, #tpu.memory_space<vmem>>, vector<1x8x32xf32>
    %99 = vector.shape_cast %98 : vector<1x8x32xf32> to vector<8x32xf32>
    %100 = vector.shape_cast %97 : vector<8x32xf32> to vector<1x8x32xf32>
    tpu.vector_store %arg19[%c0_61, %c0_62, %c0_63], %100 {strides = array<i32>} : memref<1x8x32xf32, #tpu.memory_space<vmem>>, vector<1x8x32xf32>,
    %cst_64 = arith.constant dense<0.000000e+00> : vector<1x32xf32>
    %101 = tpu.matmul %5, %97, %cst_64 {dimension_numbers = #tpu.dot_dimension_numbers<[1], [0], [0], [1], [0, 0, 1, 1], [], []>} : vector<1x8xf32>, vector<8x32xf32>, vector<1x32xf32> -> vector<1x32xf32>
    %c0_65 = arith.constant 0 : index
    %c0_66 = arith.constant 0 : index
    %c0_67 = arith.constant 0 : index
    %102 = vector.load %arg20[%c0_65, %c0_66, %c0_67] : memref<1x1x32xf32, #tpu.memory_space<vmem>>, vector<1x1x32xf32>
    %103 = vector.shape_cast %102 : vector<1x1x32xf32> to vector<1x32xf32>
    %104 = vector.shape_cast %101 : vector<1x32xf32> to vector<1x1x32xf32>
    tpu.vector_store %arg20[%c0_65, %c0_66, %c0_67], %104 {strides = array<i32>} : memref<1x1x32xf32, #tpu.memory_space<vmem>>, vector<1x1x32xf32>,
    return
  }
  func.func @transform_0(%arg0: i32) -> (i32, i32, i32) {
    %c0_i32 = arith.constant 0 : i32
    %c0_i32_0 = arith.constant 0 : i32
    %c0_i32_1 = arith.constant 0 : i32
    return %arg0, %c0_i32, %c0_i32_0 : i32, i32, i32
  }
  func.func @transform_1(%arg0: i32) -> (i32, i32, i32) {
    %c0_i32 = arith.constant 0 : i32
    %c0_i32_0 = arith.constant 0 : i32
    %c0_i32_1 = arith.constant 0 : i32
    return %arg0, %c0_i32, %c0_i32_0 : i32, i32, i32
  }
  func.func @transform_2(%arg0: i32) -> (i32, i32, i32) {
    %c0_i32 = arith.constant 0 : i32
    %c0_i32_0 = arith.constant 0 : i32
    %c0_i32_1 = arith.constant 0 : i32
    return %arg0, %c0_i32, %c0_i32_0 : i32, i32, i32
  }
  func.func @transform_3(%arg0: i32) -> (i32, i32) {
    %c0_i32 = arith.constant 0 : i32
    %c0_i32_0 = arith.constant 0 : i32
    %c0_i32_1 = arith.constant 0 : i32
    return %c0_i32, %c0_i32_0 : i32, i32
  }
  func.func @transform_4(%arg0: i32) -> (i32, i32) {
    %c0_i32 = arith.constant 0 : i32
    %c0_i32_0 = arith.constant 0 : i32
    %c0_i32_1 = arith.constant 0 : i32
    return %c0_i32, %c0_i32_0 : i32, i32
  }
  func.func @transform_5(%arg0: i32) -> (i32, i32) {
    %c0_i32 = arith.constant 0 : i32
    %c0_i32_0 = arith.constant 0 : i32
    %c0_i32_1 = arith.constant 0 : i32
    return %c0_i32, %c0_i32_0 : i32, i32
  }
  func.func @transform_6(%arg0: i32) -> (i32, i32) {
    %c0_i32 = arith.constant 0 : i32
    %c0_i32_0 = arith.constant 0 : i32
    %c0_i32_1 = arith.constant 0 : i32
    return %c0_i32, %c0_i32_0 : i32, i32
  }
  func.func @transform_7(%arg0: i32) -> (i32, i32) {
    %c0_i32 = arith.constant 0 : i32
    %c0_i32_0 = arith.constant 0 : i32
    %c0_i32_1 = arith.constant 0 : i32
    return %c0_i32, %c0_i32_0 : i32, i32
  }
  func.func @transform_8(%arg0: i32) -> (i32, i32) {
    %c0_i32 = arith.constant 0 : i32
    %c0_i32_0 = arith.constant 0 : i32
    %c0_i32_1 = arith.constant 0 : i32
    return %c0_i32, %c0_i32_0 : i32, i32
  }
  func.func @transform_9(%arg0: i32) -> (i32, i32) {
    %c0_i32 = arith.constant 0 : i32
    %c0_i32_0 = arith.constant 0 : i32
    %c0_i32_1 = arith.constant 0 : i32
    return %c0_i32, %c0_i32_0 : i32, i32
  }
  func.func @transform_10(%arg0: i32) -> (i32, i32) {
    %c0_i32 = arith.constant 0 : i32
    %c0_i32_0 = arith.constant 0 : i32
    %c0_i32_1 = arith.constant 0 : i32
    return %c0_i32, %c0_i32_0 : i32, i32
  }
  func.func @transform_11(%arg0: i32) -> (i32, i32) {
    %c0_i32 = arith.constant 0 : i32
    %c0_i32_0 = arith.constant 0 : i32
    %c0_i32_1 = arith.constant 0 : i32
    return %c0_i32, %c0_i32_0 : i32, i32
  }
  func.func @transform_12(%arg0: i32) -> (i32, i32) {
    %c0_i32 = arith.constant 0 : i32
    %c0_i32_0 = arith.constant 0 : i32
    %c0_i32_1 = arith.constant 0 : i32
    return %c0_i32, %c0_i32_0 : i32, i32
  }
  func.func @transform_13(%arg0: i32) -> (i32, i32) {
    %c0_i32 = arith.constant 0 : i32
    %c0_i32_0 = arith.constant 0 : i32
    %c0_i32_1 = arith.constant 0 : i32
    return %c0_i32, %c0_i32_0 : i32, i32
  }
  func.func @transform_14(%arg0: i32) -> (i32, i32) {
    %c0_i32 = arith.constant 0 : i32
    %c0_i32_0 = arith.constant 0 : i32
    %c0_i32_1 = arith.constant 0 : i32
    return %c0_i32, %c0_i32_0 : i32, i32
  }
  func.func @transform_15(%arg0: i32) -> (i32, i32) {
    %c0_i32 = arith.constant 0 : i32
    %c0_i32_0 = arith.constant 0 : i32
    %c0_i32_1 = arith.constant 0 : i32
    return %c0_i32, %c0_i32_0 : i32, i32
  }
  func.func @transform_16(%arg0: i32) -> (i32, i32) {
    %c0_i32 = arith.constant 0 : i32
    %c0_i32_0 = arith.constant 0 : i32
    %c0_i32_1 = arith.constant 0 : i32
    return %c0_i32, %c0_i32_0 : i32, i32
  }
  func.func @transform_17(%arg0: i32) -> (i32, i32) {
    %c0_i32 = arith.constant 0 : i32
    %c0_i32_0 = arith.constant 0 : i32
    %c0_i32_1 = arith.constant 0 : i32
    return %c0_i32, %c0_i32_0 : i32, i32
  }
  func.func @transform_18(%arg0: i32) -> (i32, i32, i32) {
    %c0_i32 = arith.constant 0 : i32
    %c0_i32_0 = arith.constant 0 : i32
    %c0_i32_1 = arith.constant 0 : i32
    return %arg0, %c0_i32, %c0_i32_0 : i32, i32, i32
  }
  func.func @transform_19(%arg0: i32) -> (i32, i32, i32) {
    %c0_i32 = arith.constant 0 : i32
    %c0_i32_0 = arith.constant 0 : i32
    %c0_i32_1 = arith.constant 0 : i32
    return %arg0, %c0_i32, %c0_i32_0 : i32, i32, i32
  }
}

module attributes {stable_mosaic.version = 11 : i64} {
  func.func @_gnn_layer_kernel(%arg0: i32, %arg1: memref<1x8x32xf32, #tpu.memory_space<vmem>>, %arg2: memref<1x8x8xf32, #tpu.memory_space<vmem>>, %arg3: memref<1x1x8xf32, #tpu.memory_space<vmem>>, %arg4: memref<32x1xf32, #tpu.memory_space<vmem>>, %arg5: memref<1x32xf32, #tpu.memory_space<vmem>>, %arg6: memref<1x1xf32, #tpu.memory_space<vmem>>, %arg7: memref<32x32xf32, #tpu.memory_space<vmem>>, %arg8: memref<1x32xf32, #tpu.memory_space<vmem>>, %arg9: memref<32x32xf32, #tpu.memory_space<vmem>>, %arg10: memref<32x32xf32, #tpu.memory_space<vmem>>, %arg11: memref<32x32xf32, #tpu.memory_space<vmem>>, %arg12: memref<32x32xf32, #tpu.memory_space<vmem>>, %arg13: memref<32x32xf32, #tpu.memory_space<vmem>>, %arg14: memref<32x32xf32, #tpu.memory_space<vmem>>, %arg15: memref<1x32xf32, #tpu.memory_space<vmem>>, %arg16: memref<1x32xf32, #tpu.memory_space<vmem>>, %arg17: memref<1x32xf32, #tpu.memory_space<vmem>>, %arg18: memref<1x32xf32, #tpu.memory_space<vmem>>, %arg19: memref<1x8x32xf32, #tpu.memory_space<vmem>>, %arg20: memref<1x1x32xf32, #tpu.memory_space<vmem>>) attributes {dimension_semantics = [#tpu.dimension_semantics<parallel>], iteration_bounds = array<i64: 2>, scalar_prefetch = 0 : i64, scratch_operands = 0 : i64, tpu.core_type = #tpu.core_type<tc>, window_params = [{transform_indices = @transform_0, window_bounds = array<i64: 1, 8, 32>}, {transform_indices = @transform_1, window_bounds = array<i64: 1, 8, 8>}, {transform_indices = @transform_2, window_bounds = array<i64: 1, 1, 8>}, {pipeline_mode = #tpu.pipeline_mode<synchronous>, transform_indices = @transform_3, window_bounds = array<i64: 32, 1>}, {pipeline_mode = #tpu.pipeline_mode<synchronous>, transform_indices = @transform_4, window_bounds = array<i64: 1, 32>}, {pipeline_mode = #tpu.pipeline_mode<synchronous>, transform_indices = @transform_5, window_bounds = array<i64: 1, 1>}, {pipeline_mode = #tpu.pipeline_mode<synchronous>, transform_indices = @transform_6, window_bounds = array<i64: 32, 32>}, {pipeline_mode = #tpu.pipeline_mode<synchronous>, transform_indices = @transform_7, window_bounds = array<i64: 1, 32>}, {pipeline_mode = #tpu.pipeline_mode<synchronous>, transform_indices = @transform_8, window_bounds = array<i64: 32, 32>}, {pipeline_mode = #tpu.pipeline_mode<synchronous>, transform_indices = @transform_9, window_bounds = array<i64: 32, 32>}, {pipeline_mode = #tpu.pipeline_mode<synchronous>, transform_indices = @transform_10, window_bounds = array<i64: 32, 32>}, {pipeline_mode = #tpu.pipeline_mode<synchronous>, transform_indices = @transform_11, window_bounds = array<i64: 32, 32>}, {pipeline_mode = #tpu.pipeline_mode<synchronous>, transform_indices = @transform_12, window_bounds = array<i64: 32, 32>}, {pipeline_mode = #tpu.pipeline_mode<synchronous>, transform_indices = @transform_13, window_bounds = array<i64: 32, 32>}, {pipeline_mode = #tpu.pipeline_mode<synchronous>, transform_indices = @transform_14, window_bounds = array<i64: 1, 32>}, {pipeline_mode = #tpu.pipeline_mode<synchronous>, transform_indices = @transform_15, window_bounds = array<i64: 1, 32>}, {pipeline_mode = #tpu.pipeline_mode<synchronous>, transform_indices = @transform_16, window_bounds = array<i64: 1, 32>}, {pipeline_mode = #tpu.pipeline_mode<synchronous>, transform_indices = @transform_17, window_bounds = array<i64: 1, 32>}, {transform_indices = @transform_18, window_bounds = array<i64: 1, 8, 32>}, {transform_indices = @transform_19, window_bounds = array<i64: 1, 1, 32>}]} {
    %c0 = arith.constant 0 : index
    %c0_0 = arith.constant 0 : index
    %c0_1 = arith.constant 0 : index
    %0 = vector.load %arg1[%c0, %c0_0, %c0_1] : memref<1x8x32xf32, #tpu.memory_space<vmem>>, vector<1x8x32xf32>
    %1 = vector.shape_cast %0 : vector<1x8x32xf32> to vector<8x32xf32>
    %c0_2 = arith.constant 0 : index
    %c0_3 = arith.constant 0 : index
    %c0_4 = arith.constant 0 : index
    %2 = vector.load %arg2[%c0_2, %c0_3, %c0_4] : memref<1x8x8xf32, #tpu.memory_space<vmem>>, vector<1x8x8xf32>
    %3 = vector.shape_cast %2 : vector<1x8x8xf32> to vector<8x8xf32>
    %c0_5 = arith.constant 0 : index
    %c0_6 = arith.constant 0 : index
    %c0_7 = arith.constant 0 : index
    %4 = vector.load %arg3[%c0_5, %c0_6, %c0_7] : memref<1x1x8xf32, #tpu.memory_space<vmem>>, vector<1x1x8xf32>
    %5 = vector.shape_cast %4 : vector<1x1x8xf32> to vector<1x8xf32>
    %c0_8 = arith.constant 0 : index
    %c0_9 = arith.constant 0 : index
    %6 = vector.load %arg4[%c0_8, %c0_9] : memref<32x1xf32, #tpu.memory_space<vmem>>, vector<32x1xf32>
    %cst = arith.constant dense<0.000000e+00> : vector<8x1xf32>
    %7 = tpu.matmul %1, %6, %cst {dimension_numbers = #tpu.dot_dimension_numbers<[1], [0], [0], [1], [0, 0, 1, 1], [], []>} : vector<8x32xf32>, vector<32x1xf32>, vector<8x1xf32> -> vector<8x1xf32>
    %c0_10 = arith.constant 0 : index
    %c0_11 = arith.constant 0 : index
    %8 = vector.load %arg5[%c0_10, %c0_11] : memref<1x32xf32, #tpu.memory_space<vmem>>, vector<1x32xf32>
    %cst_12 = arith.constant dense<0.000000e+00> : vector<1x8xf32>
    %9 = tpu.matmul %8, %1, %cst_12 {dimension_numbers = #tpu.dot_dimension_numbers<[1], [1], [0], [0], [0, 0, 1, 0], [], []>} : vector<1x32xf32>, vector<8x32xf32>, vector<1x8xf32> -> vector<1x8xf32>
    %10 = vector.broadcast %7 : vector<8x1xf32> to vector<8x8xf32>
    %11 = vector.broadcast %9 : vector<1x8xf32> to vector<8x8xf32>
    %12 = arith.addf %10, %11 : vector<8x8xf32>
    %c0_13 = arith.constant 0 : index
    %c0_14 = arith.constant 0 : index
    %13 = vector.load %arg6[%c0_13, %c0_14] : memref<1x1xf32, #tpu.memory_space<vmem>>, vector<1x1xf32>
    %14 = vector.broadcast %13 : vector<1x1xf32> to vector<8x8xf32>
    %15 = arith.addf %12, %14 : vector<8x8xf32>
    %cst_15 = arith.constant 0.000000e+00 : f32
    %16 = vector.broadcast %cst_15 : f32 to vector<8x8xf32>
    %17 = arith.cmpf ogt, %15, %16 : vector<8x8xf32>
    %cst_16 = arith.constant 0.00999999977 : f32
    %18 = vector.broadcast %cst_16 : f32 to vector<8x8xf32>
    %19 = arith.mulf %18, %15 : vector<8x8xf32>
    %20 = arith.select %17, %15, %19 : vector<8x8xi1>, vector<8x8xf32>
    %cst_17 = arith.constant 0.000000e+00 : f32
    %21 = vector.broadcast %cst_17 : f32 to vector<8x8xf32>
    %22 = arith.cmpf ogt, %3, %21 : vector<8x8xf32>
    %cst_18 = arith.constant -1.000000e+30 : f32
    %23 = vector.broadcast %cst_18 : f32 to vector<8x8xf32>
    %24 = arith.select %22, %20, %23 : vector<8x8xi1>, vector<8x8xf32>
    %cst_19 = arith.constant dense<0xFF800000> : vector<8xf32>
    %25 = vector.multi_reduction <maximumf>, %24, %cst_19 [1] : vector<8x8xf32> to vector<8xf32>
    %26 = vector.shape_cast %25 : vector<8xf32> to vector<8x1xf32>
    %27 = vector.broadcast %26 : vector<8x1xf32> to vector<8x8xf32>
    %28 = arith.subf %24, %27 : vector<8x8xf32>
    %29 = math.exp %28 : vector<8x8xf32>
    %30 = arith.mulf %29, %3 : vector<8x8xf32>
    %cst_20 = arith.constant dense<0.000000e+00> : vector<8xf32>
    %31 = vector.multi_reduction <add>, %30, %cst_20 [1] : vector<8x8xf32> to vector<8xf32>
    %32 = vector.shape_cast %31 : vector<8xf32> to vector<8x1xf32>
    %cst_21 = arith.constant 9.99999968E-21 : f32
    %33 = vector.broadcast %cst_21 : f32 to vector<8x1xf32>
    %34 = arith.maximumf %32, %33 : vector<8x1xf32>
    %35 = tpu.reciprocal %34 {approx = true} : vector<8x1xf32> -> vector<8x1xf32>
    %36 = vector.broadcast %35 : vector<8x1xf32> to vector<8x8xf32>
    %37 = arith.mulf %30, %36 : vector<8x8xf32>
    %c0_22 = arith.constant 0 : index
    %c0_23 = arith.constant 0 : index
    %38 = vector.load %arg7[%c0_22, %c0_23] : memref<32x32xf32, #tpu.memory_space<vmem>>, vector<32x32xf32>
    %cst_24 = arith.constant dense<0.000000e+00> : vector<8x32xf32>
    %39 = tpu.matmul %1, %38, %cst_24 {dimension_numbers = #tpu.dot_dimension_numbers<[1], [0], [0], [1], [0, 0, 1, 1], [], []>} : vector<8x32xf32>, vector<32x32xf32>, vector<8x32xf32> -> vector<8x32xf32>
    %c0_25 = arith.constant 0 : index
    %c0_26 = arith.constant 0 : index
    %40 = vector.load %arg8[%c0_25, %c0_26] : memref<1x32xf32, #tpu.memory_space<vmem>>, vector<1x32xf32>
    %41 = vector.broadcast %40 : vector<1x32xf32> to vector<8x32xf32>
    %42 = arith.addf %39, %41 : vector<8x32xf32>
    %cst_27 = arith.constant dense<0.000000e+00> : vector<8x32xf32>
    %43 = tpu.matmul %37, %42, %cst_27 {dimension_numbers = #tpu.dot_dimension_numbers<[1], [0], [0], [1], [0, 0, 1, 1], [], []>} : vector<8x8xf32>, vector<8x32xf32>, vector<8x32xf32> -> vector<8x32xf32>
    %cst_28 = arith.constant 0.000000e+00 : f32
    %44 = vector.broadcast %cst_28 : f32 to vector<8x32xf32>
    %45 = arith.cmpf ogt, %43, %44 : vector<8x32xf32>
    %cst_29 = arith.constant 0.000000e+00 : f32
    %46 = vector.broadcast %cst_29 : f32 to vector<8x32xf32>
    %47 = arith.minimumf %43, %46 : vector<8x32xf32>
    %48 = math.exp %47 : vector<8x32xf32>
    %cst_30 = arith.constant 1.000000e+00 : f32
    %49 = vector.broadcast %cst_30 : f32 to vector<8x32xf32>
    %50 = arith.subf %48, %49 : vector<8x32xf32>
    %51 = arith.select %45, %43, %50 : vector<8x32xi1>, vector<8x32xf32>
    %c0_31 = arith.constant 0 : index
    %c0_32 = arith.constant 0 : index
    %52 = vector.load %arg9[%c0_31, %c0_32] : memref<32x32xf32, #tpu.memory_space<vmem>>, vector<32x32xf32>
    %cst_33 = arith.constant dense<0.000000e+00> : vector<8x32xf32>
    %53 = tpu.matmul %51, %52, %cst_33 {dimension_numbers = #tpu.dot_dimension_numbers<[1], [0], [0], [1], [0, 0, 1, 1], [], []>} : vector<8x32xf32>, vector<32x32xf32>, vector<8x32xf32> -> vector<8x32xf32>
    %c0_34 = arith.constant 0 : index
    %c0_35 = arith.constant 0 : index
    %54 = vector.load %arg12[%c0_34, %c0_35] : memref<32x32xf32, #tpu.memory_space<vmem>>, vector<32x32xf32>
    %cst_36 = arith.constant dense<0.000000e+00> : vector<8x32xf32>
    %55 = tpu.matmul %1, %54, %cst_36 {dimension_numbers = #tpu.dot_dimension_numbers<[1], [0], [0], [1], [0, 0, 1, 1], [], []>} : vector<8x32xf32>, vector<32x32xf32>, vector<8x32xf32> -> vector<8x32xf32>
    %56 = arith.addf %53, %55 : vector<8x32xf32>
    %c0_37 = arith.constant 0 : index
    %c0_38 = arith.constant 0 : index
    %57 = vector.load %arg15[%c0_37, %c0_38] : memref<1x32xf32, #tpu.memory_space<vmem>>, vector<1x32xf32>
    %58 = vector.broadcast %57 : vector<1x32xf32> to vector<8x32xf32>
    %59 = arith.addf %56, %58 : vector<8x32xf32>
    %60 = arith.negf %59 : vector<8x32xf32>
    %61 = math.exp %60 : vector<8x32xf32>
    %cst_39 = arith.constant 1.000000e+00 : f32
    %62 = vector.broadcast %cst_39 : f32 to vector<8x32xf32>
    %63 = arith.addf %62, %61 : vector<8x32xf32>
    %64 = arith.divf %62, %63 : vector<8x32xf32>
    %c0_40 = arith.constant 0 : index
    %c0_41 = arith.constant 0 : index
    %65 = vector.load %arg10[%c0_40, %c0_41] : memref<32x32xf32, #tpu.memory_space<vmem>>, vector<32x32xf32>
    %cst_42 = arith.constant dense<0.000000e+00> : vector<8x32xf32>
    %66 = tpu.matmul %51, %65, %cst_42 {dimension_numbers = #tpu.dot_dimension_numbers<[1], [0], [0], [1], [0, 0, 1, 1], [], []>} : vector<8x32xf32>, vector<32x32xf32>, vector<8x32xf32> -> vector<8x32xf32>
    %c0_43 = arith.constant 0 : index
    %c0_44 = arith.constant 0 : index
    %67 = vector.load %arg13[%c0_43, %c0_44] : memref<32x32xf32, #tpu.memory_space<vmem>>, vector<32x32xf32>
    %cst_45 = arith.constant dense<0.000000e+00> : vector<8x32xf32>
    %68 = tpu.matmul %1, %67, %cst_45 {dimension_numbers = #tpu.dot_dimension_numbers<[1], [0], [0], [1], [0, 0, 1, 1], [], []>} : vector<8x32xf32>, vector<32x32xf32>, vector<8x32xf32> -> vector<8x32xf32>
    %69 = arith.addf %66, %68 : vector<8x32xf32>
    %c0_46 = arith.constant 0 : index
    %c0_47 = arith.constant 0 : index
    %70 = vector.load %arg16[%c0_46, %c0_47] : memref<1x32xf32, #tpu.memory_space<vmem>>, vector<1x32xf32>
    %71 = vector.broadcast %70 : vector<1x32xf32> to vector<8x32xf32>
    %72 = arith.addf %69, %71 : vector<8x32xf32>
    %73 = arith.negf %72 : vector<8x32xf32>
    %74 = math.exp %73 : vector<8x32xf32>
    %cst_48 = arith.constant 1.000000e+00 : f32
    %75 = vector.broadcast %cst_48 : f32 to vector<8x32xf32>
    %76 = arith.addf %75, %74 : vector<8x32xf32>
    %77 = arith.divf %75, %76 : vector<8x32xf32>
    %c0_49 = arith.constant 0 : index
    %c0_50 = arith.constant 0 : index
    %78 = vector.load %arg11[%c0_49, %c0_50] : memref<32x32xf32, #tpu.memory_space<vmem>>, vector<32x32xf32>
    %cst_51 = arith.constant dense<0.000000e+00> : vector<8x32xf32>
    %79 = tpu.matmul %51, %78, %cst_51 {dimension_numbers = #tpu.dot_dimension_numbers<[1], [0], [0], [1], [0, 0, 1, 1], [], []>} : vector<8x32xf32>, vector<32x32xf32>, vector<8x32xf32> -> vector<8x32xf32>
    %c0_52 = arith.constant 0 : index
    %c0_53 = arith.constant 0 : index
    %80 = vector.load %arg17[%c0_52, %c0_53] : memref<1x32xf32, #tpu.memory_space<vmem>>, vector<1x32xf32>
    %81 = vector.broadcast %80 : vector<1x32xf32> to vector<8x32xf32>
    %82 = arith.addf %79, %81 : vector<8x32xf32>
    %c0_54 = arith.constant 0 : index
    %c0_55 = arith.constant 0 : index
    %83 = vector.load %arg14[%c0_54, %c0_55] : memref<32x32xf32, #tpu.memory_space<vmem>>, vector<32x32xf32>
    %cst_56 = arith.constant dense<0.000000e+00> : vector<8x32xf32>
    %84 = tpu.matmul %1, %83, %cst_56 {dimension_numbers = #tpu.dot_dimension_numbers<[1], [0], [0], [1], [0, 0, 1, 1], [], []>} : vector<8x32xf32>, vector<32x32xf32>, vector<8x32xf32> -> vector<8x32xf32>
    %c0_57 = arith.constant 0 : index
    %c0_58 = arith.constant 0 : index
    %85 = vector.load %arg18[%c0_57, %c0_58] : memref<1x32xf32, #tpu.memory_space<vmem>>, vector<1x32xf32>
    %86 = vector.broadcast %85 : vector<1x32xf32> to vector<8x32xf32>
    %87 = arith.addf %84, %86 : vector<8x32xf32>
    %88 = arith.mulf %64, %87 : vector<8x32xf32>
    %89 = arith.addf %82, %88 : vector<8x32xf32>
    %90 = math.tanh %89 : vector<8x32xf32>
    %cst_59 = arith.constant 1.000000e+00 : f32
    %91 = vector.broadcast %cst_59 : f32 to vector<8x32xf32>
    %92 = arith.subf %91, %77 : vector<8x32xf32>
    %93 = arith.mulf %92, %90 : vector<8x32xf32>
    %94 = arith.mulf %77, %1 : vector<8x32xf32>
    %95 = arith.addf %93, %94 : vector<8x32xf32>
    %cst_60 = arith.constant 0.000000e+00 : f32
    %96 = vector.broadcast %cst_60 : f32 to vector<8x32xf32>
    %97 = arith.maximumf %95, %96 : vector<8x32xf32>
    %c0_61 = arith.constant 0 : index
    %c0_62 = arith.constant 0 : index
    %c0_63 = arith.constant 0 : index
    %98 = vector.load %arg19[%c0_61, %c0_62, %c0_63] : memref<1x8x32xf32, #tpu.memory_space<vmem>>, vector<1x8x32xf32>
    %99 = vector.shape_cast %98 : vector<1x8x32xf32> to vector<8x32xf32>
    %100 = vector.shape_cast %97 : vector<8x32xf32> to vector<1x8x32xf32>
    tpu.vector_store %arg19[%c0_61, %c0_62, %c0_63], %100 {strides = array<i32>} : memref<1x8x32xf32, #tpu.memory_space<vmem>>, vector<1x8x32xf32>,
    %cst_64 = arith.constant dense<0.000000e+00> : vector<1x32xf32>
    %101 = tpu.matmul %5, %97, %cst_64 {dimension_numbers = #tpu.dot_dimension_numbers<[1], [0], [0], [1], [0, 0, 1, 1], [], []>} : vector<1x8xf32>, vector<8x32xf32>, vector<1x32xf32> -> vector<1x32xf32>
    %c0_65 = arith.constant 0 : index
    %c0_66 = arith.constant 0 : index
    %c0_67 = arith.constant 0 : index
    %102 = vector.load %arg20[%c0_65, %c0_66, %c0_67] : memref<1x1x32xf32, #tpu.memory_space<vmem>>, vector<1x1x32xf32>
    %103 = vector.shape_cast %102 : vector<1x1x32xf32> to vector<1x32xf32>
    %104 = vector.shape_cast %101 : vector<1x32xf32> to vector<1x1x32xf32>
    tpu.vector_store %arg20[%c0_65, %c0_66, %c0_67], %104 {strides = array<i32>} : memref<1x1x32xf32, #tpu.memory_space<vmem>>, vector<1x1x32xf32>,
    return
  }
  func.func @transform_0(%arg0: i32) -> (i32, i32, i32) {
    %c0_i32 = arith.constant 0 : i32
    %c0_i32_0 = arith.constant 0 : i32
    %c0_i32_1 = arith.constant 0 : i32
    return %arg0, %c0_i32, %c0_i32_0 : i32, i32, i32
  }
  func.func @transform_1(%arg0: i32) -> (i32, i32, i32) {
    %c0_i32 = arith.constant 0 : i32
    %c0_i32_0 = arith.constant 0 : i32
    %c0_i32_1 = arith.constant 0 : i32
    return %arg0, %c0_i32, %c0_i32_0 : i32, i32, i32
  }
  func.func @transform_2(%arg0: i32) -> (i32, i32, i32) {
    %c0_i32 = arith.constant 0 : i32
    %c0_i32_0 = arith.constant 0 : i32
    %c0_i32_1 = arith.constant 0 : i32
    return %arg0, %c0_i32, %c0_i32_0 : i32, i32, i32
  }
  func.func @transform_3(%arg0: i32) -> (i32, i32) {
    %c0_i32 = arith.constant 0 : i32
    %c0_i32_0 = arith.constant 0 : i32
    %c0_i32_1 = arith.constant 0 : i32
    return %c0_i32, %c0_i32_0 : i32, i32
  }
  func.func @transform_4(%arg0: i32) -> (i32, i32) {
    %c0_i32 = arith.constant 0 : i32
    %c0_i32_0 = arith.constant 0 : i32
    %c0_i32_1 = arith.constant 0 : i32
    return %c0_i32, %c0_i32_0 : i32, i32
  }
  func.func @transform_5(%arg0: i32) -> (i32, i32) {
    %c0_i32 = arith.constant 0 : i32
    %c0_i32_0 = arith.constant 0 : i32
    %c0_i32_1 = arith.constant 0 : i32
    return %c0_i32, %c0_i32_0 : i32, i32
  }
  func.func @transform_6(%arg0: i32) -> (i32, i32) {
    %c0_i32 = arith.constant 0 : i32
    %c0_i32_0 = arith.constant 0 : i32
    %c0_i32_1 = arith.constant 0 : i32
    return %c0_i32, %c0_i32_0 : i32, i32
  }
  func.func @transform_7(%arg0: i32) -> (i32, i32) {
    %c0_i32 = arith.constant 0 : i32
    %c0_i32_0 = arith.constant 0 : i32
    %c0_i32_1 = arith.constant 0 : i32
    return %c0_i32, %c0_i32_0 : i32, i32
  }
  func.func @transform_8(%arg0: i32) -> (i32, i32) {
    %c0_i32 = arith.constant 0 : i32
    %c0_i32_0 = arith.constant 0 : i32
    %c0_i32_1 = arith.constant 0 : i32
    return %c0_i32, %c0_i32_0 : i32, i32
  }
  func.func @transform_9(%arg0: i32) -> (i32, i32) {
    %c0_i32 = arith.constant 0 : i32
    %c0_i32_0 = arith.constant 0 : i32
    %c0_i32_1 = arith.constant 0 : i32
    return %c0_i32, %c0_i32_0 : i32, i32
  }
  func.func @transform_10(%arg0: i32) -> (i32, i32) {
    %c0_i32 = arith.constant 0 : i32
    %c0_i32_0 = arith.constant 0 : i32
    %c0_i32_1 = arith.constant 0 : i32
    return %c0_i32, %c0_i32_0 : i32, i32
  }
  func.func @transform_11(%arg0: i32) -> (i32, i32) {
    %c0_i32 = arith.constant 0 : i32
    %c0_i32_0 = arith.constant 0 : i32
    %c0_i32_1 = arith.constant 0 : i32
    return %c0_i32, %c0_i32_0 : i32, i32
  }
  func.func @transform_12(%arg0: i32) -> (i32, i32) {
    %c0_i32 = arith.constant 0 : i32
    %c0_i32_0 = arith.constant 0 : i32
    %c0_i32_1 = arith.constant 0 : i32
    return %c0_i32, %c0_i32_0 : i32, i32
  }
  func.func @transform_13(%arg0: i32) -> (i32, i32) {
    %c0_i32 = arith.constant 0 : i32
    %c0_i32_0 = arith.constant 0 : i32
    %c0_i32_1 = arith.constant 0 : i32
    return %c0_i32, %c0_i32_0 : i32, i32
  }
  func.func @transform_14(%arg0: i32) -> (i32, i32) {
    %c0_i32 = arith.constant 0 : i32
    %c0_i32_0 = arith.constant 0 : i32
    %c0_i32_1 = arith.constant 0 : i32
    return %c0_i32, %c0_i32_0 : i32, i32
  }
  func.func @transform_15(%arg0: i32) -> (i32, i32) {
    %c0_i32 = arith.constant 0 : i32
    %c0_i32_0 = arith.constant 0 : i32
    %c0_i32_1 = arith.constant 0 : i32
    return %c0_i32, %c0_i32_0 : i32, i32
  }
  func.func @transform_16(%arg0: i32) -> (i32, i32) {
    %c0_i32 = arith.constant 0 : i32
    %c0_i32_0 = arith.constant 0 : i32
    %c0_i32_1 = arith.constant 0 : i32
    return %c0_i32, %c0_i32_0 : i32, i32
  }
  func.func @transform_17(%arg0: i32) -> (i32, i32) {
    %c0_i32 = arith.constant 0 : i32
    %c0_i32_0 = arith.constant 0 : i32
    %c0_i32_1 = arith.constant 0 : i32
    return %c0_i32, %c0_i32_0 : i32, i32
  }
  func.func @transform_18(%arg0: i32) -> (i32, i32, i32) {
    %c0_i32 = arith.constant 0 : i32
    %c0_i32_0 = arith.constant 0 : i32
    %c0_i32_1 = arith.constant 0 : i32
    return %arg0, %c0_i32, %c0_i32_0 : i32, i32, i32
  }
  func.func @transform_19(%arg0: i32) -> (i32, i32, i32) {
    %c0_i32 = arith.constant 0 : i32
    %c0_i32_0 = arith.constant 0 : i32
    %c0_i32_1 = arith.constant 0 : i32
    return %arg0, %c0_i32, %c0_i32_0 : i32, i32, i32
  }
}

module attributes {stable_mosaic.version = 11 : i64} {
  func.func @_get_context_kernel(%arg0: i32, %arg1: memref<1x8x16xf32, #tpu.memory_space<vmem>>, %arg2: memref<1x64x8xf32, #tpu.memory_space<vmem>>, %arg3: memref<1x8x8xf32, #tpu.memory_space<vmem>>, %arg4: memref<1x1x8xf32, #tpu.memory_space<vmem>>, %arg5: memref<64x8xf32, #tpu.memory_space<vmem>>, %arg6: memref<8x64xf32, #tpu.memory_space<vmem>>, %arg7: memref<8x64xf32, #tpu.memory_space<vmem>>, %arg8: memref<16x32xf32, #tpu.memory_space<vmem>>, %arg9: memref<1x32xf32, #tpu.memory_space<vmem>>, %arg10: memref<16x32xf32, #tpu.memory_space<vmem>>, %arg11: memref<8x32xf32, #tpu.memory_space<vmem>>, %arg12: memref<1x32xf32, #tpu.memory_space<vmem>>, %arg13: memref<32x1xf32, #tpu.memory_space<vmem>>, %arg14: memref<32x1xf32, #tpu.memory_space<vmem>>, %arg15: memref<1x1xf32, #tpu.memory_space<vmem>>, %arg16: memref<32x32xf32, #tpu.memory_space<vmem>>, %arg17: memref<1x32xf32, #tpu.memory_space<vmem>>, %arg18: memref<32x32xf32, #tpu.memory_space<vmem>>, %arg19: memref<32x32xf32, #tpu.memory_space<vmem>>, %arg20: memref<32x32xf32, #tpu.memory_space<vmem>>, %arg21: memref<32x32xf32, #tpu.memory_space<vmem>>, %arg22: memref<32x32xf32, #tpu.memory_space<vmem>>, %arg23: memref<32x32xf32, #tpu.memory_space<vmem>>, %arg24: memref<1x32xf32, #tpu.memory_space<vmem>>, %arg25: memref<1x32xf32, #tpu.memory_space<vmem>>, %arg26: memref<1x32xf32, #tpu.memory_space<vmem>>, %arg27: memref<1x32xf32, #tpu.memory_space<vmem>>, %arg28: memref<1x8x32xf32, #tpu.memory_space<vmem>>, %arg29: memref<1x1x32xf32, #tpu.memory_space<vmem>>) attributes {dimension_semantics = [#tpu.dimension_semantics<parallel>], iteration_bounds = array<i64: 2>, scalar_prefetch = 0 : i64, scratch_operands = 0 : i64, tpu.core_type = #tpu.core_type<tc>, window_params = [{transform_indices = @transform_0, window_bounds = array<i64: 1, 8, 16>}, {transform_indices = @transform_1, window_bounds = array<i64: 1, 64, 8>}, {transform_indices = @transform_2, window_bounds = array<i64: 1, 8, 8>}, {transform_indices = @transform_3, window_bounds = array<i64: 1, 1, 8>}, {pipeline_mode = #tpu.pipeline_mode<synchronous>, transform_indices = @transform_4, window_bounds = array<i64: 64, 8>}, {pipeline_mode = #tpu.pipeline_mode<synchronous>, transform_indices = @transform_5, window_bounds = array<i64: 8, 64>}, {pipeline_mode = #tpu.pipeline_mode<synchronous>, transform_indices = @transform_6, window_bounds = array<i64: 8, 64>}, {pipeline_mode = #tpu.pipeline_mode<synchronous>, transform_indices = @transform_7, window_bounds = array<i64: 16, 32>}, {pipeline_mode = #tpu.pipeline_mode<synchronous>, transform_indices = @transform_8, window_bounds = array<i64: 1, 32>}, {pipeline_mode = #tpu.pipeline_mode<synchronous>, transform_indices = @transform_9, window_bounds = array<i64: 16, 32>}, {pipeline_mode = #tpu.pipeline_mode<synchronous>, transform_indices = @transform_10, window_bounds = array<i64: 8, 32>}, {pipeline_mode = #tpu.pipeline_mode<synchronous>, transform_indices = @transform_11, window_bounds = array<i64: 1, 32>}, {pipeline_mode = #tpu.pipeline_mode<synchronous>, transform_indices = @transform_12, window_bounds = array<i64: 32, 1>}, {pipeline_mode = #tpu.pipeline_mode<synchronous>, transform_indices = @transform_13, window_bounds = array<i64: 32, 1>}, {pipeline_mode = #tpu.pipeline_mode<synchronous>, transform_indices = @transform_14, window_bounds = array<i64: 1, 1>}, {pipeline_mode = #tpu.pipeline_mode<synchronous>, transform_indices = @transform_15, window_bounds = array<i64: 32, 32>}, {pipeline_mode = #tpu.pipeline_mode<synchronous>, transform_indices = @transform_16, window_bounds = array<i64: 1, 32>}, {pipeline_mode = #tpu.pipeline_mode<synchronous>, transform_indices = @transform_17, window_bounds = array<i64: 32, 32>}, {pipeline_mode = #tpu.pipeline_mode<synchronous>, transform_indices = @transform_18, window_bounds = array<i64: 32, 32>}, {pipeline_mode = #tpu.pipeline_mode<synchronous>, transform_indices = @transform_19, window_bounds = array<i64: 32, 32>}, {pipeline_mode = #tpu.pipeline_mode<synchronous>, transform_indices = @transform_20, window_bounds = array<i64: 32, 32>}, {pipeline_mode = #tpu.pipeline_mode<synchronous>, transform_indices = @transform_21, window_bounds = array<i64: 32, 32>}, {pipeline_mode = #tpu.pipeline_mode<synchronous>, transform_indices = @transform_22, window_bounds = array<i64: 32, 32>}, {pipeline_mode = #tpu.pipeline_mode<synchronous>, transform_indices = @transform_23, window_bounds = array<i64: 1, 32>}, {pipeline_mode = #tpu.pipeline_mode<synchronous>, transform_indices = @transform_24, window_bounds = array<i64: 1, 32>}, {pipeline_mode = #tpu.pipeline_mode<synchronous>, transform_indices = @transform_25, window_bounds = array<i64: 1, 32>}, {pipeline_mode = #tpu.pipeline_mode<synchronous>, transform_indices = @transform_26, window_bounds = array<i64: 1, 32>}, {transform_indices = @transform_27, window_bounds = array<i64: 1, 8, 32>}, {transform_indices = @transform_28, window_bounds = array<i64: 1, 1, 32>}]} {
    %c0 = arith.constant 0 : index
    %c0_0 = arith.constant 0 : index
    %c0_1 = arith.constant 0 : index
    %0 = vector.load %arg1[%c0, %c0_0, %c0_1] : memref<1x8x16xf32, #tpu.memory_space<vmem>>, vector<1x8x16xf32>
    %1 = vector.shape_cast %0 : vector<1x8x16xf32> to vector<8x16xf32>
    %c0_2 = arith.constant 0 : index
    %c0_3 = arith.constant 0 : index
    %c0_4 = arith.constant 0 : index
    %2 = vector.load %arg2[%c0_2, %c0_3, %c0_4] : memref<1x64x8xf32, #tpu.memory_space<vmem>>, vector<1x64x8xf32>
    %3 = vector.shape_cast %2 : vector<1x64x8xf32> to vector<64x8xf32>
    %c0_5 = arith.constant 0 : index
    %c0_6 = arith.constant 0 : index
    %c0_7 = arith.constant 0 : index
    %4 = vector.load %arg3[%c0_5, %c0_6, %c0_7] : memref<1x8x8xf32, #tpu.memory_space<vmem>>, vector<1x8x8xf32>
    %5 = vector.shape_cast %4 : vector<1x8x8xf32> to vector<8x8xf32>
    %c0_8 = arith.constant 0 : index
    %c0_9 = arith.constant 0 : index
    %c0_10 = arith.constant 0 : index
    %6 = vector.load %arg4[%c0_8, %c0_9, %c0_10] : memref<1x1x8xf32, #tpu.memory_space<vmem>>, vector<1x1x8xf32>
    %7 = vector.shape_cast %6 : vector<1x1x8xf32> to vector<1x8xf32>
    %c0_11 = arith.constant 0 : index
    %c0_12 = arith.constant 0 : index
    %8 = vector.load %arg5[%c0_11, %c0_12] : memref<64x8xf32, #tpu.memory_space<vmem>>, vector<64x8xf32>
    %c0_13 = arith.constant 0 : index
    %c0_14 = arith.constant 0 : index
    %9 = vector.load %arg6[%c0_13, %c0_14] : memref<8x64xf32, #tpu.memory_space<vmem>>, vector<8x64xf32>
    %c0_15 = arith.constant 0 : index
    %c0_16 = arith.constant 0 : index
    %10 = vector.load %arg7[%c0_15, %c0_16] : memref<8x64xf32, #tpu.memory_space<vmem>>, vector<8x64xf32>
    %c0_17 = arith.constant 0 : index
    %c0_18 = arith.constant 0 : index
    %11 = vector.load %arg8[%c0_17, %c0_18] : memref<16x32xf32, #tpu.memory_space<vmem>>, vector<16x32xf32>
    %cst = arith.constant dense<0.000000e+00> : vector<8x32xf32>
    %12 = tpu.matmul %1, %11, %cst {dimension_numbers = #tpu.dot_dimension_numbers<[1], [0], [0], [1], [0, 0, 1, 1], [], []>} : vector<8x16xf32>, vector<16x32xf32>, vector<8x32xf32> -> vector<8x32xf32>
    %c0_19 = arith.constant 0 : index
    %c0_20 = arith.constant 0 : index
    %13 = vector.load %arg9[%c0_19, %c0_20] : memref<1x32xf32, #tpu.memory_space<vmem>>, vector<1x32xf32>
    %14 = vector.broadcast %13 : vector<1x32xf32> to vector<8x32xf32>
    %15 = arith.addf %12, %14 : vector<8x32xf32>
    %cst_21 = arith.constant 0.000000e+00 : f32
    %16 = vector.broadcast %cst_21 : f32 to vector<8x32xf32>
    %17 = arith.cmpf ogt, %15, %16 : vector<8x32xf32>
    %cst_22 = arith.constant 0.00999999977 : f32
    %18 = vector.broadcast %cst_22 : f32 to vector<8x32xf32>
    %19 = arith.mulf %18, %15 : vector<8x32xf32>
    %20 = arith.select %17, %15, %19 : vector<8x32xi1>, vector<8x32xf32>
    %c0_23 = arith.constant 0 : index
    %c0_24 = arith.constant 0 : index
    %21 = vector.load %arg10[%c0_23, %c0_24] : memref<16x32xf32, #tpu.memory_space<vmem>>, vector<16x32xf32>
    %cst_25 = arith.constant dense<0.000000e+00> : vector<8x32xf32>
    %22 = tpu.matmul %1, %21, %cst_25 {dimension_numbers = #tpu.dot_dimension_numbers<[1], [0], [0], [1], [0, 0, 1, 1], [], []>} : vector<8x16xf32>, vector<16x32xf32>, vector<8x32xf32> -> vector<8x32xf32>
    %cst_26 = arith.constant dense<0.000000e+00> : vector<64x32xf32>
    %23 = tpu.matmul %8, %22, %cst_26 {dimension_numbers = #tpu.dot_dimension_numbers<[1], [0], [0], [1], [0, 0, 1, 1], [], []>} : vector<64x8xf32>, vector<8x32xf32>, vector<64x32xf32> -> vector<64x32xf32>
    %c0_27 = arith.constant 0 : index
    %c0_28 = arith.constant 0 : index
    %24 = vector.load %arg11[%c0_27, %c0_28] : memref<8x32xf32, #tpu.memory_space<vmem>>, vector<8x32xf32>
    %cst_29 = arith.constant dense<0.000000e+00> : vector<64x32xf32>
    %25 = tpu.matmul %3, %24, %cst_29 {dimension_numbers = #tpu.dot_dimension_numbers<[1], [0], [0], [1], [0, 0, 1, 1], [], []>} : vector<64x8xf32>, vector<8x32xf32>, vector<64x32xf32> -> vector<64x32xf32>
    %26 = arith.addf %25, %23 : vector<64x32xf32>
    %c0_30 = arith.constant 0 : index
    %c0_31 = arith.constant 0 : index
    %27 = vector.load %arg12[%c0_30, %c0_31] : memref<1x32xf32, #tpu.memory_space<vmem>>, vector<1x32xf32>
    %28 = vector.broadcast %27 : vector<1x32xf32> to vector<64x32xf32>
    %29 = arith.addf %26, %28 : vector<64x32xf32>
    %cst_32 = arith.constant 0.000000e+00 : f32
    %30 = vector.broadcast %cst_32 : f32 to vector<64x32xf32>
    %31 = arith.cmpf ogt, %29, %30 : vector<64x32xf32>
    %cst_33 = arith.constant 0.00999999977 : f32
    %32 = vector.broadcast %cst_33 : f32 to vector<64x32xf32>
    %33 = arith.mulf %32, %29 : vector<64x32xf32>
    %34 = arith.select %31, %29, %33 : vector<64x32xi1>, vector<64x32xf32>
    %c0_34 = arith.constant 0 : index
    %c0_35 = arith.constant 0 : index
    %35 = vector.load %arg16[%c0_34, %c0_35] : memref<32x32xf32, #tpu.memory_space<vmem>>, vector<32x32xf32>
    %cst_36 = arith.constant dense<0.000000e+00> : vector<64x32xf32>
    %36 = tpu.matmul %34, %35, %cst_36 {dimension_numbers = #tpu.dot_dimension_numbers<[1], [0], [0], [1], [0, 0, 1, 1], [], []>} : vector<64x32xf32>, vector<32x32xf32>, vector<64x32xf32> -> vector<64x32xf32>
    %c0_37 = arith.constant 0 : index
    %c0_38 = arith.constant 0 : index
    %37 = vector.load %arg17[%c0_37, %c0_38] : memref<1x32xf32, #tpu.memory_space<vmem>>, vector<1x32xf32>
    %38 = vector.broadcast %37 : vector<1x32xf32> to vector<64x32xf32>
    %39 = arith.addf %36, %38 : vector<64x32xf32>
    %c0_39 = arith.constant 0 : index
    %c0_40 = arith.constant 0 : index
    %40 = vector.load %arg14[%c0_39, %c0_40] : memref<32x1xf32, #tpu.memory_space<vmem>>, vector<32x1xf32>
    %cst_41 = arith.constant dense<0.000000e+00> : vector<64x1xf32>
    %41 = tpu.matmul %34, %40, %cst_41 {dimension_numbers = #tpu.dot_dimension_numbers<[1], [0], [0], [1], [0, 0, 1, 1], [], []>} : vector<64x32xf32>, vector<32x1xf32>, vector<64x1xf32> -> vector<64x1xf32>
    %42 = vector.broadcast %41 : vector<64x1xf32> to vector<64x8xf32>
    %43 = arith.mulf %42, %8 : vector<64x8xf32>
    %cst_42 = arith.constant dense<0.000000e+00> : vector<8x8xf32>
    %44 = tpu.matmul %10, %43, %cst_42 {dimension_numbers = #tpu.dot_dimension_numbers<[1], [0], [0], [1], [0, 0, 1, 1], [], []>} : vector<8x64xf32>, vector<64x8xf32>, vector<8x8xf32> -> vector<8x8xf32>
    %c0_43 = arith.constant 0 : index
    %c0_44 = arith.constant 0 : index
    %45 = vector.load %arg13[%c0_43, %c0_44] : memref<32x1xf32, #tpu.memory_space<vmem>>, vector<32x1xf32>
    %cst_45 = arith.constant dense<0.000000e+00> : vector<8x1xf32>
    %46 = tpu.matmul %20, %45, %cst_45 {dimension_numbers = #tpu.dot_dimension_numbers<[1], [0], [0], [1], [0, 0, 1, 1], [], []>} : vector<8x32xf32>, vector<32x1xf32>, vector<8x1xf32> -> vector<8x1xf32>
    %47 = vector.broadcast %46 : vector<8x1xf32> to vector<8x8xf32>
    %48 = arith.addf %47, %44 : vector<8x8xf32>
    %c0_46 = arith.constant 0 : index
    %c0_47 = arith.constant 0 : index
    %49 = vector.load %arg15[%c0_46, %c0_47] : memref<1x1xf32, #tpu.memory_space<vmem>>, vector<1x1xf32>
    %50 = vector.broadcast %49 : vector<1x1xf32> to vector<8x8xf32>
    %51 = arith.addf %48, %50 : vector<8x8xf32>
    %cst_48 = arith.constant 0.000000e+00 : f32
    %52 = vector.broadcast %cst_48 : f32 to vector<8x8xf32>
    %53 = arith.cmpf ogt, %51, %52 : vector<8x8xf32>
    %cst_49 = arith.constant 0.00999999977 : f32
    %54 = vector.broadcast %cst_49 : f32 to vector<8x8xf32>
    %55 = arith.mulf %54, %51 : vector<8x8xf32>
    %56 = arith.select %53, %51, %55 : vector<8x8xi1>, vector<8x8xf32>
    %cst_50 = arith.constant 0.000000e+00 : f32
    %57 = vector.broadcast %cst_50 : f32 to vector<8x8xf32>
    %58 = arith.cmpf ogt, %5, %57 : vector<8x8xf32>
    %cst_51 = arith.constant -1.000000e+30 : f32
    %59 = vector.broadcast %cst_51 : f32 to vector<8x8xf32>
    %60 = arith.select %58, %56, %59 : vector<8x8xi1>, vector<8x8xf32>
    %cst_52 = arith.constant dense<0xFF800000> : vector<8xf32>
    %61 = vector.multi_reduction <maximumf>, %60, %cst_52 [1] : vector<8x8xf32> to vector<8xf32>
    %62 = vector.shape_cast %61 : vector<8xf32> to vector<8x1xf32>
    %63 = vector.broadcast %62 : vector<8x1xf32> to vector<8x8xf32>
    %64 = arith.subf %60, %63 : vector<8x8xf32>
    %65 = math.exp %64 : vector<8x8xf32>
    %66 = arith.mulf %65, %5 : vector<8x8xf32>
    %cst_53 = arith.constant dense<0.000000e+00> : vector<8xf32>
    %67 = vector.multi_reduction <add>, %66, %cst_53 [1] : vector<8x8xf32> to vector<8xf32>
    %68 = vector.shape_cast %67 : vector<8xf32> to vector<8x1xf32>
    %cst_54 = arith.constant 9.99999968E-21 : f32
    %69 = vector.broadcast %cst_54 : f32 to vector<8x1xf32>
    %70 = arith.maximumf %68, %69 : vector<8x1xf32>
    %71 = tpu.reciprocal %70 {approx = true} : vector<8x1xf32> -> vector<8x1xf32>
    %72 = vector.broadcast %71 : vector<8x1xf32> to vector<8x8xf32>
    %73 = arith.mulf %66, %72 : vector<8x8xf32>
    %cst_55 = arith.constant dense<0.000000e+00> : vector<8x64xf32>
    %74 = tpu.matmul %73, %9, %cst_55 {dimension_numbers = #tpu.dot_dimension_numbers<[1], [0], [0], [1], [0, 0, 1, 1], [], []>} : vector<8x8xf32>, vector<8x64xf32>, vector<8x64xf32> -> vector<8x64xf32>
    %75 = arith.mulf %10, %74 : vector<8x64xf32>
    %cst_56 = arith.constant dense<0.000000e+00> : vector<8x32xf32>
    %76 = tpu.matmul %75, %39, %cst_56 {dimension_numbers = #tpu.dot_dimension_numbers<[1], [0], [0], [1], [0, 0, 1, 1], [], []>} : vector<8x64xf32>, vector<64x32xf32>, vector<8x32xf32> -> vector<8x32xf32>
    %cst_57 = arith.constant 0.000000e+00 : f32
    %77 = vector.broadcast %cst_57 : f32 to vector<8x32xf32>
    %78 = arith.cmpf ogt, %76, %77 : vector<8x32xf32>
    %cst_58 = arith.constant 0.000000e+00 : f32
    %79 = vector.broadcast %cst_58 : f32 to vector<8x32xf32>
    %80 = arith.minimumf %76, %79 : vector<8x32xf32>
    %81 = math.exp %80 : vector<8x32xf32>
    %cst_59 = arith.constant 1.000000e+00 : f32
    %82 = vector.broadcast %cst_59 : f32 to vector<8x32xf32>
    %83 = arith.subf %81, %82 : vector<8x32xf32>
    %84 = arith.select %78, %76, %83 : vector<8x32xi1>, vector<8x32xf32>
    %c0_60 = arith.constant 0 : index
    %c0_61 = arith.constant 0 : index
    %85 = vector.load %arg18[%c0_60, %c0_61] : memref<32x32xf32, #tpu.memory_space<vmem>>, vector<32x32xf32>
    %cst_62 = arith.constant dense<0.000000e+00> : vector<8x32xf32>
    %86 = tpu.matmul %84, %85, %cst_62 {dimension_numbers = #tpu.dot_dimension_numbers<[1], [0], [0], [1], [0, 0, 1, 1], [], []>} : vector<8x32xf32>, vector<32x32xf32>, vector<8x32xf32> -> vector<8x32xf32>
    %c0_63 = arith.constant 0 : index
    %c0_64 = arith.constant 0 : index
    %87 = vector.load %arg21[%c0_63, %c0_64] : memref<32x32xf32, #tpu.memory_space<vmem>>, vector<32x32xf32>
    %cst_65 = arith.constant dense<0.000000e+00> : vector<8x32xf32>
    %88 = tpu.matmul %20, %87, %cst_65 {dimension_numbers = #tpu.dot_dimension_numbers<[1], [0], [0], [1], [0, 0, 1, 1], [], []>} : vector<8x32xf32>, vector<32x32xf32>, vector<8x32xf32> -> vector<8x32xf32>
    %89 = arith.addf %86, %88 : vector<8x32xf32>
    %c0_66 = arith.constant 0 : index
    %c0_67 = arith.constant 0 : index
    %90 = vector.load %arg24[%c0_66, %c0_67] : memref<1x32xf32, #tpu.memory_space<vmem>>, vector<1x32xf32>
    %91 = vector.broadcast %90 : vector<1x32xf32> to vector<8x32xf32>
    %92 = arith.addf %89, %91 : vector<8x32xf32>
    %93 = arith.negf %92 : vector<8x32xf32>
    %94 = math.exp %93 : vector<8x32xf32>
    %cst_68 = arith.constant 1.000000e+00 : f32
    %95 = vector.broadcast %cst_68 : f32 to vector<8x32xf32>
    %96 = arith.addf %95, %94 : vector<8x32xf32>
    %97 = arith.divf %95, %96 : vector<8x32xf32>
    %c0_69 = arith.constant 0 : index
    %c0_70 = arith.constant 0 : index
    %98 = vector.load %arg19[%c0_69, %c0_70] : memref<32x32xf32, #tpu.memory_space<vmem>>, vector<32x32xf32>
    %cst_71 = arith.constant dense<0.000000e+00> : vector<8x32xf32>
    %99 = tpu.matmul %84, %98, %cst_71 {dimension_numbers = #tpu.dot_dimension_numbers<[1], [0], [0], [1], [0, 0, 1, 1], [], []>} : vector<8x32xf32>, vector<32x32xf32>, vector<8x32xf32> -> vector<8x32xf32>
    %c0_72 = arith.constant 0 : index
    %c0_73 = arith.constant 0 : index
    %100 = vector.load %arg22[%c0_72, %c0_73] : memref<32x32xf32, #tpu.memory_space<vmem>>, vector<32x32xf32>
    %cst_74 = arith.constant dense<0.000000e+00> : vector<8x32xf32>
    %101 = tpu.matmul %20, %100, %cst_74 {dimension_numbers = #tpu.dot_dimension_numbers<[1], [0], [0], [1], [0, 0, 1, 1], [], []>} : vector<8x32xf32>, vector<32x32xf32>, vector<8x32xf32> -> vector<8x32xf32>
    %102 = arith.addf %99, %101 : vector<8x32xf32>
    %c0_75 = arith.constant 0 : index
    %c0_76 = arith.constant 0 : index
    %103 = vector.load %arg25[%c0_75, %c0_76] : memref<1x32xf32, #tpu.memory_space<vmem>>, vector<1x32xf32>
    %104 = vector.broadcast %103 : vector<1x32xf32> to vector<8x32xf32>
    %105 = arith.addf %102, %104 : vector<8x32xf32>
    %106 = arith.negf %105 : vector<8x32xf32>
    %107 = math.exp %106 : vector<8x32xf32>
    %cst_77 = arith.constant 1.000000e+00 : f32
    %108 = vector.broadcast %cst_77 : f32 to vector<8x32xf32>
    %109 = arith.addf %108, %107 : vector<8x32xf32>
    %110 = arith.divf %108, %109 : vector<8x32xf32>
    %c0_78 = arith.constant 0 : index
    %c0_79 = arith.constant 0 : index
    %111 = vector.load %arg20[%c0_78, %c0_79] : memref<32x32xf32, #tpu.memory_space<vmem>>, vector<32x32xf32>
    %cst_80 = arith.constant dense<0.000000e+00> : vector<8x32xf32>
    %112 = tpu.matmul %84, %111, %cst_80 {dimension_numbers = #tpu.dot_dimension_numbers<[1], [0], [0], [1], [0, 0, 1, 1], [], []>} : vector<8x32xf32>, vector<32x32xf32>, vector<8x32xf32> -> vector<8x32xf32>
    %c0_81 = arith.constant 0 : index
    %c0_82 = arith.constant 0 : index
    %113 = vector.load %arg26[%c0_81, %c0_82] : memref<1x32xf32, #tpu.memory_space<vmem>>, vector<1x32xf32>
    %114 = vector.broadcast %113 : vector<1x32xf32> to vector<8x32xf32>
    %115 = arith.addf %112, %114 : vector<8x32xf32>
    %c0_83 = arith.constant 0 : index
    %c0_84 = arith.constant 0 : index
    %116 = vector.load %arg23[%c0_83, %c0_84] : memref<32x32xf32, #tpu.memory_space<vmem>>, vector<32x32xf32>
    %cst_85 = arith.constant dense<0.000000e+00> : vector<8x32xf32>
    %117 = tpu.matmul %20, %116, %cst_85 {dimension_numbers = #tpu.dot_dimension_numbers<[1], [0], [0], [1], [0, 0, 1, 1], [], []>} : vector<8x32xf32>, vector<32x32xf32>, vector<8x32xf32> -> vector<8x32xf32>
    %c0_86 = arith.constant 0 : index
    %c0_87 = arith.constant 0 : index
    %118 = vector.load %arg27[%c0_86, %c0_87] : memref<1x32xf32, #tpu.memory_space<vmem>>, vector<1x32xf32>
    %119 = vector.broadcast %118 : vector<1x32xf32> to vector<8x32xf32>
    %120 = arith.addf %117, %119 : vector<8x32xf32>
    %121 = arith.mulf %97, %120 : vector<8x32xf32>
    %122 = arith.addf %115, %121 : vector<8x32xf32>
    %123 = math.tanh %122 : vector<8x32xf32>
    %cst_88 = arith.constant 1.000000e+00 : f32
    %124 = vector.broadcast %cst_88 : f32 to vector<8x32xf32>
    %125 = arith.subf %124, %110 : vector<8x32xf32>
    %126 = arith.mulf %125, %123 : vector<8x32xf32>
    %127 = arith.mulf %110, %20 : vector<8x32xf32>
    %128 = arith.addf %126, %127 : vector<8x32xf32>
    %cst_89 = arith.constant 0.000000e+00 : f32
    %129 = vector.broadcast %cst_89 : f32 to vector<8x32xf32>
    %130 = arith.maximumf %128, %129 : vector<8x32xf32>
    %c0_90 = arith.constant 0 : index
    %c0_91 = arith.constant 0 : index
    %c0_92 = arith.constant 0 : index
    %131 = vector.load %arg28[%c0_90, %c0_91, %c0_92] : memref<1x8x32xf32, #tpu.memory_space<vmem>>, vector<1x8x32xf32>
    %132 = vector.shape_cast %131 : vector<1x8x32xf32> to vector<8x32xf32>
    %133 = vector.shape_cast %130 : vector<8x32xf32> to vector<1x8x32xf32>
    tpu.vector_store %arg28[%c0_90, %c0_91, %c0_92], %133 {strides = array<i32>} : memref<1x8x32xf32, #tpu.memory_space<vmem>>, vector<1x8x32xf32>,
    %cst_93 = arith.constant dense<0.000000e+00> : vector<1x32xf32>
    %134 = tpu.matmul %7, %130, %cst_93 {dimension_numbers = #tpu.dot_dimension_numbers<[1], [0], [0], [1], [0, 0, 1, 1], [], []>} : vector<1x8xf32>, vector<8x32xf32>, vector<1x32xf32> -> vector<1x32xf32>
    %c0_94 = arith.constant 0 : index
    %c0_95 = arith.constant 0 : index
    %c0_96 = arith.constant 0 : index
    %135 = vector.load %arg29[%c0_94, %c0_95, %c0_96] : memref<1x1x32xf32, #tpu.memory_space<vmem>>, vector<1x1x32xf32>
    %136 = vector.shape_cast %135 : vector<1x1x32xf32> to vector<1x32xf32>
    %137 = vector.shape_cast %134 : vector<1x32xf32> to vector<1x1x32xf32>
    tpu.vector_store %arg29[%c0_94, %c0_95, %c0_96], %137 {strides = array<i32>} : memref<1x1x32xf32, #tpu.memory_space<vmem>>, vector<1x1x32xf32>,
    return
  }
  func.func @transform_0(%arg0: i32) -> (i32, i32, i32) {
    %c0_i32 = arith.constant 0 : i32
    %c0_i32_0 = arith.constant 0 : i32
    %c0_i32_1 = arith.constant 0 : i32
    return %arg0, %c0_i32, %c0_i32_0 : i32, i32, i32
  }
  func.func @transform_1(%arg0: i32) -> (i32, i32, i32) {
    %c0_i32 = arith.constant 0 : i32
    %c0_i32_0 = arith.constant 0 : i32
    %c0_i32_1 = arith.constant 0 : i32
    return %arg0, %c0_i32, %c0_i32_0 : i32, i32, i32
  }
  func.func @transform_2(%arg0: i32) -> (i32, i32, i32) {
    %c0_i32 = arith.constant 0 : i32
    %c0_i32_0 = arith.constant 0 : i32
    %c0_i32_1 = arith.constant 0 : i32
    return %arg0, %c0_i32, %c0_i32_0 : i32, i32, i32
  }
  func.func @transform_3(%arg0: i32) -> (i32, i32, i32) {
    %c0_i32 = arith.constant 0 : i32
    %c0_i32_0 = arith.constant 0 : i32
    %c0_i32_1 = arith.constant 0 : i32
    return %arg0, %c0_i32, %c0_i32_0 : i32, i32, i32
  }
  func.func @transform_4(%arg0: i32) -> (i32, i32) {
    %c0_i32 = arith.constant 0 : i32
    %c0_i32_0 = arith.constant 0 : i32
    %c0_i32_1 = arith.constant 0 : i32
    return %c0_i32, %c0_i32_0 : i32, i32
  }
  func.func @transform_5(%arg0: i32) -> (i32, i32) {
    %c0_i32 = arith.constant 0 : i32
    %c0_i32_0 = arith.constant 0 : i32
    %c0_i32_1 = arith.constant 0 : i32
    return %c0_i32, %c0_i32_0 : i32, i32
  }
  func.func @transform_6(%arg0: i32) -> (i32, i32) {
    %c0_i32 = arith.constant 0 : i32
    %c0_i32_0 = arith.constant 0 : i32
    %c0_i32_1 = arith.constant 0 : i32
    return %c0_i32, %c0_i32_0 : i32, i32
  }
  func.func @transform_7(%arg0: i32) -> (i32, i32) {
    %c0_i32 = arith.constant 0 : i32
    %c0_i32_0 = arith.constant 0 : i32
    %c0_i32_1 = arith.constant 0 : i32
    return %c0_i32, %c0_i32_0 : i32, i32
  }
  func.func @transform_8(%arg0: i32) -> (i32, i32) {
    %c0_i32 = arith.constant 0 : i32
    %c0_i32_0 = arith.constant 0 : i32
    %c0_i32_1 = arith.constant 0 : i32
    return %c0_i32, %c0_i32_0 : i32, i32
  }
  func.func @transform_9(%arg0: i32) -> (i32, i32) {
    %c0_i32 = arith.constant 0 : i32
    %c0_i32_0 = arith.constant 0 : i32
    %c0_i32_1 = arith.constant 0 : i32
    return %c0_i32, %c0_i32_0 : i32, i32
  }
  func.func @transform_10(%arg0: i32) -> (i32, i32) {
    %c0_i32 = arith.constant 0 : i32
    %c0_i32_0 = arith.constant 0 : i32
    %c0_i32_1 = arith.constant 0 : i32
    return %c0_i32, %c0_i32_0 : i32, i32
  }
  func.func @transform_11(%arg0: i32) -> (i32, i32) {
    %c0_i32 = arith.constant 0 : i32
    %c0_i32_0 = arith.constant 0 : i32
    %c0_i32_1 = arith.constant 0 : i32
    return %c0_i32, %c0_i32_0 : i32, i32
  }
  func.func @transform_12(%arg0: i32) -> (i32, i32) {
    %c0_i32 = arith.constant 0 : i32
    %c0_i32_0 = arith.constant 0 : i32
    %c0_i32_1 = arith.constant 0 : i32
    return %c0_i32, %c0_i32_0 : i32, i32
  }
  func.func @transform_13(%arg0: i32) -> (i32, i32) {
    %c0_i32 = arith.constant 0 : i32
    %c0_i32_0 = arith.constant 0 : i32
    %c0_i32_1 = arith.constant 0 : i32
    return %c0_i32, %c0_i32_0 : i32, i32
  }
  func.func @transform_14(%arg0: i32) -> (i32, i32) {
    %c0_i32 = arith.constant 0 : i32
    %c0_i32_0 = arith.constant 0 : i32
    %c0_i32_1 = arith.constant 0 : i32
    return %c0_i32, %c0_i32_0 : i32, i32
  }
  func.func @transform_15(%arg0: i32) -> (i32, i32) {
    %c0_i32 = arith.constant 0 : i32
    %c0_i32_0 = arith.constant 0 : i32
    %c0_i32_1 = arith.constant 0 : i32
    return %c0_i32, %c0_i32_0 : i32, i32
  }
  func.func @transform_16(%arg0: i32) -> (i32, i32) {
    %c0_i32 = arith.constant 0 : i32
    %c0_i32_0 = arith.constant 0 : i32
    %c0_i32_1 = arith.constant 0 : i32
    return %c0_i32, %c0_i32_0 : i32, i32
  }
  func.func @transform_17(%arg0: i32) -> (i32, i32) {
    %c0_i32 = arith.constant 0 : i32
    %c0_i32_0 = arith.constant 0 : i32
    %c0_i32_1 = arith.constant 0 : i32
    return %c0_i32, %c0_i32_0 : i32, i32
  }
  func.func @transform_18(%arg0: i32) -> (i32, i32) {
    %c0_i32 = arith.constant 0 : i32
    %c0_i32_0 = arith.constant 0 : i32
    %c0_i32_1 = arith.constant 0 : i32
    return %c0_i32, %c0_i32_0 : i32, i32
  }
  func.func @transform_19(%arg0: i32) -> (i32, i32) {
    %c0_i32 = arith.constant 0 : i32
    %c0_i32_0 = arith.constant 0 : i32
    %c0_i32_1 = arith.constant 0 : i32
    return %c0_i32, %c0_i32_0 : i32, i32
  }
  func.func @transform_20(%arg0: i32) -> (i32, i32) {
    %c0_i32 = arith.constant 0 : i32
    %c0_i32_0 = arith.constant 0 : i32
    %c0_i32_1 = arith.constant 0 : i32
    return %c0_i32, %c0_i32_0 : i32, i32
  }
  func.func @transform_21(%arg0: i32) -> (i32, i32) {
    %c0_i32 = arith.constant 0 : i32
    %c0_i32_0 = arith.constant 0 : i32
    %c0_i32_1 = arith.constant 0 : i32
    return %c0_i32, %c0_i32_0 : i32, i32
  }
  func.func @transform_22(%arg0: i32) -> (i32, i32) {
    %c0_i32 = arith.constant 0 : i32
    %c0_i32_0 = arith.constant 0 : i32
    %c0_i32_1 = arith.constant 0 : i32
    return %c0_i32, %c0_i32_0 : i32, i32
  }
  func.func @transform_23(%arg0: i32) -> (i32, i32) {
    %c0_i32 = arith.constant 0 : i32
    %c0_i32_0 = arith.constant 0 : i32
    %c0_i32_1 = arith.constant 0 : i32
    return %c0_i32, %c0_i32_0 : i32, i32
  }
  func.func @transform_24(%arg0: i32) -> (i32, i32) {
    %c0_i32 = arith.constant 0 : i32
    %c0_i32_0 = arith.constant 0 : i32
    %c0_i32_1 = arith.constant 0 : i32
    return %c0_i32, %c0_i32_0 : i32, i32
  }
  func.func @transform_25(%arg0: i32) -> (i32, i32) {
    %c0_i32 = arith.constant 0 : i32
    %c0_i32_0 = arith.constant 0 : i32
    %c0_i32_1 = arith.constant 0 : i32
    return %c0_i32, %c0_i32_0 : i32, i32
  }
  func.func @transform_26(%arg0: i32) -> (i32, i32) {
    %c0_i32 = arith.constant 0 : i32
    %c0_i32_0 = arith.constant 0 : i32
    %c0_i32_1 = arith.constant 0 : i32
    return %c0_i32, %c0_i32_0 : i32, i32
  }
  func.func @transform_27(%arg0: i32) -> (i32, i32, i32) {
    %c0_i32 = arith.constant 0 : i32
    %c0_i32_0 = arith.constant 0 : i32
    %c0_i32_1 = arith.constant 0 : i32
    return %arg0, %c0_i32, %c0_i32_0 : i32, i32, i32
  }
  func.func @transform_28(%arg0: i32) -> (i32, i32, i32) {
    %c0_i32 = arith.constant 0 : i32
    %c0_i32_0 = arith.constant 0 : i32
    %c0_i32_1 = arith.constant 0 : i32
    return %arg0, %c0_i32, %c0_i32_0 : i32, i32, i32
  }
}

module attributes {stable_mosaic.version = 11 : i64} {
  func.func @_readout_kernel(%arg0: i32, %arg1: memref<1x8x32xf32, #tpu.memory_space<vmem>>, %arg2: memref<1x1x8xf32, #tpu.memory_space<vmem>>, %arg3: memref<1x1x32xf32, #tpu.memory_space<vmem>>, %arg4: memref<32x1xf32, #tpu.memory_space<vmem>>, %arg5: memref<1x32xf32, #tpu.memory_space<vmem>>, %arg6: memref<1x1xf32, #tpu.memory_space<vmem>>, %arg7: memref<32x32xf32, #tpu.memory_space<vmem>>, %arg8: memref<1x32xf32, #tpu.memory_space<vmem>>, %arg9: memref<32x32xf32, #tpu.memory_space<vmem>>, %arg10: memref<32x32xf32, #tpu.memory_space<vmem>>, %arg11: memref<32x32xf32, #tpu.memory_space<vmem>>, %arg12: memref<32x32xf32, #tpu.memory_space<vmem>>, %arg13: memref<32x32xf32, #tpu.memory_space<vmem>>, %arg14: memref<32x32xf32, #tpu.memory_space<vmem>>, %arg15: memref<1x32xf32, #tpu.memory_space<vmem>>, %arg16: memref<1x32xf32, #tpu.memory_space<vmem>>, %arg17: memref<1x32xf32, #tpu.memory_space<vmem>>, %arg18: memref<1x32xf32, #tpu.memory_space<vmem>>, %arg19: memref<1x1x32xf32, #tpu.memory_space<vmem>>) attributes {dimension_semantics = [#tpu.dimension_semantics<parallel>], iteration_bounds = array<i64: 2>, scalar_prefetch = 0 : i64, scratch_operands = 0 : i64, tpu.core_type = #tpu.core_type<tc>, window_params = [{transform_indices = @transform_0, window_bounds = array<i64: 1, 8, 32>}, {transform_indices = @transform_1, window_bounds = array<i64: 1, 1, 8>}, {transform_indices = @transform_2, window_bounds = array<i64: 1, 1, 32>}, {pipeline_mode = #tpu.pipeline_mode<synchronous>, transform_indices = @transform_3, window_bounds = array<i64: 32, 1>}, {pipeline_mode = #tpu.pipeline_mode<synchronous>, transform_indices = @transform_4, window_bounds = array<i64: 1, 32>}, {pipeline_mode = #tpu.pipeline_mode<synchronous>, transform_indices = @transform_5, window_bounds = array<i64: 1, 1>}, {pipeline_mode = #tpu.pipeline_mode<synchronous>, transform_indices = @transform_6, window_bounds = array<i64: 32, 32>}, {pipeline_mode = #tpu.pipeline_mode<synchronous>, transform_indices = @transform_7, window_bounds = array<i64: 1, 32>}, {pipeline_mode = #tpu.pipeline_mode<synchronous>, transform_indices = @transform_8, window_bounds = array<i64: 32, 32>}, {pipeline_mode = #tpu.pipeline_mode<synchronous>, transform_indices = @transform_9, window_bounds = array<i64: 32, 32>}, {pipeline_mode = #tpu.pipeline_mode<synchronous>, transform_indices = @transform_10, window_bounds = array<i64: 32, 32>}, {pipeline_mode = #tpu.pipeline_mode<synchronous>, transform_indices = @transform_11, window_bounds = array<i64: 32, 32>}, {pipeline_mode = #tpu.pipeline_mode<synchronous>, transform_indices = @transform_12, window_bounds = array<i64: 32, 32>}, {pipeline_mode = #tpu.pipeline_mode<synchronous>, transform_indices = @transform_13, window_bounds = array<i64: 32, 32>}, {pipeline_mode = #tpu.pipeline_mode<synchronous>, transform_indices = @transform_14, window_bounds = array<i64: 1, 32>}, {pipeline_mode = #tpu.pipeline_mode<synchronous>, transform_indices = @transform_15, window_bounds = array<i64: 1, 32>}, {pipeline_mode = #tpu.pipeline_mode<synchronous>, transform_indices = @transform_16, window_bounds = array<i64: 1, 32>}, {pipeline_mode = #tpu.pipeline_mode<synchronous>, transform_indices = @transform_17, window_bounds = array<i64: 1, 32>}, {transform_indices = @transform_18, window_bounds = array<i64: 1, 1, 32>}]} {
    %c0 = arith.constant 0 : index
    %c0_0 = arith.constant 0 : index
    %c0_1 = arith.constant 0 : index
    %0 = vector.load %arg1[%c0, %c0_0, %c0_1] : memref<1x8x32xf32, #tpu.memory_space<vmem>>, vector<1x8x32xf32>
    %1 = vector.shape_cast %0 : vector<1x8x32xf32> to vector<8x32xf32>
    %c0_2 = arith.constant 0 : index
    %c0_3 = arith.constant 0 : index
    %c0_4 = arith.constant 0 : index
    %2 = vector.load %arg2[%c0_2, %c0_3, %c0_4] : memref<1x1x8xf32, #tpu.memory_space<vmem>>, vector<1x1x8xf32>
    %3 = vector.shape_cast %2 : vector<1x1x8xf32> to vector<1x8xf32>
    %c0_5 = arith.constant 0 : index
    %c0_6 = arith.constant 0 : index
    %c0_7 = arith.constant 0 : index
    %4 = vector.load %arg3[%c0_5, %c0_6, %c0_7] : memref<1x1x32xf32, #tpu.memory_space<vmem>>, vector<1x1x32xf32>
    %5 = vector.shape_cast %4 : vector<1x1x32xf32> to vector<1x32xf32>
    %cst = arith.constant 0.000000e+00 : f32
    %6 = vector.broadcast %cst : f32 to vector<1x32xf32>
    %7 = arith.maximumf %5, %6 : vector<1x32xf32>
    %c0_8 = arith.constant 0 : index
    %c0_9 = arith.constant 0 : index
    %8 = vector.load %arg4[%c0_8, %c0_9] : memref<32x1xf32, #tpu.memory_space<vmem>>, vector<32x1xf32>
    %cst_10 = arith.constant dense<0.000000e+00> : vector<1x1xf32>
    %9 = tpu.matmul %7, %8, %cst_10 {dimension_numbers = #tpu.dot_dimension_numbers<[1], [0], [0], [1], [0, 0, 1, 1], [], []>} : vector<1x32xf32>, vector<32x1xf32>, vector<1x1xf32> -> vector<1x1xf32>
    %c0_11 = arith.constant 0 : index
    %c0_12 = arith.constant 0 : index
    %10 = vector.load %arg5[%c0_11, %c0_12] : memref<1x32xf32, #tpu.memory_space<vmem>>, vector<1x32xf32>
    %cst_13 = arith.constant dense<0.000000e+00> : vector<1x8xf32>
    %11 = tpu.matmul %10, %1, %cst_13 {dimension_numbers = #tpu.dot_dimension_numbers<[1], [1], [0], [0], [0, 0, 1, 0], [], []>} : vector<1x32xf32>, vector<8x32xf32>, vector<1x8xf32> -> vector<1x8xf32>
    %12 = vector.broadcast %9 : vector<1x1xf32> to vector<1x8xf32>
    %13 = arith.addf %12, %11 : vector<1x8xf32>
    %c0_14 = arith.constant 0 : index
    %c0_15 = arith.constant 0 : index
    %14 = vector.load %arg6[%c0_14, %c0_15] : memref<1x1xf32, #tpu.memory_space<vmem>>, vector<1x1xf32>
    %15 = vector.broadcast %14 : vector<1x1xf32> to vector<1x8xf32>
    %16 = arith.addf %13, %15 : vector<1x8xf32>
    %cst_16 = arith.constant 0.000000e+00 : f32
    %17 = vector.broadcast %cst_16 : f32 to vector<1x8xf32>
    %18 = arith.cmpf ogt, %16, %17 : vector<1x8xf32>
    %cst_17 = arith.constant 0.00999999977 : f32
    %19 = vector.broadcast %cst_17 : f32 to vector<1x8xf32>
    %20 = arith.mulf %19, %16 : vector<1x8xf32>
    %21 = arith.select %18, %16, %20 : vector<1x8xi1>, vector<1x8xf32>
    %cst_18 = arith.constant 0.000000e+00 : f32
    %22 = vector.broadcast %cst_18 : f32 to vector<1x8xf32>
    %23 = arith.cmpf ogt, %3, %22 : vector<1x8xf32>
    %cst_19 = arith.constant -1.000000e+30 : f32
    %24 = vector.broadcast %cst_19 : f32 to vector<1x8xf32>
    %25 = arith.select %23, %21, %24 : vector<1x8xi1>, vector<1x8xf32>
    %cst_20 = arith.constant dense<0xFF800000> : vector<1xf32>
    %26 = vector.multi_reduction <maximumf>, %25, %cst_20 [1] : vector<1x8xf32> to vector<1xf32>
    %27 = vector.shape_cast %26 : vector<1xf32> to vector<1x1xf32>
    %28 = vector.broadcast %27 : vector<1x1xf32> to vector<1x8xf32>
    %29 = arith.subf %25, %28 : vector<1x8xf32>
    %30 = math.exp %29 : vector<1x8xf32>
    %31 = arith.mulf %30, %3 : vector<1x8xf32>
    %cst_21 = arith.constant dense<0.000000e+00> : vector<1xf32>
    %32 = vector.multi_reduction <add>, %31, %cst_21 [1] : vector<1x8xf32> to vector<1xf32>
    %33 = vector.shape_cast %32 : vector<1xf32> to vector<1x1xf32>
    %cst_22 = arith.constant 9.99999968E-21 : f32
    %34 = vector.broadcast %cst_22 : f32 to vector<1x1xf32>
    %35 = arith.maximumf %33, %34 : vector<1x1xf32>
    %36 = tpu.reciprocal %35 {approx = true} : vector<1x1xf32> -> vector<1x1xf32>
    %37 = vector.broadcast %36 : vector<1x1xf32> to vector<1x8xf32>
    %38 = arith.mulf %31, %37 : vector<1x8xf32>
    %c0_23 = arith.constant 0 : index
    %c0_24 = arith.constant 0 : index
    %39 = vector.load %arg7[%c0_23, %c0_24] : memref<32x32xf32, #tpu.memory_space<vmem>>, vector<32x32xf32>
    %cst_25 = arith.constant dense<0.000000e+00> : vector<8x32xf32>
    %40 = tpu.matmul %1, %39, %cst_25 {dimension_numbers = #tpu.dot_dimension_numbers<[1], [0], [0], [1], [0, 0, 1, 1], [], []>} : vector<8x32xf32>, vector<32x32xf32>, vector<8x32xf32> -> vector<8x32xf32>
    %c0_26 = arith.constant 0 : index
    %c0_27 = arith.constant 0 : index
    %41 = vector.load %arg8[%c0_26, %c0_27] : memref<1x32xf32, #tpu.memory_space<vmem>>, vector<1x32xf32>
    %42 = vector.broadcast %41 : vector<1x32xf32> to vector<8x32xf32>
    %43 = arith.addf %40, %42 : vector<8x32xf32>
    %cst_28 = arith.constant dense<0.000000e+00> : vector<1x32xf32>
    %44 = tpu.matmul %38, %43, %cst_28 {dimension_numbers = #tpu.dot_dimension_numbers<[1], [0], [0], [1], [0, 0, 1, 1], [], []>} : vector<1x8xf32>, vector<8x32xf32>, vector<1x32xf32> -> vector<1x32xf32>
    %cst_29 = arith.constant 0.000000e+00 : f32
    %45 = vector.broadcast %cst_29 : f32 to vector<1x32xf32>
    %46 = arith.maximumf %44, %45 : vector<1x32xf32>
    %c0_30 = arith.constant 0 : index
    %c0_31 = arith.constant 0 : index
    %47 = vector.load %arg9[%c0_30, %c0_31] : memref<32x32xf32, #tpu.memory_space<vmem>>, vector<32x32xf32>
    %cst_32 = arith.constant dense<0.000000e+00> : vector<1x32xf32>
    %48 = tpu.matmul %46, %47, %cst_32 {dimension_numbers = #tpu.dot_dimension_numbers<[1], [0], [0], [1], [0, 0, 1, 1], [], []>} : vector<1x32xf32>, vector<32x32xf32>, vector<1x32xf32> -> vector<1x32xf32>
    %c0_33 = arith.constant 0 : index
    %c0_34 = arith.constant 0 : index
    %49 = vector.load %arg12[%c0_33, %c0_34] : memref<32x32xf32, #tpu.memory_space<vmem>>, vector<32x32xf32>
    %cst_35 = arith.constant dense<0.000000e+00> : vector<1x32xf32>
    %50 = tpu.matmul %5, %49, %cst_35 {dimension_numbers = #tpu.dot_dimension_numbers<[1], [0], [0], [1], [0, 0, 1, 1], [], []>} : vector<1x32xf32>, vector<32x32xf32>, vector<1x32xf32> -> vector<1x32xf32>
    %51 = arith.addf %48, %50 : vector<1x32xf32>
    %c0_36 = arith.constant 0 : index
    %c0_37 = arith.constant 0 : index
    %52 = vector.load %arg15[%c0_36, %c0_37] : memref<1x32xf32, #tpu.memory_space<vmem>>, vector<1x32xf32>
    %53 = arith.addf %51, %52 : vector<1x32xf32>
    %54 = arith.negf %53 : vector<1x32xf32>
    %55 = math.exp %54 : vector<1x32xf32>
    %cst_38 = arith.constant 1.000000e+00 : f32
    %56 = vector.broadcast %cst_38 : f32 to vector<1x32xf32>
    %57 = arith.addf %56, %55 : vector<1x32xf32>
    %58 = arith.divf %56, %57 : vector<1x32xf32>
    %c0_39 = arith.constant 0 : index
    %c0_40 = arith.constant 0 : index
    %59 = vector.load %arg10[%c0_39, %c0_40] : memref<32x32xf32, #tpu.memory_space<vmem>>, vector<32x32xf32>
    %cst_41 = arith.constant dense<0.000000e+00> : vector<1x32xf32>
    %60 = tpu.matmul %46, %59, %cst_41 {dimension_numbers = #tpu.dot_dimension_numbers<[1], [0], [0], [1], [0, 0, 1, 1], [], []>} : vector<1x32xf32>, vector<32x32xf32>, vector<1x32xf32> -> vector<1x32xf32>
    %c0_42 = arith.constant 0 : index
    %c0_43 = arith.constant 0 : index
    %61 = vector.load %arg13[%c0_42, %c0_43] : memref<32x32xf32, #tpu.memory_space<vmem>>, vector<32x32xf32>
    %cst_44 = arith.constant dense<0.000000e+00> : vector<1x32xf32>
    %62 = tpu.matmul %5, %61, %cst_44 {dimension_numbers = #tpu.dot_dimension_numbers<[1], [0], [0], [1], [0, 0, 1, 1], [], []>} : vector<1x32xf32>, vector<32x32xf32>, vector<1x32xf32> -> vector<1x32xf32>
    %63 = arith.addf %60, %62 : vector<1x32xf32>
    %c0_45 = arith.constant 0 : index
    %c0_46 = arith.constant 0 : index
    %64 = vector.load %arg16[%c0_45, %c0_46] : memref<1x32xf32, #tpu.memory_space<vmem>>, vector<1x32xf32>
    %65 = arith.addf %63, %64 : vector<1x32xf32>
    %66 = arith.negf %65 : vector<1x32xf32>
    %67 = math.exp %66 : vector<1x32xf32>
    %cst_47 = arith.constant 1.000000e+00 : f32
    %68 = vector.broadcast %cst_47 : f32 to vector<1x32xf32>
    %69 = arith.addf %68, %67 : vector<1x32xf32>
    %70 = arith.divf %68, %69 : vector<1x32xf32>
    %c0_48 = arith.constant 0 : index
    %c0_49 = arith.constant 0 : index
    %71 = vector.load %arg11[%c0_48, %c0_49] : memref<32x32xf32, #tpu.memory_space<vmem>>, vector<32x32xf32>
    %cst_50 = arith.constant dense<0.000000e+00> : vector<1x32xf32>
    %72 = tpu.matmul %46, %71, %cst_50 {dimension_numbers = #tpu.dot_dimension_numbers<[1], [0], [0], [1], [0, 0, 1, 1], [], []>} : vector<1x32xf32>, vector<32x32xf32>, vector<1x32xf32> -> vector<1x32xf32>
    %c0_51 = arith.constant 0 : index
    %c0_52 = arith.constant 0 : index
    %73 = vector.load %arg17[%c0_51, %c0_52] : memref<1x32xf32, #tpu.memory_space<vmem>>, vector<1x32xf32>
    %74 = arith.addf %72, %73 : vector<1x32xf32>
    %c0_53 = arith.constant 0 : index
    %c0_54 = arith.constant 0 : index
    %75 = vector.load %arg14[%c0_53, %c0_54] : memref<32x32xf32, #tpu.memory_space<vmem>>, vector<32x32xf32>
    %cst_55 = arith.constant dense<0.000000e+00> : vector<1x32xf32>
    %76 = tpu.matmul %5, %75, %cst_55 {dimension_numbers = #tpu.dot_dimension_numbers<[1], [0], [0], [1], [0, 0, 1, 1], [], []>} : vector<1x32xf32>, vector<32x32xf32>, vector<1x32xf32> -> vector<1x32xf32>
    %c0_56 = arith.constant 0 : index
    %c0_57 = arith.constant 0 : index
    %77 = vector.load %arg18[%c0_56, %c0_57] : memref<1x32xf32, #tpu.memory_space<vmem>>, vector<1x32xf32>
    %78 = arith.addf %76, %77 : vector<1x32xf32>
    %79 = arith.mulf %58, %78 : vector<1x32xf32>
    %80 = arith.addf %74, %79 : vector<1x32xf32>
    %81 = math.tanh %80 : vector<1x32xf32>
    %cst_58 = arith.constant 1.000000e+00 : f32
    %82 = vector.broadcast %cst_58 : f32 to vector<1x32xf32>
    %83 = arith.subf %82, %70 : vector<1x32xf32>
    %84 = arith.mulf %83, %81 : vector<1x32xf32>
    %85 = arith.mulf %70, %5 : vector<1x32xf32>
    %86 = arith.addf %84, %85 : vector<1x32xf32>
    %c0_59 = arith.constant 0 : index
    %c0_60 = arith.constant 0 : index
    %c0_61 = arith.constant 0 : index
    %87 = vector.load %arg19[%c0_59, %c0_60, %c0_61] : memref<1x1x32xf32, #tpu.memory_space<vmem>>, vector<1x1x32xf32>
    %88 = vector.shape_cast %87 : vector<1x1x32xf32> to vector<1x32xf32>
    %89 = vector.shape_cast %86 : vector<1x32xf32> to vector<1x1x32xf32>
    tpu.vector_store %arg19[%c0_59, %c0_60, %c0_61], %89 {strides = array<i32>} : memref<1x1x32xf32, #tpu.memory_space<vmem>>, vector<1x1x32xf32>,
    return
  }
  func.func @transform_0(%arg0: i32) -> (i32, i32, i32) {
    %c0_i32 = arith.constant 0 : i32
    %c0_i32_0 = arith.constant 0 : i32
    %c0_i32_1 = arith.constant 0 : i32
    return %arg0, %c0_i32, %c0_i32_0 : i32, i32, i32
  }
  func.func @transform_1(%arg0: i32) -> (i32, i32, i32) {
    %c0_i32 = arith.constant 0 : i32
    %c0_i32_0 = arith.constant 0 : i32
    %c0_i32_1 = arith.constant 0 : i32
    return %arg0, %c0_i32, %c0_i32_0 : i32, i32, i32
  }
  func.func @transform_2(%arg0: i32) -> (i32, i32, i32) {
    %c0_i32 = arith.constant 0 : i32
    %c0_i32_0 = arith.constant 0 : i32
    %c0_i32_1 = arith.constant 0 : i32
    return %arg0, %c0_i32, %c0_i32_0 : i32, i32, i32
  }
  func.func @transform_3(%arg0: i32) -> (i32, i32) {
    %c0_i32 = arith.constant 0 : i32
    %c0_i32_0 = arith.constant 0 : i32
    %c0_i32_1 = arith.constant 0 : i32
    return %c0_i32, %c0_i32_0 : i32, i32
  }
  func.func @transform_4(%arg0: i32) -> (i32, i32) {
    %c0_i32 = arith.constant 0 : i32
    %c0_i32_0 = arith.constant 0 : i32
    %c0_i32_1 = arith.constant 0 : i32
    return %c0_i32, %c0_i32_0 : i32, i32
  }
  func.func @transform_5(%arg0: i32) -> (i32, i32) {
    %c0_i32 = arith.constant 0 : i32
    %c0_i32_0 = arith.constant 0 : i32
    %c0_i32_1 = arith.constant 0 : i32
    return %c0_i32, %c0_i32_0 : i32, i32
  }
  func.func @transform_6(%arg0: i32) -> (i32, i32) {
    %c0_i32 = arith.constant 0 : i32
    %c0_i32_0 = arith.constant 0 : i32
    %c0_i32_1 = arith.constant 0 : i32
    return %c0_i32, %c0_i32_0 : i32, i32
  }
  func.func @transform_7(%arg0: i32) -> (i32, i32) {
    %c0_i32 = arith.constant 0 : i32
    %c0_i32_0 = arith.constant 0 : i32
    %c0_i32_1 = arith.constant 0 : i32
    return %c0_i32, %c0_i32_0 : i32, i32
  }
  func.func @transform_8(%arg0: i32) -> (i32, i32) {
    %c0_i32 = arith.constant 0 : i32
    %c0_i32_0 = arith.constant 0 : i32
    %c0_i32_1 = arith.constant 0 : i32
    return %c0_i32, %c0_i32_0 : i32, i32
  }
  func.func @transform_9(%arg0: i32) -> (i32, i32) {
    %c0_i32 = arith.constant 0 : i32
    %c0_i32_0 = arith.constant 0 : i32
    %c0_i32_1 = arith.constant 0 : i32
    return %c0_i32, %c0_i32_0 : i32, i32
  }
  func.func @transform_10(%arg0: i32) -> (i32, i32) {
    %c0_i32 = arith.constant 0 : i32
    %c0_i32_0 = arith.constant 0 : i32
    %c0_i32_1 = arith.constant 0 : i32
    return %c0_i32, %c0_i32_0 : i32, i32
  }
  func.func @transform_11(%arg0: i32) -> (i32, i32) {
    %c0_i32 = arith.constant 0 : i32
    %c0_i32_0 = arith.constant 0 : i32
    %c0_i32_1 = arith.constant 0 : i32
    return %c0_i32, %c0_i32_0 : i32, i32
  }
  func.func @transform_12(%arg0: i32) -> (i32, i32) {
    %c0_i32 = arith.constant 0 : i32
    %c0_i32_0 = arith.constant 0 : i32
    %c0_i32_1 = arith.constant 0 : i32
    return %c0_i32, %c0_i32_0 : i32, i32
  }
  func.func @transform_13(%arg0: i32) -> (i32, i32) {
    %c0_i32 = arith.constant 0 : i32
    %c0_i32_0 = arith.constant 0 : i32
    %c0_i32_1 = arith.constant 0 : i32
    return %c0_i32, %c0_i32_0 : i32, i32
  }
  func.func @transform_14(%arg0: i32) -> (i32, i32) {
    %c0_i32 = arith.constant 0 : i32
    %c0_i32_0 = arith.constant 0 : i32
    %c0_i32_1 = arith.constant 0 : i32
    return %c0_i32, %c0_i32_0 : i32, i32
  }
  func.func @transform_15(%arg0: i32) -> (i32, i32) {
    %c0_i32 = arith.constant 0 : i32
    %c0_i32_0 = arith.constant 0 : i32
    %c0_i32_1 = arith.constant 0 : i32
    return %c0_i32, %c0_i32_0 : i32, i32
  }
  func.func @transform_16(%arg0: i32) -> (i32, i32) {
    %c0_i32 = arith.constant 0 : i32
    %c0_i32_0 = arith.constant 0 : i32
    %c0_i32_1 = arith.constant 0 : i32
    return %c0_i32, %c0_i32_0 : i32, i32
  }
  func.func @transform_17(%arg0: i32) -> (i32, i32) {
    %c0_i32 = arith.constant 0 : i32
    %c0_i32_0 = arith.constant 0 : i32
    %c0_i32_1 = arith.constant 0 : i32
    return %c0_i32, %c0_i32_0 : i32, i32
  }
  func.func @transform_18(%arg0: i32) -> (i32, i32, i32) {
    %c0_i32 = arith.constant 0 : i32
    %c0_i32_0 = arith.constant 0 : i32
    %c0_i32_1 = arith.constant 0 : i32
    return %arg0, %c0_i32, %c0_i32_0 : i32, i32, i32
  }
}

module attributes {stable_mosaic.version = 11 : i64} {
  func.func @_head_kernel(%arg0: i32, %arg1: memref<2x32xf32, #tpu.memory_space<vmem>>, %arg2: memref<2x24xf32, #tpu.memory_space<vmem>>, %arg3: memref<24x256xf32, #tpu.memory_space<vmem>>, %arg4: memref<1x256xf32, #tpu.memory_space<vmem>>, %arg5: memref<256x32xf32, #tpu.memory_space<vmem>>, %arg6: memref<1x32xf32, #tpu.memory_space<vmem>>, %arg7: memref<32x128xf32, #tpu.memory_space<vmem>>, %arg8: memref<32x128xf32, #tpu.memory_space<vmem>>, %arg9: memref<1x128xf32, #tpu.memory_space<vmem>>, %arg10: memref<128x1xf32, #tpu.memory_space<vmem>>, %arg11: memref<1x1xf32, #tpu.memory_space<vmem>>, %arg12: memref<2x1xf32, #tpu.memory_space<vmem>>) attributes {dimension_semantics = [#tpu.dimension_semantics<arbitrary>], iteration_bounds = array<i64: 1>, scalar_prefetch = 0 : i64, scratch_operands = 0 : i64, tpu.core_type = #tpu.core_type<tc>, window_params = [{pipeline_mode = #tpu.pipeline_mode<synchronous>, transform_indices = @transform_0, window_bounds = array<i64: 2, 32>}, {pipeline_mode = #tpu.pipeline_mode<synchronous>, transform_indices = @transform_1, window_bounds = array<i64: 2, 24>}, {pipeline_mode = #tpu.pipeline_mode<synchronous>, transform_indices = @transform_2, window_bounds = array<i64: 24, 256>}, {pipeline_mode = #tpu.pipeline_mode<synchronous>, transform_indices = @transform_3, window_bounds = array<i64: 1, 256>}, {pipeline_mode = #tpu.pipeline_mode<synchronous>, transform_indices = @transform_4, window_bounds = array<i64: 256, 32>}, {pipeline_mode = #tpu.pipeline_mode<synchronous>, transform_indices = @transform_5, window_bounds = array<i64: 1, 32>}, {pipeline_mode = #tpu.pipeline_mode<synchronous>, transform_indices = @transform_6, window_bounds = array<i64: 32, 128>}, {pipeline_mode = #tpu.pipeline_mode<synchronous>, transform_indices = @transform_7, window_bounds = array<i64: 32, 128>}, {pipeline_mode = #tpu.pipeline_mode<synchronous>, transform_indices = @transform_8, window_bounds = array<i64: 1, 128>}, {pipeline_mode = #tpu.pipeline_mode<synchronous>, transform_indices = @transform_9, window_bounds = array<i64: 128, 1>}, {pipeline_mode = #tpu.pipeline_mode<synchronous>, transform_indices = @transform_10, window_bounds = array<i64: 1, 1>}, {pipeline_mode = #tpu.pipeline_mode<synchronous>, transform_indices = @transform_11, window_bounds = array<i64: 2, 1>}]} {
    %c0 = arith.constant 0 : index
    %c0_0 = arith.constant 0 : index
    %0 = vector.load %arg2[%c0, %c0_0] : memref<2x24xf32, #tpu.memory_space<vmem>>, vector<2x24xf32>
    %c0_1 = arith.constant 0 : index
    %c0_2 = arith.constant 0 : index
    %1 = vector.load %arg3[%c0_1, %c0_2] : memref<24x256xf32, #tpu.memory_space<vmem>>, vector<24x256xf32>
    %cst = arith.constant dense<0.000000e+00> : vector<2x256xf32>
    %2 = tpu.matmul %0, %1, %cst {dimension_numbers = #tpu.dot_dimension_numbers<[1], [0], [0], [1], [0, 0, 1, 1], [], []>} : vector<2x24xf32>, vector<24x256xf32>, vector<2x256xf32> -> vector<2x256xf32>
    %c0_3 = arith.constant 0 : index
    %c0_4 = arith.constant 0 : index
    %3 = vector.load %arg4[%c0_3, %c0_4] : memref<1x256xf32, #tpu.memory_space<vmem>>, vector<1x256xf32>
    %4 = vector.broadcast %3 : vector<1x256xf32> to vector<2x256xf32>
    %5 = arith.addf %2, %4 : vector<2x256xf32>
    %cst_5 = arith.constant 0.000000e+00 : f32
    %6 = vector.broadcast %cst_5 : f32 to vector<2x256xf32>
    %7 = arith.maximumf %5, %6 : vector<2x256xf32>
    %c0_6 = arith.constant 0 : index
    %c0_7 = arith.constant 0 : index
    %8 = vector.load %arg5[%c0_6, %c0_7] : memref<256x32xf32, #tpu.memory_space<vmem>>, vector<256x32xf32>
    %cst_8 = arith.constant dense<0.000000e+00> : vector<2x32xf32>
    %9 = tpu.matmul %7, %8, %cst_8 {dimension_numbers = #tpu.dot_dimension_numbers<[1], [0], [0], [1], [0, 0, 1, 1], [], []>} : vector<2x256xf32>, vector<256x32xf32>, vector<2x32xf32> -> vector<2x32xf32>
    %c0_9 = arith.constant 0 : index
    %c0_10 = arith.constant 0 : index
    %10 = vector.load %arg6[%c0_9, %c0_10] : memref<1x32xf32, #tpu.memory_space<vmem>>, vector<1x32xf32>
    %11 = vector.broadcast %10 : vector<1x32xf32> to vector<2x32xf32>
    %12 = arith.addf %9, %11 : vector<2x32xf32>
    %c0_11 = arith.constant 0 : index
    %c0_12 = arith.constant 0 : index
    %13 = vector.load %arg1[%c0_11, %c0_12] : memref<2x32xf32, #tpu.memory_space<vmem>>, vector<2x32xf32>
    %c0_13 = arith.constant 0 : index
    %c0_14 = arith.constant 0 : index
    %14 = vector.load %arg7[%c0_13, %c0_14] : memref<32x128xf32, #tpu.memory_space<vmem>>, vector<32x128xf32>
    %cst_15 = arith.constant dense<0.000000e+00> : vector<2x128xf32>
    %15 = tpu.matmul %13, %14, %cst_15 {dimension_numbers = #tpu.dot_dimension_numbers<[1], [0], [0], [1], [0, 0, 1, 1], [], []>} : vector<2x32xf32>, vector<32x128xf32>, vector<2x128xf32> -> vector<2x128xf32>
    %c0_16 = arith.constant 0 : index
    %c0_17 = arith.constant 0 : index
    %16 = vector.load %arg8[%c0_16, %c0_17] : memref<32x128xf32, #tpu.memory_space<vmem>>, vector<32x128xf32>
    %cst_18 = arith.constant dense<0.000000e+00> : vector<2x128xf32>
    %17 = tpu.matmul %12, %16, %cst_18 {dimension_numbers = #tpu.dot_dimension_numbers<[1], [0], [0], [1], [0, 0, 1, 1], [], []>} : vector<2x32xf32>, vector<32x128xf32>, vector<2x128xf32> -> vector<2x128xf32>
    %18 = arith.addf %15, %17 : vector<2x128xf32>
    %c0_19 = arith.constant 0 : index
    %c0_20 = arith.constant 0 : index
    %19 = vector.load %arg9[%c0_19, %c0_20] : memref<1x128xf32, #tpu.memory_space<vmem>>, vector<1x128xf32>
    %20 = vector.broadcast %19 : vector<1x128xf32> to vector<2x128xf32>
    %21 = arith.addf %18, %20 : vector<2x128xf32>
    %cst_21 = arith.constant 0.000000e+00 : f32
    %22 = vector.broadcast %cst_21 : f32 to vector<2x128xf32>
    %23 = arith.maximumf %21, %22 : vector<2x128xf32>
    %c0_22 = arith.constant 0 : index
    %c0_23 = arith.constant 0 : index
    %24 = vector.load %arg10[%c0_22, %c0_23] : memref<128x1xf32, #tpu.memory_space<vmem>>, vector<128x1xf32>
    %cst_24 = arith.constant dense<0.000000e+00> : vector<2x1xf32>
    %25 = tpu.matmul %23, %24, %cst_24 {dimension_numbers = #tpu.dot_dimension_numbers<[1], [0], [0], [1], [0, 0, 1, 1], [], []>} : vector<2x128xf32>, vector<128x1xf32>, vector<2x1xf32> -> vector<2x1xf32>
    %c0_25 = arith.constant 0 : index
    %c0_26 = arith.constant 0 : index
    %26 = vector.load %arg11[%c0_25, %c0_26] : memref<1x1xf32, #tpu.memory_space<vmem>>, vector<1x1xf32>
    %27 = vector.broadcast %26 : vector<1x1xf32> to vector<2x1xf32>
    %28 = arith.addf %25, %27 : vector<2x1xf32>
    %c0_27 = arith.constant 0 : index
    %c0_28 = arith.constant 0 : index
    %29 = vector.load %arg12[%c0_27, %c0_28] : memref<2x1xf32, #tpu.memory_space<vmem>>, vector<2x1xf32>
    tpu.vector_store %arg12[%c0_27, %c0_28], %28 {strides = array<i32>} : memref<2x1xf32, #tpu.memory_space<vmem>>, vector<2x1xf32>,
    return
  }
  func.func @transform_0(%arg0: i32) -> (i32, i32) {
    %c0_i32 = arith.constant 0 : i32
    %c0_i32_0 = arith.constant 0 : i32
    %c0_i32_1 = arith.constant 0 : i32
    return %c0_i32, %c0_i32_0 : i32, i32
  }
  func.func @transform_1(%arg0: i32) -> (i32, i32) {
    %c0_i32 = arith.constant 0 : i32
    %c0_i32_0 = arith.constant 0 : i32
    %c0_i32_1 = arith.constant 0 : i32
    return %c0_i32, %c0_i32_0 : i32, i32
  }
  func.func @transform_2(%arg0: i32) -> (i32, i32) {
    %c0_i32 = arith.constant 0 : i32
    %c0_i32_0 = arith.constant 0 : i32
    %c0_i32_1 = arith.constant 0 : i32
    return %c0_i32, %c0_i32_0 : i32, i32
  }
  func.func @transform_3(%arg0: i32) -> (i32, i32) {
    %c0_i32 = arith.constant 0 : i32
    %c0_i32_0 = arith.constant 0 : i32
    %c0_i32_1 = arith.constant 0 : i32
    return %c0_i32, %c0_i32_0 : i32, i32
  }
  func.func @transform_4(%arg0: i32) -> (i32, i32) {
    %c0_i32 = arith.constant 0 : i32
    %c0_i32_0 = arith.constant 0 : i32
    %c0_i32_1 = arith.constant 0 : i32
    return %c0_i32, %c0_i32_0 : i32, i32
  }
  func.func @transform_5(%arg0: i32) -> (i32, i32) {
    %c0_i32 = arith.constant 0 : i32
    %c0_i32_0 = arith.constant 0 : i32
    %c0_i32_1 = arith.constant 0 : i32
    return %c0_i32, %c0_i32_0 : i32, i32
  }
  func.func @transform_6(%arg0: i32) -> (i32, i32) {
    %c0_i32 = arith.constant 0 : i32
    %c0_i32_0 = arith.constant 0 : i32
    %c0_i32_1 = arith.constant 0 : i32
    return %c0_i32, %c0_i32_0 : i32, i32
  }
  func.func @transform_7(%arg0: i32) -> (i32, i32) {
    %c0_i32 = arith.constant 0 : i32
    %c0_i32_0 = arith.constant 0 : i32
    %c0_i32_1 = arith.constant 0 : i32
    return %c0_i32, %c0_i32_0 : i32, i32
  }
  func.func @transform_8(%arg0: i32) -> (i32, i32) {
    %c0_i32 = arith.constant 0 : i32
    %c0_i32_0 = arith.constant 0 : i32
    %c0_i32_1 = arith.constant 0 : i32
    return %c0_i32, %c0_i32_0 : i32, i32
  }
  func.func @transform_9(%arg0: i32) -> (i32, i32) {
    %c0_i32 = arith.constant 0 : i32
    %c0_i32_0 = arith.constant 0 : i32
    %c0_i32_1 = arith.constant 0 : i32
    return %c0_i32, %c0_i32_0 : i32, i32
  }
  func.func @transform_10(%arg0: i32) -> (i32, i32) {
    %c0_i32 = arith.constant 0 : i32
    %c0_i32_0 = arith.constant 0 : i32
    %c0_i32_1 = arith.constant 0 : i32
    return %c0_i32, %c0_i32_0 : i32, i32
  }
  func.func @transform_11(%arg0: i32) -> (i32, i32) {
    %c0_i32 = arith.constant 0 : i32
    %c0_i32_0 = arith.constant 0 : i32
    %c0_i32_1 = arith.constant 0 : i32
    return %c0_i32, %c0_i32_0 : i32, i32
  }
}

</mosaic_0001>

<llo_original>
// kernel: graph_fingerprints_forward.8
$region0: #{graph_fingerprints_forward.8}
  #allocation0 [shape = 'u32[]', space=smem, size = 0x4, offset = 0x4, fixed_abs, tag = 'smem constant byte address 0x4 - core index']
  #allocation1 [shape = 'u32[72,128]{1,0:T(1,128)}', space=vmem, size = 0x9000, scoped, tag = 'internal scratch']
  #allocation2 [shape = 'f32[1,1]{1,0:T(1,128)S(1)}', space=vmem, size = 0x200, scoped, tag = 'scoped memory for graph_fingerprints_forward.8']
  %s0 = inlined_call_operand.vmem [shape: f32[2,8,32], index: 0, kind: input, shape index: {}]
  %s1 = inlined_call_operand.vmem [shape: f32[2,1,8], index: 1, kind: input, shape index: {}]
  %s2 = inlined_call_operand.vmem [shape: f32[2,1,32], index: 2, kind: input, shape index: {}]
  %s3 = inlined_call_operand.vmem [shape: f32[32,1], index: 3, kind: input, shape index: {}]
  %s4 = inlined_call_operand.vmem [shape: f32[1,32], index: 4, kind: input, shape index: {}]
  %s5 = inlined_call_operand.<no memory space> [shape: f32[1,1], index: 5, kind: input, shape index: {}]
  %s6 = inlined_call_operand.vmem [shape: f32[32,32], index: 6, kind: input, shape index: {}]
  %s7 = inlined_call_operand.vmem [shape: f32[1,32], index: 7, kind: input, shape index: {}]
  %s8 = inlined_call_operand.vmem [shape: f32[32,32], index: 8, kind: input, shape index: {}]
  %s9 = inlined_call_operand.vmem [shape: f32[32,32], index: 9, kind: input, shape index: {}]
  %s10 = inlined_call_operand.vmem [shape: f32[32,32], index: 10, kind: input, shape index: {}]
  %s11 = inlined_call_operand.vmem [shape: f32[32,32], index: 11, kind: input, shape index: {}]
  %s12 = inlined_call_operand.vmem [shape: f32[32,32], index: 12, kind: input, shape index: {}]
  %s13 = inlined_call_operand.vmem [shape: f32[32,32], index: 13, kind: input, shape index: {}]
  %s14 = inlined_call_operand.vmem [shape: f32[1,32], index: 14, kind: input, shape index: {}]
  %s15 = inlined_call_operand.vmem [shape: f32[1,32], index: 15, kind: input, shape index: {}]
  %s16 = inlined_call_operand.vmem [shape: f32[1,32], index: 16, kind: input, shape index: {}]
  %s17 = inlined_call_operand.vmem [shape: f32[1,32], index: 17, kind: input, shape index: {}]
  %s18 = inlined_call_operand.vmem [shape: f32[2,1,32], index: 18, kind: output, shape index: {}]
  %s19 = sld [smem:[#allocation0]]
  $region105: #{graph_fingerprints_forward.8} parent=0
    _
  %s21 = ssub.s32 1, %s19
  %s22 = scalar_select 0, %s21, %s19
  %v23 = vstv %s5
  %24 = vst [vmem:[#allocation2] sm:$0x1] %v23
  loop: start=0, step=1, limit=4
  $region2: #{graph_fingerprints_forward.8} parent=0 // loop_pre_header
    _
  $region3: #{graph_fingerprints_forward.8} parent=0 // loop_header
    %s26 = sphi 0, %s30
    %p27 = scmp.ge.s32.totalorder %s26, 4
    %s36 = sphi 0, %s38
    %s39 = sphi 0, %s36
    %s40 = sphi 0, %s39
    %s56 = sphi 0, %s40
    %s62 = sphi 0, %s64
    %s65 = sphi 0, %s62
    %s66 = sphi 0, %s65
    %s82 = sphi 0, %s66
    %s88 = sphi 0, %s90
    %s91 = sphi 0, %s88
    %s92 = sphi 0, %s91
    %s108 = sphi 0, %s92
    %s112 = sphi 0, %s112
    %s114 = sphi 0, %s112
    %s115 = sphi 0, %s114
    %s129 = sphi 0, %s115
    %s133 = sphi 0, %s133
    %s135 = sphi 0, %s133
    %s136 = sphi 0, %s135
    %s150 = sphi 0, %s136
    %s154 = sphi 0, %s154
    %s156 = sphi 0, %s154
    %s157 = sphi 0, %s156
    %s171 = sphi 0, %s157
    %s175 = sphi 0, %s175
    %s177 = sphi 0, %s175
    %s178 = sphi 0, %s177
    %s192 = sphi 0, %s178
    %s196 = sphi 0, %s196
    %s198 = sphi 0, %s196
    %s199 = sphi 0, %s198
    %s213 = sphi 0, %s199
    %s217 = sphi 0, %s217
    %s219 = sphi 0, %s217
    %s220 = sphi 0, %s219
    %s234 = sphi 0, %s220
    %s238 = sphi 0, %s238
    %s240 = sphi 0, %s238
    %s241 = sphi 0, %s240
    %s255 = sphi 0, %s241
    %s259 = sphi 0, %s259
    %s261 = sphi 0, %s259
    %s262 = sphi 0, %s261
    %s276 = sphi 0, %s262
    %s280 = sphi 0, %s280
    %s282 = sphi 0, %s280
    %s283 = sphi 0, %s282
    %s297 = sphi 0, %s283
    %s301 = sphi 0, %s301
    %s303 = sphi 0, %s301
    %s304 = sphi 0, %s303
    %s318 = sphi 0, %s304
    %s322 = sphi 0, %s322
    %s324 = sphi 0, %s322
    %s325 = sphi 0, %s324
    %s339 = sphi 0, %s325
    %s343 = sphi 0, %s343
    %s345 = sphi 0, %s343
    %s346 = sphi 0, %s345
    %s360 = sphi 0, %s346
    %s364 = sphi 0, %s364
    %s366 = sphi 0, %s364
    %s367 = sphi 0, %s366
    %s381 = sphi 0, %s367
    %s385 = sphi 0, %s385
    %s387 = sphi 0, %s385
    %s388 = sphi 0, %s387
    %s402 = sphi 0, %s388
    %s406 = sphi 0, %s406
    %s408 = sphi 0, %s406
    %s409 = sphi 0, %s408
    %s423 = sphi 0, %s409
    %s429 = sphi 0, %s431
    %s432 = sphi 0, %s429
    %s433 = sphi 0, %s432
    %s449 = sphi 0, %s433
  $region4: #{graph_fingerprints_forward.8} parent=0 // loop_header_branch
    %29 = sbr.rel (%p27) target = $region8
  $region5: #{graph_fingerprints_forward.8} parent=0 // loop_body
    %s31 = ssub.s32 %s26, 1
    %s32 = ssub.s32 %s26, 2
    %s33 = sadd.s32 %s26, 1
    %s34 = ssub.s32 %s26, %s33
    %p35 = scmp.eq.s32.totalorder %s34, 0
    %s37 = sadd.s32 %s36, 1
    %s38 = scalar_select %p35, %s36, %s37
    %p41 = pneg %p35
    %p42 = scmp.eq.s32.totalorder %s26, 1
    %p43 = por %p41, %p42
    %p44 = scmp.ne.s32.totalorder %s36, %s39
    %p45 = scmp.eq.s32.totalorder %s26, 0
    %p46 = por %p44, %p45
    %p47 = scmp.ne.s32.totalorder %s36, %s39
    %p48 = scmp.eq.s32.totalorder %s31, 1
    %p49 = por %p47, %p48
    %p50 = scmp.ne.s32.totalorder %s39, %s40
    %p51 = scmp.eq.s32.totalorder %s31, 0
    %p52 = por %p50, %p51
    %p53 = scmp.ne.s32.totalorder %s39, %s40
    %p54 = scmp.eq.s32.totalorder %s32, 1
    %p55 = por %p53, %p54
    %p57 = scmp.ne.s32.totalorder %s40, %s56
    %p58 = scmp.eq.s32.totalorder %s32, 0
    %p59 = por %p57, %p58
    %s60 = ssub.s32 %s26, %s33
    %p61 = scmp.eq.s32.totalorder %s60, 0
    %s63 = sadd.s32 %s62, 1
    %s64 = scalar_select %p61, %s62, %s63
    %p67 = pneg %p61
    %p68 = scmp.eq.s32.totalorder %s26, 1
    %p69 = por %p67, %p68
    %p70 = scmp.ne.s32.totalorder %s62, %s65
    %p71 = scmp.eq.s32.totalorder %s26, 0
    %p72 = por %p70, %p71
    %p73 = scmp.ne.s32.totalorder %s62, %s65
    %p74 = scmp.eq.s32.totalorder %s31, 1
    %p75 = por %p73, %p74
    %p76 = scmp.ne.s32.totalorder %s65, %s66
    %p77 = scmp.eq.s32.totalorder %s31, 0
    %p78 = por %p76, %p77
    %p79 = scmp.ne.s32.totalorder %s65, %s66
    %p80 = scmp.eq.s32.totalorder %s32, 1
    %p81 = por %p79, %p80
    %p83 = scmp.ne.s32.totalorder %s66, %s82
    %p84 = scmp.eq.s32.totalorder %s32, 0
    %p85 = por %p83, %p84
    %s86 = ssub.s32 %s26, %s33
    %p87 = scmp.eq.s32.totalorder %s86, 0
    %s89 = sadd.s32 %s88, 1
    %s90 = scalar_select %p87, %s88, %s89
    %p93 = pneg %p87
    %p94 = scmp.eq.s32.totalorder %s26, 1
    %p95 = por %p93, %p94
    %p96 = scmp.ne.s32.totalorder %s88, %s91
    %p97 = scmp.eq.s32.totalorder %s26, 0
    %p98 = por %p96, %p97
    %p99 = scmp.ne.s32.totalorder %s88, %s91
    %p100 = scmp.eq.s32.totalorder %s31, 1
    %p101 = por %p99, %p100
    %p102 = scmp.ne.s32.totalorder %s91, %s92
    %p103 = scmp.eq.s32.totalorder %s31, 0
    %p104 = por %p102, %p103
    %p105 = scmp.ne.s32.totalorder %s91, %s92
    %p106 = scmp.eq.s32.totalorder %s32, 1
    %p107 = por %p105, %p106
    %p109 = scmp.ne.s32.totalorder %s92, %s108
    %p110 = scmp.eq.s32.totalorder %s32, 0
    %p111 = por %p109, %p110
    %s113 = sadd.s32 %s112, 1
    %p116 = scmp.eq.s32.totalorder %s26, 1
    %p117 = scmp.ne.s32.totalorder %s112, %s114
    %p118 = scmp.eq.s32.totalorder %s26, 0
    %p119 = por %p117, %p118
    %p120 = scmp.ne.s32.totalorder %s112, %s114
    %p121 = scmp.eq.s32.totalorder %s31, 1
    %p122 = por %p120, %p121
    %p123 = scmp.ne.s32.totalorder %s114, %s115
    %p124 = scmp.eq.s32.totalorder %s31, 0
    %p125 = por %p123, %p124
    %p126 = scmp.ne.s32.totalorder %s114, %s115
    %p127 = scmp.eq.s32.totalorder %s32, 1
    %p128 = por %p126, %p127
    %p130 = scmp.ne.s32.totalorder %s115, %s129
    %p131 = scmp.eq.s32.totalorder %s32, 0
    %p132 = por %p130, %p131
    %s134 = sadd.s32 %s133, 1
    %p137 = scmp.eq.s32.totalorder %s26, 1
    %p138 = scmp.ne.s32.totalorder %s133, %s135
    %p139 = scmp.eq.s32.totalorder %s26, 0
    %p140 = por %p138, %p139
    %p141 = scmp.ne.s32.totalorder %s133, %s135
    %p142 = scmp.eq.s32.totalorder %s31, 1
    %p143 = por %p141, %p142
    %p144 = scmp.ne.s32.totalorder %s135, %s136
    %p145 = scmp.eq.s32.totalorder %s31, 0
    %p146 = por %p144, %p145
    %p147 = scmp.ne.s32.totalorder %s135, %s136
    %p148 = scmp.eq.s32.totalorder %s32, 1
    %p149 = por %p147, %p148
    %p151 = scmp.ne.s32.totalorder %s136, %s150
    %p152 = scmp.eq.s32.totalorder %s32, 0
    %p153 = por %p151, %p152
    %s155 = sadd.s32 %s154, 1
    %p158 = scmp.eq.s32.totalorder %s26, 1
    %p159 = scmp.ne.s32.totalorder %s154, %s156
    %p160 = scmp.eq.s32.totalorder %s26, 0
    %p161 = por %p159, %p160
    %p162 = scmp.ne.s32.totalorder %s154, %s156
    %p163 = scmp.eq.s32.totalorder %s31, 1
    %p164 = por %p162, %p163
    %p165 = scmp.ne.s32.totalorder %s156, %s157
    %p166 = scmp.eq.s32.totalorder %s31, 0
    %p167 = por %p165, %p166
    %p168 = scmp.ne.s32.totalorder %s156, %s157
    %p169 = scmp.eq.s32.totalorder %s32, 1
    %p170 = por %p168, %p169
    %p172 = scmp.ne.s32.totalorder %s157, %s171
    %p173 = scmp.eq.s32.totalorder %s32, 0
    %p174 = por %p172, %p173
    %s176 = sadd.s32 %s175, 1
    %p179 = scmp.eq.s32.totalorder %s26, 1
    %p180 = scmp.ne.s32.totalorder %s175, %s177
    %p181 = scmp.eq.s32.totalorder %s26, 0
    %p182 = por %p180, %p181
    %p183 = scmp.ne.s32.totalorder %s175, %s177
    %p184 = scmp.eq.s32.totalorder %s31, 1
    %p185 = por %p183, %p184
    %p186 = scmp.ne.s32.totalorder %s177, %s178
    %p187 = scmp.eq.s32.totalorder %s31, 0
    %p188 = por %p186, %p187
    %p189 = scmp.ne.s32.totalorder %s177, %s178
    %p190 = scmp.eq.s32.totalorder %s32, 1
    %p191 = por %p189, %p190
    %p193 = scmp.ne.s32.totalorder %s178, %s192
    %p194 = scmp.eq.s32.totalorder %s32, 0
    %p195 = por %p193, %p194
    %s197 = sadd.s32 %s196, 1
    %p200 = scmp.eq.s32.totalorder %s26, 1
    %p201 = scmp.ne.s32.totalorder %s196, %s198
    %p202 = scmp.eq.s32.totalorder %s26, 0
    %p203 = por %p201, %p202
    %p204 = scmp.ne.s32.totalorder %s196, %s198
    %p205 = scmp.eq.s32.totalorder %s31, 1
    %p206 = por %p204, %p205
    %p207 = scmp.ne.s32.totalorder %s198, %s199
    %p208 = scmp.eq.s32.totalorder %s31, 0
    %p209 = por %p207, %p208
    %p210 = scmp.ne.s32.totalorder %s198, %s199
    %p211 = scmp.eq.s32.totalorder %s32, 1
    %p212 = por %p210, %p211
    %p214 = scmp.ne.s32.totalorder %s199, %s213
    %p215 = scmp.eq.s32.totalorder %s32, 0
    %p216 = por %p214, %p215
    %s218 = sadd.s32 %s217, 1
    %p221 = scmp.eq.s32.totalorder %s26, 1
    %p222 = scmp.ne.s32.totalorder %s217, %s219
    %p223 = scmp.eq.s32.totalorder %s26, 0
    %p224 = por %p222, %p223
    %p225 = scmp.ne.s32.totalorder %s217, %s219
    %p226 = scmp.eq.s32.totalorder %s31, 1
    %p227 = por %p225, %p226
    %p228 = scmp.ne.s32.totalorder %s219, %s220
    %p229 = scmp.eq.s32.totalorder %s31, 0
    %p230 = por %p228, %p229
    %p231 = scmp.ne.s32.totalorder %s219, %s220
    %p232 = scmp.eq.s32.totalorder %s32, 1
    %p233 = por %p231, %p232
    %p235 = scmp.ne.s32.totalorder %s220, %s234
    %p236 = scmp.eq.s32.totalorder %s32, 0
    %p237 = por %p235, %p236
    %s239 = sadd.s32 %s238, 1
    %p242 = scmp.eq.s32.totalorder %s26, 1
    %p243 = scmp.ne.s32.totalorder %s238, %s240
    %p244 = scmp.eq.s32.totalorder %s26, 0
    %p245 = por %p243, %p244
    %p246 = scmp.ne.s32.totalorder %s238, %s240
    %p247 = scmp.eq.s32.totalorder %s31, 1
    %p248 = por %p246, %p247
    %p249 = scmp.ne.s32.totalorder %s240, %s241
    %p250 = scmp.eq.s32.totalorder %s31, 0
    %p251 = por %p249, %p250
    %p252 = scmp.ne.s32.totalorder %s240, %s241
    %p253 = scmp.eq.s32.totalorder %s32, 1
    %p254 = por %p252, %p253
    %p256 = scmp.ne.s32.totalorder %s241, %s255
    %p257 = scmp.eq.s32.totalorder %s32, 0
    %p258 = por %p256, %p257
    %s260 = sadd.s32 %s259, 1
    %p263 = scmp.eq.s32.totalorder %s26, 1
    %p264 = scmp.ne.s32.totalorder %s259, %s261
    %p265 = scmp.eq.s32.totalorder %s26, 0
    %p266 = por %p264, %p265
    %p267 = scmp.ne.s32.totalorder %s259, %s261
    %p268 = scmp.eq.s32.totalorder %s31, 1
    %p269 = por %p267, %p268
    %p270 = scmp.ne.s32.totalorder %s261, %s262
    %p271 = scmp.eq.s32.totalorder %s31, 0
    %p272 = por %p270, %p271
    %p273 = scmp.ne.s32.totalorder %s261, %s262
    %p274 = scmp.eq.s32.totalorder %s32, 1
    %p275 = por %p273, %p274
    %p277 = scmp.ne.s32.totalorder %s262, %s276
    %p278 = scmp.eq.s32.totalorder %s32, 0
    %p279 = por %p277, %p278
    %s281 = sadd.s32 %s280, 1
    %p284 = scmp.eq.s32.totalorder %s26, 1
    %p285 = scmp.ne.s32.totalorder %s280, %s282
    %p286 = scmp.eq.s32.totalorder %s26, 0
    %p287 = por %p285, %p286
    %p288 = scmp.ne.s32.totalorder %s280, %s282
    %p289 = scmp.eq.s32.totalorder %s31, 1
    %p290 = por %p288, %p289
    %p291 = scmp.ne.s32.totalorder %s282, %s283
    %p292 = scmp.eq.s32.totalorder %s31, 0
    %p293 = por %p291, %p292
    %p294 = scmp.ne.s32.totalorder %s282, %s283
    %p295 = scmp.eq.s32.totalorder %s32, 1
    %p296 = por %p294, %p295
    %p298 = scmp.ne.s32.totalorder %s283, %s297
    %p299 = scmp.eq.s32.totalorder %s32, 0
    %p300 = por %p298, %p299
    %s302 = sadd.s32 %s301, 1
    %p305 = scmp.eq.s32.totalorder %s26, 1
    %p306 = scmp.ne.s32.totalorder %s301, %s303
    %p307 = scmp.eq.s32.totalorder %s26, 0
    %p308 = por %p306, %p307
    %p309 = scmp.ne.s32.totalorder %s301, %s303
    %p310 = scmp.eq.s32.totalorder %s31, 1
    %p311 = por %p309, %p310
    %p312 = scmp.ne.s32.totalorder %s303, %s304
    %p313 = scmp.eq.s32.totalorder %s31, 0
    %p314 = por %p312, %p313
    %p315 = scmp.ne.s32.totalorder %s303, %s304
    %p316 = scmp.eq.s32.totalorder %s32, 1
    %p317 = por %p315, %p316
    %p319 = scmp.ne.s32.totalorder %s304, %s318
    %p320 = scmp.eq.s32.totalorder %s32, 0
    %p321 = por %p319, %p320
    %s323 = sadd.s32 %s322, 1
    %p326 = scmp.eq.s32.totalorder %s26, 1
    %p327 = scmp.ne.s32.totalorder %s322, %s324
    %p328 = scmp.eq.s32.totalorder %s26, 0
    %p329 = por %p327, %p328
    %p330 = scmp.ne.s32.totalorder %s322, %s324
    %p331 = scmp.eq.s32.totalorder %s31, 1
    %p332 = por %p330, %p331
    %p333 = scmp.ne.s32.totalorder %s324, %s325
    %p334 = scmp.eq.s32.totalorder %s31, 0
    %p335 = por %p333, %p334
    %p336 = scmp.ne.s32.totalorder %s324, %s325
    %p337 = scmp.eq.s32.totalorder %s32, 1
    %p338 = por %p336, %p337
    %p340 = scmp.ne.s32.totalorder %s325, %s339
    %p341 = scmp.eq.s32.totalorder %s32, 0
    %p342 = por %p340, %p341
    %s344 = sadd.s32 %s343, 1
    %p347 = scmp.eq.s32.totalorder %s26, 1
    %p348 = scmp.ne.s32.totalorder %s343, %s345
    %p349 = scmp.eq.s32.totalorder %s26, 0
    %p350 = por %p348, %p349
    %p351 = scmp.ne.s32.totalorder %s343, %s345
    %p352 = scmp.eq.s32.totalorder %s31, 1
    %p353 = por %p351, %p352
    %p354 = scmp.ne.s32.totalorder %s345, %s346
    %p355 = scmp.eq.s32.totalorder %s31, 0
    %p356 = por %p354, %p355
    %p357 = scmp.ne.s32.totalorder %s345, %s346
    %p358 = scmp.eq.s32.totalorder %s32, 1
    %p359 = por %p357, %p358
    %p361 = scmp.ne.s32.totalorder %s346, %s360
    %p362 = scmp.eq.s32.totalorder %s32, 0
    %p363 = por %p361, %p362
    %s365 = sadd.s32 %s364, 1
    %p368 = scmp.eq.s32.totalorder %s26, 1
    %p369 = scmp.ne.s32.totalorder %s364, %s366
    %p370 = scmp.eq.s32.totalorder %s26, 0
    %p371 = por %p369, %p370
    %p372 = scmp.ne.s32.totalorder %s364, %s366
    %p373 = scmp.eq.s32.totalorder %s31, 1
    %p374 = por %p372, %p373
    %p375 = scmp.ne.s32.totalorder %s366, %s367
    %p376 = scmp.eq.s32.totalorder %s31, 0
    %p377 = por %p375, %p376
    %p378 = scmp.ne.s32.totalorder %s366, %s367
    %p379 = scmp.eq.s32.totalorder %s32, 1
    %p380 = por %p378, %p379
    %p382 = scmp.ne.s32.totalorder %s367, %s381
    %p383 = scmp.eq.s32.totalorder %s32, 0
    %p384 = por %p382, %p383
    %s386 = sadd.s32 %s385, 1
    %p389 = scmp.eq.s32.totalorder %s26, 1
    %p390 = scmp.ne.s32.totalorder %s385, %s387
    %p391 = scmp.eq.s32.totalorder %s26, 0
    %p392 = por %p390, %p391
    %p393 = scmp.ne.s32.totalorder %s385, %s387
    %p394 = scmp.eq.s32.totalorder %s31, 1
    %p395 = por %p393, %p394
    %p396 = scmp.ne.s32.totalorder %s387, %s388
    %p397 = scmp.eq.s32.totalorder %s31, 0
    %p398 = por %p396, %p397
    %p399 = scmp.ne.s32.totalorder %s387, %s388
    %p400 = scmp.eq.s32.totalorder %s32, 1
    %p401 = por %p399, %p400
    %p403 = scmp.ne.s32.totalorder %s388, %s402
    %p404 = scmp.eq.s32.totalorder %s32, 0
    %p405 = por %p403, %p404
    %s407 = sadd.s32 %s406, 1
    %p410 = scmp.eq.s32.totalorder %s26, 1
    %p411 = scmp.ne.s32.totalorder %s406, %s408
    %p412 = scmp.eq.s32.totalorder %s26, 0
    %p413 = por %p411, %p412
    %p414 = scmp.ne.s32.totalorder %s406, %s408
    %p415 = scmp.eq.s32.totalorder %s31, 1
    %p416 = por %p414, %p415
    %p417 = scmp.ne.s32.totalorder %s408, %s409
    %p418 = scmp.eq.s32.totalorder %s31, 0
    %p419 = por %p417, %p418
    %p420 = scmp.ne.s32.totalorder %s408, %s409
    %p421 = scmp.eq.s32.totalorder %s32, 1
    %p422 = por %p420, %p421
    %p424 = scmp.ne.s32.totalorder %s409, %s423
    %p425 = scmp.eq.s32.totalorder %s32, 0
    %p426 = por %p424, %p425
    %s427 = ssub.s32 %s26, %s33
    %p428 = scmp.eq.s32.totalorder %s427, 0
    %s430 = sadd.s32 %s429, 1
    %s431 = scalar_select %p428, %s429, %s430
    %p434 = pneg %p428
    %p435 = scmp.eq.s32.totalorder %s26, 1
    %p436 = por %p434, %p435
    %p437 = scmp.ne.s32.totalorder %s429, %s432
    %p438 = scmp.eq.s32.totalorder %s26, 0
    %p439 = por %p437, %p438
    %p440 = scmp.ne.s32.totalorder %s429, %s432
    %p441 = scmp.eq.s32.totalorder %s31, 1
    %p442 = por %p440, %p441
    %p443 = scmp.ne.s32.totalorder %s432, %s433
    %p444 = scmp.eq.s32.totalorder %s31, 0
    %p445 = por %p443, %p444
    %p446 = scmp.ne.s32.totalorder %s432, %s433
    %p447 = scmp.eq.s32.totalorder %s32, 1
    %p448 = por %p446, %p447
    %p450 = scmp.ne.s32.totalorder %s433, %s449
    %p451 = scmp.eq.s32.totalorder %s32, 0
    %p452 = por %p450, %p451
    %p453 = scmp.le.s32.totalorder 1, %s26
    %p454 = scmp.lt.s32.totalorder %s26, 3
    %p455 = pnand %p453, %p454
    %p456 = pneg %p455
    // Predicated region
    $region9: #{graph_fingerprints_forward.8} parent=5 // pred_check
      _
    $region10: #{graph_fingerprints_forward.8} parent=5 // pred_check_branch
      %458 = sbr.rel (%p455) target = $region12
    $region11: #{graph_fingerprints_forward.8} parent=5 // pred_region
      %s459 = ssub.s32 %s26, 1
      // Predicated region
      $region13: #{graph_fingerprints_forward.8} parent=11 // pred_check
        %p460 = pneg %p125
      $region14: #{graph_fingerprints_forward.8} parent=11 // pred_check_branch
        %462 = sbr.rel (%p460) target = $region16
      $region15: #{graph_fingerprints_forward.8} parent=11 // pred_region
        _
      $region16: #{graph_fingerprints_forward.8} parent=11 // pred_fallthru
        _
      // Predicated region
      $region17: #{graph_fingerprints_forward.8} parent=11 // pred_check
        %p463 = pneg %p146
      $region18: #{graph_fingerprints_forward.8} parent=11 // pred_check_branch
        %465 = sbr.rel (%p463) target = $region20
      $region19: #{graph_fingerprints_forward.8} parent=11 // pred_region
        _
      $region20: #{graph_fingerprints_forward.8} parent=11 // pred_fallthru
        _
      // Predicated region
      $region21: #{graph_fingerprints_forward.8} parent=11 // pred_check
        %p466 = pneg %p167
      $region22: #{graph_fingerprints_forward.8} parent=11 // pred_check_branch
        %468 = sbr.rel (%p466) target = $region24
      $region23: #{graph_fingerprints_forward.8} parent=11 // pred_region
        _
      $region24: #{graph_fingerprints_forward.8} parent=11 // pred_fallthru
        _
      // Predicated region
      $region25: #{graph_fingerprints_forward.8} parent=11 // pred_check
        %p469 = pneg %p188
      $region26: #{graph_fingerprints_forward.8} parent=11 // pred_check_branch
        %471 = sbr.rel (%p469) target = $region28
      $region27: #{graph_fingerprints_forward.8} parent=11 // pred_region
        _
      $region28: #{graph_fingerprints_forward.8} parent=11 // pred_fallthru
        _
      // Predicated region
      $region29: #{graph_fingerprints_forward.8} parent=11 // pred_check
        %p472 = pneg %p209
      $region30: #{graph_fingerprints_forward.8} parent=11 // pred_check_branch
        %474 = sbr.rel (%p472) target = $region32
      $region31: #{graph_fingerprints_forward.8} parent=11 // pred_region
        _
      $region32: #{graph_fingerprints_forward.8} parent=11 // pred_fallthru
        _
      // Predicated region
      $region33: #{graph_fingerprints_forward.8} parent=11 // pred_check
        %p475 = pneg %p230
      $region34: #{graph_fingerprints_forward.8} parent=11 // pred_check_branch
        %477 = sbr.rel (%p475) target = $region36
      $region35: #{graph_fingerprints_forward.8} parent=11 // pred_region
        _
      $region36: #{graph_fingerprints_forward.8} parent=11 // pred_fallthru
        _
      // Predicated region
      $region37: #{graph_fingerprints_forward.8} parent=11 // pred_check
        %p478 = pneg %p251
      $region38: #{graph_fingerprints_forward.8} parent=11 // pred_check_branch
        %480 = sbr.rel (%p478) target = $region40
      $region39: #{graph_fingerprints_forward.8} parent=11 // pred_region
        _
      $region40: #{graph_fingerprints_forward.8} parent=11 // pred_fallthru
        _
      // Predicated region
      $region41: #{graph_fingerprints_forward.8} parent=11 // pred_check
        %p481 = pneg %p272
      $region42: #{graph_fingerprints_forward.8} parent=11 // pred_check_branch
        %483 = sbr.rel (%p481) target = $region44
      $region43: #{graph_fingerprints_forward.8} parent=11 // pred_region
        _
      $region44: #{graph_fingerprints_forward.8} parent=11 // pred_fallthru
        _
      // Predicated region
      $region45: #{graph_fingerprints_forward.8} parent=11 // pred_check
        %p484 = pneg %p293
      $region46: #{graph_fingerprints_forward.8} parent=11 // pred_check_branch
        %486 = sbr.rel (%p484) target = $region48
      $region47: #{graph_fingerprints_forward.8} parent=11 // pred_region
        _
      $region48: #{graph_fingerprints_forward.8} parent=11 // pred_fallthru
        _
      // Predicated region
      $region49: #{graph_fingerprints_forward.8} parent=11 // pred_check
        %p487 = pneg %p314
      $region50: #{graph_fingerprints_forward.8} parent=11 // pred_check_branch
        %489 = sbr.rel (%p487) target = $region52
      $region51: #{graph_fingerprints_forward.8} parent=11 // pred_region
        _
      $region52: #{graph_fingerprints_forward.8} parent=11 // pred_fallthru
        _
      // Predicated region
      $region53: #{graph_fingerprints_forward.8} parent=11 // pred_check
        %p490 = pneg %p335
      $region54: #{graph_fingerprints_forward.8} parent=11 // pred_check_branch
        %492 = sbr.rel (%p490) target = $region56
      $region55: #{graph_fingerprints_forward.8} parent=11 // pred_region
        _
      $region56: #{graph_fingerprints_forward.8} parent=11 // pred_fallthru
        _
      // Predicated region
      $region57: #{graph_fingerprints_forward.8} parent=11 // pred_check
        %p493 = pneg %p356
      $region58: #{graph_fingerprints_forward.8} parent=11 // pred_check_branch
        %495 = sbr.rel (%p493) target = $region60
      $region59: #{graph_fingerprints_forward.8} parent=11 // pred_region
        _
      $region60: #{graph_fingerprints_forward.8} parent=11 // pred_fallthru
        _
      // Predicated region
      $region61: #{graph_fingerprints_forward.8} parent=11 // pred_check
        %p496 = pneg %p377
      $region62: #{graph_fingerprints_forward.8} parent=11 // pred_check_branch
        %498 = sbr.rel (%p496) target = $region64
      $region63: #{graph_fingerprints_forward.8} parent=11 // pred_region
        _
      $region64: #{graph_fingerprints_forward.8} parent=11 // pred_fallthru
        _
      // Predicated region
      $region65: #{graph_fingerprints_forward.8} parent=11 // pred_check
        %p499 = pneg %p398
      $region66: #{graph_fingerprints_forward.8} parent=11 // pred_check_branch
        %501 = sbr.rel (%p499) target = $region68
      $region67: #{graph_fingerprints_forward.8} parent=11 // pred_region
        _
      $region68: #{graph_fingerprints_forward.8} parent=11 // pred_fallthru
        _
      // Predicated region
      $region69: #{graph_fingerprints_forward.8} parent=11 // pred_check
        %p502 = pneg %p419
      $region70: #{graph_fingerprints_forward.8} parent=11 // pred_check_branch
        %504 = sbr.rel (%p502) target = $region72
      $region71: #{graph_fingerprints_forward.8} parent=11 // pred_region
        _
      $region72: #{graph_fingerprints_forward.8} parent=11 // pred_fallthru
        _
    $region12: #{graph_fingerprints_forward.8} parent=5 // pred_fallthru
      _
    %p505 = scmp.lt.s32.totalorder %s26, 2
    // Predicated region
    $region73: #{graph_fingerprints_forward.8} parent=5 // pred_check
      %p506 = pneg %p505
    $region74: #{graph_fingerprints_forward.8} parent=5 // pred_check_branch
      %508 = sbr.rel (%p506) target = $region76
    $region75: #{graph_fingerprints_forward.8} parent=5 // pred_region
      // Predicated region
      $region77: #{graph_fingerprints_forward.8} parent=75 // pred_check
        %p509 = pneg %p46
      $region78: #{graph_fingerprints_forward.8} parent=75 // pred_check_branch
        %511 = sbr.rel (%p509) target = $region80
      $region79: #{graph_fingerprints_forward.8} parent=75 // pred_region
        %p512 = scmp.lt.s32.totalorder %s26, 1
        %s513 = scalar_select %p512, %s26, 1
        %s514 = smul.addr %s513, 8
        %s515 = scalar_lea.vmem %s0, %s514
      $region80: #{graph_fingerprints_forward.8} parent=75 // pred_fallthru
        _
      // Predicated region
      $region81: #{graph_fingerprints_forward.8} parent=75 // pred_check
        %p516 = pneg %p72
      $region82: #{graph_fingerprints_forward.8} parent=75 // pred_check_branch
        %518 = sbr.rel (%p516) target = $region84
      $region83: #{graph_fingerprints_forward.8} parent=75 // pred_region
        %p519 = scmp.lt.s32.totalorder %s26, 1
        %s520 = scalar_select %p519, %s26, 1
        %s521 = scalar_lea.vmem %s1, %s520
      $region84: #{graph_fingerprints_forward.8} parent=75 // pred_fallthru
        _
      // Predicated region
      $region85: #{graph_fingerprints_forward.8} parent=75 // pred_check
        %p522 = pneg %p98
      $region86: #{graph_fingerprints_forward.8} parent=75 // pred_check_branch
        %524 = sbr.rel (%p522) target = $region88
      $region87: #{graph_fingerprints_forward.8} parent=75 // pred_region
        %p525 = scmp.lt.s32.totalorder %s26, 1
        %s526 = scalar_select %p525, %s26, 1
        %s527 = scalar_lea.vmem %s2, %s526
      $region88: #{graph_fingerprints_forward.8} parent=75 // pred_fallthru
        _
    $region76: #{graph_fingerprints_forward.8} parent=5 // pred_fallthru
      _
    %p528 = scmp.le.s32.totalorder 1, %s26
    %p529 = scmp.lt.s32.totalorder %s26, 3
    %p530 = pnand %p528, %p529
    %p531 = pneg %p530
    // Predicated region
    $region89: #{graph_fingerprints_forward.8} parent=5 // pred_check
      _
    $region90: #{graph_fingerprints_forward.8} parent=5 // pred_check_branch
      %533 = sbr.rel (%p530) target = $region92
    $region91: #{graph_fingerprints_forward.8} parent=5 // pred_region
      %s534 = ssub.s32 %s26, 1
      %p535 = scmp.lt.s32.totalorder %s31, 1
      %s536 = scalar_select %p535, %s31, 1
      %s537 = smul.addr %s536, 8
      %s538 = scalar_lea.vmem %s0, %s537
      %p539 = pneg %p52
      %p540 = pneg %p49
      %p541 = scmp.lt.s32.totalorder %s31, 1
      %s542 = scalar_select %p541, %s31, 1
      %s543 = scalar_lea.vmem %s1, %s542
      %p544 = pneg %p78
      %p545 = pneg %p75
      %p546 = scmp.lt.s32.totalorder %s31, 1
      %s547 = scalar_select %p546, %s31, 1
      %s548 = scalar_lea.vmem %s2, %s547
      %p549 = pneg %p104
      %p550 = pneg %p101
      %p551 = pneg %p125
      %p552 = pneg %p122
      %p553 = pneg %p146
      %p554 = pneg %p143
      %p555 = pneg %p167
      %p556 = pneg %p164
      %p557 = pneg %p188
      %p558 = pneg %p185
      %p559 = pneg %p209
      %p560 = pneg %p206
      %p561 = pneg %p230
      %p562 = pneg %p227
      %p563 = pneg %p251
      %p564 = pneg %p248
      %p565 = pneg %p272
      %p566 = pneg %p269
      %p567 = pneg %p293
      %p568 = pneg %p290
      %p569 = pneg %p314
      %p570 = pneg %p311
      %p571 = pneg %p335
      %p572 = pneg %p332
      %p573 = pneg %p356
      %p574 = pneg %p353
      %p575 = pneg %p377
      %p576 = pneg %p374
      %p577 = pneg %p398
      %p578 = pneg %p395
      %p579 = pneg %p419
      %p580 = pneg %p416
      %p581 = pneg %p445
      %p582 = pneg %p442
      %p583 = scmp.lt.s32.totalorder %s31, 1
      %s584 = scalar_select %p583, %s31, 1
      %s585 = scalar_lea.vmem %s18, %s584
      %p586 = scmp.lt.s32.totalorder %s31, 1
      %s587 = scalar_select %p586, %s31, 1
      %s588 = smul.addr %s587, 8
      %s589 = scalar_lea.vmem %s0, %s588
      %p590 = scmp.lt.s32.totalorder %s31, 1
      %s591 = scalar_select %p590, %s31, 1
      %s592 = scalar_lea.vmem %s1, %s591
      %p593 = scmp.lt.s32.totalorder %s31, 1
      %s594 = scalar_select %p593, %s31, 1
      %s595 = scalar_lea.vmem %s2, %s594
      %p596 = scmp.lt.s32.totalorder %s31, 1
      %s597 = scalar_select %p596, %s31, 1
      %s598 = scalar_lea.vmem %s18, %s597
      %v599 = vld [vmem:[%s589] sm:$0xff]
      %v600 = vld [vmem:[%s592] sm:$0x1]
      %v601 = vld [vmem:[%s595] sm:$0x1]
      %v602 = vmax.f32 %v601, 0.0
      %v603 = vld [vmem:[%s3] sm:$0xff]
      %v604 = vld [vmem:[%s3 + $0x8] sm:$0xff]
      %v605 = vld [vmem:[%s3 + $0x10] sm:$0xff]
      %v606 = vld [vmem:[%s3 + $0x18] sm:$0xff]
      %vm607 = vcmask 261120
      %v609 = vsel %vm607, %v602, 0
      %611 = vmatpush.msra.mxu0 0.0
      %612 = vmatpush.msra.mxu0 0.0
      %613 = vmatpush.msra.mxu0 0.0
      %614 = vmatpush.msra.mxu0 0.0
      %615 = vmatpush.msra.mxu0 0.0
      %616 = vmatpush.msra.mxu0 0.0
      %617 = vmatpush.msra.mxu0 0.0
      %618 = vmatpush.msra.mxu0 0.0
      %619 = vmatpush.msra.mxu0 0.0
      %620 = vmatpush.msra.mxu0 0.0
      %621 = vmatpush.msra.mxu0 0.0
      %622 = vmatpush.msra.mxu0 0.0
      %623 = vmatpush.msra.mxu0 %v606
      %624 = vmatpush.msra.mxu0 %v605
      %625 = vmatpush.msra.mxu0 %v604
      %626 = vmatpush.msra.mxu0 %v603
      %627 = vmatmul.f32.gmra.mxu0 %v609
      %v628 = vpop.f32.mrf.mxu0
      %v629 = vadd.f32 0.0, %v628
      %630 = vdwg.mxu0
      %v631 = vld [vmem:[%s4] sm:$0x1]
      %v633 = vsel %vm607, %v631, 0
      %v636 = vsel %vm607, %v599, 0
      %638 = vmatpush.xpose.msra.mxu0 0.0
      %639 = vmatpush.xpose.msra.mxu0 0.0
      %640 = vmatpush.xpose.msra.mxu0 0.0
      %641 = vmatpush.xpose.msra.mxu0 0.0
      %642 = vmatpush.xpose.msra.mxu0 0.0
      %643 = vmatpush.xpose.msra.mxu0 0.0
      %644 = vmatpush.xpose.msra.mxu0 0.0
      %645 = vmatpush.xpose.msra.mxu0 0.0
      %646 = vmatpush.xpose.msra.mxu0 0.0
      %647 = vmatpush.xpose.msra.mxu0 0.0
      %648 = vmatpush.xpose.msra.mxu0 0.0
      %649 = vmatpush.xpose.msra.mxu0 0.0
      %650 = vmatpush.xpose.msra.mxu0 0.0
      %651 = vmatpush.xpose.msra.mxu0 0.0
      %652 = vmatpush.xpose.msra.mxu0 0.0
      %653 = vmatpush.xpose.msra.mxu0 %v636
      %654 = vmatmul.f32.gmra.mxu0 %v633
      %v655 = vpop.f32.mrf.mxu0
      %v656 = vadd.f32 0.0, %v655
      %657 = vdwg.mxu0
      %659 = vset.pattern.permute.xlu0 0
      %660 = vperm.xlu0 %659, %v629
      %v661 = vpop.permute.xlu0 %660
      %v663 = vadd.f32 %v661, %v656
      %v664 = vld [vmem:[#allocation2] sm:$0x1]
      %666 = vset.pattern.permute.xlu0 0
      %667 = vperm.xlu0 %666, %v664
      %v668 = vpop.permute.xlu0 %667
      %v670 = vperm.slane %v668, 0
      %v671 = vadd.f32 %v663, %v670
      %vm672 = vcmp.gt.f32.partialorder %v671, 0.0
      %v673 = vmul.f32 %v671, 0.01
      %v674 = vsel %vm672, %v671, %v673
      %vm675 = vcmp.gt.f32.partialorder %v600, 0.0
      %v676 = vsel %vm675, %v674, -1e+30
      %vm677 = vcmask 57344
      %v678 = vsel %vm677, %v676, -inf
      %679 = vmax.xlane.f32.xlu0 %v678
      %v680 = vpop.xlane.xlu0 %679
      %v681 = vsub.f32 %v676, %v680
      %v682 = vmul.f32 %v681, 1.442695
      %v683 = vpow.pop %v682
      %v684 = vmul.f32 %v683, %v600
      %v685 = vsel %vm677, %v684, 0.0
      %686 = vadd.xlane.f32.xlu0 %v685
      %v687 = vpop.xlane.xlu0 %686
      %v688 = vmax.f32 %v687, 1e-20
      %v689 = vrcp.pop %v688
      %v690 = vmul.f32 %v684, %v689
      %v691 = vld [vmem:[%s6] sm:$0xff]
      %v692 = vld [vmem:[%s6 + $0x8] sm:$0xff]
      %v693 = vld [vmem:[%s6 + $0x10] sm:$0xff]
      %v694 = vld [vmem:[%s6 + $0x18] sm:$0xff]
      %v695 = vld [vmem:[%s7] sm:$0x1]
      %v697 = vperm.slane %v695, 0
      %699 = vmatpush.msra.mxu0 0.0
      %700 = vmatpush.msra.mxu0 0.0
      %701 = vmatpush.msra.mxu0 0.0
      %702 = vmatpush.msra.mxu0 0.0
      %703 = vmatpush.msra.mxu0 0.0
      %704 = vmatpush.msra.mxu0 0.0
      %705 = vmatpush.msra.mxu0 0.0
      %706 = vmatpush.msra.mxu0 0.0
      %707 = vmatpush.msra.mxu0 0.0
      %708 = vmatpush.msra.mxu0 0.0
      %709 = vmatpush.msra.mxu0 0.0
      %710 = vmatpush.msra.mxu0 0.0
      %711 = vmatpush.msra.mxu0 %v694
      %712 = vmatpush.msra.mxu0 %v693
      %713 = vmatpush.msra.mxu0 %v692
      %714 = vmatpush.msra.mxu0 %v691
      %715 = vmatmul.f32.gmra.mxu0 %v636
      %v716 = vpop.f32.mrf.mxu0
      %v717 = vadd.f32 %v697, %v716
      %718 = vdwg.mxu0
      %vm719 = vcmask 64512
      %v721 = vsel %vm719, %v690, 0
      %723 = vmatpush.msra.mxu0 0.0
      %724 = vmatpush.msra.mxu0 0.0
      %725 = vmatpush.msra.mxu0 0.0
      %726 = vmatpush.msra.mxu0 0.0
      %727 = vmatpush.msra.mxu0 0.0
      %728 = vmatpush.msra.mxu0 0.0
      %729 = vmatpush.msra.mxu0 0.0
      %730 = vmatpush.msra.mxu0 0.0
      %731 = vmatpush.msra.mxu0 0.0
      %732 = vmatpush.msra.mxu0 0.0
      %733 = vmatpush.msra.mxu0 0.0
      %734 = vmatpush.msra.mxu0 0.0
      %735 = vmatpush.msra.mxu0 0.0
      %736 = vmatpush.msra.mxu0 0.0
      %737 = vmatpush.msra.mxu0 0.0
      %738 = vmatpush.msra.mxu0 %v717
      %739 = vmatmul.f32.gmra.mxu0 %v721
      %v740 = vpop.f32.mrf.mxu0
      %v741 = vadd.f32 0.0, %v740
      %742 = vdwg.mxu0
      %v743 = vmax.f32 %v741, 0.0
      %v744 = vld [vmem:[%s8] sm:$0xff]
      %v745 = vld [vmem:[%s8 + $0x8] sm:$0xff]
      %v746 = vld [vmem:[%s8 + $0x10] sm:$0xff]
      %v747 = vld [vmem:[%s8 + $0x18] sm:$0xff]
      %v748 = vld [vmem:[%s11] sm:$0xff]
      %v749 = vld [vmem:[%s11 + $0x8] sm:$0xff]
      %v750 = vld [vmem:[%s11 + $0x10] sm:$0xff]
      %v751 = vld [vmem:[%s11 + $0x18] sm:$0xff]
      %v753 = vsel %vm607, %v601, 0
      %755 = vmatpush.msra.mxu0 0.0
      %756 = vmatpush.msra.mxu0 0.0
      %757 = vmatpush.msra.mxu0 0.0
      %758 = vmatpush.msra.mxu0 0.0
      %759 = vmatpush.msra.mxu0 0.0
      %760 = vmatpush.msra.mxu0 0.0
      %761 = vmatpush.msra.mxu0 0.0
      %762 = vmatpush.msra.mxu0 0.0
      %763 = vmatpush.msra.mxu0 0.0
      %764 = vmatpush.msra.mxu0 0.0
      %765 = vmatpush.msra.mxu0 0.0
      %766 = vmatpush.msra.mxu0 0.0
      %767 = vmatpush.msra.mxu0 %v751
      %768 = vmatpush.msra.mxu0 %v750
      %769 = vmatpush.msra.mxu0 %v749
      %770 = vmatpush.msra.mxu0 %v748
      %771 = vmatmul.f32.gmra.mxu0 %v753
      %v772 = vpop.f32.mrf.mxu0
      %v773 = vadd.f32 0.0, %v772
      %774 = vdwg.mxu0
      %v776 = vsel %vm607, %v743, 0
      %778 = vmatpush.msra.mxu0 0.0
      %779 = vmatpush.msra.mxu0 0.0
      %780 = vmatpush.msra.mxu0 0.0
      %781 = vmatpush.msra.mxu0 0.0
      %782 = vmatpush.msra.mxu0 0.0
      %783 = vmatpush.msra.mxu0 0.0
      %784 = vmatpush.msra.mxu0 0.0
      %785 = vmatpush.msra.mxu0 0.0
      %786 = vmatpush.msra.mxu0 0.0
      %787 = vmatpush.msra.mxu0 0.0
      %788 = vmatpush.msra.mxu0 0.0
      %789 = vmatpush.msra.mxu0 0.0
      %790 = vmatpush.msra.mxu0 %v747
      %791 = vmatpush.msra.mxu0 %v746
      %792 = vmatpush.msra.mxu0 %v745
      %793 = vmatpush.msra.mxu0 %v744
      %794 = vmatmul.f32.gmra.mxu0 %v776
      %v795 = vpop.f32.mrf.mxu0
      %v796 = vadd.f32 %v773, %v795
      %797 = vdwg.mxu0
      %v798 = vld [vmem:[%s14] sm:$0x1]
      %v799 = vadd.f32 %v796, %v798
      %v800 = vxor.u32 %v799, 2147483648
      %v801 = vmul.f32 %v800, 1.442695
      %v802 = vpow.pop %v801
      %v803 = vadd.f32 %v802, 1.0
      %v804 = vrcp.pop %v803
      %v805 = vmul.f32 %v803, %v804
      %v806 = vsub.f32 1.0, %v805
      %v807 = vmul.f32 %v804, %v806
      %v808 = vadd.f32 %v804, %v807
      %vm809 = vweird.f32 %v803
      %vm810 = vweird.f32 %v804
      %vm811 = vmor %vm809, %vm810
      %v812 = vsel %vm811, %v804, %v808
      %v813 = vand.u32 2147483647, %v803
      %vm814 = vcmp.eq.f32.partialorder %v813, 8.507059e+37
      %v815 = vand.u32 %v803, 2147483648
      %v816 = vor.u32 1.1754944e-38, %v815
      %v817 = vsel %vm814, %v816, %v812
      %v818 = vmul.f32 1.0, %v817
      %v819 = vld [vmem:[%s9] sm:$0xff]
      %v820 = vld [vmem:[%s9 + $0x8] sm:$0xff]
      %v821 = vld [vmem:[%s9 + $0x10] sm:$0xff]
      %v822 = vld [vmem:[%s9 + $0x18] sm:$0xff]
      %v823 = vld [vmem:[%s12] sm:$0xff]
      %v824 = vld [vmem:[%s12 + $0x8] sm:$0xff]
      %v825 = vld [vmem:[%s12 + $0x10] sm:$0xff]
      %v826 = vld [vmem:[%s12 + $0x18] sm:$0xff]
      %827 = vmatpush.msra.mxu0 0.0
      %828 = vmatpush.msra.mxu0 0.0
      %829 = vmatpush.msra.mxu0 0.0
      %830 = vmatpush.msra.mxu0 0.0
      %831 = vmatpush.msra.mxu0 0.0
      %832 = vmatpush.msra.mxu0 0.0
      %833 = vmatpush.msra.mxu0 0.0
      %834 = vmatpush.msra.mxu0 0.0
      %835 = vmatpush.msra.mxu0 0.0
      %836 = vmatpush.msra.mxu0 0.0
      %837 = vmatpush.msra.mxu0 0.0
      %838 = vmatpush.msra.mxu0 0.0
      %839 = vmatpush.msra.mxu0 %v826
      %840 = vmatpush.msra.mxu0 %v825
      %841 = vmatpush.msra.mxu0 %v824
      %842 = vmatpush.msra.mxu0 %v823
      %843 = vmatmul.f32.gmra.mxu0 %v753
      %v844 = vpop.f32.mrf.mxu0
      %v845 = vadd.f32 0.0, %v844
      %846 = vdwg.mxu0
      %847 = vmatpush.msra.mxu0 0.0
      %848 = vmatpush.msra.mxu0 0.0
      %849 = vmatpush.msra.mxu0 0.0
      %850 = vmatpush.msra.mxu0 0.0
      %851 = vmatpush.msra.mxu0 0.0
      %852 = vmatpush.msra.mxu0 0.0
      %853 = vmatpush.msra.mxu0 0.0
      %854 = vmatpush.msra.mxu0 0.0
      %855 = vmatpush.msra.mxu0 0.0
      %856 = vmatpush.msra.mxu0 0.0
      %857 = vmatpush.msra.mxu0 0.0
      %858 = vmatpush.msra.mxu0 0.0
      %859 = vmatpush.msra.mxu0 %v822
      %860 = vmatpush.msra.mxu0 %v821
      %861 = vmatpush.msra.mxu0 %v820
      %862 = vmatpush.msra.mxu0 %v819
      %863 = vmatmul.f32.gmra.mxu0 %v776
      %v864 = vpop.f32.mrf.mxu0
      %v865 = vadd.f32 %v845, %v864
      %866 = vdwg.mxu0
      %v867 = vld [vmem:[%s15] sm:$0x1]
      %v868 = vadd.f32 %v865, %v867
      %v869 = vxor.u32 %v868, 2147483648
      %v870 = vmul.f32 %v869, 1.442695
      %v871 = vpow.pop %v870
      %v872 = vadd.f32 %v871, 1.0
      %v873 = vrcp.pop %v872
      %v874 = vmul.f32 %v872, %v873
      %v875 = vsub.f32 1.0, %v874
      %v876 = vmul.f32 %v873, %v875
      %v877 = vadd.f32 %v873, %v876
      %vm878 = vweird.f32 %v872
      %vm879 = vweird.f32 %v873
      %vm880 = vmor %vm878, %vm879
      %v881 = vsel %vm880, %v873, %v877
      %v882 = vand.u32 2147483647, %v872
      %vm883 = vcmp.eq.f32.partialorder %v882, 8.507059e+37
      %v884 = vand.u32 %v872, 2147483648
      %v885 = vor.u32 1.1754944e-38, %v884
      %v886 = vsel %vm883, %v885, %v881
      %v887 = vmul.f32 1.0, %v886
      %v888 = vld [vmem:[%s10] sm:$0xff]
      %v889 = vld [vmem:[%s10 + $0x8] sm:$0xff]
      %v890 = vld [vmem:[%s10 + $0x10] sm:$0xff]
      %v891 = vld [vmem:[%s10 + $0x18] sm:$0xff]
      %v892 = vld [vmem:[%s16] sm:$0x1]
      %893 = vmatpush.msra.mxu0 0.0
      %894 = vmatpush.msra.mxu0 0.0
      %895 = vmatpush.msra.mxu0 0.0
      %896 = vmatpush.msra.mxu0 0.0
      %897 = vmatpush.msra.mxu0 0.0
      %898 = vmatpush.msra.mxu0 0.0
      %899 = vmatpush.msra.mxu0 0.0
      %900 = vmatpush.msra.mxu0 0.0
      %901 = vmatpush.msra.mxu0 0.0
      %902 = vmatpush.msra.mxu0 0.0
      %903 = vmatpush.msra.mxu0 0.0
      %904 = vmatpush.msra.mxu0 0.0
      %905 = vmatpush.msra.mxu0 %v891
      %906 = vmatpush.msra.mxu0 %v890
      %907 = vmatpush.msra.mxu0 %v889
      %908 = vmatpush.msra.mxu0 %v888
      %909 = vmatmul.f32.gmra.mxu0 %v776
      %v910 = vpop.f32.mrf.mxu0
      %v911 = vadd.f32 %v892, %v910
      %912 = vdwg.mxu0
      %v913 = vld [vmem:[%s13] sm:$0xff]
      %v914 = vld [vmem:[%s13 + $0x8] sm:$0xff]
      %v915 = vld [vmem:[%s13 + $0x10] sm:$0xff]
      %v916 = vld [vmem:[%s13 + $0x18] sm:$0xff]
      %v917 = vld [vmem:[%s17] sm:$0x1]
      %918 = vmatpush.msra.mxu0 0.0
      %919 = vmatpush.msra.mxu0 0.0
      %920 = vmatpush.msra.mxu0 0.0
      %921 = vmatpush.msra.mxu0 0.0
      %922 = vmatpush.msra.mxu0 0.0
      %923 = vmatpush.msra.mxu0 0.0
      %924 = vmatpush.msra.mxu0 0.0
      %925 = vmatpush.msra.mxu0 0.0
      %926 = vmatpush.msra.mxu0 0.0
      %927 = vmatpush.msra.mxu0 0.0
      %928 = vmatpush.msra.mxu0 0.0
      %929 = vmatpush.msra.mxu0 0.0
      %930 = vmatpush.msra.mxu0 %v916
      %931 = vmatpush.msra.mxu0 %v915
      %932 = vmatpush.msra.mxu0 %v914
      %933 = vmatpush.msra.mxu0 %v913
      %934 = vmatmul.f32.gmra.mxu0 %v753
      %v935 = vpop.f32.mrf.mxu0
      %v936 = vadd.f32 %v917, %v935
      %937 = vdwg.mxu0
      %v938 = vmul.f32 %v818, %v936
      %v939 = vadd.f32 %v911, %v938
      %v940 = vtanh.pop %v939
      %v941 = vsub.f32 1.0, %v887
      %v942 = vmul.f32 %v941, %v940
      %v943 = vmul.f32 %v887, %v601
      %v944 = vadd.f32 %v942, %v943
      %vm945 = vcmask 253952
      %946 = vst.msk [vmem:[%s598] sm:$0x1] %vm945, %v944
      %p947 = scmp.lt.s32.totalorder %s31, 1
      %s948 = scalar_select %p947, %s31, 1
      %s949 = scalar_lea.vmem %s18, %s948
      // Predicated region
      $region93: #{graph_fingerprints_forward.8} parent=91 // pred_check
        %p950 = pneg %p442
      $region94: #{graph_fingerprints_forward.8} parent=91 // pred_check_branch
        %952 = sbr.rel (%p950) target = $region96
      $region95: #{graph_fingerprints_forward.8} parent=91 // pred_region
        _
      $region96: #{graph_fingerprints_forward.8} parent=91 // pred_fallthru
        _
    $region92: #{graph_fingerprints_forward.8} parent=5 // pred_fallthru
      _
    %p953 = scmp.le.s32.totalorder 2, %s26
    // Predicated region
    $region97: #{graph_fingerprints_forward.8} parent=5 // pred_check
      %p954 = pneg %p953
    $region98: #{graph_fingerprints_forward.8} parent=5 // pred_check_branch
      %956 = sbr.rel (%p954) target = $region100
    $region99: #{graph_fingerprints_forward.8} parent=5 // pred_region
      %s957 = ssub.s32 %s26, 2
      // Predicated region
      $region101: #{graph_fingerprints_forward.8} parent=99 // pred_check
        %p958 = pneg %p448
      $region102: #{graph_fingerprints_forward.8} parent=99 // pred_check_branch
        %960 = sbr.rel (%p958) target = $region104
      $region103: #{graph_fingerprints_forward.8} parent=99 // pred_region
        %p961 = scmp.lt.s32.totalorder %s32, 1
        %s962 = scalar_select %p961, %s32, 1
        %s963 = scalar_lea.vmem %s18, %s962
      $region104: #{graph_fingerprints_forward.8} parent=99 // pred_fallthru
        _
    $region100: #{graph_fingerprints_forward.8} parent=5 // pred_fallthru
      _
  $region6: #{graph_fingerprints_forward.8} parent=0 // loop_footer
    %s30 = sadd.s32 1, %s26
  $region7: #{graph_fingerprints_forward.8} parent=0 // loop_footer_branch
    %25 = sbr.rel target = $region3
  $region8: #{graph_fingerprints_forward.8} parent=0 // loop_exit
    _

// kernel: graph_fingerprints_forward.6
$region0: #{graph_fingerprints_forward.6}
  #allocation0 [shape = 'u32[]', space=smem, size = 0x4, offset = 0x4, fixed_abs, tag = 'smem constant byte address 0x4 - core index']
  #allocation1 [shape = 'u32[72,128]{1,0:T(1,128)}', space=vmem, size = 0x9000, scoped, tag = 'internal scratch']
  #allocation2 [shape = 'f32[1,1]{1,0:T(1,128)S(1)}', space=vmem, size = 0x200, scoped, tag = 'scoped memory for graph_fingerprints_forward.6']
  %s0 = inlined_call_operand.vmem [shape: f32[2,8,32], index: 0, kind: input, shape index: {}]
  %s1 = inlined_call_operand.vmem [shape: f32[2,8,8], index: 1, kind: input, shape index: {}]
  %s2 = inlined_call_operand.vmem [shape: f32[2,1,8], index: 2, kind: input, shape index: {}]
  %s3 = inlined_call_operand.vmem [shape: f32[32,1], index: 3, kind: input, shape index: {}]
  %s4 = inlined_call_operand.vmem [shape: f32[1,32], index: 4, kind: input, shape index: {}]
  %s5 = inlined_call_operand.<no memory space> [shape: f32[1,1], index: 5, kind: input, shape index: {}]
  %s6 = inlined_call_operand.vmem [shape: f32[32,32], index: 6, kind: input, shape index: {}]
  %s7 = inlined_call_operand.vmem [shape: f32[1,32], index: 7, kind: input, shape index: {}]
  %s8 = inlined_call_operand.vmem [shape: f32[32,32], index: 8, kind: input, shape index: {}]
  %s9 = inlined_call_operand.vmem [shape: f32[32,32], index: 9, kind: input, shape index: {}]
  %s10 = inlined_call_operand.vmem [shape: f32[32,32], index: 10, kind: input, shape index: {}]
  %s11 = inlined_call_operand.vmem [shape: f32[32,32], index: 11, kind: input, shape index: {}]
  %s12 = inlined_call_operand.vmem [shape: f32[32,32], index: 12, kind: input, shape index: {}]
  %s13 = inlined_call_operand.vmem [shape: f32[32,32], index: 13, kind: input, shape index: {}]
  %s14 = inlined_call_operand.vmem [shape: f32[1,32], index: 14, kind: input, shape index: {}]
  %s15 = inlined_call_operand.vmem [shape: f32[1,32], index: 15, kind: input, shape index: {}]
  %s16 = inlined_call_operand.vmem [shape: f32[1,32], index: 16, kind: input, shape index: {}]
  %s17 = inlined_call_operand.vmem [shape: f32[1,32], index: 17, kind: input, shape index: {}]
  %s18 = inlined_call_operand.vmem [shape: f32[2,8,32], index: 18, kind: output, shape index: {0}]
  %s19 = inlined_call_operand.hbm [shape: f32[2,1,32], index: 19, kind: output, shape index: {1}]
  %20 = xla_tuple %s18, %s19
  %s21 = sld [smem:[#allocation0]]
  $region113: #{graph_fingerprints_forward.6} parent=0
    _
  %s23 = ssub.s32 1, %s21
  %s24 = scalar_select 0, %s23, %s21
  %v25 = vstv %s5
  %26 = vst [vmem:[#allocation2] sm:$0x1] %v25
  $region1: #{graph_fingerprints_forward.6} parent=0
    #allocation3 [shape = 'u8[1024]{0}', space=vmem, size = 0x400, scoped, tag = 'output window, operand 1']
    #allocation4 [shape = 's32[2]{0}', space=sflag, size = 0x8, scoped, tag = 'scoped memory for graph_fingerprints_forward.6']
    %27 = vsyncpa [#allocation4], 0
    %s28 = scalar_lea.sflag [#allocation4], 1
    %29 = vsyncpa %s28, 0
    loop: start=0, step=1, limit=4
    $region2: #{graph_fingerprints_forward.6} parent=1 // loop_pre_header
      _
    $region3: #{graph_fingerprints_forward.6} parent=1 // loop_header
      %s31 = sphi 0, %s35
      %p32 = scmp.ge.s32.totalorder %s31, 4
      %s41 = sphi 0, %s43
      %s44 = sphi 0, %s41
      %s45 = sphi 0, %s44
      %s61 = sphi 0, %s45
      %s67 = sphi 0, %s69
      %s70 = sphi 0, %s67
      %s71 = sphi 0, %s70
      %s87 = sphi 0, %s71
      %s93 = sphi 0, %s95
      %s96 = sphi 0, %s93
      %s97 = sphi 0, %s96
      %s113 = sphi 0, %s97
      %s117 = sphi 0, %s117
      %s119 = sphi 0, %s117
      %s120 = sphi 0, %s119
      %s134 = sphi 0, %s120
      %s138 = sphi 0, %s138
      %s140 = sphi 0, %s138
      %s141 = sphi 0, %s140
      %s155 = sphi 0, %s141
      %s159 = sphi 0, %s159
      %s161 = sphi 0, %s159
      %s162 = sphi 0, %s161
      %s176 = sphi 0, %s162
      %s180 = sphi 0, %s180
      %s182 = sphi 0, %s180
      %s183 = sphi 0, %s182
      %s197 = sphi 0, %s183
      %s201 = sphi 0, %s201
      %s203 = sphi 0, %s201
      %s204 = sphi 0, %s203
      %s218 = sphi 0, %s204
      %s222 = sphi 0, %s222
      %s224 = sphi 0, %s222
      %s225 = sphi 0, %s224
      %s239 = sphi 0, %s225
      %s243 = sphi 0, %s243
      %s245 = sphi 0, %s243
      %s246 = sphi 0, %s245
      %s260 = sphi 0, %s246
      %s264 = sphi 0, %s264
      %s266 = sphi 0, %s264
      %s267 = sphi 0, %s266
      %s281 = sphi 0, %s267
      %s285 = sphi 0, %s285
      %s287 = sphi 0, %s285
      %s288 = sphi 0, %s287
      %s302 = sphi 0, %s288
      %s306 = sphi 0, %s306
      %s308 = sphi 0, %s306
      %s309 = sphi 0, %s308
      %s323 = sphi 0, %s309
      %s327 = sphi 0, %s327
      %s329 = sphi 0, %s327
      %s330 = sphi 0, %s329
      %s344 = sphi 0, %s330
      %s348 = sphi 0, %s348
      %s350 = sphi 0, %s348
      %s351 = sphi 0, %s350
      %s365 = sphi 0, %s351
      %s369 = sphi 0, %s369
      %s371 = sphi 0, %s369
      %s372 = sphi 0, %s371
      %s386 = sphi 0, %s372
      %s390 = sphi 0, %s390
      %s392 = sphi 0, %s390
      %s393 = sphi 0, %s392
      %s407 = sphi 0, %s393
      %s411 = sphi 0, %s411
      %s413 = sphi 0, %s411
      %s414 = sphi 0, %s413
      %s428 = sphi 0, %s414
      %s434 = sphi 0, %s436
      %s437 = sphi 0, %s434
      %s438 = sphi 0, %s437
      %s454 = sphi 0, %s438
      %s460 = sphi 0, %s462
      %s463 = sphi 0, %s460
      %s464 = sphi 0, %s463
      %s480 = sphi 0, %s464
    $region4: #{graph_fingerprints_forward.6} parent=1 // loop_header_branch
      %34 = sbr.rel (%p32) target = $region8
    $region5: #{graph_fingerprints_forward.6} parent=1 // loop_body
      %s36 = ssub.s32 %s31, 1
      %s37 = ssub.s32 %s31, 2
      %s38 = sadd.s32 %s31, 1
      %s39 = ssub.s32 %s31, %s38
      %p40 = scmp.eq.s32.totalorder %s39, 0
      %s42 = sadd.s32 %s41, 1
      %s43 = scalar_select %p40, %s41, %s42
      %p46 = pneg %p40
      %p47 = scmp.eq.s32.totalorder %s31, 1
      %p48 = por %p46, %p47
      %p49 = scmp.ne.s32.totalorder %s41, %s44
      %p50 = scmp.eq.s32.totalorder %s31, 0
      %p51 = por %p49, %p50
      %p52 = scmp.ne.s32.totalorder %s41, %s44
      %p53 = scmp.eq.s32.totalorder %s36, 1
      %p54 = por %p52, %p53
      %p55 = scmp.ne.s32.totalorder %s44, %s45
      %p56 = scmp.eq.s32.totalorder %s36, 0
      %p57 = por %p55, %p56
      %p58 = scmp.ne.s32.totalorder %s44, %s45
      %p59 = scmp.eq.s32.totalorder %s37, 1
      %p60 = por %p58, %p59
      %p62 = scmp.ne.s32.totalorder %s45, %s61
      %p63 = scmp.eq.s32.totalorder %s37, 0
      %p64 = por %p62, %p63
      %s65 = ssub.s32 %s31, %s38
      %p66 = scmp.eq.s32.totalorder %s65, 0
      %s68 = sadd.s32 %s67, 1
      %s69 = scalar_select %p66, %s67, %s68
      %p72 = pneg %p66
      %p73 = scmp.eq.s32.totalorder %s31, 1
      %p74 = por %p72, %p73
      %p75 = scmp.ne.s32.totalorder %s67, %s70
      %p76 = scmp.eq.s32.totalorder %s31, 0
      %p77 = por %p75, %p76
      %p78 = scmp.ne.s32.totalorder %s67, %s70
      %p79 = scmp.eq.s32.totalorder %s36, 1
      %p80 = por %p78, %p79
      %p81 = scmp.ne.s32.totalorder %s70, %s71
      %p82 = scmp.eq.s32.totalorder %s36, 0
      %p83 = por %p81, %p82
      %p84 = scmp.ne.s32.totalorder %s70, %s71
      %p85 = scmp.eq.s32.totalorder %s37, 1
      %p86 = por %p84, %p85
      %p88 = scmp.ne.s32.totalorder %s71, %s87
      %p89 = scmp.eq.s32.totalorder %s37, 0
      %p90 = por %p88, %p89
      %s91 = ssub.s32 %s31, %s38
      %p92 = scmp.eq.s32.totalorder %s91, 0
      %s94 = sadd.s32 %s93, 1
      %s95 = scalar_select %p92, %s93, %s94
      %p98 = pneg %p92
      %p99 = scmp.eq.s32.totalorder %s31, 1
      %p100 = por %p98, %p99
      %p101 = scmp.ne.s32.totalorder %s93, %s96
      %p102 = scmp.eq.s32.totalorder %s31, 0
      %p103 = por %p101, %p102
      %p104 = scmp.ne.s32.totalorder %s93, %s96
      %p105 = scmp.eq.s32.totalorder %s36, 1
      %p106 = por %p104, %p105
      %p107 = scmp.ne.s32.totalorder %s96, %s97
      %p108 = scmp.eq.s32.totalorder %s36, 0
      %p109 = por %p107, %p108
      %p110 = scmp.ne.s32.totalorder %s96, %s97
      %p111 = scmp.eq.s32.totalorder %s37, 1
      %p112 = por %p110, %p111
      %p114 = scmp.ne.s32.totalorder %s97, %s113
      %p115 = scmp.eq.s32.totalorder %s37, 0
      %p116 = por %p114, %p115
      %s118 = sadd.s32 %s117, 1
      %p121 = scmp.eq.s32.totalorder %s31, 1
      %p122 = scmp.ne.s32.totalorder %s117, %s119
      %p123 = scmp.eq.s32.totalorder %s31, 0
      %p124 = por %p122, %p123
      %p125 = scmp.ne.s32.totalorder %s117, %s119
      %p126 = scmp.eq.s32.totalorder %s36, 1
      %p127 = por %p125, %p126
      %p128 = scmp.ne.s32.totalorder %s119, %s120
      %p129 = scmp.eq.s32.totalorder %s36, 0
      %p130 = por %p128, %p129
      %p131 = scmp.ne.s32.totalorder %s119, %s120
      %p132 = scmp.eq.s32.totalorder %s37, 1
      %p133 = por %p131, %p132
      %p135 = scmp.ne.s32.totalorder %s120, %s134
      %p136 = scmp.eq.s32.totalorder %s37, 0
      %p137 = por %p135, %p136
      %s139 = sadd.s32 %s138, 1
      %p142 = scmp.eq.s32.totalorder %s31, 1
      %p143 = scmp.ne.s32.totalorder %s138, %s140
      %p144 = scmp.eq.s32.totalorder %s31, 0
      %p145 = por %p143, %p144
      %p146 = scmp.ne.s32.totalorder %s138, %s140
      %p147 = scmp.eq.s32.totalorder %s36, 1
      %p148 = por %p146, %p147
      %p149 = scmp.ne.s32.totalorder %s140, %s141
      %p150 = scmp.eq.s32.totalorder %s36, 0
      %p151 = por %p149, %p150
      %p152 = scmp.ne.s32.totalorder %s140, %s141
      %p153 = scmp.eq.s32.totalorder %s37, 1
      %p154 = por %p152, %p153
      %p156 = scmp.ne.s32.totalorder %s141, %s155
      %p157 = scmp.eq.s32.totalorder %s37, 0
      %p158 = por %p156, %p157
      %s160 = sadd.s32 %s159, 1
      %p163 = scmp.eq.s32.totalorder %s31, 1
      %p164 = scmp.ne.s32.totalorder %s159, %s161
      %p165 = scmp.eq.s32.totalorder %s31, 0
      %p166 = por %p164, %p165
      %p167 = scmp.ne.s32.totalorder %s159, %s161
      %p168 = scmp.eq.s32.totalorder %s36, 1
      %p169 = por %p167, %p168
      %p170 = scmp.ne.s32.totalorder %s161, %s162
      %p171 = scmp.eq.s32.totalorder %s36, 0
      %p172 = por %p170, %p171
      %p173 = scmp.ne.s32.totalorder %s161, %s162
      %p174 = scmp.eq.s32.totalorder %s37, 1
      %p175 = por %p173, %p174
      %p177 = scmp.ne.s32.totalorder %s162, %s176
      %p178 = scmp.eq.s32.totalorder %s37, 0
      %p179 = por %p177, %p178
      %s181 = sadd.s32 %s180, 1
      %p184 = scmp.eq.s32.totalorder %s31, 1
      %p185 = scmp.ne.s32.totalorder %s180, %s182
      %p186 = scmp.eq.s32.totalorder %s31, 0
      %p187 = por %p185, %p186
      %p188 = scmp.ne.s32.totalorder %s180, %s182
      %p189 = scmp.eq.s32.totalorder %s36, 1
      %p190 = por %p188, %p189
      %p191 = scmp.ne.s32.totalorder %s182, %s183
      %p192 = scmp.eq.s32.totalorder %s36, 0
      %p193 = por %p191, %p192
      %p194 = scmp.ne.s32.totalorder %s182, %s183
      %p195 = scmp.eq.s32.totalorder %s37, 1
      %p196 = por %p194, %p195
      %p198 = scmp.ne.s32.totalorder %s183, %s197
      %p199 = scmp.eq.s32.totalorder %s37, 0
      %p200 = por %p198, %p199
      %s202 = sadd.s32 %s201, 1
      %p205 = scmp.eq.s32.totalorder %s31, 1
      %p206 = scmp.ne.s32.totalorder %s201, %s203
      %p207 = scmp.eq.s32.totalorder %s31, 0
      %p208 = por %p206, %p207
      %p209 = scmp.ne.s32.totalorder %s201, %s203
      %p210 = scmp.eq.s32.totalorder %s36, 1
      %p211 = por %p209, %p210
      %p212 = scmp.ne.s32.totalorder %s203, %s204
      %p213 = scmp.eq.s32.totalorder %s36, 0
      %p214 = por %p212, %p213
      %p215 = scmp.ne.s32.totalorder %s203, %s204
      %p216 = scmp.eq.s32.totalorder %s37, 1
      %p217 = por %p215, %p216
      %p219 = scmp.ne.s32.totalorder %s204, %s218
      %p220 = scmp.eq.s32.totalorder %s37, 0
      %p221 = por %p219, %p220
      %s223 = sadd.s32 %s222, 1
      %p226 = scmp.eq.s32.totalorder %s31, 1
      %p227 = scmp.ne.s32.totalorder %s222, %s224
      %p228 = scmp.eq.s32.totalorder %s31, 0
      %p229 = por %p227, %p228
      %p230 = scmp.ne.s32.totalorder %s222, %s224
      %p231 = scmp.eq.s32.totalorder %s36, 1
      %p232 = por %p230, %p231
      %p233 = scmp.ne.s32.totalorder %s224, %s225
      %p234 = scmp.eq.s32.totalorder %s36, 0
      %p235 = por %p233, %p234
      %p236 = scmp.ne.s32.totalorder %s224, %s225
      %p237 = scmp.eq.s32.totalorder %s37, 1
      %p238 = por %p236, %p237
      %p240 = scmp.ne.s32.totalorder %s225, %s239
      %p241 = scmp.eq.s32.totalorder %s37, 0
      %p242 = por %p240, %p241
      %s244 = sadd.s32 %s243, 1
      %p247 = scmp.eq.s32.totalorder %s31, 1
      %p248 = scmp.ne.s32.totalorder %s243, %s245
      %p249 = scmp.eq.s32.totalorder %s31, 0
      %p250 = por %p248, %p249
      %p251 = scmp.ne.s32.totalorder %s243, %s245
      %p252 = scmp.eq.s32.totalorder %s36, 1
      %p253 = por %p251, %p252
      %p254 = scmp.ne.s32.totalorder %s245, %s246
      %p255 = scmp.eq.s32.totalorder %s36, 0
      %p256 = por %p254, %p255
      %p257 = scmp.ne.s32.totalorder %s245, %s246
      %p258 = scmp.eq.s32.totalorder %s37, 1
      %p259 = por %p257, %p258
      %p261 = scmp.ne.s32.totalorder %s246, %s260
      %p262 = scmp.eq.s32.totalorder %s37, 0
      %p263 = por %p261, %p262
      %s265 = sadd.s32 %s264, 1
      %p268 = scmp.eq.s32.totalorder %s31, 1
      %p269 = scmp.ne.s32.totalorder %s264, %s266
      %p270 = scmp.eq.s32.totalorder %s31, 0
      %p271 = por %p269, %p270
      %p272 = scmp.ne.s32.totalorder %s264, %s266
      %p273 = scmp.eq.s32.totalorder %s36, 1
      %p274 = por %p272, %p273
      %p275 = scmp.ne.s32.totalorder %s266, %s267
      %p276 = scmp.eq.s32.totalorder %s36, 0
      %p277 = por %p275, %p276
      %p278 = scmp.ne.s32.totalorder %s266, %s267
      %p279 = scmp.eq.s32.totalorder %s37, 1
      %p280 = por %p278, %p279
      %p282 = scmp.ne.s32.totalorder %s267, %s281
      %p283 = scmp.eq.s32.totalorder %s37, 0
      %p284 = por %p282, %p283
      %s286 = sadd.s32 %s285, 1
      %p289 = scmp.eq.s32.totalorder %s31, 1
      %p290 = scmp.ne.s32.totalorder %s285, %s287
      %p291 = scmp.eq.s32.totalorder %s31, 0
      %p292 = por %p290, %p291
      %p293 = scmp.ne.s32.totalorder %s285, %s287
      %p294 = scmp.eq.s32.totalorder %s36, 1
      %p295 = por %p293, %p294
      %p296 = scmp.ne.s32.totalorder %s287, %s288
      %p297 = scmp.eq.s32.totalorder %s36, 0
      %p298 = por %p296, %p297
      %p299 = scmp.ne.s32.totalorder %s287, %s288
      %p300 = scmp.eq.s32.totalorder %s37, 1
      %p301 = por %p299, %p300
      %p303 = scmp.ne.s32.totalorder %s288, %s302
      %p304 = scmp.eq.s32.totalorder %s37, 0
      %p305 = por %p303, %p304
      %s307 = sadd.s32 %s306, 1
      %p310 = scmp.eq.s32.totalorder %s31, 1
      %p311 = scmp.ne.s32.totalorder %s306, %s308
      %p312 = scmp.eq.s32.totalorder %s31, 0
      %p313 = por %p311, %p312
      %p314 = scmp.ne.s32.totalorder %s306, %s308
      %p315 = scmp.eq.s32.totalorder %s36, 1
      %p316 = por %p314, %p315
      %p317 = scmp.ne.s32.totalorder %s308, %s309
      %p318 = scmp.eq.s32.totalorder %s36, 0
      %p319 = por %p317, %p318
      %p320 = scmp.ne.s32.totalorder %s308, %s309
      %p321 = scmp.eq.s32.totalorder %s37, 1
      %p322 = por %p320, %p321
      %p324 = scmp.ne.s32.totalorder %s309, %s323
      %p325 = scmp.eq.s32.totalorder %s37, 0
      %p326 = por %p324, %p325
      %s328 = sadd.s32 %s327, 1
      %p331 = scmp.eq.s32.totalorder %s31, 1
      %p332 = scmp.ne.s32.totalorder %s327, %s329
      %p333 = scmp.eq.s32.totalorder %s31, 0
      %p334 = por %p332, %p333
      %p335 = scmp.ne.s32.totalorder %s327, %s329
      %p336 = scmp.eq.s32.totalorder %s36, 1
      %p337 = por %p335, %p336
      %p338 = scmp.ne.s32.totalorder %s329, %s330
      %p339 = scmp.eq.s32.totalorder %s36, 0
      %p340 = por %p338, %p339
      %p341 = scmp.ne.s32.totalorder %s329, %s330
      %p342 = scmp.eq.s32.totalorder %s37, 1
      %p343 = por %p341, %p342
      %p345 = scmp.ne.s32.totalorder %s330, %s344
      %p346 = scmp.eq.s32.totalorder %s37, 0
      %p347 = por %p345, %p346
      %s349 = sadd.s32 %s348, 1
      %p352 = scmp.eq.s32.totalorder %s31, 1
      %p353 = scmp.ne.s32.totalorder %s348, %s350
      %p354 = scmp.eq.s32.totalorder %s31, 0
      %p355 = por %p353, %p354
      %p356 = scmp.ne.s32.totalorder %s348, %s350
      %p357 = scmp.eq.s32.totalorder %s36, 1
      %p358 = por %p356, %p357
      %p359 = scmp.ne.s32.totalorder %s350, %s351
      %p360 = scmp.eq.s32.totalorder %s36, 0
      %p361 = por %p359, %p360
      %p362 = scmp.ne.s32.totalorder %s350, %s351
      %p363 = scmp.eq.s32.totalorder %s37, 1
      %p364 = por %p362, %p363
      %p366 = scmp.ne.s32.totalorder %s351, %s365
      %p367 = scmp.eq.s32.totalorder %s37, 0
      %p368 = por %p366, %p367
      %s370 = sadd.s32 %s369, 1
      %p373 = scmp.eq.s32.totalorder %s31, 1
      %p374 = scmp.ne.s32.totalorder %s369, %s371
      %p375 = scmp.eq.s32.totalorder %s31, 0
      %p376 = por %p374, %p375
      %p377 = scmp.ne.s32.totalorder %s369, %s371
      %p378 = scmp.eq.s32.totalorder %s36, 1
      %p379 = por %p377, %p378
      %p380 = scmp.ne.s32.totalorder %s371, %s372
      %p381 = scmp.eq.s32.totalorder %s36, 0
      %p382 = por %p380, %p381
      %p383 = scmp.ne.s32.totalorder %s371, %s372
      %p384 = scmp.eq.s32.totalorder %s37, 1
      %p385 = por %p383, %p384
      %p387 = scmp.ne.s32.totalorder %s372, %s386
      %p388 = scmp.eq.s32.totalorder %s37, 0
      %p389 = por %p387, %p388
      %s391 = sadd.s32 %s390, 1
      %p394 = scmp.eq.s32.totalorder %s31, 1
      %p395 = scmp.ne.s32.totalorder %s390, %s392
      %p396 = scmp.eq.s32.totalorder %s31, 0
      %p397 = por %p395, %p396
      %p398 = scmp.ne.s32.totalorder %s390, %s392
      %p399 = scmp.eq.s32.totalorder %s36, 1
      %p400 = por %p398, %p399
      %p401 = scmp.ne.s32.totalorder %s392, %s393
      %p402 = scmp.eq.s32.totalorder %s36, 0
      %p403 = por %p401, %p402
      %p404 = scmp.ne.s32.totalorder %s392, %s393
      %p405 = scmp.eq.s32.totalorder %s37, 1
      %p406 = por %p404, %p405
      %p408 = scmp.ne.s32.totalorder %s393, %s407
      %p409 = scmp.eq.s32.totalorder %s37, 0
      %p410 = por %p408, %p409
      %s412 = sadd.s32 %s411, 1
      %p415 = scmp.eq.s32.totalorder %s31, 1
      %p416 = scmp.ne.s32.totalorder %s411, %s413
      %p417 = scmp.eq.s32.totalorder %s31, 0
      %p418 = por %p416, %p417
      %p419 = scmp.ne.s32.totalorder %s411, %s413
      %p420 = scmp.eq.s32.totalorder %s36, 1
      %p421 = por %p419, %p420
      %p422 = scmp.ne.s32.totalorder %s413, %s414
      %p423 = scmp.eq.s32.totalorder %s36, 0
      %p424 = por %p422, %p423
      %p425 = scmp.ne.s32.totalorder %s413, %s414
      %p426 = scmp.eq.s32.totalorder %s37, 1
      %p427 = por %p425, %p426
      %p429 = scmp.ne.s32.totalorder %s414, %s428
      %p430 = scmp.eq.s32.totalorder %s37, 0
      %p431 = por %p429, %p430
      %s432 = ssub.s32 %s31, %s38
      %p433 = scmp.eq.s32.totalorder %s432, 0
      %s435 = sadd.s32 %s434, 1
      %s436 = scalar_select %p433, %s434, %s435
      %p439 = pneg %p433
      %p440 = scmp.eq.s32.totalorder %s31, 1
      %p441 = por %p439, %p440
      %p442 = scmp.ne.s32.totalorder %s434, %s437
      %p443 = scmp.eq.s32.totalorder %s31, 0
      %p444 = por %p442, %p443
      %p445 = scmp.ne.s32.totalorder %s434, %s437
      %p446 = scmp.eq.s32.totalorder %s36, 1
      %p447 = por %p445, %p446
      %p448 = scmp.ne.s32.totalorder %s437, %s438
      %p449 = scmp.eq.s32.totalorder %s36, 0
      %p450 = por %p448, %p449
      %p451 = scmp.ne.s32.totalorder %s437, %s438
      %p452 = scmp.eq.s32.totalorder %s37, 1
      %p453 = por %p451, %p452
      %p455 = scmp.ne.s32.totalorder %s438, %s454
      %p456 = scmp.eq.s32.totalorder %s37, 0
      %p457 = por %p455, %p456
      %s458 = ssub.s32 %s31, %s38
      %p459 = scmp.eq.s32.totalorder %s458, 0
      %s461 = sadd.s32 %s460, 1
      %s462 = scalar_select %p459, %s460, %s461
      %p465 = pneg %p459
      %p466 = scmp.eq.s32.totalorder %s31, 1
      %p467 = por %p465, %p466
      %p468 = scmp.ne.s32.totalorder %s460, %s463
      %p469 = scmp.eq.s32.totalorder %s31, 0
      %p470 = por %p468, %p469
      %p471 = scmp.ne.s32.totalorder %s460, %s463
      %p472 = scmp.eq.s32.totalorder %s36, 1
      %p473 = por %p471, %p472
      %p474 = scmp.ne.s32.totalorder %s463, %s464
      %p475 = scmp.eq.s32.totalorder %s36, 0
      %p476 = por %p474, %p475
      %p477 = scmp.ne.s32.totalorder %s463, %s464
      %p478 = scmp.eq.s32.totalorder %s37, 1
      %p479 = por %p477, %p478
      %p481 = scmp.ne.s32.totalorder %s464, %s480
      %p482 = scmp.eq.s32.totalorder %s37, 0
      %p483 = por %p481, %p482
      %p484 = scmp.le.s32.totalorder 1, %s31
      %p485 = scmp.lt.s32.totalorder %s31, 3
      %p486 = pnand %p484, %p485
      %p487 = pneg %p486
      // Predicated region
      $region9: #{graph_fingerprints_forward.6} parent=5 // pred_check
        _
      $region10: #{graph_fingerprints_forward.6} parent=5 // pred_check_branch
        %489 = sbr.rel (%p486) target = $region12
      $region11: #{graph_fingerprints_forward.6} parent=5 // pred_region
        %s490 = ssub.s32 %s31, 1
        // Predicated region
        $region13: #{graph_fingerprints_forward.6} parent=11 // pred_check
          %p491 = pneg %p130
        $region14: #{graph_fingerprints_forward.6} parent=11 // pred_check_branch
          %493 = sbr.rel (%p491) target = $region16
        $region15: #{graph_fingerprints_forward.6} parent=11 // pred_region
          _
        $region16: #{graph_fingerprints_forward.6} parent=11 // pred_fallthru
          _
        // Predicated region
        $region17: #{graph_fingerprints_forward.6} parent=11 // pred_check
          %p494 = pneg %p151
        $region18: #{graph_fingerprints_forward.6} parent=11 // pred_check_branch
          %496 = sbr.rel (%p494) target = $region20
        $region19: #{graph_fingerprints_forward.6} parent=11 // pred_region
          _
        $region20: #{graph_fingerprints_forward.6} parent=11 // pred_fallthru
          _
        // Predicated region
        $region21: #{graph_fingerprints_forward.6} parent=11 // pred_check
          %p497 = pneg %p172
        $region22: #{graph_fingerprints_forward.6} parent=11 // pred_check_branch
          %499 = sbr.rel (%p497) target = $region24
        $region23: #{graph_fingerprints_forward.6} parent=11 // pred_region
          _
        $region24: #{graph_fingerprints_forward.6} parent=11 // pred_fallthru
          _
        // Predicated region
        $region25: #{graph_fingerprints_forward.6} parent=11 // pred_check
          %p500 = pneg %p193
        $region26: #{graph_fingerprints_forward.6} parent=11 // pred_check_branch
          %502 = sbr.rel (%p500) target = $region28
        $region27: #{graph_fingerprints_forward.6} parent=11 // pred_region
          _
        $region28: #{graph_fingerprints_forward.6} parent=11 // pred_fallthru
          _
        // Predicated region
        $region29: #{graph_fingerprints_forward.6} parent=11 // pred_check
          %p503 = pneg %p214
        $region30: #{graph_fingerprints_forward.6} parent=11 // pred_check_branch
          %505 = sbr.rel (%p503) target = $region32
        $region31: #{graph_fingerprints_forward.6} parent=11 // pred_region
          _
        $region32: #{graph_fingerprints_forward.6} parent=11 // pred_fallthru
          _
        // Predicated region
        $region33: #{graph_fingerprints_forward.6} parent=11 // pred_check
          %p506 = pneg %p235
        $region34: #{graph_fingerprints_forward.6} parent=11 // pred_check_branch
          %508 = sbr.rel (%p506) target = $region36
        $region35: #{graph_fingerprints_forward.6} parent=11 // pred_region
          _
        $region36: #{graph_fingerprints_forward.6} parent=11 // pred_fallthru
          _
        // Predicated region
        $region37: #{graph_fingerprints_forward.6} parent=11 // pred_check
          %p509 = pneg %p256
        $region38: #{graph_fingerprints_forward.6} parent=11 // pred_check_branch
          %511 = sbr.rel (%p509) target = $region40
        $region39: #{graph_fingerprints_forward.6} parent=11 // pred_region
          _
        $region40: #{graph_fingerprints_forward.6} parent=11 // pred_fallthru
          _
        // Predicated region
        $region41: #{graph_fingerprints_forward.6} parent=11 // pred_check
          %p512 = pneg %p277
        $region42: #{graph_fingerprints_forward.6} parent=11 // pred_check_branch
          %514 = sbr.rel (%p512) target = $region44
        $region43: #{graph_fingerprints_forward.6} parent=11 // pred_region
          _
        $region44: #{graph_fingerprints_forward.6} parent=11 // pred_fallthru
          _
        // Predicated region
        $region45: #{graph_fingerprints_forward.6} parent=11 // pred_check
          %p515 = pneg %p298
        $region46: #{graph_fingerprints_forward.6} parent=11 // pred_check_branch
          %517 = sbr.rel (%p515) target = $region48
        $region47: #{graph_fingerprints_forward.6} parent=11 // pred_region
          _
        $region48: #{graph_fingerprints_forward.6} parent=11 // pred_fallthru
          _
        // Predicated region
        $region49: #{graph_fingerprints_forward.6} parent=11 // pred_check
          %p518 = pneg %p319
        $region50: #{graph_fingerprints_forward.6} parent=11 // pred_check_branch
          %520 = sbr.rel (%p518) target = $region52
        $region51: #{graph_fingerprints_forward.6} parent=11 // pred_region
          _
        $region52: #{graph_fingerprints_forward.6} parent=11 // pred_fallthru
          _
        // Predicated region
        $region53: #{graph_fingerprints_forward.6} parent=11 // pred_check
          %p521 = pneg %p340
        $region54: #{graph_fingerprints_forward.6} parent=11 // pred_check_branch
          %523 = sbr.rel (%p521) target = $region56
        $region55: #{graph_fingerprints_forward.6} parent=11 // pred_region
          _
        $region56: #{graph_fingerprints_forward.6} parent=11 // pred_fallthru
          _
        // Predicated region
        $region57: #{graph_fingerprints_forward.6} parent=11 // pred_check
          %p524 = pneg %p361
        $region58: #{graph_fingerprints_forward.6} parent=11 // pred_check_branch
          %526 = sbr.rel (%p524) target = $region60
        $region59: #{graph_fingerprints_forward.6} parent=11 // pred_region
          _
        $region60: #{graph_fingerprints_forward.6} parent=11 // pred_fallthru
          _
        // Predicated region
        $region61: #{graph_fingerprints_forward.6} parent=11 // pred_check
          %p527 = pneg %p382
        $region62: #{graph_fingerprints_forward.6} parent=11 // pred_check_branch
          %529 = sbr.rel (%p527) target = $region64
        $region63: #{graph_fingerprints_forward.6} parent=11 // pred_region
          _
        $region64: #{graph_fingerprints_forward.6} parent=11 // pred_fallthru
          _
        // Predicated region
        $region65: #{graph_fingerprints_forward.6} parent=11 // pred_check
          %p530 = pneg %p403
        $region66: #{graph_fingerprints_forward.6} parent=11 // pred_check_branch
          %532 = sbr.rel (%p530) target = $region68
        $region67: #{graph_fingerprints_forward.6} parent=11 // pred_region
          _
        $region68: #{graph_fingerprints_forward.6} parent=11 // pred_fallthru
          _
        // Predicated region
        $region69: #{graph_fingerprints_forward.6} parent=11 // pred_check
          %p533 = pneg %p424
        $region70: #{graph_fingerprints_forward.6} parent=11 // pred_check_branch
          %535 = sbr.rel (%p533) target = $region72
        $region71: #{graph_fingerprints_forward.6} parent=11 // pred_region
          _
        $region72: #{graph_fingerprints_forward.6} parent=11 // pred_fallthru
          _
      $region12: #{graph_fingerprints_forward.6} parent=5 // pred_fallthru
        _
      %p536 = scmp.lt.s32.totalorder %s31, 2
      // Predicated region
      $region73: #{graph_fingerprints_forward.6} parent=5 // pred_check
        %p537 = pneg %p536
      $region74: #{graph_fingerprints_forward.6} parent=5 // pred_check_branch
        %539 = sbr.rel (%p537) target = $region76
      $region75: #{graph_fingerprints_forward.6} parent=5 // pred_region
        // Predicated region
        $region77: #{graph_fingerprints_forward.6} parent=75 // pred_check
          %p540 = pneg %p51
        $region78: #{graph_fingerprints_forward.6} parent=75 // pred_check_branch
          %542 = sbr.rel (%p540) target = $region80
        $region79: #{graph_fingerprints_forward.6} parent=75 // pred_region
          %p543 = scmp.lt.s32.totalorder %s31, 1
          %s544 = scalar_select %p543, %s31, 1
          %s545 = smul.addr %s544, 8
          %s546 = scalar_lea.vmem %s0, %s545
        $region80: #{graph_fingerprints_forward.6} parent=75 // pred_fallthru
          _
        // Predicated region
        $region81: #{graph_fingerprints_forward.6} parent=75 // pred_check
          %p547 = pneg %p77
        $region82: #{graph_fingerprints_forward.6} parent=75 // pred_check_branch
          %549 = sbr.rel (%p547) target = $region84
        $region83: #{graph_fingerprints_forward.6} parent=75 // pred_region
          %p550 = scmp.lt.s32.totalorder %s31, 1
          %s551 = scalar_select %p550, %s31, 1
          %s552 = smul.addr %s551, 8
          %s553 = scalar_lea.vmem %s1, %s552
        $region84: #{graph_fingerprints_forward.6} parent=75 // pred_fallthru
          _
        // Predicated region
        $region85: #{graph_fingerprints_forward.6} parent=75 // pred_check
          %p554 = pneg %p103
        $region86: #{graph_fingerprints_forward.6} parent=75 // pred_check_branch
          %556 = sbr.rel (%p554) target = $region88
        $region87: #{graph_fingerprints_forward.6} parent=75 // pred_region
          %p557 = scmp.lt.s32.totalorder %s31, 1
          %s558 = scalar_select %p557, %s31, 1
          %s559 = scalar_lea.vmem %s2, %s558
        $region88: #{graph_fingerprints_forward.6} parent=75 // pred_fallthru
          _
      $region76: #{graph_fingerprints_forward.6} parent=5 // pred_fallthru
        _
      %p560 = scmp.le.s32.totalorder 1, %s31
      %p561 = scmp.lt.s32.totalorder %s31, 3
      %p562 = pnand %p560, %p561
      %p563 = pneg %p562
      // Predicated region
      $region89: #{graph_fingerprints_forward.6} parent=5 // pred_check
        _
      $region90: #{graph_fingerprints_forward.6} parent=5 // pred_check_branch
        %565 = sbr.rel (%p562) target = $region92
      $region91: #{graph_fingerprints_forward.6} parent=5 // pred_region
        %s566 = ssub.s32 %s31, 1
        %p567 = scmp.lt.s32.totalorder %s36, 1
        %s568 = scalar_select %p567, %s36, 1
        %s569 = smul.addr %s568, 8
        %s570 = scalar_lea.vmem %s0, %s569
        %p571 = pneg %p57
        %p572 = pneg %p54
        %p573 = scmp.lt.s32.totalorder %s36, 1
        %s574 = scalar_select %p573, %s36, 1
        %s575 = smul.addr %s574, 8
        %s576 = scalar_lea.vmem %s1, %s575
        %p577 = pneg %p83
        %p578 = pneg %p80
        %p579 = scmp.lt.s32.totalorder %s36, 1
        %s580 = scalar_select %p579, %s36, 1
        %s581 = scalar_lea.vmem %s2, %s580
        %p582 = pneg %p109
        %p583 = pneg %p106
        %p584 = pneg %p130
        %p585 = pneg %p127
        %p586 = pneg %p151
        %p587 = pneg %p148
        %p588 = pneg %p172
        %p589 = pneg %p169
        %p590 = pneg %p193
        %p591 = pneg %p190
        %p592 = pneg %p214
        %p593 = pneg %p211
        %p594 = pneg %p235
        %p595 = pneg %p232
        %p596 = pneg %p256
        %p597 = pneg %p253
        %p598 = pneg %p277
        %p599 = pneg %p274
        %p600 = pneg %p298
        %p601 = pneg %p295
        %p602 = pneg %p319
        %p603 = pneg %p316
        %p604 = pneg %p340
        %p605 = pneg %p337
        %p606 = pneg %p361
        %p607 = pneg %p358
        %p608 = pneg %p382
        %p609 = pneg %p379
        %p610 = pneg %p403
        %p611 = pneg %p400
        %p612 = pneg %p424
        %p613 = pneg %p421
        %p614 = pneg %p450
        %p615 = pneg %p447
        %p616 = scmp.lt.s32.totalorder %s36, 1
        %s617 = scalar_select %p616, %s36, 1
        %s618 = smul.addr %s617, 8
        %s619 = scalar_lea.vmem %s18, %s618
        %p620 = pneg %p476
        %p621 = pneg %p473
        %s622 = sand.u32 %s463, 1
        %s623 = scalar_lea.sflag [#allocation4], %s622
        %s624 = sand.u32 %s463, 1
        %s625 = scalar_lea.vmem [#allocation3], %s624
        %p626 = scmp.lt.s32.totalorder %s36, 1
        %s627 = scalar_select %p626, %s36, 1
        %s628 = smul.addr %s627, 8
        %s629 = scalar_lea.vmem %s0, %s628
        %p630 = scmp.lt.s32.totalorder %s36, 1
        %s631 = scalar_select %p630, %s36, 1
        %s632 = smul.addr %s631, 8
        %s633 = scalar_lea.vmem %s1, %s632
        %p634 = scmp.lt.s32.totalorder %s36, 1
        %s635 = scalar_select %p634, %s36, 1
        %s636 = scalar_lea.vmem %s2, %s635
        %p637 = scmp.lt.s32.totalorder %s36, 1
        %s638 = scalar_select %p637, %s36, 1
        %s639 = smul.addr %s638, 8
        %s640 = scalar_lea.vmem %s18, %s639
        %v641 = vld [vmem:[%s629] sm:$0xff]
        %v642 = vld [vmem:[%s633] sm:$0xff]
        %v643 = vld [vmem:[%s636] sm:$0x1]
        %v644 = vld [vmem:[%s3] sm:$0xff]
        %v645 = vld [vmem:[%s3 + $0x8] sm:$0xff]
        %v646 = vld [vmem:[%s3 + $0x10] sm:$0xff]
        %v647 = vld [vmem:[%s3 + $0x18] sm:$0xff]
        %vm648 = vcmask 261120
        %v650 = vsel %vm648, %v641, 0
        %652 = vmatpush.msra.mxu0 0.0
        %653 = vmatpush.msra.mxu0 0.0
        %654 = vmatpush.msra.mxu0 0.0
        %655 = vmatpush.msra.mxu0 0.0
        %656 = vmatpush.msra.mxu0 0.0
        %657 = vmatpush.msra.mxu0 0.0
        %658 = vmatpush.msra.mxu0 0.0
        %659 = vmatpush.msra.mxu0 0.0
        %660 = vmatpush.msra.mxu0 0.0
        %661 = vmatpush.msra.mxu0 0.0
        %662 = vmatpush.msra.mxu0 0.0
        %663 = vmatpush.msra.mxu0 0.0
        %664 = vmatpush.msra.mxu0 %v647
        %665 = vmatpush.msra.mxu0 %v646
        %666 = vmatpush.msra.mxu0 %v645
        %667 = vmatpush.msra.mxu0 %v644
        %668 = vmatmul.f32.gmra.mxu0 %v650
        %v669 = vpop.f32.mrf.mxu0
        %v670 = vadd.f32 0.0, %v669
        %671 = vdwg.mxu0
        %v672 = vld [vmem:[%s4] sm:$0x1]
        %v674 = vsel %vm648, %v672, 0
        %676 = vmatpush.xpose.msra.mxu0 0.0
        %677 = vmatpush.xpose.msra.mxu0 0.0
        %678 = vmatpush.xpose.msra.mxu0 0.0
        %679 = vmatpush.xpose.msra.mxu0 0.0
        %680 = vmatpush.xpose.msra.mxu0 0.0
        %681 = vmatpush.xpose.msra.mxu0 0.0
        %682 = vmatpush.xpose.msra.mxu0 0.0
        %683 = vmatpush.xpose.msra.mxu0 0.0
        %684 = vmatpush.xpose.msra.mxu0 0.0
        %685 = vmatpush.xpose.msra.mxu0 0.0
        %686 = vmatpush.xpose.msra.mxu0 0.0
        %687 = vmatpush.xpose.msra.mxu0 0.0
        %688 = vmatpush.xpose.msra.mxu0 0.0
        %689 = vmatpush.xpose.msra.mxu0 0.0
        %690 = vmatpush.xpose.msra.mxu0 0.0
        %691 = vmatpush.xpose.msra.mxu0 %v650
        %692 = vmatmul.f32.gmra.mxu0 %v674
        %v693 = vpop.f32.mrf.mxu0
        %v694 = vadd.f32 0.0, %v693
        %695 = vdwg.mxu0
        %697 = vset.pattern.permute.xlu0 0
        %698 = vperm.xlu0 %697, %v670
        %v699 = vpop.permute.xlu0 %698
        %v701 = vperm.slane %v694, 0
        %v702 = vadd.f32 %v699, %v701
        %v703 = vld [vmem:[#allocation2] sm:$0x1]
        %v705 = vperm.slane %v703, 0
        %706 = vset.pattern.permute.xlu0 0
        %707 = vperm.xlu0 %706, %v705
        %v708 = vpop.permute.xlu0 %707
        %v710 = vadd.f32 %v702, %v708
        %vm711 = vcmp.gt.f32.partialorder %v710, 0.0
        %v712 = vmul.f32 %v710, 0.01
        %v713 = vsel %vm711, %v710, %v712
        %vm714 = vcmp.gt.f32.partialorder %v642, 0.0
        %v715 = vsel %vm714, %v713, -1e+30
        %vm716 = vcmask 64512
        %v717 = vsel %vm716, %v715, -inf
        %718 = vmax.xlane.f32.xlu0 %v717
        %v719 = vpop.xlane.xlu0 %718
        %v720 = vsub.f32 %v715, %v719
        %v721 = vmul.f32 %v720, 1.442695
        %v722 = vpow.pop %v721
        %v723 = vmul.f32 %v722, %v642
        %v724 = vsel %vm716, %v723, 0.0
        %725 = vadd.xlane.f32.xlu0 %v724
        %v726 = vpop.xlane.xlu0 %725
        %v727 = vmax.f32 %v726, 1e-20
        %v728 = vrcp.pop %v727
        %v729 = vmul.f32 %v723, %v728
        %v730 = vld [vmem:[%s6] sm:$0xff]
        %v731 = vld [vmem:[%s6 + $0x8] sm:$0xff]
        %v732 = vld [vmem:[%s6 + $0x10] sm:$0xff]
        %v733 = vld [vmem:[%s6 + $0x18] sm:$0xff]
        %v734 = vld [vmem:[%s7] sm:$0x1]
        %v736 = vperm.slane %v734, 0
        %738 = vmatpush.msra.mxu0 0.0
        %739 = vmatpush.msra.mxu0 0.0
        %740 = vmatpush.msra.mxu0 0.0
        %741 = vmatpush.msra.mxu0 0.0
        %742 = vmatpush.msra.mxu0 0.0
        %743 = vmatpush.msra.mxu0 0.0
        %744 = vmatpush.msra.mxu0 0.0
        %745 = vmatpush.msra.mxu0 0.0
        %746 = vmatpush.msra.mxu0 0.0
        %747 = vmatpush.msra.mxu0 0.0
        %748 = vmatpush.msra.mxu0 0.0
        %749 = vmatpush.msra.mxu0 0.0
        %750 = vmatpush.msra.mxu0 %v733
        %751 = vmatpush.msra.mxu0 %v732
        %752 = vmatpush.msra.mxu0 %v731
        %753 = vmatpush.msra.mxu0 %v730
        %754 = vmatmul.f32.gmra.mxu0 %v650
        %v755 = vpop.f32.mrf.mxu0
        %v756 = vadd.f32 %v736, %v755
        %757 = vdwg.mxu0
        %v759 = vsel %vm716, %v729, 0
        %761 = vmatpush.msra.mxu0 0.0
        %762 = vmatpush.msra.mxu0 0.0
        %763 = vmatpush.msra.mxu0 0.0
        %764 = vmatpush.msra.mxu0 0.0
        %765 = vmatpush.msra.mxu0 0.0
        %766 = vmatpush.msra.mxu0 0.0
        %767 = vmatpush.msra.mxu0 0.0
        %768 = vmatpush.msra.mxu0 0.0
        %769 = vmatpush.msra.mxu0 0.0
        %770 = vmatpush.msra.mxu0 0.0
        %771 = vmatpush.msra.mxu0 0.0
        %772 = vmatpush.msra.mxu0 0.0
        %773 = vmatpush.msra.mxu0 0.0
        %774 = vmatpush.msra.mxu0 0.0
        %775 = vmatpush.msra.mxu0 0.0
        %776 = vmatpush.msra.mxu0 %v756
        %777 = vmatmul.f32.gmra.mxu0 %v759
        %v778 = vpop.f32.mrf.mxu0
        %v779 = vadd.f32 0.0, %v778
        %780 = vdwg.mxu0
        %vm781 = vcmp.gt.f32.partialorder %v779, 0.0
        %v782 = vmin.f32 %v779, 0.0
        %v783 = vmul.f32 %v782, 1.442695
        %v784 = vpow.pop %v783
        %v785 = vsub.f32 %v784, 1.0
        %v786 = vsel %vm781, %v779, %v785
        %v787 = vld [vmem:[%s8] sm:$0xff]
        %v788 = vld [vmem:[%s8 + $0x8] sm:$0xff]
        %v789 = vld [vmem:[%s8 + $0x10] sm:$0xff]
        %v790 = vld [vmem:[%s8 + $0x18] sm:$0xff]
        %v791 = vld [vmem:[%s11] sm:$0xff]
        %v792 = vld [vmem:[%s11 + $0x8] sm:$0xff]
        %v793 = vld [vmem:[%s11 + $0x10] sm:$0xff]
        %v794 = vld [vmem:[%s11 + $0x18] sm:$0xff]
        %795 = vmatpush.msra.mxu0 0.0
        %796 = vmatpush.msra.mxu0 0.0
        %797 = vmatpush.msra.mxu0 0.0
        %798 = vmatpush.msra.mxu0 0.0
        %799 = vmatpush.msra.mxu0 0.0
        %800 = vmatpush.msra.mxu0 0.0
        %801 = vmatpush.msra.mxu0 0.0
        %802 = vmatpush.msra.mxu0 0.0
        %803 = vmatpush.msra.mxu0 0.0
        %804 = vmatpush.msra.mxu0 0.0
        %805 = vmatpush.msra.mxu0 0.0
        %806 = vmatpush.msra.mxu0 0.0
        %807 = vmatpush.msra.mxu0 %v794
        %808 = vmatpush.msra.mxu0 %v793
        %809 = vmatpush.msra.mxu0 %v792
        %810 = vmatpush.msra.mxu0 %v791
        %811 = vmatmul.f32.gmra.mxu0 %v650
        %v812 = vpop.f32.mrf.mxu0
        %v813 = vadd.f32 0.0, %v812
        %814 = vdwg.mxu0
        %v816 = vsel %vm648, %v786, 0
        %818 = vmatpush.msra.mxu0 0.0
        %819 = vmatpush.msra.mxu0 0.0
        %820 = vmatpush.msra.mxu0 0.0
        %821 = vmatpush.msra.mxu0 0.0
        %822 = vmatpush.msra.mxu0 0.0
        %823 = vmatpush.msra.mxu0 0.0
        %824 = vmatpush.msra.mxu0 0.0
        %825 = vmatpush.msra.mxu0 0.0
        %826 = vmatpush.msra.mxu0 0.0
        %827 = vmatpush.msra.mxu0 0.0
        %828 = vmatpush.msra.mxu0 0.0
        %829 = vmatpush.msra.mxu0 0.0
        %830 = vmatpush.msra.mxu0 %v790
        %831 = vmatpush.msra.mxu0 %v789
        %832 = vmatpush.msra.mxu0 %v788
        %833 = vmatpush.msra.mxu0 %v787
        %834 = vmatmul.f32.gmra.mxu0 %v816
        %v835 = vpop.f32.mrf.mxu0
        %v836 = vadd.f32 %v813, %v835
        %837 = vdwg.mxu0
        %v838 = vld [vmem:[%s14] sm:$0x1]
        %v840 = vperm.slane %v838, 0
        %v842 = vadd.f32 %v836, %v840
        %v843 = vxor.u32 %v842, 2147483648
        %v844 = vmul.f32 %v843, 1.442695
        %v845 = vpow.pop %v844
        %v846 = vadd.f32 %v845, 1.0
        %v847 = vrcp.pop %v846
        %v848 = vmul.f32 %v846, %v847
        %v849 = vsub.f32 1.0, %v848
        %v850 = vmul.f32 %v847, %v849
        %v851 = vadd.f32 %v847, %v850
        %vm852 = vweird.f32 %v846
        %vm853 = vweird.f32 %v847
        %vm854 = vmor %vm852, %vm853
        %v855 = vsel %vm854, %v847, %v851
        %v856 = vand.u32 2147483647, %v846
        %vm857 = vcmp.eq.f32.partialorder %v856, 8.507059e+37
        %v858 = vand.u32 %v846, 2147483648
        %v859 = vor.u32 1.1754944e-38, %v858
        %v860 = vsel %vm857, %v859, %v855
        %v861 = vmul.f32 1.0, %v860
        %v862 = vld [vmem:[%s9] sm:$0xff]
        %v863 = vld [vmem:[%s9 + $0x8] sm:$0xff]
        %v864 = vld [vmem:[%s9 + $0x10] sm:$0xff]
        %v865 = vld [vmem:[%s9 + $0x18] sm:$0xff]
        %v866 = vld [vmem:[%s12] sm:$0xff]
        %v867 = vld [vmem:[%s12 + $0x8] sm:$0xff]
        %v868 = vld [vmem:[%s12 + $0x10] sm:$0xff]
        %v869 = vld [vmem:[%s12 + $0x18] sm:$0xff]
        %870 = vmatpush.msra.mxu0 0.0
        %871 = vmatpush.msra.mxu0 0.0
        %872 = vmatpush.msra.mxu0 0.0
        %873 = vmatpush.msra.mxu0 0.0
        %874 = vmatpush.msra.mxu0 0.0
        %875 = vmatpush.msra.mxu0 0.0
        %876 = vmatpush.msra.mxu0 0.0
        %877 = vmatpush.msra.mxu0 0.0
        %878 = vmatpush.msra.mxu0 0.0
        %879 = vmatpush.msra.mxu0 0.0
        %880 = vmatpush.msra.mxu0 0.0
        %881 = vmatpush.msra.mxu0 0.0
        %882 = vmatpush.msra.mxu0 %v869
        %883 = vmatpush.msra.mxu0 %v868
        %884 = vmatpush.msra.mxu0 %v867
        %885 = vmatpush.msra.mxu0 %v866
        %886 = vmatmul.f32.gmra.mxu0 %v650
        %v887 = vpop.f32.mrf.mxu0
        %v888 = vadd.f32 0.0, %v887
        %889 = vdwg.mxu0
        %890 = vmatpush.msra.mxu0 0.0
        %891 = vmatpush.msra.mxu0 0.0
        %892 = vmatpush.msra.mxu0 0.0
        %893 = vmatpush.msra.mxu0 0.0
        %894 = vmatpush.msra.mxu0 0.0
        %895 = vmatpush.msra.mxu0 0.0
        %896 = vmatpush.msra.mxu0 0.0
        %897 = vmatpush.msra.mxu0 0.0
        %898 = vmatpush.msra.mxu0 0.0
        %899 = vmatpush.msra.mxu0 0.0
        %900 = vmatpush.msra.mxu0 0.0
        %901 = vmatpush.msra.mxu0 0.0
        %902 = vmatpush.msra.mxu0 %v865
        %903 = vmatpush.msra.mxu0 %v864
        %904 = vmatpush.msra.mxu0 %v863
        %905 = vmatpush.msra.mxu0 %v862
        %906 = vmatmul.f32.gmra.mxu0 %v816
        %v907 = vpop.f32.mrf.mxu0
        %v908 = vadd.f32 %v888, %v907
        %909 = vdwg.mxu0
        %v910 = vld [vmem:[%s15] sm:$0x1]
        %v912 = vperm.slane %v910, 0
        %v914 = vadd.f32 %v908, %v912
        %v915 = vxor.u32 %v914, 2147483648
        %v916 = vmul.f32 %v915, 1.442695
        %v917 = vpow.pop %v916
        %v918 = vadd.f32 %v917, 1.0
        %v919 = vrcp.pop %v918
        %v920 = vmul.f32 %v918, %v919
        %v921 = vsub.f32 1.0, %v920
        %v922 = vmul.f32 %v919, %v921
        %v923 = vadd.f32 %v919, %v922
        %vm924 = vweird.f32 %v918
        %vm925 = vweird.f32 %v919
        %vm926 = vmor %vm924, %vm925
        %v927 = vsel %vm926, %v919, %v923
        %v928 = vand.u32 2147483647, %v918
        %vm929 = vcmp.eq.f32.partialorder %v928, 8.507059e+37
        %v930 = vand.u32 %v918, 2147483648
        %v931 = vor.u32 1.1754944e-38, %v930
        %v932 = vsel %vm929, %v931, %v927
        %v933 = vmul.f32 1.0, %v932
        %v934 = vld [vmem:[%s10] sm:$0xff]
        %v935 = vld [vmem:[%s10 + $0x8] sm:$0xff]
        %v936 = vld [vmem:[%s10 + $0x10] sm:$0xff]
        %v937 = vld [vmem:[%s10 + $0x18] sm:$0xff]
        %v938 = vld [vmem:[%s16] sm:$0x1]
        %v940 = vperm.slane %v938, 0
        %942 = vmatpush.msra.mxu0 0.0
        %943 = vmatpush.msra.mxu0 0.0
        %944 = vmatpush.msra.mxu0 0.0
        %945 = vmatpush.msra.mxu0 0.0
        %946 = vmatpush.msra.mxu0 0.0
        %947 = vmatpush.msra.mxu0 0.0
        %948 = vmatpush.msra.mxu0 0.0
        %949 = vmatpush.msra.mxu0 0.0
        %950 = vmatpush.msra.mxu0 0.0
        %951 = vmatpush.msra.mxu0 0.0
        %952 = vmatpush.msra.mxu0 0.0
        %953 = vmatpush.msra.mxu0 0.0
        %954 = vmatpush.msra.mxu0 %v937
        %955 = vmatpush.msra.mxu0 %v936
        %956 = vmatpush.msra.mxu0 %v935
        %957 = vmatpush.msra.mxu0 %v934
        %958 = vmatmul.f32.gmra.mxu0 %v816
        %v959 = vpop.f32.mrf.mxu0
        %v960 = vadd.f32 %v940, %v959
        %961 = vdwg.mxu0
        %v962 = vld [vmem:[%s13] sm:$0xff]
        %v963 = vld [vmem:[%s13 + $0x8] sm:$0xff]
        %v964 = vld [vmem:[%s13 + $0x10] sm:$0xff]
        %v965 = vld [vmem:[%s13 + $0x18] sm:$0xff]
        %v966 = vld [vmem:[%s17] sm:$0x1]
        %v968 = vperm.slane %v966, 0
        %970 = vmatpush.msra.mxu0 0.0
        %971 = vmatpush.msra.mxu0 0.0
        %972 = vmatpush.msra.mxu0 0.0
        %973 = vmatpush.msra.mxu0 0.0
        %974 = vmatpush.msra.mxu0 0.0
        %975 = vmatpush.msra.mxu0 0.0
        %976 = vmatpush.msra.mxu0 0.0
        %977 = vmatpush.msra.mxu0 0.0
        %978 = vmatpush.msra.mxu0 0.0
        %979 = vmatpush.msra.mxu0 0.0
        %980 = vmatpush.msra.mxu0 0.0
        %981 = vmatpush.msra.mxu0 0.0
        %982 = vmatpush.msra.mxu0 %v965
        %983 = vmatpush.msra.mxu0 %v964
        %984 = vmatpush.msra.mxu0 %v963
        %985 = vmatpush.msra.mxu0 %v962
        %986 = vmatmul.f32.gmra.mxu0 %v650
        %v987 = vpop.f32.mrf.mxu0
        %v988 = vadd.f32 %v968, %v987
        %989 = vdwg.mxu0
        %v990 = vmul.f32 %v861, %v988
        %v991 = vadd.f32 %v960, %v990
        %v992 = vtanh.pop %v991
        %v993 = vsub.f32 1.0, %v933
        %v994 = vmul.f32 %v993, %v992
        %v995 = vmul.f32 %v933, %v641
        %v996 = vadd.f32 %v994, %v995
        %v997 = vmax.f32 %v996, 0.0
        %998 = vst.msk [vmem:[%s640] sm:$0xff] %vm648, %v997
        %v1000 = vsel %vm716, %v643, 0
        %1002 = vmatpush.msra.mxu0 0.0
        %1003 = vmatpush.msra.mxu0 0.0
        %1004 = vmatpush.msra.mxu0 0.0
        %1005 = vmatpush.msra.mxu0 0.0
        %1006 = vmatpush.msra.mxu0 0.0
        %1007 = vmatpush.msra.mxu0 0.0
        %1008 = vmatpush.msra.mxu0 0.0
        %1009 = vmatpush.msra.mxu0 0.0
        %1010 = vmatpush.msra.mxu0 0.0
        %1011 = vmatpush.msra.mxu0 0.0
        %1012 = vmatpush.msra.mxu0 0.0
        %1013 = vmatpush.msra.mxu0 0.0
        %1014 = vmatpush.msra.mxu0 0.0
        %1015 = vmatpush.msra.mxu0 0.0
        %1016 = vmatpush.msra.mxu0 0.0
        %1017 = vmatpush.msra.mxu0 %v997
        %1018 = vmatmul.f32.gmra.mxu0 %v1000
        %v1019 = vpop.f32.mrf.mxu0
        %v1020 = vadd.f32 0.0, %v1019
        %1021 = vdwg.mxu0
        %vm1022 = vcmask 253952
        %1023 = vst.msk [vmem:[%s625] sm:$0x1] %vm1022, %v1020
        %p1024 = scmp.lt.s32.totalorder %s36, 1
        %s1025 = scalar_select %p1024, %s36, 1
        %s1026 = smul.addr %s1025, 8
        %s1027 = scalar_lea.vmem %s18, %s1026
        %s1028 = sand.u32 %s463, 1
        %s1029 = scalar_lea.sflag [#allocation4], %s1028
        %s1030 = sand.u32 %s463, 1
        %s1031 = scalar_lea.vmem [#allocation3], %s1030
        // Predicated region
        $region93: #{graph_fingerprints_forward.6} parent=91 // pred_check
          %p1032 = pneg %p447
        $region94: #{graph_fingerprints_forward.6} parent=91 // pred_check_branch
          %1034 = sbr.rel (%p1032) target = $region96
        $region95: #{graph_fingerprints_forward.6} parent=91 // pred_region
          _
        $region96: #{graph_fingerprints_forward.6} parent=91 // pred_fallthru
          _
        // Predicated region
        $region97: #{graph_fingerprints_forward.6} parent=91 // pred_check
          %p1035 = pneg %p473
        $region98: #{graph_fingerprints_forward.6} parent=91 // pred_check_branch
          %1037 = sbr.rel (%p1035) target = $region100
        $region99: #{graph_fingerprints_forward.6} parent=91 // pred_region
          %1039 = vsyncadd %s1029, 0
          %s1040 = scalar_lea.hbm %s19, %s36
          %s1042 = sshll.u32 %s1031, 4
          %s1043 = int_to_ptr.vmem [resolvable:$true] %s1042
          %s1044 = sshll.u32 %s1040, 4
          %s1045 = int_to_ptr.hbm [resolvable:$true] %s1044
          %1047 = dma.vmem_to_hbm [thread:$0]  %s1043, 16, %s1045, %s1029
        $region100: #{graph_fingerprints_forward.6} parent=91 // pred_fallthru
          _
      $region92: #{graph_fingerprints_forward.6} parent=5 // pred_fallthru
        _
      %p1048 = scmp.le.s32.totalorder 2, %s31
      // Predicated region
      $region101: #{graph_fingerprints_forward.6} parent=5 // pred_check
        %p1049 = pneg %p1048
      $region102: #{graph_fingerprints_forward.6} parent=5 // pred_check_branch
        %1051 = sbr.rel (%p1049) target = $region104
      $region103: #{graph_fingerprints_forward.6} parent=5 // pred_region
        %s1052 = ssub.s32 %s31, 2
        // Predicated region
        $region105: #{graph_fingerprints_forward.6} parent=103 // pred_check
          %p1053 = pneg %p453
        $region106: #{graph_fingerprints_forward.6} parent=103 // pred_check_branch
          %1055 = sbr.rel (%p1053) target = $region108
        $region107: #{graph_fingerprints_forward.6} parent=103 // pred_region
          %p1056 = scmp.lt.s32.totalorder %s37, 1
          %s1057 = scalar_select %p1056, %s37, 1
          %s1058 = smul.addr %s1057, 8
          %s1059 = scalar_lea.vmem %s18, %s1058
        $region108: #{graph_fingerprints_forward.6} parent=103 // pred_fallthru
          _
        // Predicated region
        $region109: #{graph_fingerprints_forward.6} parent=103 // pred_check
          %p1060 = pneg %p479
        $region110: #{graph_fingerprints_forward.6} parent=103 // pred_check_branch
          %1062 = sbr.rel (%p1060) target = $region112
        $region111: #{graph_fingerprints_forward.6} parent=103 // pred_region
          %s1063 = sand.u32 %s464, 1
          %s1064 = scalar_lea.sflag [#allocation4], %s1063
          %s1065 = sand.u32 %s464, 1
          %s1066 = scalar_lea.vmem [#allocation3], %s1065
          %1068 = dma.done %s1064, 16
        $region112: #{graph_fingerprints_forward.6} parent=103 // pred_fallthru
          _
      $region104: #{graph_fingerprints_forward.6} parent=5 // pred_fallthru
        _
    $region6: #{graph_fingerprints_forward.6} parent=1 // loop_footer
      %s35 = sadd.s32 1, %s31
    $region7: #{graph_fingerprints_forward.6} parent=1 // loop_footer_branch
      %30 = sbr.rel target = $region3
    $region8: #{graph_fingerprints_forward.6} parent=1 // loop_exit
      _
    %1069 = vsyncpa [#allocation4], 1
    %s1070 = scalar_lea.sflag [#allocation4], 1
    %1071 = vsyncpa %s1070, 1

// kernel: graph_fingerprints_forward.7
$region0: #{graph_fingerprints_forward.7}
  #allocation0 [shape = 'u32[]', space=smem, size = 0x4, offset = 0x4, fixed_abs, tag = 'smem constant byte address 0x4 - core index']
  #allocation1 [shape = 'u32[72,128]{1,0:T(1,128)}', space=vmem, size = 0x9000, scoped, tag = 'internal scratch']
  #allocation2 [shape = 'f32[1,1]{1,0:T(1,128)S(1)}', space=vmem, size = 0x200, scoped, tag = 'scoped memory for graph_fingerprints_forward.7']
  %s0 = inlined_call_operand.vmem [shape: f32[2,8,32], index: 0, kind: input, shape index: {}]
  %s1 = inlined_call_operand.vmem [shape: f32[2,8,8], index: 1, kind: input, shape index: {}]
  %s2 = inlined_call_operand.vmem [shape: f32[2,1,8], index: 2, kind: input, shape index: {}]
  %s3 = inlined_call_operand.vmem [shape: f32[32,1], index: 3, kind: input, shape index: {}]
  %s4 = inlined_call_operand.vmem [shape: f32[1,32], index: 4, kind: input, shape index: {}]
  %s5 = inlined_call_operand.<no memory space> [shape: f32[1,1], index: 5, kind: input, shape index: {}]
  %s6 = inlined_call_operand.vmem [shape: f32[32,32], index: 6, kind: input, shape index: {}]
  %s7 = inlined_call_operand.vmem [shape: f32[1,32], index: 7, kind: input, shape index: {}]
  %s8 = inlined_call_operand.vmem [shape: f32[32,32], index: 8, kind: input, shape index: {}]
  %s9 = inlined_call_operand.vmem [shape: f32[32,32], index: 9, kind: input, shape index: {}]
  %s10 = inlined_call_operand.vmem [shape: f32[32,32], index: 10, kind: input, shape index: {}]
  %s11 = inlined_call_operand.vmem [shape: f32[32,32], index: 11, kind: input, shape index: {}]
  %s12 = inlined_call_operand.vmem [shape: f32[32,32], index: 12, kind: input, shape index: {}]
  %s13 = inlined_call_operand.vmem [shape: f32[32,32], index: 13, kind: input, shape index: {}]
  %s14 = inlined_call_operand.vmem [shape: f32[1,32], index: 14, kind: input, shape index: {}]
  %s15 = inlined_call_operand.vmem [shape: f32[1,32], index: 15, kind: input, shape index: {}]
  %s16 = inlined_call_operand.vmem [shape: f32[1,32], index: 16, kind: input, shape index: {}]
  %s17 = inlined_call_operand.vmem [shape: f32[1,32], index: 17, kind: input, shape index: {}]
  %s18 = inlined_call_operand.vmem [shape: f32[2,8,32], index: 18, kind: output, shape index: {0}]
  %s19 = inlined_call_operand.vmem [shape: f32[2,1,32], index: 19, kind: output, shape index: {1}]
  %20 = xla_tuple %s18, %s19
  %s21 = sld [smem:[#allocation0]]
  $region113: #{graph_fingerprints_forward.7} parent=0
    _
  %s23 = ssub.s32 1, %s21
  %s24 = scalar_select 0, %s23, %s21
  %v25 = vstv %s5
  %26 = vst [vmem:[#allocation2] sm:$0x1] %v25
  loop: start=0, step=1, limit=4
  $region2: #{graph_fingerprints_forward.7} parent=0 // loop_pre_header
    _
  $region3: #{graph_fingerprints_forward.7} parent=0 // loop_header
    %s28 = sphi 0, %s32
    %p29 = scmp.ge.s32.totalorder %s28, 4
    %s38 = sphi 0, %s40
    %s41 = sphi 0, %s38
    %s42 = sphi 0, %s41
    %s58 = sphi 0, %s42
    %s64 = sphi 0, %s66
    %s67 = sphi 0, %s64
    %s68 = sphi 0, %s67
    %s84 = sphi 0, %s68
    %s90 = sphi 0, %s92
    %s93 = sphi 0, %s90
    %s94 = sphi 0, %s93
    %s110 = sphi 0, %s94
    %s114 = sphi 0, %s114
    %s116 = sphi 0, %s114
    %s117 = sphi 0, %s116
    %s131 = sphi 0, %s117
    %s135 = sphi 0, %s135
    %s137 = sphi 0, %s135
    %s138 = sphi 0, %s137
    %s152 = sphi 0, %s138
    %s156 = sphi 0, %s156
    %s158 = sphi 0, %s156
    %s159 = sphi 0, %s158
    %s173 = sphi 0, %s159
    %s177 = sphi 0, %s177
    %s179 = sphi 0, %s177
    %s180 = sphi 0, %s179
    %s194 = sphi 0, %s180
    %s198 = sphi 0, %s198
    %s200 = sphi 0, %s198
    %s201 = sphi 0, %s200
    %s215 = sphi 0, %s201
    %s219 = sphi 0, %s219
    %s221 = sphi 0, %s219
    %s222 = sphi 0, %s221
    %s236 = sphi 0, %s222
    %s240 = sphi 0, %s240
    %s242 = sphi 0, %s240
    %s243 = sphi 0, %s242
    %s257 = sphi 0, %s243
    %s261 = sphi 0, %s261
    %s263 = sphi 0, %s261
    %s264 = sphi 0, %s263
    %s278 = sphi 0, %s264
    %s282 = sphi 0, %s282
    %s284 = sphi 0, %s282
    %s285 = sphi 0, %s284
    %s299 = sphi 0, %s285
    %s303 = sphi 0, %s303
    %s305 = sphi 0, %s303
    %s306 = sphi 0, %s305
    %s320 = sphi 0, %s306
    %s324 = sphi 0, %s324
    %s326 = sphi 0, %s324
    %s327 = sphi 0, %s326
    %s341 = sphi 0, %s327
    %s345 = sphi 0, %s345
    %s347 = sphi 0, %s345
    %s348 = sphi 0, %s347
    %s362 = sphi 0, %s348
    %s366 = sphi 0, %s366
    %s368 = sphi 0, %s366
    %s369 = sphi 0, %s368
    %s383 = sphi 0, %s369
    %s387 = sphi 0, %s387
    %s389 = sphi 0, %s387
    %s390 = sphi 0, %s389
    %s404 = sphi 0, %s390
    %s408 = sphi 0, %s408
    %s410 = sphi 0, %s408
    %s411 = sphi 0, %s410
    %s425 = sphi 0, %s411
    %s431 = sphi 0, %s433
    %s434 = sphi 0, %s431
    %s435 = sphi 0, %s434
    %s451 = sphi 0, %s435
    %s457 = sphi 0, %s459
    %s460 = sphi 0, %s457
    %s461 = sphi 0, %s460
    %s477 = sphi 0, %s461
  $region4: #{graph_fingerprints_forward.7} parent=0 // loop_header_branch
    %31 = sbr.rel (%p29) target = $region8
  $region5: #{graph_fingerprints_forward.7} parent=0 // loop_body
    %s33 = ssub.s32 %s28, 1
    %s34 = ssub.s32 %s28, 2
    %s35 = sadd.s32 %s28, 1
    %s36 = ssub.s32 %s28, %s35
    %p37 = scmp.eq.s32.totalorder %s36, 0
    %s39 = sadd.s32 %s38, 1
    %s40 = scalar_select %p37, %s38, %s39
    %p43 = pneg %p37
    %p44 = scmp.eq.s32.totalorder %s28, 1
    %p45 = por %p43, %p44
    %p46 = scmp.ne.s32.totalorder %s38, %s41
    %p47 = scmp.eq.s32.totalorder %s28, 0
    %p48 = por %p46, %p47
    %p49 = scmp.ne.s32.totalorder %s38, %s41
    %p50 = scmp.eq.s32.totalorder %s33, 1
    %p51 = por %p49, %p50
    %p52 = scmp.ne.s32.totalorder %s41, %s42
    %p53 = scmp.eq.s32.totalorder %s33, 0
    %p54 = por %p52, %p53
    %p55 = scmp.ne.s32.totalorder %s41, %s42
    %p56 = scmp.eq.s32.totalorder %s34, 1
    %p57 = por %p55, %p56
    %p59 = scmp.ne.s32.totalorder %s42, %s58
    %p60 = scmp.eq.s32.totalorder %s34, 0
    %p61 = por %p59, %p60
    %s62 = ssub.s32 %s28, %s35
    %p63 = scmp.eq.s32.totalorder %s62, 0
    %s65 = sadd.s32 %s64, 1
    %s66 = scalar_select %p63, %s64, %s65
    %p69 = pneg %p63
    %p70 = scmp.eq.s32.totalorder %s28, 1
    %p71 = por %p69, %p70
    %p72 = scmp.ne.s32.totalorder %s64, %s67
    %p73 = scmp.eq.s32.totalorder %s28, 0
    %p74 = por %p72, %p73
    %p75 = scmp.ne.s32.totalorder %s64, %s67
    %p76 = scmp.eq.s32.totalorder %s33, 1
    %p77 = por %p75, %p76
    %p78 = scmp.ne.s32.totalorder %s67, %s68
    %p79 = scmp.eq.s32.totalorder %s33, 0
    %p80 = por %p78, %p79
    %p81 = scmp.ne.s32.totalorder %s67, %s68
    %p82 = scmp.eq.s32.totalorder %s34, 1
    %p83 = por %p81, %p82
    %p85 = scmp.ne.s32.totalorder %s68, %s84
    %p86 = scmp.eq.s32.totalorder %s34, 0
    %p87 = por %p85, %p86
    %s88 = ssub.s32 %s28, %s35
    %p89 = scmp.eq.s32.totalorder %s88, 0
    %s91 = sadd.s32 %s90, 1
    %s92 = scalar_select %p89, %s90, %s91
    %p95 = pneg %p89
    %p96 = scmp.eq.s32.totalorder %s28, 1
    %p97 = por %p95, %p96
    %p98 = scmp.ne.s32.totalorder %s90, %s93
    %p99 = scmp.eq.s32.totalorder %s28, 0
    %p100 = por %p98, %p99
    %p101 = scmp.ne.s32.totalorder %s90, %s93
    %p102 = scmp.eq.s32.totalorder %s33, 1
    %p103 = por %p101, %p102
    %p104 = scmp.ne.s32.totalorder %s93, %s94
    %p105 = scmp.eq.s32.totalorder %s33, 0
    %p106 = por %p104, %p105
    %p107 = scmp.ne.s32.totalorder %s93, %s94
    %p108 = scmp.eq.s32.totalorder %s34, 1
    %p109 = por %p107, %p108
    %p111 = scmp.ne.s32.totalorder %s94, %s110
    %p112 = scmp.eq.s32.totalorder %s34, 0
    %p113 = por %p111, %p112
    %s115 = sadd.s32 %s114, 1
    %p118 = scmp.eq.s32.totalorder %s28, 1
    %p119 = scmp.ne.s32.totalorder %s114, %s116
    %p120 = scmp.eq.s32.totalorder %s28, 0
    %p121 = por %p119, %p120
    %p122 = scmp.ne.s32.totalorder %s114, %s116
    %p123 = scmp.eq.s32.totalorder %s33, 1
    %p124 = por %p122, %p123
    %p125 = scmp.ne.s32.totalorder %s116, %s117
    %p126 = scmp.eq.s32.totalorder %s33, 0
    %p127 = por %p125, %p126
    %p128 = scmp.ne.s32.totalorder %s116, %s117
    %p129 = scmp.eq.s32.totalorder %s34, 1
    %p130 = por %p128, %p129
    %p132 = scmp.ne.s32.totalorder %s117, %s131
    %p133 = scmp.eq.s32.totalorder %s34, 0
    %p134 = por %p132, %p133
    %s136 = sadd.s32 %s135, 1
    %p139 = scmp.eq.s32.totalorder %s28, 1
    %p140 = scmp.ne.s32.totalorder %s135, %s137
    %p141 = scmp.eq.s32.totalorder %s28, 0
    %p142 = por %p140, %p141
    %p143 = scmp.ne.s32.totalorder %s135, %s137
    %p144 = scmp.eq.s32.totalorder %s33, 1
    %p145 = por %p143, %p144
    %p146 = scmp.ne.s32.totalorder %s137, %s138
    %p147 = scmp.eq.s32.totalorder %s33, 0
    %p148 = por %p146, %p147
    %p149 = scmp.ne.s32.totalorder %s137, %s138
    %p150 = scmp.eq.s32.totalorder %s34, 1
    %p151 = por %p149, %p150
    %p153 = scmp.ne.s32.totalorder %s138, %s152
    %p154 = scmp.eq.s32.totalorder %s34, 0
    %p155 = por %p153, %p154
    %s157 = sadd.s32 %s156, 1
    %p160 = scmp.eq.s32.totalorder %s28, 1
    %p161 = scmp.ne.s32.totalorder %s156, %s158
    %p162 = scmp.eq.s32.totalorder %s28, 0
    %p163 = por %p161, %p162
    %p164 = scmp.ne.s32.totalorder %s156, %s158
    %p165 = scmp.eq.s32.totalorder %s33, 1
    %p166 = por %p164, %p165
    %p167 = scmp.ne.s32.totalorder %s158, %s159
    %p168 = scmp.eq.s32.totalorder %s33, 0
    %p169 = por %p167, %p168
    %p170 = scmp.ne.s32.totalorder %s158, %s159
    %p171 = scmp.eq.s32.totalorder %s34, 1
    %p172 = por %p170, %p171
    %p174 = scmp.ne.s32.totalorder %s159, %s173
    %p175 = scmp.eq.s32.totalorder %s34, 0
    %p176 = por %p174, %p175
    %s178 = sadd.s32 %s177, 1
    %p181 = scmp.eq.s32.totalorder %s28, 1
    %p182 = scmp.ne.s32.totalorder %s177, %s179
    %p183 = scmp.eq.s32.totalorder %s28, 0
    %p184 = por %p182, %p183
    %p185 = scmp.ne.s32.totalorder %s177, %s179
    %p186 = scmp.eq.s32.totalorder %s33, 1
    %p187 = por %p185, %p186
    %p188 = scmp.ne.s32.totalorder %s179, %s180
    %p189 = scmp.eq.s32.totalorder %s33, 0
    %p190 = por %p188, %p189
    %p191 = scmp.ne.s32.totalorder %s179, %s180
    %p192 = scmp.eq.s32.totalorder %s34, 1
    %p193 = por %p191, %p192
    %p195 = scmp.ne.s32.totalorder %s180, %s194
    %p196 = scmp.eq.s32.totalorder %s34, 0
    %p197 = por %p195, %p196
    %s199 = sadd.s32 %s198, 1
    %p202 = scmp.eq.s32.totalorder %s28, 1
    %p203 = scmp.ne.s32.totalorder %s198, %s200
    %p204 = scmp.eq.s32.totalorder %s28, 0
    %p205 = por %p203, %p204
    %p206 = scmp.ne.s32.totalorder %s198, %s200
    %p207 = scmp.eq.s32.totalorder %s33, 1
    %p208 = por %p206, %p207
    %p209 = scmp.ne.s32.totalorder %s200, %s201
    %p210 = scmp.eq.s32.totalorder %s33, 0
    %p211 = por %p209, %p210
    %p212 = scmp.ne.s32.totalorder %s200, %s201
    %p213 = scmp.eq.s32.totalorder %s34, 1
    %p214 = por %p212, %p213
    %p216 = scmp.ne.s32.totalorder %s201, %s215
    %p217 = scmp.eq.s32.totalorder %s34, 0
    %p218 = por %p216, %p217
    %s220 = sadd.s32 %s219, 1
    %p223 = scmp.eq.s32.totalorder %s28, 1
    %p224 = scmp.ne.s32.totalorder %s219, %s221
    %p225 = scmp.eq.s32.totalorder %s28, 0
    %p226 = por %p224, %p225
    %p227 = scmp.ne.s32.totalorder %s219, %s221
    %p228 = scmp.eq.s32.totalorder %s33, 1
    %p229 = por %p227, %p228
    %p230 = scmp.ne.s32.totalorder %s221, %s222
    %p231 = scmp.eq.s32.totalorder %s33, 0
    %p232 = por %p230, %p231
    %p233 = scmp.ne.s32.totalorder %s221, %s222
    %p234 = scmp.eq.s32.totalorder %s34, 1
    %p235 = por %p233, %p234
    %p237 = scmp.ne.s32.totalorder %s222, %s236
    %p238 = scmp.eq.s32.totalorder %s34, 0
    %p239 = por %p237, %p238
    %s241 = sadd.s32 %s240, 1
    %p244 = scmp.eq.s32.totalorder %s28, 1
    %p245 = scmp.ne.s32.totalorder %s240, %s242
    %p246 = scmp.eq.s32.totalorder %s28, 0
    %p247 = por %p245, %p246
    %p248 = scmp.ne.s32.totalorder %s240, %s242
    %p249 = scmp.eq.s32.totalorder %s33, 1
    %p250 = por %p248, %p249
    %p251 = scmp.ne.s32.totalorder %s242, %s243
    %p252 = scmp.eq.s32.totalorder %s33, 0
    %p253 = por %p251, %p252
    %p254 = scmp.ne.s32.totalorder %s242, %s243
    %p255 = scmp.eq.s32.totalorder %s34, 1
    %p256 = por %p254, %p255
    %p258 = scmp.ne.s32.totalorder %s243, %s257
    %p259 = scmp.eq.s32.totalorder %s34, 0
    %p260 = por %p258, %p259
    %s262 = sadd.s32 %s261, 1
    %p265 = scmp.eq.s32.totalorder %s28, 1
    %p266 = scmp.ne.s32.totalorder %s261, %s263
    %p267 = scmp.eq.s32.totalorder %s28, 0
    %p268 = por %p266, %p267
    %p269 = scmp.ne.s32.totalorder %s261, %s263
    %p270 = scmp.eq.s32.totalorder %s33, 1
    %p271 = por %p269, %p270
    %p272 = scmp.ne.s32.totalorder %s263, %s264
    %p273 = scmp.eq.s32.totalorder %s33, 0
    %p274 = por %p272, %p273
    %p275 = scmp.ne.s32.totalorder %s263, %s264
    %p276 = scmp.eq.s32.totalorder %s34, 1
    %p277 = por %p275, %p276
    %p279 = scmp.ne.s32.totalorder %s264, %s278
    %p280 = scmp.eq.s32.totalorder %s34, 0
    %p281 = por %p279, %p280
    %s283 = sadd.s32 %s282, 1
    %p286 = scmp.eq.s32.totalorder %s28, 1
    %p287 = scmp.ne.s32.totalorder %s282, %s284
    %p288 = scmp.eq.s32.totalorder %s28, 0
    %p289 = por %p287, %p288
    %p290 = scmp.ne.s32.totalorder %s282, %s284
    %p291 = scmp.eq.s32.totalorder %s33, 1
    %p292 = por %p290, %p291
    %p293 = scmp.ne.s32.totalorder %s284, %s285
    %p294 = scmp.eq.s32.totalorder %s33, 0
    %p295 = por %p293, %p294
    %p296 = scmp.ne.s32.totalorder %s284, %s285
    %p297 = scmp.eq.s32.totalorder %s34, 1
    %p298 = por %p296, %p297
    %p300 = scmp.ne.s32.totalorder %s285, %s299
    %p301 = scmp.eq.s32.totalorder %s34, 0
    %p302 = por %p300, %p301
    %s304 = sadd.s32 %s303, 1
    %p307 = scmp.eq.s32.totalorder %s28, 1
    %p308 = scmp.ne.s32.totalorder %s303, %s305
    %p309 = scmp.eq.s32.totalorder %s28, 0
    %p310 = por %p308, %p309
    %p311 = scmp.ne.s32.totalorder %s303, %s305
    %p312 = scmp.eq.s32.totalorder %s33, 1
    %p313 = por %p311, %p312
    %p314 = scmp.ne.s32.totalorder %s305, %s306
    %p315 = scmp.eq.s32.totalorder %s33, 0
    %p316 = por %p314, %p315
    %p317 = scmp.ne.s32.totalorder %s305, %s306
    %p318 = scmp.eq.s32.totalorder %s34, 1
    %p319 = por %p317, %p318
    %p321 = scmp.ne.s32.totalorder %s306, %s320
    %p322 = scmp.eq.s32.totalorder %s34, 0
    %p323 = por %p321, %p322
    %s325 = sadd.s32 %s324, 1
    %p328 = scmp.eq.s32.totalorder %s28, 1
    %p329 = scmp.ne.s32.totalorder %s324, %s326
    %p330 = scmp.eq.s32.totalorder %s28, 0
    %p331 = por %p329, %p330
    %p332 = scmp.ne.s32.totalorder %s324, %s326
    %p333 = scmp.eq.s32.totalorder %s33, 1
    %p334 = por %p332, %p333
    %p335 = scmp.ne.s32.totalorder %s326, %s327
    %p336 = scmp.eq.s32.totalorder %s33, 0
    %p337 = por %p335, %p336
    %p338 = scmp.ne.s32.totalorder %s326, %s327
    %p339 = scmp.eq.s32.totalorder %s34, 1
    %p340 = por %p338, %p339
    %p342 = scmp.ne.s32.totalorder %s327, %s341
    %p343 = scmp.eq.s32.totalorder %s34, 0
    %p344 = por %p342, %p343
    %s346 = sadd.s32 %s345, 1
    %p349 = scmp.eq.s32.totalorder %s28, 1
    %p350 = scmp.ne.s32.totalorder %s345, %s347
    %p351 = scmp.eq.s32.totalorder %s28, 0
    %p352 = por %p350, %p351
    %p353 = scmp.ne.s32.totalorder %s345, %s347
    %p354 = scmp.eq.s32.totalorder %s33, 1
    %p355 = por %p353, %p354
    %p356 = scmp.ne.s32.totalorder %s347, %s348
    %p357 = scmp.eq.s32.totalorder %s33, 0
    %p358 = por %p356, %p357
    %p359 = scmp.ne.s32.totalorder %s347, %s348
    %p360 = scmp.eq.s32.totalorder %s34, 1
    %p361 = por %p359, %p360
    %p363 = scmp.ne.s32.totalorder %s348, %s362
    %p364 = scmp.eq.s32.totalorder %s34, 0
    %p365 = por %p363, %p364
    %s367 = sadd.s32 %s366, 1
    %p370 = scmp.eq.s32.totalorder %s28, 1
    %p371 = scmp.ne.s32.totalorder %s366, %s368
    %p372 = scmp.eq.s32.totalorder %s28, 0
    %p373 = por %p371, %p372
    %p374 = scmp.ne.s32.totalorder %s366, %s368
    %p375 = scmp.eq.s32.totalorder %s33, 1
    %p376 = por %p374, %p375
    %p377 = scmp.ne.s32.totalorder %s368, %s369
    %p378 = scmp.eq.s32.totalorder %s33, 0
    %p379 = por %p377, %p378
    %p380 = scmp.ne.s32.totalorder %s368, %s369
    %p381 = scmp.eq.s32.totalorder %s34, 1
    %p382 = por %p380, %p381
    %p384 = scmp.ne.s32.totalorder %s369, %s383
    %p385 = scmp.eq.s32.totalorder %s34, 0
    %p386 = por %p384, %p385
    %s388 = sadd.s32 %s387, 1
    %p391 = scmp.eq.s32.totalorder %s28, 1
    %p392 = scmp.ne.s32.totalorder %s387, %s389
    %p393 = scmp.eq.s32.totalorder %s28, 0
    %p394 = por %p392, %p393
    %p395 = scmp.ne.s32.totalorder %s387, %s389
    %p396 = scmp.eq.s32.totalorder %s33, 1
    %p397 = por %p395, %p396
    %p398 = scmp.ne.s32.totalorder %s389, %s390
    %p399 = scmp.eq.s32.totalorder %s33, 0
    %p400 = por %p398, %p399
    %p401 = scmp.ne.s32.totalorder %s389, %s390
    %p402 = scmp.eq.s32.totalorder %s34, 1
    %p403 = por %p401, %p402
    %p405 = scmp.ne.s32.totalorder %s390, %s404
    %p406 = scmp.eq.s32.totalorder %s34, 0
    %p407 = por %p405, %p406
    %s409 = sadd.s32 %s408, 1
    %p412 = scmp.eq.s32.totalorder %s28, 1
    %p413 = scmp.ne.s32.totalorder %s408, %s410
    %p414 = scmp.eq.s32.totalorder %s28, 0
    %p415 = por %p413, %p414
    %p416 = scmp.ne.s32.totalorder %s408, %s410
    %p417 = scmp.eq.s32.totalorder %s33, 1
    %p418 = por %p416, %p417
    %p419 = scmp.ne.s32.totalorder %s410, %s411
    %p420 = scmp.eq.s32.totalorder %s33, 0
    %p421 = por %p419, %p420
    %p422 = scmp.ne.s32.totalorder %s410, %s411
    %p423 = scmp.eq.s32.totalorder %s34, 1
    %p424 = por %p422, %p423
    %p426 = scmp.ne.s32.totalorder %s411, %s425
    %p427 = scmp.eq.s32.totalorder %s34, 0
    %p428 = por %p426, %p427
    %s429 = ssub.s32 %s28, %s35
    %p430 = scmp.eq.s32.totalorder %s429, 0
    %s432 = sadd.s32 %s431, 1
    %s433 = scalar_select %p430, %s431, %s432
    %p436 = pneg %p430
    %p437 = scmp.eq.s32.totalorder %s28, 1
    %p438 = por %p436, %p437
    %p439 = scmp.ne.s32.totalorder %s431, %s434
    %p440 = scmp.eq.s32.totalorder %s28, 0
    %p441 = por %p439, %p440
    %p442 = scmp.ne.s32.totalorder %s431, %s434
    %p443 = scmp.eq.s32.totalorder %s33, 1
    %p444 = por %p442, %p443
    %p445 = scmp.ne.s32.totalorder %s434, %s435
    %p446 = scmp.eq.s32.totalorder %s33, 0
    %p447 = por %p445, %p446
    %p448 = scmp.ne.s32.totalorder %s434, %s435
    %p449 = scmp.eq.s32.totalorder %s34, 1
    %p450 = por %p448, %p449
    %p452 = scmp.ne.s32.totalorder %s435, %s451
    %p453 = scmp.eq.s32.totalorder %s34, 0
    %p454 = por %p452, %p453
    %s455 = ssub.s32 %s28, %s35
    %p456 = scmp.eq.s32.totalorder %s455, 0
    %s458 = sadd.s32 %s457, 1
    %s459 = scalar_select %p456, %s457, %s458
    %p462 = pneg %p456
    %p463 = scmp.eq.s32.totalorder %s28, 1
    %p464 = por %p462, %p463
    %p465 = scmp.ne.s32.totalorder %s457, %s460
    %p466 = scmp.eq.s32.totalorder %s28, 0
    %p467 = por %p465, %p466
    %p468 = scmp.ne.s32.totalorder %s457, %s460
    %p469 = scmp.eq.s32.totalorder %s33, 1
    %p470 = por %p468, %p469
    %p471 = scmp.ne.s32.totalorder %s460, %s461
    %p472 = scmp.eq.s32.totalorder %s33, 0
    %p473 = por %p471, %p472
    %p474 = scmp.ne.s32.totalorder %s460, %s461
    %p475 = scmp.eq.s32.totalorder %s34, 1
    %p476 = por %p474, %p475
    %p478 = scmp.ne.s32.totalorder %s461, %s477
    %p479 = scmp.eq.s32.totalorder %s34, 0
    %p480 = por %p478, %p479
    %p481 = scmp.le.s32.totalorder 1, %s28
    %p482 = scmp.lt.s32.totalorder %s28, 3
    %p483 = pnand %p481, %p482
    %p484 = pneg %p483
    // Predicated region
    $region9: #{graph_fingerprints_forward.7} parent=5 // pred_check
      _
    $region10: #{graph_fingerprints_forward.7} parent=5 // pred_check_branch
      %486 = sbr.rel (%p483) target = $region12
    $region11: #{graph_fingerprints_forward.7} parent=5 // pred_region
      %s487 = ssub.s32 %s28, 1
      // Predicated region
      $region13: #{graph_fingerprints_forward.7} parent=11 // pred_check
        %p488 = pneg %p127
      $region14: #{graph_fingerprints_forward.7} parent=11 // pred_check_branch
        %490 = sbr.rel (%p488) target = $region16
      $region15: #{graph_fingerprints_forward.7} parent=11 // pred_region
        _
      $region16: #{graph_fingerprints_forward.7} parent=11 // pred_fallthru
        _
      // Predicated region
      $region17: #{graph_fingerprints_forward.7} parent=11 // pred_check
        %p491 = pneg %p148
      $region18: #{graph_fingerprints_forward.7} parent=11 // pred_check_branch
        %493 = sbr.rel (%p491) target = $region20
      $region19: #{graph_fingerprints_forward.7} parent=11 // pred_region
        _
      $region20: #{graph_fingerprints_forward.7} parent=11 // pred_fallthru
        _
      // Predicated region
      $region21: #{graph_fingerprints_forward.7} parent=11 // pred_check
        %p494 = pneg %p169
      $region22: #{graph_fingerprints_forward.7} parent=11 // pred_check_branch
        %496 = sbr.rel (%p494) target = $region24
      $region23: #{graph_fingerprints_forward.7} parent=11 // pred_region
        _
      $region24: #{graph_fingerprints_forward.7} parent=11 // pred_fallthru
        _
      // Predicated region
      $region25: #{graph_fingerprints_forward.7} parent=11 // pred_check
        %p497 = pneg %p190
      $region26: #{graph_fingerprints_forward.7} parent=11 // pred_check_branch
        %499 = sbr.rel (%p497) target = $region28
      $region27: #{graph_fingerprints_forward.7} parent=11 // pred_region
        _
      $region28: #{graph_fingerprints_forward.7} parent=11 // pred_fallthru
        _
      // Predicated region
      $region29: #{graph_fingerprints_forward.7} parent=11 // pred_check
        %p500 = pneg %p211
      $region30: #{graph_fingerprints_forward.7} parent=11 // pred_check_branch
        %502 = sbr.rel (%p500) target = $region32
      $region31: #{graph_fingerprints_forward.7} parent=11 // pred_region
        _
      $region32: #{graph_fingerprints_forward.7} parent=11 // pred_fallthru
        _
      // Predicated region
      $region33: #{graph_fingerprints_forward.7} parent=11 // pred_check
        %p503 = pneg %p232
      $region34: #{graph_fingerprints_forward.7} parent=11 // pred_check_branch
        %505 = sbr.rel (%p503) target = $region36
      $region35: #{graph_fingerprints_forward.7} parent=11 // pred_region
        _
      $region36: #{graph_fingerprints_forward.7} parent=11 // pred_fallthru
        _
      // Predicated region
      $region37: #{graph_fingerprints_forward.7} parent=11 // pred_check
        %p506 = pneg %p253
      $region38: #{graph_fingerprints_forward.7} parent=11 // pred_check_branch
        %508 = sbr.rel (%p506) target = $region40
      $region39: #{graph_fingerprints_forward.7} parent=11 // pred_region
        _
      $region40: #{graph_fingerprints_forward.7} parent=11 // pred_fallthru
        _
      // Predicated region
      $region41: #{graph_fingerprints_forward.7} parent=11 // pred_check
        %p509 = pneg %p274
      $region42: #{graph_fingerprints_forward.7} parent=11 // pred_check_branch
        %511 = sbr.rel (%p509) target = $region44
      $region43: #{graph_fingerprints_forward.7} parent=11 // pred_region
        _
      $region44: #{graph_fingerprints_forward.7} parent=11 // pred_fallthru
        _
      // Predicated region
      $region45: #{graph_fingerprints_forward.7} parent=11 // pred_check
        %p512 = pneg %p295
      $region46: #{graph_fingerprints_forward.7} parent=11 // pred_check_branch
        %514 = sbr.rel (%p512) target = $region48
      $region47: #{graph_fingerprints_forward.7} parent=11 // pred_region
        _
      $region48: #{graph_fingerprints_forward.7} parent=11 // pred_fallthru
        _
      // Predicated region
      $region49: #{graph_fingerprints_forward.7} parent=11 // pred_check
        %p515 = pneg %p316
      $region50: #{graph_fingerprints_forward.7} parent=11 // pred_check_branch
        %517 = sbr.rel (%p515) target = $region52
      $region51: #{graph_fingerprints_forward.7} parent=11 // pred_region
        _
      $region52: #{graph_fingerprints_forward.7} parent=11 // pred_fallthru
        _
      // Predicated region
      $region53: #{graph_fingerprints_forward.7} parent=11 // pred_check
        %p518 = pneg %p337
      $region54: #{graph_fingerprints_forward.7} parent=11 // pred_check_branch
        %520 = sbr.rel (%p518) target = $region56
      $region55: #{graph_fingerprints_forward.7} parent=11 // pred_region
        _
      $region56: #{graph_fingerprints_forward.7} parent=11 // pred_fallthru
        _
      // Predicated region
      $region57: #{graph_fingerprints_forward.7} parent=11 // pred_check
        %p521 = pneg %p358
      $region58: #{graph_fingerprints_forward.7} parent=11 // pred_check_branch
        %523 = sbr.rel (%p521) target = $region60
      $region59: #{graph_fingerprints_forward.7} parent=11 // pred_region
        _
      $region60: #{graph_fingerprints_forward.7} parent=11 // pred_fallthru
        _
      // Predicated region
      $region61: #{graph_fingerprints_forward.7} parent=11 // pred_check
        %p524 = pneg %p379
      $region62: #{graph_fingerprints_forward.7} parent=11 // pred_check_branch
        %526 = sbr.rel (%p524) target = $region64
      $region63: #{graph_fingerprints_forward.7} parent=11 // pred_region
        _
      $region64: #{graph_fingerprints_forward.7} parent=11 // pred_fallthru
        _
      // Predicated region
      $region65: #{graph_fingerprints_forward.7} parent=11 // pred_check
        %p527 = pneg %p400
      $region66: #{graph_fingerprints_forward.7} parent=11 // pred_check_branch
        %529 = sbr.rel (%p527) target = $region68
      $region67: #{graph_fingerprints_forward.7} parent=11 // pred_region
        _
      $region68: #{graph_fingerprints_forward.7} parent=11 // pred_fallthru
        _
      // Predicated region
      $region69: #{graph_fingerprints_forward.7} parent=11 // pred_check
        %p530 = pneg %p421
      $region70: #{graph_fingerprints_forward.7} parent=11 // pred_check_branch
        %532 = sbr.rel (%p530) target = $region72
      $region71: #{graph_fingerprints_forward.7} parent=11 // pred_region
        _
      $region72: #{graph_fingerprints_forward.7} parent=11 // pred_fallthru
        _
    $region12: #{graph_fingerprints_forward.7} parent=5 // pred_fallthru
      _
    %p533 = scmp.lt.s32.totalorder %s28, 2
    // Predicated region
    $region73: #{graph_fingerprints_forward.7} parent=5 // pred_check
      %p534 = pneg %p533
    $region74: #{graph_fingerprints_forward.7} parent=5 // pred_check_branch
      %536 = sbr.rel (%p534) target = $region76
    $region75: #{graph_fingerprints_forward.7} parent=5 // pred_region
      // Predicated region
      $region77: #{graph_fingerprints_forward.7} parent=75 // pred_check
        %p537 = pneg %p48
      $region78: #{graph_fingerprints_forward.7} parent=75 // pred_check_branch
        %539 = sbr.rel (%p537) target = $region80
      $region79: #{graph_fingerprints_forward.7} parent=75 // pred_region
        %p540 = scmp.lt.s32.totalorder %s28, 1
        %s541 = scalar_select %p540, %s28, 1
        %s542 = smul.addr %s541, 8
        %s543 = scalar_lea.vmem %s0, %s542
      $region80: #{graph_fingerprints_forward.7} parent=75 // pred_fallthru
        _
      // Predicated region
      $region81: #{graph_fingerprints_forward.7} parent=75 // pred_check
        %p544 = pneg %p74
      $region82: #{graph_fingerprints_forward.7} parent=75 // pred_check_branch
        %546 = sbr.rel (%p544) target = $region84
      $region83: #{graph_fingerprints_forward.7} parent=75 // pred_region
        %p547 = scmp.lt.s32.totalorder %s28, 1
        %s548 = scalar_select %p547, %s28, 1
        %s549 = smul.addr %s548, 8
        %s550 = scalar_lea.vmem %s1, %s549
      $region84: #{graph_fingerprints_forward.7} parent=75 // pred_fallthru
        _
      // Predicated region
      $region85: #{graph_fingerprints_forward.7} parent=75 // pred_check
        %p551 = pneg %p100
      $region86: #{graph_fingerprints_forward.7} parent=75 // pred_check_branch
        %553 = sbr.rel (%p551) target = $region88
      $region87: #{graph_fingerprints_forward.7} parent=75 // pred_region
        %p554 = scmp.lt.s32.totalorder %s28, 1
        %s555 = scalar_select %p554, %s28, 1
        %s556 = scalar_lea.vmem %s2, %s555
      $region88: #{graph_fingerprints_forward.7} parent=75 // pred_fallthru
        _
    $region76: #{graph_fingerprints_forward.7} parent=5 // pred_fallthru
      _
    %p557 = scmp.le.s32.totalorder 1, %s28
    %p558 = scmp.lt.s32.totalorder %s28, 3
    %p559 = pnand %p557, %p558
    %p560 = pneg %p559
    // Predicated region
    $region89: #{graph_fingerprints_forward.7} parent=5 // pred_check
      _
    $region90: #{graph_fingerprints_forward.7} parent=5 // pred_check_branch
      %562 = sbr.rel (%p559) target = $region92
    $region91: #{graph_fingerprints_forward.7} parent=5 // pred_region
      %s563 = ssub.s32 %s28, 1
      %p564 = scmp.lt.s32.totalorder %s33, 1
      %s565 = scalar_select %p564, %s33, 1
      %s566 = smul.addr %s565, 8
      %s567 = scalar_lea.vmem %s0, %s566
      %p568 = pneg %p54
      %p569 = pneg %p51
      %p570 = scmp.lt.s32.totalorder %s33, 1
      %s571 = scalar_select %p570, %s33, 1
      %s572 = smul.addr %s571, 8
      %s573 = scalar_lea.vmem %s1, %s572
      %p574 = pneg %p80
      %p575 = pneg %p77
      %p576 = scmp.lt.s32.totalorder %s33, 1
      %s577 = scalar_select %p576, %s33, 1
      %s578 = scalar_lea.vmem %s2, %s577
      %p579 = pneg %p106
      %p580 = pneg %p103
      %p581 = pneg %p127
      %p582 = pneg %p124
      %p583 = pneg %p148
      %p584 = pneg %p145
      %p585 = pneg %p169
      %p586 = pneg %p166
      %p587 = pneg %p190
      %p588 = pneg %p187
      %p589 = pneg %p211
      %p590 = pneg %p208
      %p591 = pneg %p232
      %p592 = pneg %p229
      %p593 = pneg %p253
      %p594 = pneg %p250
      %p595 = pneg %p274
      %p596 = pneg %p271
      %p597 = pneg %p295
      %p598 = pneg %p292
      %p599 = pneg %p316
      %p600 = pneg %p313
      %p601 = pneg %p337
      %p602 = pneg %p334
      %p603 = pneg %p358
      %p604 = pneg %p355
      %p605 = pneg %p379
      %p606 = pneg %p376
      %p607 = pneg %p400
      %p608 = pneg %p397
      %p609 = pneg %p421
      %p610 = pneg %p418
      %p611 = pneg %p447
      %p612 = pneg %p444
      %p613 = scmp.lt.s32.totalorder %s33, 1
      %s614 = scalar_select %p613, %s33, 1
      %s615 = smul.addr %s614, 8
      %s616 = scalar_lea.vmem %s18, %s615
      %p617 = pneg %p473
      %p618 = pneg %p470
      %p619 = scmp.lt.s32.totalorder %s33, 1
      %s620 = scalar_select %p619, %s33, 1
      %s621 = scalar_lea.vmem %s19, %s620
      %p622 = scmp.lt.s32.totalorder %s33, 1
      %s623 = scalar_select %p622, %s33, 1
      %s624 = smul.addr %s623, 8
      %s625 = scalar_lea.vmem %s0, %s624
      %p626 = scmp.lt.s32.totalorder %s33, 1
      %s627 = scalar_select %p626, %s33, 1
      %s628 = smul.addr %s627, 8
      %s629 = scalar_lea.vmem %s1, %s628
      %p630 = scmp.lt.s32.totalorder %s33, 1
      %s631 = scalar_select %p630, %s33, 1
      %s632 = scalar_lea.vmem %s2, %s631
      %p633 = scmp.lt.s32.totalorder %s33, 1
      %s634 = scalar_select %p633, %s33, 1
      %s635 = smul.addr %s634, 8
      %s636 = scalar_lea.vmem %s18, %s635
      %p637 = scmp.lt.s32.totalorder %s33, 1
      %s638 = scalar_select %p637, %s33, 1
      %s639 = scalar_lea.vmem %s19, %s638
      %v640 = vld [vmem:[%s625] sm:$0xff]
      %v641 = vld [vmem:[%s629] sm:$0xff]
      %v642 = vld [vmem:[%s632] sm:$0x1]
      %v643 = vld [vmem:[%s3] sm:$0xff]
      %v644 = vld [vmem:[%s3 + $0x8] sm:$0xff]
      %v645 = vld [vmem:[%s3 + $0x10] sm:$0xff]
      %v646 = vld [vmem:[%s3 + $0x18] sm:$0xff]
      %vm647 = vcmask 261120
      %v649 = vsel %vm647, %v640, 0
      %651 = vmatpush.msra.mxu0 0.0
      %652 = vmatpush.msra.mxu0 0.0
      %653 = vmatpush.msra.mxu0 0.0
      %654 = vmatpush.msra.mxu0 0.0
      %655 = vmatpush.msra.mxu0 0.0
      %656 = vmatpush.msra.mxu0 0.0
      %657 = vmatpush.msra.mxu0 0.0
      %658 = vmatpush.msra.mxu0 0.0
      %659 = vmatpush.msra.mxu0 0.0
      %660 = vmatpush.msra.mxu0 0.0
      %661 = vmatpush.msra.mxu0 0.0
      %662 = vmatpush.msra.mxu0 0.0
      %663 = vmatpush.msra.mxu0 %v646
      %664 = vmatpush.msra.mxu0 %v645
      %665 = vmatpush.msra.mxu0 %v644
      %666 = vmatpush.msra.mxu0 %v643
      %667 = vmatmul.f32.gmra.mxu0 %v649
      %v668 = vpop.f32.mrf.mxu0
      %v669 = vadd.f32 0.0, %v668
      %670 = vdwg.mxu0
      %v671 = vld [vmem:[%s4] sm:$0x1]
      %v673 = vsel %vm647, %v671, 0
      %675 = vmatpush.xpose.msra.mxu0 0.0
      %676 = vmatpush.xpose.msra.mxu0 0.0
      %677 = vmatpush.xpose.msra.mxu0 0.0
      %678 = vmatpush.xpose.msra.mxu0 0.0
      %679 = vmatpush.xpose.msra.mxu0 0.0
      %680 = vmatpush.xpose.msra.mxu0 0.0
      %681 = vmatpush.xpose.msra.mxu0 0.0
      %682 = vmatpush.xpose.msra.mxu0 0.0
      %683 = vmatpush.xpose.msra.mxu0 0.0
      %684 = vmatpush.xpose.msra.mxu0 0.0
      %685 = vmatpush.xpose.msra.mxu0 0.0
      %686 = vmatpush.xpose.msra.mxu0 0.0
      %687 = vmatpush.xpose.msra.mxu0 0.0
      %688 = vmatpush.xpose.msra.mxu0 0.0
      %689 = vmatpush.xpose.msra.mxu0 0.0
      %690 = vmatpush.xpose.msra.mxu0 %v649
      %691 = vmatmul.f32.gmra.mxu0 %v673
      %v692 = vpop.f32.mrf.mxu0
      %v693 = vadd.f32 0.0, %v692
      %694 = vdwg.mxu0
      %696 = vset.pattern.permute.xlu0 0
      %697 = vperm.xlu0 %696, %v669
      %v698 = vpop.permute.xlu0 %697
      %v700 = vperm.slane %v693, 0
      %v701 = vadd.f32 %v698, %v700
      %v702 = vld [vmem:[#allocation2] sm:$0x1]
      %v704 = vperm.slane %v702, 0
      %705 = vset.pattern.permute.xlu0 0
      %706 = vperm.xlu0 %705, %v704
      %v707 = vpop.permute.xlu0 %706
      %v709 = vadd.f32 %v701, %v707
      %vm710 = vcmp.gt.f32.partialorder %v709, 0.0
      %v711 = vmul.f32 %v709, 0.01
      %v712 = vsel %vm710, %v709, %v711
      %vm713 = vcmp.gt.f32.partialorder %v641, 0.0
      %v714 = vsel %vm713, %v712, -1e+30
      %vm715 = vcmask 64512
      %v716 = vsel %vm715, %v714, -inf
      %717 = vmax.xlane.f32.xlu0 %v716
      %v718 = vpop.xlane.xlu0 %717
      %v719 = vsub.f32 %v714, %v718
      %v720 = vmul.f32 %v719, 1.442695
      %v721 = vpow.pop %v720
      %v722 = vmul.f32 %v721, %v641
      %v723 = vsel %vm715, %v722, 0.0
      %724 = vadd.xlane.f32.xlu0 %v723
      %v725 = vpop.xlane.xlu0 %724
      %v726 = vmax.f32 %v725, 1e-20
      %v727 = vrcp.pop %v726
      %v728 = vmul.f32 %v722, %v727
      %v729 = vld [vmem:[%s6] sm:$0xff]
      %v730 = vld [vmem:[%s6 + $0x8] sm:$0xff]
      %v731 = vld [vmem:[%s6 + $0x10] sm:$0xff]
      %v732 = vld [vmem:[%s6 + $0x18] sm:$0xff]
      %v733 = vld [vmem:[%s7] sm:$0x1]
      %v735 = vperm.slane %v733, 0
      %737 = vmatpush.msra.mxu0 0.0
      %738 = vmatpush.msra.mxu0 0.0
      %739 = vmatpush.msra.mxu0 0.0
      %740 = vmatpush.msra.mxu0 0.0
      %741 = vmatpush.msra.mxu0 0.0
      %742 = vmatpush.msra.mxu0 0.0
      %743 = vmatpush.msra.mxu0 0.0
      %744 = vmatpush.msra.mxu0 0.0
      %745 = vmatpush.msra.mxu0 0.0
      %746 = vmatpush.msra.mxu0 0.0
      %747 = vmatpush.msra.mxu0 0.0
      %748 = vmatpush.msra.mxu0 0.0
      %749 = vmatpush.msra.mxu0 %v732
      %750 = vmatpush.msra.mxu0 %v731
      %751 = vmatpush.msra.mxu0 %v730
      %752 = vmatpush.msra.mxu0 %v729
      %753 = vmatmul.f32.gmra.mxu0 %v649
      %v754 = vpop.f32.mrf.mxu0
      %v755 = vadd.f32 %v735, %v754
      %756 = vdwg.mxu0
      %v758 = vsel %vm715, %v728, 0
      %760 = vmatpush.msra.mxu0 0.0
      %761 = vmatpush.msra.mxu0 0.0
      %762 = vmatpush.msra.mxu0 0.0
      %763 = vmatpush.msra.mxu0 0.0
      %764 = vmatpush.msra.mxu0 0.0
      %765 = vmatpush.msra.mxu0 0.0
      %766 = vmatpush.msra.mxu0 0.0
      %767 = vmatpush.msra.mxu0 0.0
      %768 = vmatpush.msra.mxu0 0.0
      %769 = vmatpush.msra.mxu0 0.0
      %770 = vmatpush.msra.mxu0 0.0
      %771 = vmatpush.msra.mxu0 0.0
      %772 = vmatpush.msra.mxu0 0.0
      %773 = vmatpush.msra.mxu0 0.0
      %774 = vmatpush.msra.mxu0 0.0
      %775 = vmatpush.msra.mxu0 %v755
      %776 = vmatmul.f32.gmra.mxu0 %v758
      %v777 = vpop.f32.mrf.mxu0
      %v778 = vadd.f32 0.0, %v777
      %779 = vdwg.mxu0
      %vm780 = vcmp.gt.f32.partialorder %v778, 0.0
      %v781 = vmin.f32 %v778, 0.0
      %v782 = vmul.f32 %v781, 1.442695
      %v783 = vpow.pop %v782
      %v784 = vsub.f32 %v783, 1.0
      %v785 = vsel %vm780, %v778, %v784
      %v786 = vld [vmem:[%s8] sm:$0xff]
      %v787 = vld [vmem:[%s8 + $0x8] sm:$0xff]
      %v788 = vld [vmem:[%s8 + $0x10] sm:$0xff]
      %v789 = vld [vmem:[%s8 + $0x18] sm:$0xff]
      %v790 = vld [vmem:[%s11] sm:$0xff]
      %v791 = vld [vmem:[%s11 + $0x8] sm:$0xff]
      %v792 = vld [vmem:[%s11 + $0x10] sm:$0xff]
      %v793 = vld [vmem:[%s11 + $0x18] sm:$0xff]
      %794 = vmatpush.msra.mxu0 0.0
      %795 = vmatpush.msra.mxu0 0.0
      %796 = vmatpush.msra.mxu0 0.0
      %797 = vmatpush.msra.mxu0 0.0
      %798 = vmatpush.msra.mxu0 0.0
      %799 = vmatpush.msra.mxu0 0.0
      %800 = vmatpush.msra.mxu0 0.0
      %801 = vmatpush.msra.mxu0 0.0
      %802 = vmatpush.msra.mxu0 0.0
      %803 = vmatpush.msra.mxu0 0.0
      %804 = vmatpush.msra.mxu0 0.0
      %805 = vmatpush.msra.mxu0 0.0
      %806 = vmatpush.msra.mxu0 %v793
      %807 = vmatpush.msra.mxu0 %v792
      %808 = vmatpush.msra.mxu0 %v791
      %809 = vmatpush.msra.mxu0 %v790
      %810 = vmatmul.f32.gmra.mxu0 %v649
      %v811 = vpop.f32.mrf.mxu0
      %v812 = vadd.f32 0.0, %v811
      %813 = vdwg.mxu0
      %v815 = vsel %vm647, %v785, 0
      %817 = vmatpush.msra.mxu0 0.0
      %818 = vmatpush.msra.mxu0 0.0
      %819 = vmatpush.msra.mxu0 0.0
      %820 = vmatpush.msra.mxu0 0.0
      %821 = vmatpush.msra.mxu0 0.0
      %822 = vmatpush.msra.mxu0 0.0
      %823 = vmatpush.msra.mxu0 0.0
      %824 = vmatpush.msra.mxu0 0.0
      %825 = vmatpush.msra.mxu0 0.0
      %826 = vmatpush.msra.mxu0 0.0
      %827 = vmatpush.msra.mxu0 0.0
      %828 = vmatpush.msra.mxu0 0.0
      %829 = vmatpush.msra.mxu0 %v789
      %830 = vmatpush.msra.mxu0 %v788
      %831 = vmatpush.msra.mxu0 %v787
      %832 = vmatpush.msra.mxu0 %v786
      %833 = vmatmul.f32.gmra.mxu0 %v815
      %v834 = vpop.f32.mrf.mxu0
      %v835 = vadd.f32 %v812, %v834
      %836 = vdwg.mxu0
      %v837 = vld [vmem:[%s14] sm:$0x1]
      %v839 = vperm.slane %v837, 0
      %v841 = vadd.f32 %v835, %v839
      %v842 = vxor.u32 %v841, 2147483648
      %v843 = vmul.f32 %v842, 1.442695
      %v844 = vpow.pop %v843
      %v845 = vadd.f32 %v844, 1.0
      %v846 = vrcp.pop %v845
      %v847 = vmul.f32 %v845, %v846
      %v848 = vsub.f32 1.0, %v847
      %v849 = vmul.f32 %v846, %v848
      %v850 = vadd.f32 %v846, %v849
      %vm851 = vweird.f32 %v845
      %vm852 = vweird.f32 %v846
      %vm853 = vmor %vm851, %vm852
      %v854 = vsel %vm853, %v846, %v850
      %v855 = vand.u32 2147483647, %v845
      %vm856 = vcmp.eq.f32.partialorder %v855, 8.507059e+37
      %v857 = vand.u32 %v845, 2147483648
      %v858 = vor.u32 1.1754944e-38, %v857
      %v859 = vsel %vm856, %v858, %v854
      %v860 = vmul.f32 1.0, %v859
      %v861 = vld [vmem:[%s9] sm:$0xff]
      %v862 = vld [vmem:[%s9 + $0x8] sm:$0xff]
      %v863 = vld [vmem:[%s9 + $0x10] sm:$0xff]
      %v864 = vld [vmem:[%s9 + $0x18] sm:$0xff]
      %v865 = vld [vmem:[%s12] sm:$0xff]
      %v866 = vld [vmem:[%s12 + $0x8] sm:$0xff]
      %v867 = vld [vmem:[%s12 + $0x10] sm:$0xff]
      %v868 = vld [vmem:[%s12 + $0x18] sm:$0xff]
      %869 = vmatpush.msra.mxu0 0.0
      %870 = vmatpush.msra.mxu0 0.0
      %871 = vmatpush.msra.mxu0 0.0
      %872 = vmatpush.msra.mxu0 0.0
      %873 = vmatpush.msra.mxu0 0.0
      %874 = vmatpush.msra.mxu0 0.0
      %875 = vmatpush.msra.mxu0 0.0
      %876 = vmatpush.msra.mxu0 0.0
      %877 = vmatpush.msra.mxu0 0.0
      %878 = vmatpush.msra.mxu0 0.0
      %879 = vmatpush.msra.mxu0 0.0
      %880 = vmatpush.msra.mxu0 0.0
      %881 = vmatpush.msra.mxu0 %v868
      %882 = vmatpush.msra.mxu0 %v867
      %883 = vmatpush.msra.mxu0 %v866
      %884 = vmatpush.msra.mxu0 %v865
      %885 = vmatmul.f32.gmra.mxu0 %v649
      %v886 = vpop.f32.mrf.mxu0
      %v887 = vadd.f32 0.0, %v886
      %888 = vdwg.mxu0
      %889 = vmatpush.msra.mxu0 0.0
      %890 = vmatpush.msra.mxu0 0.0
      %891 = vmatpush.msra.mxu0 0.0
      %892 = vmatpush.msra.mxu0 0.0
      %893 = vmatpush.msra.mxu0 0.0
      %894 = vmatpush.msra.mxu0 0.0
      %895 = vmatpush.msra.mxu0 0.0
      %896 = vmatpush.msra.mxu0 0.0
      %897 = vmatpush.msra.mxu0 0.0
      %898 = vmatpush.msra.mxu0 0.0
      %899 = vmatpush.msra.mxu0 0.0
      %900 = vmatpush.msra.mxu0 0.0
      %901 = vmatpush.msra.mxu0 %v864
      %902 = vmatpush.msra.mxu0 %v863
      %903 = vmatpush.msra.mxu0 %v862
      %904 = vmatpush.msra.mxu0 %v861
      %905 = vmatmul.f32.gmra.mxu0 %v815
      %v906 = vpop.f32.mrf.mxu0
      %v907 = vadd.f32 %v887, %v906
      %908 = vdwg.mxu0
      %v909 = vld [vmem:[%s15] sm:$0x1]
      %v911 = vperm.slane %v909, 0
      %v913 = vadd.f32 %v907, %v911
      %v914 = vxor.u32 %v913, 2147483648
      %v915 = vmul.f32 %v914, 1.442695
      %v916 = vpow.pop %v915
      %v917 = vadd.f32 %v916, 1.0
      %v918 = vrcp.pop %v917
      %v919 = vmul.f32 %v917, %v918
      %v920 = vsub.f32 1.0, %v919
      %v921 = vmul.f32 %v918, %v920
      %v922 = vadd.f32 %v918, %v921
      %vm923 = vweird.f32 %v917
      %vm924 = vweird.f32 %v918
      %vm925 = vmor %vm923, %vm924
      %v926 = vsel %vm925, %v918, %v922
      %v927 = vand.u32 2147483647, %v917
      %vm928 = vcmp.eq.f32.partialorder %v927, 8.507059e+37
      %v929 = vand.u32 %v917, 2147483648
      %v930 = vor.u32 1.1754944e-38, %v929
      %v931 = vsel %vm928, %v930, %v926
      %v932 = vmul.f32 1.0, %v931
      %v933 = vld [vmem:[%s10] sm:$0xff]
      %v934 = vld [vmem:[%s10 + $0x8] sm:$0xff]
      %v935 = vld [vmem:[%s10 + $0x10] sm:$0xff]
      %v936 = vld [vmem:[%s10 + $0x18] sm:$0xff]
      %v937 = vld [vmem:[%s16] sm:$0x1]
      %v939 = vperm.slane %v937, 0
      %941 = vmatpush.msra.mxu0 0.0
      %942 = vmatpush.msra.mxu0 0.0
      %943 = vmatpush.msra.mxu0 0.0
      %944 = vmatpush.msra.mxu0 0.0
      %945 = vmatpush.msra.mxu0 0.0
      %946 = vmatpush.msra.mxu0 0.0
      %947 = vmatpush.msra.mxu0 0.0
      %948 = vmatpush.msra.mxu0 0.0
      %949 = vmatpush.msra.mxu0 0.0
      %950 = vmatpush.msra.mxu0 0.0
      %951 = vmatpush.msra.mxu0 0.0
      %952 = vmatpush.msra.mxu0 0.0
      %953 = vmatpush.msra.mxu0 %v936
      %954 = vmatpush.msra.mxu0 %v935
      %955 = vmatpush.msra.mxu0 %v934
      %956 = vmatpush.msra.mxu0 %v933
      %957 = vmatmul.f32.gmra.mxu0 %v815
      %v958 = vpop.f32.mrf.mxu0
      %v959 = vadd.f32 %v939, %v958
      %960 = vdwg.mxu0
      %v961 = vld [vmem:[%s13] sm:$0xff]
      %v962 = vld [vmem:[%s13 + $0x8] sm:$0xff]
      %v963 = vld [vmem:[%s13 + $0x10] sm:$0xff]
      %v964 = vld [vmem:[%s13 + $0x18] sm:$0xff]
      %v965 = vld [vmem:[%s17] sm:$0x1]
      %v967 = vperm.slane %v965, 0
      %969 = vmatpush.msra.mxu0 0.0
      %970 = vmatpush.msra.mxu0 0.0
      %971 = vmatpush.msra.mxu0 0.0
      %972 = vmatpush.msra.mxu0 0.0
      %973 = vmatpush.msra.mxu0 0.0
      %974 = vmatpush.msra.mxu0 0.0
      %975 = vmatpush.msra.mxu0 0.0
      %976 = vmatpush.msra.mxu0 0.0
      %977 = vmatpush.msra.mxu0 0.0
      %978 = vmatpush.msra.mxu0 0.0
      %979 = vmatpush.msra.mxu0 0.0
      %980 = vmatpush.msra.mxu0 0.0
      %981 = vmatpush.msra.mxu0 %v964
      %982 = vmatpush.msra.mxu0 %v963
      %983 = vmatpush.msra.mxu0 %v962
      %984 = vmatpush.msra.mxu0 %v961
      %985 = vmatmul.f32.gmra.mxu0 %v649
      %v986 = vpop.f32.mrf.mxu0
      %v987 = vadd.f32 %v967, %v986
      %988 = vdwg.mxu0
      %v989 = vmul.f32 %v860, %v987
      %v990 = vadd.f32 %v959, %v989
      %v991 = vtanh.pop %v990
      %v992 = vsub.f32 1.0, %v932
      %v993 = vmul.f32 %v992, %v991
      %v994 = vmul.f32 %v932, %v640
      %v995 = vadd.f32 %v993, %v994
      %v996 = vmax.f32 %v995, 0.0
      %997 = vst.msk [vmem:[%s636] sm:$0xff] %vm647, %v996
      %v999 = vsel %vm715, %v642, 0
      %1001 = vmatpush.msra.mxu0 0.0
      %1002 = vmatpush.msra.mxu0 0.0
      %1003 = vmatpush.msra.mxu0 0.0
      %1004 = vmatpush.msra.mxu0 0.0
      %1005 = vmatpush.msra.mxu0 0.0
      %1006 = vmatpush.msra.mxu0 0.0
      %1007 = vmatpush.msra.mxu0 0.0
      %1008 = vmatpush.msra.mxu0 0.0
      %1009 = vmatpush.msra.mxu0 0.0
      %1010 = vmatpush.msra.mxu0 0.0
      %1011 = vmatpush.msra.mxu0 0.0
      %1012 = vmatpush.msra.mxu0 0.0
      %1013 = vmatpush.msra.mxu0 0.0
      %1014 = vmatpush.msra.mxu0 0.0
      %1015 = vmatpush.msra.mxu0 0.0
      %1016 = vmatpush.msra.mxu0 %v996
      %1017 = vmatmul.f32.gmra.mxu0 %v999
      %v1018 = vpop.f32.mrf.mxu0
      %v1019 = vadd.f32 0.0, %v1018
      %1020 = vdwg.mxu0
      %vm1021 = vcmask 253952
      %1022 = vst.msk [vmem:[%s639] sm:$0x1] %vm1021, %v1019
      %p1023 = scmp.lt.s32.totalorder %s33, 1
      %s1024 = scalar_select %p1023, %s33, 1
      %s1025 = smul.addr %s1024, 8
      %s1026 = scalar_lea.vmem %s18, %s1025
      %p1027 = scmp.lt.s32.totalorder %s33, 1
      %s1028 = scalar_select %p1027, %s33, 1
      %s1029 = scalar_lea.vmem %s19, %s1028
      // Predicated region
      $region93: #{graph_fingerprints_forward.7} parent=91 // pred_check
        %p1030 = pneg %p444
      $region94: #{graph_fingerprints_forward.7} parent=91 // pred_check_branch
        %1032 = sbr.rel (%p1030) target = $region96
      $region95: #{graph_fingerprints_forward.7} parent=91 // pred_region
        _
      $region96: #{graph_fingerprints_forward.7} parent=91 // pred_fallthru
        _
      // Predicated region
      $region97: #{graph_fingerprints_forward.7} parent=91 // pred_check
        %p1033 = pneg %p470
      $region98: #{graph_fingerprints_forward.7} parent=91 // pred_check_branch
        %1035 = sbr.rel (%p1033) target = $region100
      $region99: #{graph_fingerprints_forward.7} parent=91 // pred_region
        _
      $region100: #{graph_fingerprints_forward.7} parent=91 // pred_fallthru
        _
    $region92: #{graph_fingerprints_forward.7} parent=5 // pred_fallthru
      _
    %p1036 = scmp.le.s32.totalorder 2, %s28
    // Predicated region
    $region101: #{graph_fingerprints_forward.7} parent=5 // pred_check
      %p1037 = pneg %p1036
    $region102: #{graph_fingerprints_forward.7} parent=5 // pred_check_branch
      %1039 = sbr.rel (%p1037) target = $region104
    $region103: #{graph_fingerprints_forward.7} parent=5 // pred_region
      %s1040 = ssub.s32 %s28, 2
      // Predicated region
      $region105: #{graph_fingerprints_forward.7} parent=103 // pred_check
        %p1041 = pneg %p450
      $region106: #{graph_fingerprints_forward.7} parent=103 // pred_check_branch
        %1043 = sbr.rel (%p1041) target = $region108
      $region107: #{graph_fingerprints_forward.7} parent=103 // pred_region
        %p1044 = scmp.lt.s32.totalorder %s34, 1
        %s1045 = scalar_select %p1044, %s34, 1
        %s1046 = smul.addr %s1045, 8
        %s1047 = scalar_lea.vmem %s18, %s1046
      $region108: #{graph_fingerprints_forward.7} parent=103 // pred_fallthru
        _
      // Predicated region
      $region109: #{graph_fingerprints_forward.7} parent=103 // pred_check
        %p1048 = pneg %p476
      $region110: #{graph_fingerprints_forward.7} parent=103 // pred_check_branch
        %1050 = sbr.rel (%p1048) target = $region112
      $region111: #{graph_fingerprints_forward.7} parent=103 // pred_region
        %p1051 = scmp.lt.s32.totalorder %s34, 1
        %s1052 = scalar_select %p1051, %s34, 1
        %s1053 = scalar_lea.vmem %s19, %s1052
      $region112: #{graph_fingerprints_forward.7} parent=103 // pred_fallthru
        _
    $region104: #{graph_fingerprints_forward.7} parent=5 // pred_fallthru
      _
  $region6: #{graph_fingerprints_forward.7} parent=0 // loop_footer
    %s32 = sadd.s32 1, %s28
  $region7: #{graph_fingerprints_forward.7} parent=0 // loop_footer_branch
    %27 = sbr.rel target = $region3
  $region8: #{graph_fingerprints_forward.7} parent=0 // loop_exit
    _

// kernel: graph_fingerprints_forward.5
$region0: #{graph_fingerprints_forward.5}
  #allocation0 [shape = 'u32[]', space=smem, size = 0x4, offset = 0x4, fixed_abs, tag = 'smem constant byte address 0x4 - core index']
  #allocation1 [shape = 'u32[72,128]{1,0:T(1,128)}', space=vmem, size = 0x9000, scoped, tag = 'internal scratch']
  #allocation2 [shape = 'f32[1,1]{1,0:T(1,128)S(1)}', space=vmem, size = 0x200, scoped, tag = 'scoped memory for graph_fingerprints_forward.5']
  %s0 = inlined_call_operand.vmem [shape: f32[2,8,16], index: 0, kind: input, shape index: {}]
  %s1 = inlined_call_operand.vmem [shape: f32[2,64,8], index: 1, kind: input, shape index: {}]
  %s2 = inlined_call_operand.vmem [shape: f32[2,8,8], index: 2, kind: input, shape index: {}]
  %s3 = inlined_call_operand.vmem [shape: f32[2,1,8], index: 3, kind: input, shape index: {}]
  %s4 = inlined_call_operand.vmem [shape: f32[64,8], index: 4, kind: input, shape index: {}]
  %s5 = inlined_call_operand.vmem [shape: f32[8,64], index: 5, kind: input, shape index: {}]
  %s6 = inlined_call_operand.vmem [shape: f32[8,64], index: 6, kind: input, shape index: {}]
  %s7 = inlined_call_operand.vmem [shape: f32[16,32], index: 7, kind: input, shape index: {}]
  %s8 = inlined_call_operand.vmem [shape: f32[1,32], index: 8, kind: input, shape index: {}]
  %s9 = inlined_call_operand.vmem [shape: f32[16,32], index: 9, kind: input, shape index: {}]
  %s10 = inlined_call_operand.vmem [shape: f32[8,32], index: 10, kind: input, shape index: {}]
  %s11 = inlined_call_operand.vmem [shape: f32[1,32], index: 11, kind: input, shape index: {}]
  %s12 = inlined_call_operand.vmem [shape: f32[32,1], index: 12, kind: input, shape index: {}]
  %s13 = inlined_call_operand.vmem [shape: f32[32,1], index: 13, kind: input, shape index: {}]
  %s14 = inlined_call_operand.<no memory space> [shape: f32[1,1], index: 14, kind: input, shape index: {}]
  %s15 = inlined_call_operand.vmem [shape: f32[32,32], index: 15, kind: input, shape index: {}]
  %s16 = inlined_call_operand.vmem [shape: f32[1,32], index: 16, kind: input, shape index: {}]
  %s17 = inlined_call_operand.vmem [shape: f32[32,32], index: 17, kind: input, shape index: {}]
  %s18 = inlined_call_operand.vmem [shape: f32[32,32], index: 18, kind: input, shape index: {}]
  %s19 = inlined_call_operand.vmem [shape: f32[32,32], index: 19, kind: input, shape index: {}]
  %s20 = inlined_call_operand.vmem [shape: f32[32,32], index: 20, kind: input, shape index: {}]
  %s21 = inlined_call_operand.vmem [shape: f32[32,32], index: 21, kind: input, shape index: {}]
  %s22 = inlined_call_operand.vmem [shape: f32[32,32], index: 22, kind: input, shape index: {}]
  %s23 = inlined_call_operand.vmem [shape: f32[1,32], index: 23, kind: input, shape index: {}]
  %s24 = inlined_call_operand.vmem [shape: f32[1,32], index: 24, kind: input, shape index: {}]
  %s25 = inlined_call_operand.vmem [shape: f32[1,32], index: 25, kind: input, shape index: {}]
  %s26 = inlined_call_operand.vmem [shape: f32[1,32], index: 26, kind: input, shape index: {}]
  %s27 = inlined_call_operand.vmem [shape: f32[2,8,32], index: 27, kind: output, shape index: {0}]
  %s28 = inlined_call_operand.hbm [shape: f32[2,1,32], index: 28, kind: output, shape index: {1}]
  %29 = xla_tuple %s27, %s28
  %s30 = sld [smem:[#allocation0]]
  $region149: #{graph_fingerprints_forward.5} parent=0
    _
  %s32 = ssub.s32 1, %s30
  %s33 = scalar_select 0, %s32, %s30
  %v34 = vstv %s14
  %35 = vst [vmem:[#allocation2] sm:$0x1] %v34
  $region1: #{graph_fingerprints_forward.5} parent=0
    #allocation3 [shape = 'u8[1024]{0}', space=vmem, size = 0x400, scoped, tag = 'output window, operand 1']
    #allocation4 [shape = 's32[2]{0}', space=sflag, size = 0x8, scoped, tag = 'scoped memory for graph_fingerprints_forward.5']
    %36 = vsyncpa [#allocation4], 0
    %s37 = scalar_lea.sflag [#allocation4], 1
    %38 = vsyncpa %s37, 0
    loop: start=0, step=1, limit=4
    $region2: #{graph_fingerprints_forward.5} parent=1 // loop_pre_header
      _
    $region3: #{graph_fingerprints_forward.5} parent=1 // loop_header
      %s40 = sphi 0, %s44
      %p41 = scmp.ge.s32.totalorder %s40, 4
      %s50 = sphi 0, %s52
      %s53 = sphi 0, %s50
      %s54 = sphi 0, %s53
      %s70 = sphi 0, %s54
      %s76 = sphi 0, %s78
      %s79 = sphi 0, %s76
      %s80 = sphi 0, %s79
      %s96 = sphi 0, %s80
      %s102 = sphi 0, %s104
      %s105 = sphi 0, %s102
      %s106 = sphi 0, %s105
      %s122 = sphi 0, %s106
      %s128 = sphi 0, %s130
      %s131 = sphi 0, %s128
      %s132 = sphi 0, %s131
      %s148 = sphi 0, %s132
      %s152 = sphi 0, %s152
      %s154 = sphi 0, %s152
      %s155 = sphi 0, %s154
      %s169 = sphi 0, %s155
      %s173 = sphi 0, %s173
      %s175 = sphi 0, %s173
      %s176 = sphi 0, %s175
      %s190 = sphi 0, %s176
      %s194 = sphi 0, %s194
      %s196 = sphi 0, %s194
      %s197 = sphi 0, %s196
      %s211 = sphi 0, %s197
      %s215 = sphi 0, %s215
      %s217 = sphi 0, %s215
      %s218 = sphi 0, %s217
      %s232 = sphi 0, %s218
      %s236 = sphi 0, %s236
      %s238 = sphi 0, %s236
      %s239 = sphi 0, %s238
      %s253 = sphi 0, %s239
      %s257 = sphi 0, %s257
      %s259 = sphi 0, %s257
      %s260 = sphi 0, %s259
      %s274 = sphi 0, %s260
      %s278 = sphi 0, %s278
      %s280 = sphi 0, %s278
      %s281 = sphi 0, %s280
      %s295 = sphi 0, %s281
      %s299 = sphi 0, %s299
      %s301 = sphi 0, %s299
      %s302 = sphi 0, %s301
      %s316 = sphi 0, %s302
      %s320 = sphi 0, %s320
      %s322 = sphi 0, %s320
      %s323 = sphi 0, %s322
      %s337 = sphi 0, %s323
      %s341 = sphi 0, %s341
      %s343 = sphi 0, %s341
      %s344 = sphi 0, %s343
      %s358 = sphi 0, %s344
      %s362 = sphi 0, %s362
      %s364 = sphi 0, %s362
      %s365 = sphi 0, %s364
      %s379 = sphi 0, %s365
      %s383 = sphi 0, %s383
      %s385 = sphi 0, %s383
      %s386 = sphi 0, %s385
      %s400 = sphi 0, %s386
      %s404 = sphi 0, %s404
      %s406 = sphi 0, %s404
      %s407 = sphi 0, %s406
      %s421 = sphi 0, %s407
      %s425 = sphi 0, %s425
      %s427 = sphi 0, %s425
      %s428 = sphi 0, %s427
      %s442 = sphi 0, %s428
      %s446 = sphi 0, %s446
      %s448 = sphi 0, %s446
      %s449 = sphi 0, %s448
      %s463 = sphi 0, %s449
      %s467 = sphi 0, %s467
      %s469 = sphi 0, %s467
      %s470 = sphi 0, %s469
      %s484 = sphi 0, %s470
      %s488 = sphi 0, %s488
      %s490 = sphi 0, %s488
      %s491 = sphi 0, %s490
      %s505 = sphi 0, %s491
      %s509 = sphi 0, %s509
      %s511 = sphi 0, %s509
      %s512 = sphi 0, %s511
      %s526 = sphi 0, %s512
      %s530 = sphi 0, %s530
      %s532 = sphi 0, %s530
      %s533 = sphi 0, %s532
      %s547 = sphi 0, %s533
      %s551 = sphi 0, %s551
      %s553 = sphi 0, %s551
      %s554 = sphi 0, %s553
      %s568 = sphi 0, %s554
      %s572 = sphi 0, %s572
      %s574 = sphi 0, %s572
      %s575 = sphi 0, %s574
      %s589 = sphi 0, %s575
      %s593 = sphi 0, %s593
      %s595 = sphi 0, %s593
      %s596 = sphi 0, %s595
      %s610 = sphi 0, %s596
      %s614 = sphi 0, %s614
      %s616 = sphi 0, %s614
      %s617 = sphi 0, %s616
      %s631 = sphi 0, %s617
      %s637 = sphi 0, %s639
      %s640 = sphi 0, %s637
      %s641 = sphi 0, %s640
      %s657 = sphi 0, %s641
      %s663 = sphi 0, %s665
      %s666 = sphi 0, %s663
      %s667 = sphi 0, %s666
      %s683 = sphi 0, %s667
    $region4: #{graph_fingerprints_forward.5} parent=1 // loop_header_branch
      %43 = sbr.rel (%p41) target = $region8
    $region5: #{graph_fingerprints_forward.5} parent=1 // loop_body
      %s45 = ssub.s32 %s40, 1
      %s46 = ssub.s32 %s40, 2
      %s47 = sadd.s32 %s40, 1
      %s48 = ssub.s32 %s40, %s47
      %p49 = scmp.eq.s32.totalorder %s48, 0
      %s51 = sadd.s32 %s50, 1
      %s52 = scalar_select %p49, %s50, %s51
      %p55 = pneg %p49
      %p56 = scmp.eq.s32.totalorder %s40, 1
      %p57 = por %p55, %p56
      %p58 = scmp.ne.s32.totalorder %s50, %s53
      %p59 = scmp.eq.s32.totalorder %s40, 0
      %p60 = por %p58, %p59
      %p61 = scmp.ne.s32.totalorder %s50, %s53
      %p62 = scmp.eq.s32.totalorder %s45, 1
      %p63 = por %p61, %p62
      %p64 = scmp.ne.s32.totalorder %s53, %s54
      %p65 = scmp.eq.s32.totalorder %s45, 0
      %p66 = por %p64, %p65
      %p67 = scmp.ne.s32.totalorder %s53, %s54
      %p68 = scmp.eq.s32.totalorder %s46, 1
      %p69 = por %p67, %p68
      %p71 = scmp.ne.s32.totalorder %s54, %s70
      %p72 = scmp.eq.s32.totalorder %s46, 0
      %p73 = por %p71, %p72
      %s74 = ssub.s32 %s40, %s47
      %p75 = scmp.eq.s32.totalorder %s74, 0
      %s77 = sadd.s32 %s76, 1
      %s78 = scalar_select %p75, %s76, %s77
      %p81 = pneg %p75
      %p82 = scmp.eq.s32.totalorder %s40, 1
      %p83 = por %p81, %p82
      %p84 = scmp.ne.s32.totalorder %s76, %s79
      %p85 = scmp.eq.s32.totalorder %s40, 0
      %p86 = por %p84, %p85
      %p87 = scmp.ne.s32.totalorder %s76, %s79
      %p88 = scmp.eq.s32.totalorder %s45, 1
      %p89 = por %p87, %p88
      %p90 = scmp.ne.s32.totalorder %s79, %s80
      %p91 = scmp.eq.s32.totalorder %s45, 0
      %p92 = por %p90, %p91
      %p93 = scmp.ne.s32.totalorder %s79, %s80
      %p94 = scmp.eq.s32.totalorder %s46, 1
      %p95 = por %p93, %p94
      %p97 = scmp.ne.s32.totalorder %s80, %s96
      %p98 = scmp.eq.s32.totalorder %s46, 0
      %p99 = por %p97, %p98
      %s100 = ssub.s32 %s40, %s47
      %p101 = scmp.eq.s32.totalorder %s100, 0
      %s103 = sadd.s32 %s102, 1
      %s104 = scalar_select %p101, %s102, %s103
      %p107 = pneg %p101
      %p108 = scmp.eq.s32.totalorder %s40, 1
      %p109 = por %p107, %p108
      %p110 = scmp.ne.s32.totalorder %s102, %s105
      %p111 = scmp.eq.s32.totalorder %s40, 0
      %p112 = por %p110, %p111
      %p113 = scmp.ne.s32.totalorder %s102, %s105
      %p114 = scmp.eq.s32.totalorder %s45, 1
      %p115 = por %p113, %p114
      %p116 = scmp.ne.s32.totalorder %s105, %s106
      %p117 = scmp.eq.s32.totalorder %s45, 0
      %p118 = por %p116, %p117
      %p119 = scmp.ne.s32.totalorder %s105, %s106
      %p120 = scmp.eq.s32.totalorder %s46, 1
      %p121 = por %p119, %p120
      %p123 = scmp.ne.s32.totalorder %s106, %s122
      %p124 = scmp.eq.s32.totalorder %s46, 0
      %p125 = por %p123, %p124
      %s126 = ssub.s32 %s40, %s47
      %p127 = scmp.eq.s32.totalorder %s126, 0
      %s129 = sadd.s32 %s128, 1
      %s130 = scalar_select %p127, %s128, %s129
      %p133 = pneg %p127
      %p134 = scmp.eq.s32.totalorder %s40, 1
      %p135 = por %p133, %p134
      %p136 = scmp.ne.s32.totalorder %s128, %s131
      %p137 = scmp.eq.s32.totalorder %s40, 0
      %p138 = por %p136, %p137
      %p139 = scmp.ne.s32.totalorder %s128, %s131
      %p140 = scmp.eq.s32.totalorder %s45, 1
      %p141 = por %p139, %p140
      %p142 = scmp.ne.s32.totalorder %s131, %s132
      %p143 = scmp.eq.s32.totalorder %s45, 0
      %p144 = por %p142, %p143
      %p145 = scmp.ne.s32.totalorder %s131, %s132
      %p146 = scmp.eq.s32.totalorder %s46, 1
      %p147 = por %p145, %p146
      %p149 = scmp.ne.s32.totalorder %s132, %s148
      %p150 = scmp.eq.s32.totalorder %s46, 0
      %p151 = por %p149, %p150
      %s153 = sadd.s32 %s152, 1
      %p156 = scmp.eq.s32.totalorder %s40, 1
      %p157 = scmp.ne.s32.totalorder %s152, %s154
      %p158 = scmp.eq.s32.totalorder %s40, 0
      %p159 = por %p157, %p158
      %p160 = scmp.ne.s32.totalorder %s152, %s154
      %p161 = scmp.eq.s32.totalorder %s45, 1
      %p162 = por %p160, %p161
      %p163 = scmp.ne.s32.totalorder %s154, %s155
      %p164 = scmp.eq.s32.totalorder %s45, 0
      %p165 = por %p163, %p164
      %p166 = scmp.ne.s32.totalorder %s154, %s155
      %p167 = scmp.eq.s32.totalorder %s46, 1
      %p168 = por %p166, %p167
      %p170 = scmp.ne.s32.totalorder %s155, %s169
      %p171 = scmp.eq.s32.totalorder %s46, 0
      %p172 = por %p170, %p171
      %s174 = sadd.s32 %s173, 1
      %p177 = scmp.eq.s32.totalorder %s40, 1
      %p178 = scmp.ne.s32.totalorder %s173, %s175
      %p179 = scmp.eq.s32.totalorder %s40, 0
      %p180 = por %p178, %p179
      %p181 = scmp.ne.s32.totalorder %s173, %s175
      %p182 = scmp.eq.s32.totalorder %s45, 1
      %p183 = por %p181, %p182
      %p184 = scmp.ne.s32.totalorder %s175, %s176
      %p185 = scmp.eq.s32.totalorder %s45, 0
      %p186 = por %p184, %p185
      %p187 = scmp.ne.s32.totalorder %s175, %s176
      %p188 = scmp.eq.s32.totalorder %s46, 1
      %p189 = por %p187, %p188
      %p191 = scmp.ne.s32.totalorder %s176, %s190
      %p192 = scmp.eq.s32.totalorder %s46, 0
      %p193 = por %p191, %p192
      %s195 = sadd.s32 %s194, 1
      %p198 = scmp.eq.s32.totalorder %s40, 1
      %p199 = scmp.ne.s32.totalorder %s194, %s196
      %p200 = scmp.eq.s32.totalorder %s40, 0
      %p201 = por %p199, %p200
      %p202 = scmp.ne.s32.totalorder %s194, %s196
      %p203 = scmp.eq.s32.totalorder %s45, 1
      %p204 = por %p202, %p203
      %p205 = scmp.ne.s32.totalorder %s196, %s197
      %p206 = scmp.eq.s32.totalorder %s45, 0
      %p207 = por %p205, %p206
      %p208 = scmp.ne.s32.totalorder %s196, %s197
      %p209 = scmp.eq.s32.totalorder %s46, 1
      %p210 = por %p208, %p209
      %p212 = scmp.ne.s32.totalorder %s197, %s211
      %p213 = scmp.eq.s32.totalorder %s46, 0
      %p214 = por %p212, %p213
      %s216 = sadd.s32 %s215, 1
      %p219 = scmp.eq.s32.totalorder %s40, 1
      %p220 = scmp.ne.s32.totalorder %s215, %s217
      %p221 = scmp.eq.s32.totalorder %s40, 0
      %p222 = por %p220, %p221
      %p223 = scmp.ne.s32.totalorder %s215, %s217
      %p224 = scmp.eq.s32.totalorder %s45, 1
      %p225 = por %p223, %p224
      %p226 = scmp.ne.s32.totalorder %s217, %s218
      %p227 = scmp.eq.s32.totalorder %s45, 0
      %p228 = por %p226, %p227
      %p229 = scmp.ne.s32.totalorder %s217, %s218
      %p230 = scmp.eq.s32.totalorder %s46, 1
      %p231 = por %p229, %p230
      %p233 = scmp.ne.s32.totalorder %s218, %s232
      %p234 = scmp.eq.s32.totalorder %s46, 0
      %p235 = por %p233, %p234
      %s237 = sadd.s32 %s236, 1
      %p240 = scmp.eq.s32.totalorder %s40, 1
      %p241 = scmp.ne.s32.totalorder %s236, %s238
      %p242 = scmp.eq.s32.totalorder %s40, 0
      %p243 = por %p241, %p242
      %p244 = scmp.ne.s32.totalorder %s236, %s238
      %p245 = scmp.eq.s32.totalorder %s45, 1
      %p246 = por %p244, %p245
      %p247 = scmp.ne.s32.totalorder %s238, %s239
      %p248 = scmp.eq.s32.totalorder %s45, 0
      %p249 = por %p247, %p248
      %p250 = scmp.ne.s32.totalorder %s238, %s239
      %p251 = scmp.eq.s32.totalorder %s46, 1
      %p252 = por %p250, %p251
      %p254 = scmp.ne.s32.totalorder %s239, %s253
      %p255 = scmp.eq.s32.totalorder %s46, 0
      %p256 = por %p254, %p255
      %s258 = sadd.s32 %s257, 1
      %p261 = scmp.eq.s32.totalorder %s40, 1
      %p262 = scmp.ne.s32.totalorder %s257, %s259
      %p263 = scmp.eq.s32.totalorder %s40, 0
      %p264 = por %p262, %p263
      %p265 = scmp.ne.s32.totalorder %s257, %s259
      %p266 = scmp.eq.s32.totalorder %s45, 1
      %p267 = por %p265, %p266
      %p268 = scmp.ne.s32.totalorder %s259, %s260
      %p269 = scmp.eq.s32.totalorder %s45, 0
      %p270 = por %p268, %p269
      %p271 = scmp.ne.s32.totalorder %s259, %s260
      %p272 = scmp.eq.s32.totalorder %s46, 1
      %p273 = por %p271, %p272
      %p275 = scmp.ne.s32.totalorder %s260, %s274
      %p276 = scmp.eq.s32.totalorder %s46, 0
      %p277 = por %p275, %p276
      %s279 = sadd.s32 %s278, 1
      %p282 = scmp.eq.s32.totalorder %s40, 1
      %p283 = scmp.ne.s32.totalorder %s278, %s280
      %p284 = scmp.eq.s32.totalorder %s40, 0
      %p285 = por %p283, %p284
      %p286 = scmp.ne.s32.totalorder %s278, %s280
      %p287 = scmp.eq.s32.totalorder %s45, 1
      %p288 = por %p286, %p287
      %p289 = scmp.ne.s32.totalorder %s280, %s281
      %p290 = scmp.eq.s32.totalorder %s45, 0
      %p291 = por %p289, %p290
      %p292 = scmp.ne.s32.totalorder %s280, %s281
      %p293 = scmp.eq.s32.totalorder %s46, 1
      %p294 = por %p292, %p293
      %p296 = scmp.ne.s32.totalorder %s281, %s295
      %p297 = scmp.eq.s32.totalorder %s46, 0
      %p298 = por %p296, %p297
      %s300 = sadd.s32 %s299, 1
      %p303 = scmp.eq.s32.totalorder %s40, 1
      %p304 = scmp.ne.s32.totalorder %s299, %s301
      %p305 = scmp.eq.s32.totalorder %s40, 0
      %p306 = por %p304, %p305
      %p307 = scmp.ne.s32.totalorder %s299, %s301
      %p308 = scmp.eq.s32.totalorder %s45, 1
      %p309 = por %p307, %p308
      %p310 = scmp.ne.s32.totalorder %s301, %s302
      %p311 = scmp.eq.s32.totalorder %s45, 0
      %p312 = por %p310, %p311
      %p313 = scmp.ne.s32.totalorder %s301, %s302
      %p314 = scmp.eq.s32.totalorder %s46, 1
      %p315 = por %p313, %p314
      %p317 = scmp.ne.s32.totalorder %s302, %s316
      %p318 = scmp.eq.s32.totalorder %s46, 0
      %p319 = por %p317, %p318
      %s321 = sadd.s32 %s320, 1
      %p324 = scmp.eq.s32.totalorder %s40, 1
      %p325 = scmp.ne.s32.totalorder %s320, %s322
      %p326 = scmp.eq.s32.totalorder %s40, 0
      %p327 = por %p325, %p326
      %p328 = scmp.ne.s32.totalorder %s320, %s322
      %p329 = scmp.eq.s32.totalorder %s45, 1
      %p330 = por %p328, %p329
      %p331 = scmp.ne.s32.totalorder %s322, %s323
      %p332 = scmp.eq.s32.totalorder %s45, 0
      %p333 = por %p331, %p332
      %p334 = scmp.ne.s32.totalorder %s322, %s323
      %p335 = scmp.eq.s32.totalorder %s46, 1
      %p336 = por %p334, %p335
      %p338 = scmp.ne.s32.totalorder %s323, %s337
      %p339 = scmp.eq.s32.totalorder %s46, 0
      %p340 = por %p338, %p339
      %s342 = sadd.s32 %s341, 1
      %p345 = scmp.eq.s32.totalorder %s40, 1
      %p346 = scmp.ne.s32.totalorder %s341, %s343
      %p347 = scmp.eq.s32.totalorder %s40, 0
      %p348 = por %p346, %p347
      %p349 = scmp.ne.s32.totalorder %s341, %s343
      %p350 = scmp.eq.s32.totalorder %s45, 1
      %p351 = por %p349, %p350
      %p352 = scmp.ne.s32.totalorder %s343, %s344
      %p353 = scmp.eq.s32.totalorder %s45, 0
      %p354 = por %p352, %p353
      %p355 = scmp.ne.s32.totalorder %s343, %s344
      %p356 = scmp.eq.s32.totalorder %s46, 1
      %p357 = por %p355, %p356
      %p359 = scmp.ne.s32.totalorder %s344, %s358
      %p360 = scmp.eq.s32.totalorder %s46, 0
      %p361 = por %p359, %p360
      %s363 = sadd.s32 %s362, 1
      %p366 = scmp.eq.s32.totalorder %s40, 1
      %p367 = scmp.ne.s32.totalorder %s362, %s364
      %p368 = scmp.eq.s32.totalorder %s40, 0
      %p369 = por %p367, %p368
      %p370 = scmp.ne.s32.totalorder %s362, %s364
      %p371 = scmp.eq.s32.totalorder %s45, 1
      %p372 = por %p370, %p371
      %p373 = scmp.ne.s32.totalorder %s364, %s365
      %p374 = scmp.eq.s32.totalorder %s45, 0
      %p375 = por %p373, %p374
      %p376 = scmp.ne.s32.totalorder %s364, %s365
      %p377 = scmp.eq.s32.totalorder %s46, 1
      %p378 = por %p376, %p377
      %p380 = scmp.ne.s32.totalorder %s365, %s379
      %p381 = scmp.eq.s32.totalorder %s46, 0
      %p382 = por %p380, %p381
      %s384 = sadd.s32 %s383, 1
      %p387 = scmp.eq.s32.totalorder %s40, 1
      %p388 = scmp.ne.s32.totalorder %s383, %s385
      %p389 = scmp.eq.s32.totalorder %s40, 0
      %p390 = por %p388, %p389
      %p391 = scmp.ne.s32.totalorder %s383, %s385
      %p392 = scmp.eq.s32.totalorder %s45, 1
      %p393 = por %p391, %p392
      %p394 = scmp.ne.s32.totalorder %s385, %s386
      %p395 = scmp.eq.s32.totalorder %s45, 0
      %p396 = por %p394, %p395
      %p397 = scmp.ne.s32.totalorder %s385, %s386
      %p398 = scmp.eq.s32.totalorder %s46, 1
      %p399 = por %p397, %p398
      %p401 = scmp.ne.s32.totalorder %s386, %s400
      %p402 = scmp.eq.s32.totalorder %s46, 0
      %p403 = por %p401, %p402
      %s405 = sadd.s32 %s404, 1
      %p408 = scmp.eq.s32.totalorder %s40, 1
      %p409 = scmp.ne.s32.totalorder %s404, %s406
      %p410 = scmp.eq.s32.totalorder %s40, 0
      %p411 = por %p409, %p410
      %p412 = scmp.ne.s32.totalorder %s404, %s406
      %p413 = scmp.eq.s32.totalorder %s45, 1
      %p414 = por %p412, %p413
      %p415 = scmp.ne.s32.totalorder %s406, %s407
      %p416 = scmp.eq.s32.totalorder %s45, 0
      %p417 = por %p415, %p416
      %p418 = scmp.ne.s32.totalorder %s406, %s407
      %p419 = scmp.eq.s32.totalorder %s46, 1
      %p420 = por %p418, %p419
      %p422 = scmp.ne.s32.totalorder %s407, %s421
      %p423 = scmp.eq.s32.totalorder %s46, 0
      %p424 = por %p422, %p423
      %s426 = sadd.s32 %s425, 1
      %p429 = scmp.eq.s32.totalorder %s40, 1
      %p430 = scmp.ne.s32.totalorder %s425, %s427
      %p431 = scmp.eq.s32.totalorder %s40, 0
      %p432 = por %p430, %p431
      %p433 = scmp.ne.s32.totalorder %s425, %s427
      %p434 = scmp.eq.s32.totalorder %s45, 1
      %p435 = por %p433, %p434
      %p436 = scmp.ne.s32.totalorder %s427, %s428
      %p437 = scmp.eq.s32.totalorder %s45, 0
      %p438 = por %p436, %p437
      %p439 = scmp.ne.s32.totalorder %s427, %s428
      %p440 = scmp.eq.s32.totalorder %s46, 1
      %p441 = por %p439, %p440
      %p443 = scmp.ne.s32.totalorder %s428, %s442
      %p444 = scmp.eq.s32.totalorder %s46, 0
      %p445 = por %p443, %p444
      %s447 = sadd.s32 %s446, 1
      %p450 = scmp.eq.s32.totalorder %s40, 1
      %p451 = scmp.ne.s32.totalorder %s446, %s448
      %p452 = scmp.eq.s32.totalorder %s40, 0
      %p453 = por %p451, %p452
      %p454 = scmp.ne.s32.totalorder %s446, %s448
      %p455 = scmp.eq.s32.totalorder %s45, 1
      %p456 = por %p454, %p455
      %p457 = scmp.ne.s32.totalorder %s448, %s449
      %p458 = scmp.eq.s32.totalorder %s45, 0
      %p459 = por %p457, %p458
      %p460 = scmp.ne.s32.totalorder %s448, %s449
      %p461 = scmp.eq.s32.totalorder %s46, 1
      %p462 = por %p460, %p461
      %p464 = scmp.ne.s32.totalorder %s449, %s463
      %p465 = scmp.eq.s32.totalorder %s46, 0
      %p466 = por %p464, %p465
      %s468 = sadd.s32 %s467, 1
      %p471 = scmp.eq.s32.totalorder %s40, 1
      %p472 = scmp.ne.s32.totalorder %s467, %s469
      %p473 = scmp.eq.s32.totalorder %s40, 0
      %p474 = por %p472, %p473
      %p475 = scmp.ne.s32.totalorder %s467, %s469
      %p476 = scmp.eq.s32.totalorder %s45, 1
      %p477 = por %p475, %p476
      %p478 = scmp.ne.s32.totalorder %s469, %s470
      %p479 = scmp.eq.s32.totalorder %s45, 0
      %p480 = por %p478, %p479
      %p481 = scmp.ne.s32.totalorder %s469, %s470
      %p482 = scmp.eq.s32.totalorder %s46, 1
      %p483 = por %p481, %p482
      %p485 = scmp.ne.s32.totalorder %s470, %s484
      %p486 = scmp.eq.s32.totalorder %s46, 0
      %p487 = por %p485, %p486
      %s489 = sadd.s32 %s488, 1
      %p492 = scmp.eq.s32.totalorder %s40, 1
      %p493 = scmp.ne.s32.totalorder %s488, %s490
      %p494 = scmp.eq.s32.totalorder %s40, 0
      %p495 = por %p493, %p494
      %p496 = scmp.ne.s32.totalorder %s488, %s490
      %p497 = scmp.eq.s32.totalorder %s45, 1
      %p498 = por %p496, %p497
      %p499 = scmp.ne.s32.totalorder %s490, %s491
      %p500 = scmp.eq.s32.totalorder %s45, 0
      %p501 = por %p499, %p500
      %p502 = scmp.ne.s32.totalorder %s490, %s491
      %p503 = scmp.eq.s32.totalorder %s46, 1
      %p504 = por %p502, %p503
      %p506 = scmp.ne.s32.totalorder %s491, %s505
      %p507 = scmp.eq.s32.totalorder %s46, 0
      %p508 = por %p506, %p507
      %s510 = sadd.s32 %s509, 1
      %p513 = scmp.eq.s32.totalorder %s40, 1
      %p514 = scmp.ne.s32.totalorder %s509, %s511
      %p515 = scmp.eq.s32.totalorder %s40, 0
      %p516 = por %p514, %p515
      %p517 = scmp.ne.s32.totalorder %s509, %s511
      %p518 = scmp.eq.s32.totalorder %s45, 1
      %p519 = por %p517, %p518
      %p520 = scmp.ne.s32.totalorder %s511, %s512
      %p521 = scmp.eq.s32.totalorder %s45, 0
      %p522 = por %p520, %p521
      %p523 = scmp.ne.s32.totalorder %s511, %s512
      %p524 = scmp.eq.s32.totalorder %s46, 1
      %p525 = por %p523, %p524
      %p527 = scmp.ne.s32.totalorder %s512, %s526
      %p528 = scmp.eq.s32.totalorder %s46, 0
      %p529 = por %p527, %p528
      %s531 = sadd.s32 %s530, 1
      %p534 = scmp.eq.s32.totalorder %s40, 1
      %p535 = scmp.ne.s32.totalorder %s530, %s532
      %p536 = scmp.eq.s32.totalorder %s40, 0
      %p537 = por %p535, %p536
      %p538 = scmp.ne.s32.totalorder %s530, %s532
      %p539 = scmp.eq.s32.totalorder %s45, 1
      %p540 = por %p538, %p539
      %p541 = scmp.ne.s32.totalorder %s532, %s533
      %p542 = scmp.eq.s32.totalorder %s45, 0
      %p543 = por %p541, %p542
      %p544 = scmp.ne.s32.totalorder %s532, %s533
      %p545 = scmp.eq.s32.totalorder %s46, 1
      %p546 = por %p544, %p545
      %p548 = scmp.ne.s32.totalorder %s533, %s547
      %p549 = scmp.eq.s32.totalorder %s46, 0
      %p550 = por %p548, %p549
      %s552 = sadd.s32 %s551, 1
      %p555 = scmp.eq.s32.totalorder %s40, 1
      %p556 = scmp.ne.s32.totalorder %s551, %s553
      %p557 = scmp.eq.s32.totalorder %s40, 0
      %p558 = por %p556, %p557
      %p559 = scmp.ne.s32.totalorder %s551, %s553
      %p560 = scmp.eq.s32.totalorder %s45, 1
      %p561 = por %p559, %p560
      %p562 = scmp.ne.s32.totalorder %s553, %s554
      %p563 = scmp.eq.s32.totalorder %s45, 0
      %p564 = por %p562, %p563
      %p565 = scmp.ne.s32.totalorder %s553, %s554
      %p566 = scmp.eq.s32.totalorder %s46, 1
      %p567 = por %p565, %p566
      %p569 = scmp.ne.s32.totalorder %s554, %s568
      %p570 = scmp.eq.s32.totalorder %s46, 0
      %p571 = por %p569, %p570
      %s573 = sadd.s32 %s572, 1
      %p576 = scmp.eq.s32.totalorder %s40, 1
      %p577 = scmp.ne.s32.totalorder %s572, %s574
      %p578 = scmp.eq.s32.totalorder %s40, 0
      %p579 = por %p577, %p578
      %p580 = scmp.ne.s32.totalorder %s572, %s574
      %p581 = scmp.eq.s32.totalorder %s45, 1
      %p582 = por %p580, %p581
      %p583 = scmp.ne.s32.totalorder %s574, %s575
      %p584 = scmp.eq.s32.totalorder %s45, 0
      %p585 = por %p583, %p584
      %p586 = scmp.ne.s32.totalorder %s574, %s575
      %p587 = scmp.eq.s32.totalorder %s46, 1
      %p588 = por %p586, %p587
      %p590 = scmp.ne.s32.totalorder %s575, %s589
      %p591 = scmp.eq.s32.totalorder %s46, 0
      %p592 = por %p590, %p591
      %s594 = sadd.s32 %s593, 1
      %p597 = scmp.eq.s32.totalorder %s40, 1
      %p598 = scmp.ne.s32.totalorder %s593, %s595
      %p599 = scmp.eq.s32.totalorder %s40, 0
      %p600 = por %p598, %p599
      %p601 = scmp.ne.s32.totalorder %s593, %s595
      %p602 = scmp.eq.s32.totalorder %s45, 1
      %p603 = por %p601, %p602
      %p604 = scmp.ne.s32.totalorder %s595, %s596
      %p605 = scmp.eq.s32.totalorder %s45, 0
      %p606 = por %p604, %p605
      %p607 = scmp.ne.s32.totalorder %s595, %s596
      %p608 = scmp.eq.s32.totalorder %s46, 1
      %p609 = por %p607, %p608
      %p611 = scmp.ne.s32.totalorder %s596, %s610
      %p612 = scmp.eq.s32.totalorder %s46, 0
      %p613 = por %p611, %p612
      %s615 = sadd.s32 %s614, 1
      %p618 = scmp.eq.s32.totalorder %s40, 1
      %p619 = scmp.ne.s32.totalorder %s614, %s616
      %p620 = scmp.eq.s32.totalorder %s40, 0
      %p621 = por %p619, %p620
      %p622 = scmp.ne.s32.totalorder %s614, %s616
      %p623 = scmp.eq.s32.totalorder %s45, 1
      %p624 = por %p622, %p623
      %p625 = scmp.ne.s32.totalorder %s616, %s617
      %p626 = scmp.eq.s32.totalorder %s45, 0
      %p627 = por %p625, %p626
      %p628 = scmp.ne.s32.totalorder %s616, %s617
      %p629 = scmp.eq.s32.totalorder %s46, 1
      %p630 = por %p628, %p629
      %p632 = scmp.ne.s32.totalorder %s617, %s631
      %p633 = scmp.eq.s32.totalorder %s46, 0
      %p634 = por %p632, %p633
      %s635 = ssub.s32 %s40, %s47
      %p636 = scmp.eq.s32.totalorder %s635, 0
      %s638 = sadd.s32 %s637, 1
      %s639 = scalar_select %p636, %s637, %s638
      %p642 = pneg %p636
      %p643 = scmp.eq.s32.totalorder %s40, 1
      %p644 = por %p642, %p643
      %p645 = scmp.ne.s32.totalorder %s637, %s640
      %p646 = scmp.eq.s32.totalorder %s40, 0
      %p647 = por %p645, %p646
      %p648 = scmp.ne.s32.totalorder %s637, %s640
      %p649 = scmp.eq.s32.totalorder %s45, 1
      %p650 = por %p648, %p649
      %p651 = scmp.ne.s32.totalorder %s640, %s641
      %p652 = scmp.eq.s32.totalorder %s45, 0
      %p653 = por %p651, %p652
      %p654 = scmp.ne.s32.totalorder %s640, %s641
      %p655 = scmp.eq.s32.totalorder %s46, 1
      %p656 = por %p654, %p655
      %p658 = scmp.ne.s32.totalorder %s641, %s657
      %p659 = scmp.eq.s32.totalorder %s46, 0
      %p660 = por %p658, %p659
      %s661 = ssub.s32 %s40, %s47
      %p662 = scmp.eq.s32.totalorder %s661, 0
      %s664 = sadd.s32 %s663, 1
      %s665 = scalar_select %p662, %s663, %s664
      %p668 = pneg %p662
      %p669 = scmp.eq.s32.totalorder %s40, 1
      %p670 = por %p668, %p669
      %p671 = scmp.ne.s32.totalorder %s663, %s666
      %p672 = scmp.eq.s32.totalorder %s40, 0
      %p673 = por %p671, %p672
      %p674 = scmp.ne.s32.totalorder %s663, %s666
      %p675 = scmp.eq.s32.totalorder %s45, 1
      %p676 = por %p674, %p675
      %p677 = scmp.ne.s32.totalorder %s666, %s667
      %p678 = scmp.eq.s32.totalorder %s45, 0
      %p679 = por %p677, %p678
      %p680 = scmp.ne.s32.totalorder %s666, %s667
      %p681 = scmp.eq.s32.totalorder %s46, 1
      %p682 = por %p680, %p681
      %p684 = scmp.ne.s32.totalorder %s667, %s683
      %p685 = scmp.eq.s32.totalorder %s46, 0
      %p686 = por %p684, %p685
      %p687 = scmp.le.s32.totalorder 1, %s40
      %p688 = scmp.lt.s32.totalorder %s40, 3
      %p689 = pnand %p687, %p688
      %p690 = pneg %p689
      // Predicated region
      $region9: #{graph_fingerprints_forward.5} parent=5 // pred_check
        _
      $region10: #{graph_fingerprints_forward.5} parent=5 // pred_check_branch
        %692 = sbr.rel (%p689) target = $region12
      $region11: #{graph_fingerprints_forward.5} parent=5 // pred_region
        %s693 = ssub.s32 %s40, 1
        // Predicated region
        $region13: #{graph_fingerprints_forward.5} parent=11 // pred_check
          %p694 = pneg %p165
        $region14: #{graph_fingerprints_forward.5} parent=11 // pred_check_branch
          %696 = sbr.rel (%p694) target = $region16
        $region15: #{graph_fingerprints_forward.5} parent=11 // pred_region
          _
        $region16: #{graph_fingerprints_forward.5} parent=11 // pred_fallthru
          _
        // Predicated region
        $region17: #{graph_fingerprints_forward.5} parent=11 // pred_check
          %p697 = pneg %p186
        $region18: #{graph_fingerprints_forward.5} parent=11 // pred_check_branch
          %699 = sbr.rel (%p697) target = $region20
        $region19: #{graph_fingerprints_forward.5} parent=11 // pred_region
          _
        $region20: #{graph_fingerprints_forward.5} parent=11 // pred_fallthru
          _
        // Predicated region
        $region21: #{graph_fingerprints_forward.5} parent=11 // pred_check
          %p700 = pneg %p207
        $region22: #{graph_fingerprints_forward.5} parent=11 // pred_check_branch
          %702 = sbr.rel (%p700) target = $region24
        $region23: #{graph_fingerprints_forward.5} parent=11 // pred_region
          _
        $region24: #{graph_fingerprints_forward.5} parent=11 // pred_fallthru
          _
        // Predicated region
        $region25: #{graph_fingerprints_forward.5} parent=11 // pred_check
          %p703 = pneg %p228
        $region26: #{graph_fingerprints_forward.5} parent=11 // pred_check_branch
          %705 = sbr.rel (%p703) target = $region28
        $region27: #{graph_fingerprints_forward.5} parent=11 // pred_region
          _
        $region28: #{graph_fingerprints_forward.5} parent=11 // pred_fallthru
          _
        // Predicated region
        $region29: #{graph_fingerprints_forward.5} parent=11 // pred_check
          %p706 = pneg %p249
        $region30: #{graph_fingerprints_forward.5} parent=11 // pred_check_branch
          %708 = sbr.rel (%p706) target = $region32
        $region31: #{graph_fingerprints_forward.5} parent=11 // pred_region
          _
        $region32: #{graph_fingerprints_forward.5} parent=11 // pred_fallthru
          _
        // Predicated region
        $region33: #{graph_fingerprints_forward.5} parent=11 // pred_check
          %p709 = pneg %p270
        $region34: #{graph_fingerprints_forward.5} parent=11 // pred_check_branch
          %711 = sbr.rel (%p709) target = $region36
        $region35: #{graph_fingerprints_forward.5} parent=11 // pred_region
          _
        $region36: #{graph_fingerprints_forward.5} parent=11 // pred_fallthru
          _
        // Predicated region
        $region37: #{graph_fingerprints_forward.5} parent=11 // pred_check
          %p712 = pneg %p291
        $region38: #{graph_fingerprints_forward.5} parent=11 // pred_check_branch
          %714 = sbr.rel (%p712) target = $region40
        $region39: #{graph_fingerprints_forward.5} parent=11 // pred_region
          _
        $region40: #{graph_fingerprints_forward.5} parent=11 // pred_fallthru
          _
        // Predicated region
        $region41: #{graph_fingerprints_forward.5} parent=11 // pred_check
          %p715 = pneg %p312
        $region42: #{graph_fingerprints_forward.5} parent=11 // pred_check_branch
          %717 = sbr.rel (%p715) target = $region44
        $region43: #{graph_fingerprints_forward.5} parent=11 // pred_region
          _
        $region44: #{graph_fingerprints_forward.5} parent=11 // pred_fallthru
          _
        // Predicated region
        $region45: #{graph_fingerprints_forward.5} parent=11 // pred_check
          %p718 = pneg %p333
        $region46: #{graph_fingerprints_forward.5} parent=11 // pred_check_branch
          %720 = sbr.rel (%p718) target = $region48
        $region47: #{graph_fingerprints_forward.5} parent=11 // pred_region
          _
        $region48: #{graph_fingerprints_forward.5} parent=11 // pred_fallthru
          _
        // Predicated region
        $region49: #{graph_fingerprints_forward.5} parent=11 // pred_check
          %p721 = pneg %p354
        $region50: #{graph_fingerprints_forward.5} parent=11 // pred_check_branch
          %723 = sbr.rel (%p721) target = $region52
        $region51: #{graph_fingerprints_forward.5} parent=11 // pred_region
          _
        $region52: #{graph_fingerprints_forward.5} parent=11 // pred_fallthru
          _
        // Predicated region
        $region53: #{graph_fingerprints_forward.5} parent=11 // pred_check
          %p724 = pneg %p375
        $region54: #{graph_fingerprints_forward.5} parent=11 // pred_check_branch
          %726 = sbr.rel (%p724) target = $region56
        $region55: #{graph_fingerprints_forward.5} parent=11 // pred_region
          _
        $region56: #{graph_fingerprints_forward.5} parent=11 // pred_fallthru
          _
        // Predicated region
        $region57: #{graph_fingerprints_forward.5} parent=11 // pred_check
          %p727 = pneg %p396
        $region58: #{graph_fingerprints_forward.5} parent=11 // pred_check_branch
          %729 = sbr.rel (%p727) target = $region60
        $region59: #{graph_fingerprints_forward.5} parent=11 // pred_region
          _
        $region60: #{graph_fingerprints_forward.5} parent=11 // pred_fallthru
          _
        // Predicated region
        $region61: #{graph_fingerprints_forward.5} parent=11 // pred_check
          %p730 = pneg %p417
        $region62: #{graph_fingerprints_forward.5} parent=11 // pred_check_branch
          %732 = sbr.rel (%p730) target = $region64
        $region63: #{graph_fingerprints_forward.5} parent=11 // pred_region
          _
        $region64: #{graph_fingerprints_forward.5} parent=11 // pred_fallthru
          _
        // Predicated region
        $region65: #{graph_fingerprints_forward.5} parent=11 // pred_check
          %p733 = pneg %p438
        $region66: #{graph_fingerprints_forward.5} parent=11 // pred_check_branch
          %735 = sbr.rel (%p733) target = $region68
        $region67: #{graph_fingerprints_forward.5} parent=11 // pred_region
          _
        $region68: #{graph_fingerprints_forward.5} parent=11 // pred_fallthru
          _
        // Predicated region
        $region69: #{graph_fingerprints_forward.5} parent=11 // pred_check
          %p736 = pneg %p459
        $region70: #{graph_fingerprints_forward.5} parent=11 // pred_check_branch
          %738 = sbr.rel (%p736) target = $region72
        $region71: #{graph_fingerprints_forward.5} parent=11 // pred_region
          _
        $region72: #{graph_fingerprints_forward.5} parent=11 // pred_fallthru
          _
        // Predicated region
        $region73: #{graph_fingerprints_forward.5} parent=11 // pred_check
          %p739 = pneg %p480
        $region74: #{graph_fingerprints_forward.5} parent=11 // pred_check_branch
          %741 = sbr.rel (%p739) target = $region76
        $region75: #{graph_fingerprints_forward.5} parent=11 // pred_region
          _
        $region76: #{graph_fingerprints_forward.5} parent=11 // pred_fallthru
          _
        // Predicated region
        $region77: #{graph_fingerprints_forward.5} parent=11 // pred_check
          %p742 = pneg %p501
        $region78: #{graph_fingerprints_forward.5} parent=11 // pred_check_branch
          %744 = sbr.rel (%p742) target = $region80
        $region79: #{graph_fingerprints_forward.5} parent=11 // pred_region
          _
        $region80: #{graph_fingerprints_forward.5} parent=11 // pred_fallthru
          _
        // Predicated region
        $region81: #{graph_fingerprints_forward.5} parent=11 // pred_check
          %p745 = pneg %p522
        $region82: #{graph_fingerprints_forward.5} parent=11 // pred_check_branch
          %747 = sbr.rel (%p745) target = $region84
        $region83: #{graph_fingerprints_forward.5} parent=11 // pred_region
          _
        $region84: #{graph_fingerprints_forward.5} parent=11 // pred_fallthru
          _
        // Predicated region
        $region85: #{graph_fingerprints_forward.5} parent=11 // pred_check
          %p748 = pneg %p543
        $region86: #{graph_fingerprints_forward.5} parent=11 // pred_check_branch
          %750 = sbr.rel (%p748) target = $region88
        $region87: #{graph_fingerprints_forward.5} parent=11 // pred_region
          _
        $region88: #{graph_fingerprints_forward.5} parent=11 // pred_fallthru
          _
        // Predicated region
        $region89: #{graph_fingerprints_forward.5} parent=11 // pred_check
          %p751 = pneg %p564
        $region90: #{graph_fingerprints_forward.5} parent=11 // pred_check_branch
          %753 = sbr.rel (%p751) target = $region92
        $region91: #{graph_fingerprints_forward.5} parent=11 // pred_region
          _
        $region92: #{graph_fingerprints_forward.5} parent=11 // pred_fallthru
          _
        // Predicated region
        $region93: #{graph_fingerprints_forward.5} parent=11 // pred_check
          %p754 = pneg %p585
        $region94: #{graph_fingerprints_forward.5} parent=11 // pred_check_branch
          %756 = sbr.rel (%p754) target = $region96
        $region95: #{graph_fingerprints_forward.5} parent=11 // pred_region
          _
        $region96: #{graph_fingerprints_forward.5} parent=11 // pred_fallthru
          _
        // Predicated region
        $region97: #{graph_fingerprints_forward.5} parent=11 // pred_check
          %p757 = pneg %p606
        $region98: #{graph_fingerprints_forward.5} parent=11 // pred_check_branch
          %759 = sbr.rel (%p757) target = $region100
        $region99: #{graph_fingerprints_forward.5} parent=11 // pred_region
          _
        $region100: #{graph_fingerprints_forward.5} parent=11 // pred_fallthru
          _
        // Predicated region
        $region101: #{graph_fingerprints_forward.5} parent=11 // pred_check
          %p760 = pneg %p627
        $region102: #{graph_fingerprints_forward.5} parent=11 // pred_check_branch
          %762 = sbr.rel (%p760) target = $region104
        $region103: #{graph_fingerprints_forward.5} parent=11 // pred_region
          _
        $region104: #{graph_fingerprints_forward.5} parent=11 // pred_fallthru
          _
      $region12: #{graph_fingerprints_forward.5} parent=5 // pred_fallthru
        _
      %p763 = scmp.lt.s32.totalorder %s40, 2
      // Predicated region
      $region105: #{graph_fingerprints_forward.5} parent=5 // pred_check
        %p764 = pneg %p763
      $region106: #{graph_fingerprints_forward.5} parent=5 // pred_check_branch
        %766 = sbr.rel (%p764) target = $region108
      $region107: #{graph_fingerprints_forward.5} parent=5 // pred_region
        // Predicated region
        $region109: #{graph_fingerprints_forward.5} parent=107 // pred_check
          %p767 = pneg %p60
        $region110: #{graph_fingerprints_forward.5} parent=107 // pred_check_branch
          %769 = sbr.rel (%p767) target = $region112
        $region111: #{graph_fingerprints_forward.5} parent=107 // pred_region
          %p770 = scmp.lt.s32.totalorder %s40, 1
          %s771 = scalar_select %p770, %s40, 1
          %s772 = smul.addr %s771, 8
          %s773 = scalar_lea.vmem %s0, %s772
        $region112: #{graph_fingerprints_forward.5} parent=107 // pred_fallthru
          _
        // Predicated region
        $region113: #{graph_fingerprints_forward.5} parent=107 // pred_check
          %p774 = pneg %p86
        $region114: #{graph_fingerprints_forward.5} parent=107 // pred_check_branch
          %776 = sbr.rel (%p774) target = $region116
        $region115: #{graph_fingerprints_forward.5} parent=107 // pred_region
          %p777 = scmp.lt.s32.totalorder %s40, 1
          %s778 = scalar_select %p777, %s40, 1
          %s779 = smul.addr %s778, 8
          %s780 = smul.addr %s779, 8
          %s781 = scalar_lea.vmem %s1, %s780
        $region116: #{graph_fingerprints_forward.5} parent=107 // pred_fallthru
          _
        // Predicated region
        $region117: #{graph_fingerprints_forward.5} parent=107 // pred_check
          %p782 = pneg %p112
        $region118: #{graph_fingerprints_forward.5} parent=107 // pred_check_branch
          %784 = sbr.rel (%p782) target = $region120
        $region119: #{graph_fingerprints_forward.5} parent=107 // pred_region
          %p785 = scmp.lt.s32.totalorder %s40, 1
          %s786 = scalar_select %p785, %s40, 1
          %s787 = smul.addr %s786, 8
          %s788 = scalar_lea.vmem %s2, %s787
        $region120: #{graph_fingerprints_forward.5} parent=107 // pred_fallthru
          _
        // Predicated region
        $region121: #{graph_fingerprints_forward.5} parent=107 // pred_check
          %p789 = pneg %p138
        $region122: #{graph_fingerprints_forward.5} parent=107 // pred_check_branch
          %791 = sbr.rel (%p789) target = $region124
        $region123: #{graph_fingerprints_forward.5} parent=107 // pred_region
          %p792 = scmp.lt.s32.totalorder %s40, 1
          %s793 = scalar_select %p792, %s40, 1
          %s794 = scalar_lea.vmem %s3, %s793
        $region124: #{graph_fingerprints_forward.5} parent=107 // pred_fallthru
          _
      $region108: #{graph_fingerprints_forward.5} parent=5 // pred_fallthru
        _
      %p795 = scmp.le.s32.totalorder 1, %s40
      %p796 = scmp.lt.s32.totalorder %s40, 3
      %p797 = pnand %p795, %p796
      %p798 = pneg %p797
      // Predicated region
      $region125: #{graph_fingerprints_forward.5} parent=5 // pred_check
        _
      $region126: #{graph_fingerprints_forward.5} parent=5 // pred_check_branch
        %800 = sbr.rel (%p797) target = $region128
      $region127: #{graph_fingerprints_forward.5} parent=5 // pred_region
        %s801 = ssub.s32 %s40, 1
        %p802 = scmp.lt.s32.totalorder %s45, 1
        %s803 = scalar_select %p802, %s45, 1
        %s804 = smul.addr %s803, 8
        %s805 = scalar_lea.vmem %s0, %s804
        %p806 = pneg %p66
        %p807 = pneg %p63
        %p808 = scmp.lt.s32.totalorder %s45, 1
        %s809 = scalar_select %p808, %s45, 1
        %s810 = smul.addr %s809, 8
        %s811 = smul.addr %s810, 8
        %s812 = scalar_lea.vmem %s1, %s811
        %p813 = pneg %p92
        %p814 = pneg %p89
        %p815 = scmp.lt.s32.totalorder %s45, 1
        %s816 = scalar_select %p815, %s45, 1
        %s817 = smul.addr %s816, 8
        %s818 = scalar_lea.vmem %s2, %s817
        %p819 = pneg %p118
        %p820 = pneg %p115
        %p821 = scmp.lt.s32.totalorder %s45, 1
        %s822 = scalar_select %p821, %s45, 1
        %s823 = scalar_lea.vmem %s3, %s822
        %p824 = pneg %p144
        %p825 = pneg %p141
        %p826 = pneg %p165
        %p827 = pneg %p162
        %p828 = pneg %p186
        %p829 = pneg %p183
        %p830 = pneg %p207
        %p831 = pneg %p204
        %p832 = pneg %p228
        %p833 = pneg %p225
        %p834 = pneg %p249
        %p835 = pneg %p246
        %p836 = pneg %p270
        %p837 = pneg %p267
        %p838 = pneg %p291
        %p839 = pneg %p288
        %p840 = pneg %p312
        %p841 = pneg %p309
        %p842 = pneg %p333
        %p843 = pneg %p330
        %p844 = pneg %p354
        %p845 = pneg %p351
        %p846 = pneg %p375
        %p847 = pneg %p372
        %p848 = pneg %p396
        %p849 = pneg %p393
        %p850 = pneg %p417
        %p851 = pneg %p414
        %p852 = pneg %p438
        %p853 = pneg %p435
        %p854 = pneg %p459
        %p855 = pneg %p456
        %p856 = pneg %p480
        %p857 = pneg %p477
        %p858 = pneg %p501
        %p859 = pneg %p498
        %p860 = pneg %p522
        %p861 = pneg %p519
        %p862 = pneg %p543
        %p863 = pneg %p540
        %p864 = pneg %p564
        %p865 = pneg %p561
        %p866 = pneg %p585
        %p867 = pneg %p582
        %p868 = pneg %p606
        %p869 = pneg %p603
        %p870 = pneg %p627
        %p871 = pneg %p624
        %p872 = pneg %p653
        %p873 = pneg %p650
        %p874 = scmp.lt.s32.totalorder %s45, 1
        %s875 = scalar_select %p874, %s45, 1
        %s876 = smul.addr %s875, 8
        %s877 = scalar_lea.vmem %s27, %s876
        %p878 = pneg %p679
        %p879 = pneg %p676
        %s880 = sand.u32 %s666, 1
        %s881 = scalar_lea.sflag [#allocation4], %s880
        %s882 = sand.u32 %s666, 1
        %s883 = scalar_lea.vmem [#allocation3], %s882
        %p884 = scmp.lt.s32.totalorder %s45, 1
        %s885 = scalar_select %p884, %s45, 1
        %s886 = smul.addr %s885, 8
        %s887 = scalar_lea.vmem %s0, %s886
        %p888 = scmp.lt.s32.totalorder %s45, 1
        %s889 = scalar_select %p888, %s45, 1
        %s890 = smul.addr %s889, 8
        %s891 = smul.addr %s890, 8
        %s892 = scalar_lea.vmem %s1, %s891
        %p893 = scmp.lt.s32.totalorder %s45, 1
        %s894 = scalar_select %p893, %s45, 1
        %s895 = smul.addr %s894, 8
        %s896 = scalar_lea.vmem %s2, %s895
        %p897 = scmp.lt.s32.totalorder %s45, 1
        %s898 = scalar_select %p897, %s45, 1
        %s899 = scalar_lea.vmem %s3, %s898
        %p900 = scmp.lt.s32.totalorder %s45, 1
        %s901 = scalar_select %p900, %s45, 1
        %s902 = smul.addr %s901, 8
        %s903 = scalar_lea.vmem %s27, %s902
        %v904 = vld [vmem:[%s887] sm:$0xff]
        %v905 = vld [vmem:[%s892] sm:$0xff]
        %v906 = vld [vmem:[%s892 + $0x8] sm:$0xff]
        %v907 = vld [vmem:[%s892 + $0x10] sm:$0xff]
        %v908 = vld [vmem:[%s892 + $0x18] sm:$0xff]
        %v909 = vld [vmem:[%s892 + $0x20] sm:$0xff]
        %v910 = vld [vmem:[%s892 + $0x28] sm:$0xff]
        %v911 = vld [vmem:[%s892 + $0x30] sm:$0xff]
        %v912 = vld [vmem:[%s892 + $0x38] sm:$0xff]
        %v913 = vld [vmem:[%s896] sm:$0xff]
        %v914 = vld [vmem:[%s899] sm:$0x1]
        %v915 = vld [vmem:[%s4] sm:$0xff]
        %v916 = vld [vmem:[%s4 + $0x8] sm:$0xff]
        %v917 = vld [vmem:[%s4 + $0x10] sm:$0xff]
        %v918 = vld [vmem:[%s4 + $0x18] sm:$0xff]
        %v919 = vld [vmem:[%s4 + $0x20] sm:$0xff]
        %v920 = vld [vmem:[%s4 + $0x28] sm:$0xff]
        %v921 = vld [vmem:[%s4 + $0x30] sm:$0xff]
        %v922 = vld [vmem:[%s4 + $0x38] sm:$0xff]
        %v923 = vld [vmem:[%s5] sm:$0xff]
        %v924 = vld [vmem:[%s6] sm:$0xff]
        %v925 = vld [vmem:[%s7] sm:$0xff]
        %v926 = vld [vmem:[%s7 + $0x8] sm:$0xff]
        %v927 = vld [vmem:[%s8] sm:$0x1]
        %v929 = vperm.slane %v927, 0
        %vm931 = vcmask 130048
        %v933 = vsel %vm931, %v904, 0
        %935 = vmatpush.msra.mxu0 0.0
        %936 = vmatpush.msra.mxu0 0.0
        %937 = vmatpush.msra.mxu0 0.0
        %938 = vmatpush.msra.mxu0 0.0
        %939 = vmatpush.msra.mxu0 0.0
        %940 = vmatpush.msra.mxu0 0.0
        %941 = vmatpush.msra.mxu0 0.0
        %942 = vmatpush.msra.mxu0 0.0
        %943 = vmatpush.msra.mxu0 0.0
        %944 = vmatpush.msra.mxu0 0.0
        %945 = vmatpush.msra.mxu0 0.0
        %946 = vmatpush.msra.mxu0 0.0
        %947 = vmatpush.msra.mxu0 0.0
        %948 = vmatpush.msra.mxu0 0.0
        %949 = vmatpush.msra.mxu0 %v926
        %950 = vmatpush.msra.mxu0 %v925
        %951 = vmatmul.f32.gmra.mxu0 %v933
        %v952 = vpop.f32.mrf.mxu0
        %v953 = vadd.f32 %v929, %v952
        %954 = vdwg.mxu0
        %vm955 = vcmp.gt.f32.partialorder %v953, 0.0
        %v956 = vmul.f32 %v953, 0.01
        %v957 = vsel %vm955, %v953, %v956
        %v958 = vld [vmem:[%s9] sm:$0xff]
        %v959 = vld [vmem:[%s9 + $0x8] sm:$0xff]
        %960 = vmatpush.msra.mxu0 0.0
        %961 = vmatpush.msra.mxu0 0.0
        %962 = vmatpush.msra.mxu0 0.0
        %963 = vmatpush.msra.mxu0 0.0
        %964 = vmatpush.msra.mxu0 0.0
        %965 = vmatpush.msra.mxu0 0.0
        %966 = vmatpush.msra.mxu0 0.0
        %967 = vmatpush.msra.mxu0 0.0
        %968 = vmatpush.msra.mxu0 0.0
        %969 = vmatpush.msra.mxu0 0.0
        %970 = vmatpush.msra.mxu0 0.0
        %971 = vmatpush.msra.mxu0 0.0
        %972 = vmatpush.msra.mxu0 0.0
        %973 = vmatpush.msra.mxu0 0.0
        %974 = vmatpush.msra.mxu0 %v959
        %975 = vmatpush.msra.mxu0 %v958
        %976 = vmatmul.f32.gmra.mxu0 %v933
        %v977 = vpop.f32.mrf.mxu0
        %v978 = vadd.f32 0.0, %v977
        %979 = vdwg.mxu0
        %vm980 = vcmask 64512
        %v982 = vsel %vm980, %v915, 0
        %v985 = vsel %vm980, %v916, 0
        %v988 = vsel %vm980, %v917, 0
        %v991 = vsel %vm980, %v918, 0
        %v994 = vsel %vm980, %v919, 0
        %v997 = vsel %vm980, %v920, 0
        %v1000 = vsel %vm980, %v921, 0
        %v1003 = vsel %vm980, %v922, 0
        %1005 = vmatpush.msra.mxu0 0.0
        %1006 = vmatpush.msra.mxu0 0.0
        %1007 = vmatpush.msra.mxu0 0.0
        %1008 = vmatpush.msra.mxu0 0.0
        %1009 = vmatpush.msra.mxu0 0.0
        %1010 = vmatpush.msra.mxu0 0.0
        %1011 = vmatpush.msra.mxu0 0.0
        %1012 = vmatpush.msra.mxu0 0.0
        %1013 = vmatpush.msra.mxu0 0.0
        %1014 = vmatpush.msra.mxu0 0.0
        %1015 = vmatpush.msra.mxu0 0.0
        %1016 = vmatpush.msra.mxu0 0.0
        %1017 = vmatpush.msra.mxu0 0.0
        %1018 = vmatpush.msra.mxu0 0.0
        %1019 = vmatpush.msra.mxu0 0.0
        %1020 = vmatpush.msra.mxu0 %v978
        %1021 = vmatmul.f32.gmra.mxu0 %v982
        %v1022 = vpop.f32.mrf.mxu0
        %v1023 = vadd.f32 0.0, %v1022
        %1024 = vmatmul.f32.gmra.mxu0 %v985
        %v1025 = vpop.f32.mrf.mxu0
        %v1026 = vadd.f32 0.0, %v1025
        %1027 = vmatmul.f32.gmra.mxu0 %v988
        %v1028 = vpop.f32.mrf.mxu0
        %v1029 = vadd.f32 0.0, %v1028
        %1030 = vmatmul.f32.gmra.mxu0 %v991
        %v1031 = vpop.f32.mrf.mxu0
        %v1032 = vadd.f32 0.0, %v1031
        %1033 = vmatmul.f32.gmra.mxu0 %v994
        %v1034 = vpop.f32.mrf.mxu0
        %v1035 = vadd.f32 0.0, %v1034
        %1036 = vmatmul.f32.gmra.mxu0 %v997
        %v1037 = vpop.f32.mrf.mxu0
        %v1038 = vadd.f32 0.0, %v1037
        %1039 = vmatmul.f32.gmra.mxu0 %v1000
        %v1040 = vpop.f32.mrf.mxu0
        %v1041 = vadd.f32 0.0, %v1040
        %1042 = vmatmul.f32.gmra.mxu0 %v1003
        %v1043 = vpop.f32.mrf.mxu0
        %v1044 = vadd.f32 0.0, %v1043
        %1045 = vdwg.mxu0
        %v1046 = vld [vmem:[%s10] sm:$0xff]
        %v1048 = vsel %vm980, %v905, 0
        %v1051 = vsel %vm980, %v906, 0
        %v1054 = vsel %vm980, %v907, 0
        %v1057 = vsel %vm980, %v908, 0
        %v1060 = vsel %vm980, %v909, 0
        %v1063 = vsel %vm980, %v910, 0
        %v1066 = vsel %vm980, %v911, 0
        %v1069 = vsel %vm980, %v912, 0
        %1071 = vmatpush.msra.mxu0 0.0
        %1072 = vmatpush.msra.mxu0 0.0
        %1073 = vmatpush.msra.mxu0 0.0
        %1074 = vmatpush.msra.mxu0 0.0
        %1075 = vmatpush.msra.mxu0 0.0
        %1076 = vmatpush.msra.mxu0 0.0
        %1077 = vmatpush.msra.mxu0 0.0
        %1078 = vmatpush.msra.mxu0 0.0
        %1079 = vmatpush.msra.mxu0 0.0
        %1080 = vmatpush.msra.mxu0 0.0
        %1081 = vmatpush.msra.mxu0 0.0
        %1082 = vmatpush.msra.mxu0 0.0
        %1083 = vmatpush.msra.mxu0 0.0
        %1084 = vmatpush.msra.mxu0 0.0
        %1085 = vmatpush.msra.mxu0 0.0
        %1086 = vmatpush.msra.mxu0 %v1046
        %1087 = vmatmul.f32.gmra.mxu0 %v1048
        %v1088 = vpop.f32.mrf.mxu0
        %v1089 = vadd.f32 %v1023, %v1088
        %1090 = vmatmul.f32.gmra.mxu0 %v1051
        %v1091 = vpop.f32.mrf.mxu0
        %v1092 = vadd.f32 %v1026, %v1091
        %1093 = vmatmul.f32.gmra.mxu0 %v1054
        %v1094 = vpop.f32.mrf.mxu0
        %v1095 = vadd.f32 %v1029, %v1094
        %1096 = vmatmul.f32.gmra.mxu0 %v1057
        %v1097 = vpop.f32.mrf.mxu0
        %v1098 = vadd.f32 %v1032, %v1097
        %1099 = vmatmul.f32.gmra.mxu0 %v1060
        %v1100 = vpop.f32.mrf.mxu0
        %v1101 = vadd.f32 %v1035, %v1100
        %1102 = vmatmul.f32.gmra.mxu0 %v1063
        %v1103 = vpop.f32.mrf.mxu0
        %v1104 = vadd.f32 %v1038, %v1103
        %1105 = vmatmul.f32.gmra.mxu0 %v1066
        %v1106 = vpop.f32.mrf.mxu0
        %v1107 = vadd.f32 %v1041, %v1106
        %1108 = vmatmul.f32.gmra.mxu0 %v1069
        %v1109 = vpop.f32.mrf.mxu0
        %v1110 = vadd.f32 %v1044, %v1109
        %1111 = vdwg.mxu0
        %v1112 = vld [vmem:[%s11] sm:$0x1]
        %v1114 = vperm.slane %v1112, 0
        %v1116 = vadd.f32 %v1089, %v1114
        %v1117 = vadd.f32 %v1092, %v1114
        %v1118 = vadd.f32 %v1095, %v1114
        %v1119 = vadd.f32 %v1098, %v1114
        %v1120 = vadd.f32 %v1101, %v1114
        %v1121 = vadd.f32 %v1104, %v1114
        %v1122 = vadd.f32 %v1107, %v1114
        %v1123 = vadd.f32 %v1110, %v1114
        %vm1124 = vcmp.gt.f32.partialorder %v1116, 0.0
        %vm1125 = vcmp.gt.f32.partialorder %v1117, 0.0
        %vm1126 = vcmp.gt.f32.partialorder %v1118, 0.0
        %vm1127 = vcmp.gt.f32.partialorder %v1119, 0.0
        %vm1128 = vcmp.gt.f32.partialorder %v1120, 0.0
        %vm1129 = vcmp.gt.f32.partialorder %v1121, 0.0
        %vm1130 = vcmp.gt.f32.partialorder %v1122, 0.0
        %vm1131 = vcmp.gt.f32.partialorder %v1123, 0.0
        %v1132 = vmul.f32 %v1116, 0.01
        %v1133 = vmul.f32 %v1117, 0.01
        %v1134 = vmul.f32 %v1118, 0.01
        %v1135 = vmul.f32 %v1119, 0.01
        %v1136 = vmul.f32 %v1120, 0.01
        %v1137 = vmul.f32 %v1121, 0.01
        %v1138 = vmul.f32 %v1122, 0.01
        %v1139 = vmul.f32 %v1123, 0.01
        %v1140 = vsel %vm1124, %v1116, %v1132
        %v1141 = vsel %vm1125, %v1117, %v1133
        %v1142 = vsel %vm1126, %v1118, %v1134
        %v1143 = vsel %vm1127, %v1119, %v1135
        %v1144 = vsel %vm1128, %v1120, %v1136
        %v1145 = vsel %vm1129, %v1121, %v1137
        %v1146 = vsel %vm1130, %v1122, %v1138
        %v1147 = vsel %vm1131, %v1123, %v1139
        %v1148 = vld [vmem:[%s15] sm:$0xff]
        %v1149 = vld [vmem:[%s15 + $0x8] sm:$0xff]
        %v1150 = vld [vmem:[%s15 + $0x10] sm:$0xff]
        %v1151 = vld [vmem:[%s15 + $0x18] sm:$0xff]
        %v1152 = vld [vmem:[%s16] sm:$0x1]
        %v1154 = vperm.slane %v1152, 0
        %vm1156 = vcmask 261120
        %v1158 = vsel %vm1156, %v1140, 0
        %v1161 = vsel %vm1156, %v1141, 0
        %v1164 = vsel %vm1156, %v1142, 0
        %v1167 = vsel %vm1156, %v1143, 0
        %v1170 = vsel %vm1156, %v1144, 0
        %v1173 = vsel %vm1156, %v1145, 0
        %v1176 = vsel %vm1156, %v1146, 0
        %v1179 = vsel %vm1156, %v1147, 0
        %1181 = vmatpush.msra.mxu0 0.0
        %1182 = vmatpush.msra.mxu0 0.0
        %1183 = vmatpush.msra.mxu0 0.0
        %1184 = vmatpush.msra.mxu0 0.0
        %1185 = vmatpush.msra.mxu0 0.0
        %1186 = vmatpush.msra.mxu0 0.0
        %1187 = vmatpush.msra.mxu0 0.0
        %1188 = vmatpush.msra.mxu0 0.0
        %1189 = vmatpush.msra.mxu0 0.0
        %1190 = vmatpush.msra.mxu0 0.0
        %1191 = vmatpush.msra.mxu0 0.0
        %1192 = vmatpush.msra.mxu0 0.0
        %1193 = vmatpush.msra.mxu0 %v1151
        %1194 = vmatpush.msra.mxu0 %v1150
        %1195 = vmatpush.msra.mxu0 %v1149
        %1196 = vmatpush.msra.mxu0 %v1148
        %1197 = vmatmul.f32.gmra.mxu0 %v1158
        %v1198 = vpop.f32.mrf.mxu0
        %v1199 = vadd.f32 %v1154, %v1198
        %1200 = vmatmul.f32.gmra.mxu0 %v1161
        %v1201 = vpop.f32.mrf.mxu0
        %v1202 = vadd.f32 %v1154, %v1201
        %1203 = vmatmul.f32.gmra.mxu0 %v1164
        %v1204 = vpop.f32.mrf.mxu0
        %v1205 = vadd.f32 %v1154, %v1204
        %1206 = vmatmul.f32.gmra.mxu0 %v1167
        %v1207 = vpop.f32.mrf.mxu0
        %v1208 = vadd.f32 %v1154, %v1207
        %1209 = vmatmul.f32.gmra.mxu0 %v1170
        %v1210 = vpop.f32.mrf.mxu0
        %v1211 = vadd.f32 %v1154, %v1210
        %1212 = vmatmul.f32.gmra.mxu0 %v1173
        %v1213 = vpop.f32.mrf.mxu0
        %v1214 = vadd.f32 %v1154, %v1213
        %1215 = vmatmul.f32.gmra.mxu0 %v1176
        %v1216 = vpop.f32.mrf.mxu0
        %v1217 = vadd.f32 %v1154, %v1216
        %1218 = vmatmul.f32.gmra.mxu0 %v1179
        %v1219 = vpop.f32.mrf.mxu0
        %v1220 = vadd.f32 %v1154, %v1219
        %1221 = vdwg.mxu0
        %v1222 = vld [vmem:[%s13] sm:$0xff]
        %v1223 = vld [vmem:[%s13 + $0x8] sm:$0xff]
        %v1224 = vld [vmem:[%s13 + $0x10] sm:$0xff]
        %v1225 = vld [vmem:[%s13 + $0x18] sm:$0xff]
        %1226 = vmatpush.msra.mxu0 0.0
        %1227 = vmatpush.msra.mxu0 0.0
        %1228 = vmatpush.msra.mxu0 0.0
        %1229 = vmatpush.msra.mxu0 0.0
        %1230 = vmatpush.msra.mxu0 0.0
        %1231 = vmatpush.msra.mxu0 0.0
        %1232 = vmatpush.msra.mxu0 0.0
        %1233 = vmatpush.msra.mxu0 0.0
        %1234 = vmatpush.msra.mxu0 0.0
        %1235 = vmatpush.msra.mxu0 0.0
        %1236 = vmatpush.msra.mxu0 0.0
        %1237 = vmatpush.msra.mxu0 0.0
        %1238 = vmatpush.msra.mxu0 %v1225
        %1239 = vmatpush.msra.mxu0 %v1224
        %1240 = vmatpush.msra.mxu0 %v1223
        %1241 = vmatpush.msra.mxu0 %v1222
        %1242 = vmatmul.f32.gmra.mxu0 %v1158
        %v1243 = vpop.f32.mrf.mxu0
        %v1244 = vadd.f32 0.0, %v1243
        %1245 = vmatmul.f32.gmra.mxu0 %v1161
        %v1246 = vpop.f32.mrf.mxu0
        %v1247 = vadd.f32 0.0, %v1246
        %1248 = vmatmul.f32.gmra.mxu0 %v1164
        %v1249 = vpop.f32.mrf.mxu0
        %v1250 = vadd.f32 0.0, %v1249
        %1251 = vmatmul.f32.gmra.mxu0 %v1167
        %v1252 = vpop.f32.mrf.mxu0
        %v1253 = vadd.f32 0.0, %v1252
        %1254 = vmatmul.f32.gmra.mxu0 %v1170
        %v1255 = vpop.f32.mrf.mxu0
        %v1256 = vadd.f32 0.0, %v1255
        %1257 = vmatmul.f32.gmra.mxu0 %v1173
        %v1258 = vpop.f32.mrf.mxu0
        %v1259 = vadd.f32 0.0, %v1258
        %1260 = vmatmul.f32.gmra.mxu0 %v1176
        %v1261 = vpop.f32.mrf.mxu0
        %v1262 = vadd.f32 0.0, %v1261
        %1263 = vmatmul.f32.gmra.mxu0 %v1179
        %v1264 = vpop.f32.mrf.mxu0
        %v1265 = vadd.f32 0.0, %v1264
        %1266 = vdwg.mxu0
        %1268 = vset.pattern.permute.xlu0 0
        %1269 = vperm.xlu0 %1268, %v1244
        %v1270 = vpop.permute.xlu0 %1269
        %1273 = vset.pattern.permute.xlu0 0
        %1274 = vperm.xlu0 %1273, %v1247
        %v1275 = vpop.permute.xlu0 %1274
        %1278 = vset.pattern.permute.xlu0 0
        %1279 = vperm.xlu0 %1278, %v1250
        %v1280 = vpop.permute.xlu0 %1279
        %1283 = vset.pattern.permute.xlu0 0
        %1284 = vperm.xlu0 %1283, %v1253
        %v1285 = vpop.permute.xlu0 %1284
        %1288 = vset.pattern.permute.xlu0 0
        %1289 = vperm.xlu0 %1288, %v1256
        %v1290 = vpop.permute.xlu0 %1289
        %1293 = vset.pattern.permute.xlu0 0
        %1294 = vperm.xlu0 %1293, %v1259
        %v1295 = vpop.permute.xlu0 %1294
        %1298 = vset.pattern.permute.xlu0 0
        %1299 = vperm.xlu0 %1298, %v1262
        %v1300 = vpop.permute.xlu0 %1299
        %1303 = vset.pattern.permute.xlu0 0
        %1304 = vperm.xlu0 %1303, %v1265
        %v1305 = vpop.permute.xlu0 %1304
        %v1307 = vmul.f32 %v1270, %v915
        %v1308 = vmul.f32 %v1275, %v916
        %v1309 = vmul.f32 %v1280, %v917
        %v1310 = vmul.f32 %v1285, %v918
        %v1311 = vmul.f32 %v1290, %v919
        %v1312 = vmul.f32 %v1295, %v920
        %v1313 = vmul.f32 %v1300, %v921
        %v1314 = vmul.f32 %v1305, %v922
        %vm1315 = vcmask 523264
        %v1317 = vsel %vm1315, %v924, 0
        %1319 = vmatpush.msra.mxu0 0.0
        %1320 = vmatpush.msra.mxu0 0.0
        %1321 = vmatpush.msra.mxu0 0.0
        %1322 = vmatpush.msra.mxu0 0.0
        %1323 = vmatpush.msra.mxu0 0.0
        %1324 = vmatpush.msra.mxu0 0.0
        %1325 = vmatpush.msra.mxu0 0.0
        %1326 = vmatpush.msra.mxu0 0.0
        %1327 = vmatpush.msra.mxu0 %v1314
        %1328 = vmatpush.msra.mxu0 %v1313
        %1329 = vmatpush.msra.mxu0 %v1312
        %1330 = vmatpush.msra.mxu0 %v1311
        %1331 = vmatpush.msra.mxu0 %v1310
        %1332 = vmatpush.msra.mxu0 %v1309
        %1333 = vmatpush.msra.mxu0 %v1308
        %1334 = vmatpush.msra.mxu0 %v1307
        %1335 = vmatmul.f32.gmra.mxu0 %v1317
        %v1336 = vpop.f32.mrf.mxu0
        %v1337 = vadd.f32 0.0, %v1336
        %1338 = vdwg.mxu0
        %v1339 = vld [vmem:[%s12] sm:$0xff]
        %v1340 = vld [vmem:[%s12 + $0x8] sm:$0xff]
        %v1341 = vld [vmem:[%s12 + $0x10] sm:$0xff]
        %v1342 = vld [vmem:[%s12 + $0x18] sm:$0xff]
        %v1344 = vsel %vm1156, %v957, 0
        %1346 = vmatpush.msra.mxu0 0.0
        %1347 = vmatpush.msra.mxu0 0.0
        %1348 = vmatpush.msra.mxu0 0.0
        %1349 = vmatpush.msra.mxu0 0.0
        %1350 = vmatpush.msra.mxu0 0.0
        %1351 = vmatpush.msra.mxu0 0.0
        %1352 = vmatpush.msra.mxu0 0.0
        %1353 = vmatpush.msra.mxu0 0.0
        %1354 = vmatpush.msra.mxu0 0.0
        %1355 = vmatpush.msra.mxu0 0.0
        %1356 = vmatpush.msra.mxu0 0.0
        %1357 = vmatpush.msra.mxu0 0.0
        %1358 = vmatpush.msra.mxu0 %v1342
        %1359 = vmatpush.msra.mxu0 %v1341
        %1360 = vmatpush.msra.mxu0 %v1340
        %1361 = vmatpush.msra.mxu0 %v1339
        %1362 = vmatmul.f32.gmra.mxu0 %v1344
        %v1363 = vpop.f32.mrf.mxu0
        %v1364 = vadd.f32 0.0, %v1363
        %1365 = vdwg.mxu0
        %1367 = vset.pattern.permute.xlu0 0
        %1368 = vperm.xlu0 %1367, %v1364
        %v1369 = vpop.permute.xlu0 %1368
        %v1371 = vadd.f32 %v1369, %v1337
        %v1372 = vld [vmem:[#allocation2] sm:$0x1]
        %v1374 = vperm.slane %v1372, 0
        %1375 = vset.pattern.permute.xlu0 0
        %1376 = vperm.xlu0 %1375, %v1374
        %v1377 = vpop.permute.xlu0 %1376
        %v1379 = vadd.f32 %v1371, %v1377
        %vm1380 = vcmp.gt.f32.partialorder %v1379, 0.0
        %v1381 = vmul.f32 %v1379, 0.01
        %v1382 = vsel %vm1380, %v1379, %v1381
        %vm1383 = vcmp.gt.f32.partialorder %v913, 0.0
        %v1384 = vsel %vm1383, %v1382, -1e+30
        %v1385 = vsel %vm980, %v1384, -inf
        %1386 = vmax.xlane.f32.xlu0 %v1385
        %v1387 = vpop.xlane.xlu0 %1386
        %v1388 = vsub.f32 %v1384, %v1387
        %v1389 = vmul.f32 %v1388, 1.442695
        %v1390 = vpow.pop %v1389
        %v1391 = vmul.f32 %v1390, %v913
        %v1392 = vsel %vm980, %v1391, 0.0
        %1393 = vadd.xlane.f32.xlu0 %v1392
        %v1394 = vpop.xlane.xlu0 %1393
        %v1395 = vmax.f32 %v1394, 1e-20
        %v1396 = vrcp.pop %v1395
        %v1397 = vmul.f32 %v1391, %v1396
        %v1399 = vsel %vm980, %v1397, 0
        %1401 = vmatpush.msra.mxu0 0.0
        %1402 = vmatpush.msra.mxu0 0.0
        %1403 = vmatpush.msra.mxu0 0.0
        %1404 = vmatpush.msra.mxu0 0.0
        %1405 = vmatpush.msra.mxu0 0.0
        %1406 = vmatpush.msra.mxu0 0.0
        %1407 = vmatpush.msra.mxu0 0.0
        %1408 = vmatpush.msra.mxu0 0.0
        %1409 = vmatpush.msra.mxu0 0.0
        %1410 = vmatpush.msra.mxu0 0.0
        %1411 = vmatpush.msra.mxu0 0.0
        %1412 = vmatpush.msra.mxu0 0.0
        %1413 = vmatpush.msra.mxu0 0.0
        %1414 = vmatpush.msra.mxu0 0.0
        %1415 = vmatpush.msra.mxu0 0.0
        %1416 = vmatpush.msra.mxu0 %v923
        %1417 = vmatmul.f32.gmra.mxu0 %v1399
        %v1418 = vpop.f32.mrf.mxu0
        %v1419 = vadd.f32 0.0, %v1418
        %1420 = vdwg.mxu0
        %v1421 = vmul.f32 %v924, %v1419
        %v1423 = vsel %vm1315, %v1421, 0
        %1425 = vmatpush.msra.mxu0 0.0
        %1426 = vmatpush.msra.mxu0 0.0
        %1427 = vmatpush.msra.mxu0 0.0
        %1428 = vmatpush.msra.mxu0 0.0
        %1429 = vmatpush.msra.mxu0 0.0
        %1430 = vmatpush.msra.mxu0 0.0
        %1431 = vmatpush.msra.mxu0 0.0
        %1432 = vmatpush.msra.mxu0 0.0
        %1433 = vmatpush.msra.mxu0 %v1220
        %1434 = vmatpush.msra.mxu0 %v1217
        %1435 = vmatpush.msra.mxu0 %v1214
        %1436 = vmatpush.msra.mxu0 %v1211
        %1437 = vmatpush.msra.mxu0 %v1208
        %1438 = vmatpush.msra.mxu0 %v1205
        %1439 = vmatpush.msra.mxu0 %v1202
        %1440 = vmatpush.msra.mxu0 %v1199
        %1441 = vmatmul.f32.gmra.mxu0 %v1423
        %v1442 = vpop.f32.mrf.mxu0
        %v1443 = vadd.f32 0.0, %v1442
        %1444 = vdwg.mxu0
        %vm1445 = vcmp.gt.f32.partialorder %v1443, 0.0
        %v1446 = vmin.f32 %v1443, 0.0
        %v1447 = vmul.f32 %v1446, 1.442695
        %v1448 = vpow.pop %v1447
        %v1449 = vsub.f32 %v1448, 1.0
        %v1450 = vsel %vm1445, %v1443, %v1449
        %v1451 = vld [vmem:[%s17] sm:$0xff]
        %v1452 = vld [vmem:[%s17 + $0x8] sm:$0xff]
        %v1453 = vld [vmem:[%s17 + $0x10] sm:$0xff]
        %v1454 = vld [vmem:[%s17 + $0x18] sm:$0xff]
        %v1455 = vld [vmem:[%s20] sm:$0xff]
        %v1456 = vld [vmem:[%s20 + $0x8] sm:$0xff]
        %v1457 = vld [vmem:[%s20 + $0x10] sm:$0xff]
        %v1458 = vld [vmem:[%s20 + $0x18] sm:$0xff]
        %1459 = vmatpush.msra.mxu0 0.0
        %1460 = vmatpush.msra.mxu0 0.0
        %1461 = vmatpush.msra.mxu0 0.0
        %1462 = vmatpush.msra.mxu0 0.0
        %1463 = vmatpush.msra.mxu0 0.0
        %1464 = vmatpush.msra.mxu0 0.0
        %1465 = vmatpush.msra.mxu0 0.0
        %1466 = vmatpush.msra.mxu0 0.0
        %1467 = vmatpush.msra.mxu0 0.0
        %1468 = vmatpush.msra.mxu0 0.0
        %1469 = vmatpush.msra.mxu0 0.0
        %1470 = vmatpush.msra.mxu0 0.0
        %1471 = vmatpush.msra.mxu0 %v1458
        %1472 = vmatpush.msra.mxu0 %v1457
        %1473 = vmatpush.msra.mxu0 %v1456
        %1474 = vmatpush.msra.mxu0 %v1455
        %1475 = vmatmul.f32.gmra.mxu0 %v1344
        %v1476 = vpop.f32.mrf.mxu0
        %v1477 = vadd.f32 0.0, %v1476
        %1478 = vdwg.mxu0
        %v1480 = vsel %vm1156, %v1450, 0
        %1482 = vmatpush.msra.mxu0 0.0
        %1483 = vmatpush.msra.mxu0 0.0
        %1484 = vmatpush.msra.mxu0 0.0
        %1485 = vmatpush.msra.mxu0 0.0
        %1486 = vmatpush.msra.mxu0 0.0
        %1487 = vmatpush.msra.mxu0 0.0
        %1488 = vmatpush.msra.mxu0 0.0
        %1489 = vmatpush.msra.mxu0 0.0
        %1490 = vmatpush.msra.mxu0 0.0
        %1491 = vmatpush.msra.mxu0 0.0
        %1492 = vmatpush.msra.mxu0 0.0
        %1493 = vmatpush.msra.mxu0 0.0
        %1494 = vmatpush.msra.mxu0 %v1454
        %1495 = vmatpush.msra.mxu0 %v1453
        %1496 = vmatpush.msra.mxu0 %v1452
        %1497 = vmatpush.msra.mxu0 %v1451
        %1498 = vmatmul.f32.gmra.mxu0 %v1480
        %v1499 = vpop.f32.mrf.mxu0
        %v1500 = vadd.f32 %v1477, %v1499
        %1501 = vdwg.mxu0
        %v1502 = vld [vmem:[%s23] sm:$0x1]
        %v1504 = vperm.slane %v1502, 0
        %v1506 = vadd.f32 %v1500, %v1504
        %v1507 = vxor.u32 %v1506, 2147483648
        %v1508 = vmul.f32 %v1507, 1.442695
        %v1509 = vpow.pop %v1508
        %v1510 = vadd.f32 %v1509, 1.0
        %v1511 = vrcp.pop %v1510
        %v1512 = vmul.f32 %v1510, %v1511
        %v1513 = vsub.f32 1.0, %v1512
        %v1514 = vmul.f32 %v1511, %v1513
        %v1515 = vadd.f32 %v1511, %v1514
        %vm1516 = vweird.f32 %v1510
        %vm1517 = vweird.f32 %v1511
        %vm1518 = vmor %vm1516, %vm1517
        %v1519 = vsel %vm1518, %v1511, %v1515
        %v1520 = vand.u32 2147483647, %v1510
        %vm1521 = vcmp.eq.f32.partialorder %v1520, 8.507059e+37
        %v1522 = vand.u32 %v1510, 2147483648
        %v1523 = vor.u32 1.1754944e-38, %v1522
        %v1524 = vsel %vm1521, %v1523, %v1519
        %v1525 = vmul.f32 1.0, %v1524
        %v1526 = vld [vmem:[%s18] sm:$0xff]
        %v1527 = vld [vmem:[%s18 + $0x8] sm:$0xff]
        %v1528 = vld [vmem:[%s18 + $0x10] sm:$0xff]
        %v1529 = vld [vmem:[%s18 + $0x18] sm:$0xff]
        %v1530 = vld [vmem:[%s21] sm:$0xff]
        %v1531 = vld [vmem:[%s21 + $0x8] sm:$0xff]
        %v1532 = vld [vmem:[%s21 + $0x10] sm:$0xff]
        %v1533 = vld [vmem:[%s21 + $0x18] sm:$0xff]
        %1534 = vmatpush.msra.mxu0 0.0
        %1535 = vmatpush.msra.mxu0 0.0
        %1536 = vmatpush.msra.mxu0 0.0
        %1537 = vmatpush.msra.mxu0 0.0
        %1538 = vmatpush.msra.mxu0 0.0
        %1539 = vmatpush.msra.mxu0 0.0
        %1540 = vmatpush.msra.mxu0 0.0
        %1541 = vmatpush.msra.mxu0 0.0
        %1542 = vmatpush.msra.mxu0 0.0
        %1543 = vmatpush.msra.mxu0 0.0
        %1544 = vmatpush.msra.mxu0 0.0
        %1545 = vmatpush.msra.mxu0 0.0
        %1546 = vmatpush.msra.mxu0 %v1533
        %1547 = vmatpush.msra.mxu0 %v1532
        %1548 = vmatpush.msra.mxu0 %v1531
        %1549 = vmatpush.msra.mxu0 %v1530
        %1550 = vmatmul.f32.gmra.mxu0 %v1344
        %v1551 = vpop.f32.mrf.mxu0
        %v1552 = vadd.f32 0.0, %v1551
        %1553 = vdwg.mxu0
        %1554 = vmatpush.msra.mxu0 0.0
        %1555 = vmatpush.msra.mxu0 0.0
        %1556 = vmatpush.msra.mxu0 0.0
        %1557 = vmatpush.msra.mxu0 0.0
        %1558 = vmatpush.msra.mxu0 0.0
        %1559 = vmatpush.msra.mxu0 0.0
        %1560 = vmatpush.msra.mxu0 0.0
        %1561 = vmatpush.msra.mxu0 0.0
        %1562 = vmatpush.msra.mxu0 0.0
        %1563 = vmatpush.msra.mxu0 0.0
        %1564 = vmatpush.msra.mxu0 0.0
        %1565 = vmatpush.msra.mxu0 0.0
        %1566 = vmatpush.msra.mxu0 %v1529
        %1567 = vmatpush.msra.mxu0 %v1528
        %1568 = vmatpush.msra.mxu0 %v1527
        %1569 = vmatpush.msra.mxu0 %v1526
        %1570 = vmatmul.f32.gmra.mxu0 %v1480
        %v1571 = vpop.f32.mrf.mxu0
        %v1572 = vadd.f32 %v1552, %v1571
        %1573 = vdwg.mxu0
        %v1574 = vld [vmem:[%s24] sm:$0x1]
        %v1576 = vperm.slane %v1574, 0
        %v1578 = vadd.f32 %v1572, %v1576
        %v1579 = vxor.u32 %v1578, 2147483648
        %v1580 = vmul.f32 %v1579, 1.442695
        %v1581 = vpow.pop %v1580
        %v1582 = vadd.f32 %v1581, 1.0
        %v1583 = vrcp.pop %v1582
        %v1584 = vmul.f32 %v1582, %v1583
        %v1585 = vsub.f32 1.0, %v1584
        %v1586 = vmul.f32 %v1583, %v1585
        %v1587 = vadd.f32 %v1583, %v1586
        %vm1588 = vweird.f32 %v1582
        %vm1589 = vweird.f32 %v1583
        %vm1590 = vmor %vm1588, %vm1589
        %v1591 = vsel %vm1590, %v1583, %v1587
        %v1592 = vand.u32 2147483647, %v1582
        %vm1593 = vcmp.eq.f32.partialorder %v1592, 8.507059e+37
        %v1594 = vand.u32 %v1582, 2147483648
        %v1595 = vor.u32 1.1754944e-38, %v1594
        %v1596 = vsel %vm1593, %v1595, %v1591
        %v1597 = vmul.f32 1.0, %v1596
        %v1598 = vld [vmem:[%s19] sm:$0xff]
        %v1599 = vld [vmem:[%s19 + $0x8] sm:$0xff]
        %v1600 = vld [vmem:[%s19 + $0x10] sm:$0xff]
        %v1601 = vld [vmem:[%s19 + $0x18] sm:$0xff]
        %v1602 = vld [vmem:[%s25] sm:$0x1]
        %v1604 = vperm.slane %v1602, 0
        %1606 = vmatpush.msra.mxu0 0.0
        %1607 = vmatpush.msra.mxu0 0.0
        %1608 = vmatpush.msra.mxu0 0.0
        %1609 = vmatpush.msra.mxu0 0.0
        %1610 = vmatpush.msra.mxu0 0.0
        %1611 = vmatpush.msra.mxu0 0.0
        %1612 = vmatpush.msra.mxu0 0.0
        %1613 = vmatpush.msra.mxu0 0.0
        %1614 = vmatpush.msra.mxu0 0.0
        %1615 = vmatpush.msra.mxu0 0.0
        %1616 = vmatpush.msra.mxu0 0.0
        %1617 = vmatpush.msra.mxu0 0.0
        %1618 = vmatpush.msra.mxu0 %v1601
        %1619 = vmatpush.msra.mxu0 %v1600
        %1620 = vmatpush.msra.mxu0 %v1599
        %1621 = vmatpush.msra.mxu0 %v1598
        %1622 = vmatmul.f32.gmra.mxu0 %v1480
        %v1623 = vpop.f32.mrf.mxu0
        %v1624 = vadd.f32 %v1604, %v1623
        %1625 = vdwg.mxu0
        %v1626 = vld [vmem:[%s22] sm:$0xff]
        %v1627 = vld [vmem:[%s22 + $0x8] sm:$0xff]
        %v1628 = vld [vmem:[%s22 + $0x10] sm:$0xff]
        %v1629 = vld [vmem:[%s22 + $0x18] sm:$0xff]
        %v1630 = vld [vmem:[%s26] sm:$0x1]
        %v1632 = vperm.slane %v1630, 0
        %1634 = vmatpush.msra.mxu0 0.0
        %1635 = vmatpush.msra.mxu0 0.0
        %1636 = vmatpush.msra.mxu0 0.0
        %1637 = vmatpush.msra.mxu0 0.0
        %1638 = vmatpush.msra.mxu0 0.0
        %1639 = vmatpush.msra.mxu0 0.0
        %1640 = vmatpush.msra.mxu0 0.0
        %1641 = vmatpush.msra.mxu0 0.0
        %1642 = vmatpush.msra.mxu0 0.0
        %1643 = vmatpush.msra.mxu0 0.0
        %1644 = vmatpush.msra.mxu0 0.0
        %1645 = vmatpush.msra.mxu0 0.0
        %1646 = vmatpush.msra.mxu0 %v1629
        %1647 = vmatpush.msra.mxu0 %v1628
        %1648 = vmatpush.msra.mxu0 %v1627
        %1649 = vmatpush.msra.mxu0 %v1626
        %1650 = vmatmul.f32.gmra.mxu0 %v1344
        %v1651 = vpop.f32.mrf.mxu0
        %v1652 = vadd.f32 %v1632, %v1651
        %1653 = vdwg.mxu0
        %v1654 = vmul.f32 %v1525, %v1652
        %v1655 = vadd.f32 %v1624, %v1654
        %v1656 = vtanh.pop %v1655
        %v1657 = vsub.f32 1.0, %v1597
        %v1658 = vmul.f32 %v1657, %v1656
        %v1659 = vmul.f32 %v1597, %v957
        %v1660 = vadd.f32 %v1658, %v1659
        %v1661 = vmax.f32 %v1660, 0.0
        %1662 = vst.msk [vmem:[%s903] sm:$0xff] %vm1156, %v1661
        %v1664 = vsel %vm980, %v914, 0
        %1666 = vmatpush.msra.mxu0 0.0
        %1667 = vmatpush.msra.mxu0 0.0
        %1668 = vmatpush.msra.mxu0 0.0
        %1669 = vmatpush.msra.mxu0 0.0
        %1670 = vmatpush.msra.mxu0 0.0
        %1671 = vmatpush.msra.mxu0 0.0
        %1672 = vmatpush.msra.mxu0 0.0
        %1673 = vmatpush.msra.mxu0 0.0
        %1674 = vmatpush.msra.mxu0 0.0
        %1675 = vmatpush.msra.mxu0 0.0
        %1676 = vmatpush.msra.mxu0 0.0
        %1677 = vmatpush.msra.mxu0 0.0
        %1678 = vmatpush.msra.mxu0 0.0
        %1679 = vmatpush.msra.mxu0 0.0
        %1680 = vmatpush.msra.mxu0 0.0
        %1681 = vmatpush.msra.mxu0 %v1661
        %1682 = vmatmul.f32.gmra.mxu0 %v1664
        %v1683 = vpop.f32.mrf.mxu0
        %v1684 = vadd.f32 0.0, %v1683
        %1685 = vdwg.mxu0
        %vm1686 = vcmask 253952
        %1687 = vst.msk [vmem:[%s883] sm:$0x1] %vm1686, %v1684
        %p1688 = scmp.lt.s32.totalorder %s45, 1
        %s1689 = scalar_select %p1688, %s45, 1
        %s1690 = smul.addr %s1689, 8
        %s1691 = scalar_lea.vmem %s27, %s1690
        %s1692 = sand.u32 %s666, 1
        %s1693 = scalar_lea.sflag [#allocation4], %s1692
        %s1694 = sand.u32 %s666, 1
        %s1695 = scalar_lea.vmem [#allocation3], %s1694
        // Predicated region
        $region129: #{graph_fingerprints_forward.5} parent=127 // pred_check
          %p1696 = pneg %p650
        $region130: #{graph_fingerprints_forward.5} parent=127 // pred_check_branch
          %1698 = sbr.rel (%p1696) target = $region132
        $region131: #{graph_fingerprints_forward.5} parent=127 // pred_region
          _
        $region132: #{graph_fingerprints_forward.5} parent=127 // pred_fallthru
          _
        // Predicated region
        $region133: #{graph_fingerprints_forward.5} parent=127 // pred_check
          %p1699 = pneg %p676
        $region134: #{graph_fingerprints_forward.5} parent=127 // pred_check_branch
          %1701 = sbr.rel (%p1699) target = $region136
        $region135: #{graph_fingerprints_forward.5} parent=127 // pred_region
          %1703 = vsyncadd %s1693, 0
          %s1704 = scalar_lea.hbm %s28, %s45
          %s1706 = sshll.u32 %s1695, 4
          %s1707 = int_to_ptr.vmem [resolvable:$true] %s1706
          %s1708 = sshll.u32 %s1704, 4
          %s1709 = int_to_ptr.hbm [resolvable:$true] %s1708
          %1711 = dma.vmem_to_hbm [thread:$0]  %s1707, 16, %s1709, %s1693
        $region136: #{graph_fingerprints_forward.5} parent=127 // pred_fallthru
          _
      $region128: #{graph_fingerprints_forward.5} parent=5 // pred_fallthru
        _
      %p1712 = scmp.le.s32.totalorder 2, %s40
      // Predicated region
      $region137: #{graph_fingerprints_forward.5} parent=5 // pred_check
        %p1713 = pneg %p1712
      $region138: #{graph_fingerprints_forward.5} parent=5 // pred_check_branch
        %1715 = sbr.rel (%p1713) target = $region140
      $region139: #{graph_fingerprints_forward.5} parent=5 // pred_region
        %s1716 = ssub.s32 %s40, 2
        // Predicated region
        $region141: #{graph_fingerprints_forward.5} parent=139 // pred_check
          %p1717 = pneg %p656
        $region142: #{graph_fingerprints_forward.5} parent=139 // pred_check_branch
          %1719 = sbr.rel (%p1717) target = $region144
        $region143: #{graph_fingerprints_forward.5} parent=139 // pred_region
          %p1720 = scmp.lt.s32.totalorder %s46, 1
          %s1721 = scalar_select %p1720, %s46, 1
          %s1722 = smul.addr %s1721, 8
          %s1723 = scalar_lea.vmem %s27, %s1722
        $region144: #{graph_fingerprints_forward.5} parent=139 // pred_fallthru
          _
        // Predicated region
        $region145: #{graph_fingerprints_forward.5} parent=139 // pred_check
          %p1724 = pneg %p682
        $region146: #{graph_fingerprints_forward.5} parent=139 // pred_check_branch
          %1726 = sbr.rel (%p1724) target = $region148
        $region147: #{graph_fingerprints_forward.5} parent=139 // pred_region
          %s1727 = sand.u32 %s667, 1
          %s1728 = scalar_lea.sflag [#allocation4], %s1727
          %s1729 = sand.u32 %s667, 1
          %s1730 = scalar_lea.vmem [#allocation3], %s1729
          %1732 = dma.done %s1728, 16
        $region148: #{graph_fingerprints_forward.5} parent=139 // pred_fallthru
          _
      $region140: #{graph_fingerprints_forward.5} parent=5 // pred_fallthru
        _
    $region6: #{graph_fingerprints_forward.5} parent=1 // loop_footer
      %s44 = sadd.s32 1, %s40
    $region7: #{graph_fingerprints_forward.5} parent=1 // loop_footer_branch
      %39 = sbr.rel target = $region3
    $region8: #{graph_fingerprints_forward.5} parent=1 // loop_exit
      _
    %1733 = vsyncpa [#allocation4], 1
    %s1734 = scalar_lea.sflag [#allocation4], 1
    %1735 = vsyncpa %s1734, 1

// kernel: graph_fingerprints_forward.9
$region0: #{graph_fingerprints_forward.9}
  #allocation0 [shape = 'u32[]', space=smem, size = 0x4, offset = 0x4, fixed_abs, tag = 'smem constant byte address 0x4 - core index']
  #allocation1 [shape = 'u32[72,128]{1,0:T(1,128)}', space=vmem, size = 0x9000, scoped, tag = 'internal scratch']
  #allocation2 [shape = 'f32[1,1]{1,0:T(1,128)S(1)}', space=vmem, size = 0x200, scoped, tag = 'scoped memory for graph_fingerprints_forward.9']
  %s0 = inlined_call_operand.vmem [shape: f32[2,32], index: 0, kind: input, shape index: {}]
  %s1 = inlined_call_operand.vmem [shape: f32[2,24], index: 1, kind: input, shape index: {}]
  %s2 = inlined_call_operand.vmem [shape: f32[24,256], index: 2, kind: input, shape index: {}]
  %s3 = inlined_call_operand.vmem [shape: f32[1,256], index: 3, kind: input, shape index: {}]
  %s4 = inlined_call_operand.vmem [shape: f32[256,32], index: 4, kind: input, shape index: {}]
  %s5 = inlined_call_operand.vmem [shape: f32[1,32], index: 5, kind: input, shape index: {}]
  %s6 = inlined_call_operand.vmem [shape: f32[32,128], index: 6, kind: input, shape index: {}]
  %s7 = inlined_call_operand.vmem [shape: f32[32,128], index: 7, kind: input, shape index: {}]
  %s8 = inlined_call_operand.vmem [shape: f32[1,128], index: 8, kind: input, shape index: {}]
  %s9 = inlined_call_operand.vmem [shape: f32[128,1], index: 9, kind: input, shape index: {}]
  %s10 = inlined_call_operand.<no memory space> [shape: f32[1,1], index: 10, kind: input, shape index: {}]
  %s11 = inlined_call_operand.vmem [shape: f32[2,1], index: 11, kind: output, shape index: {}]
  %s12 = sld [smem:[#allocation0]]
  $region54: #{graph_fingerprints_forward.9} parent=0
    _
  %s14 = ssub.s32 1, %s12
  %s15 = scalar_select 0, %s14, %s12
  %v16 = vstv %s10
  %17 = vst [vmem:[#allocation2] sm:$0x1] %v16
  // Predicated region
  $region2: #{graph_fingerprints_forward.9} parent=0 // pred_check
    _
  $region3: #{graph_fingerprints_forward.9} parent=0 // pred_check_branch
    %19 = sbr.rel (0) target = $region5
  $region4: #{graph_fingerprints_forward.9} parent=0 // pred_region
    _
  $region5: #{graph_fingerprints_forward.9} parent=0 // pred_fallthru
    _
  // Predicated region
  $region6: #{graph_fingerprints_forward.9} parent=0 // pred_check
    _
  $region7: #{graph_fingerprints_forward.9} parent=0 // pred_check_branch
    %21 = sbr.rel (0) target = $region9
  $region8: #{graph_fingerprints_forward.9} parent=0 // pred_region
    _
  $region9: #{graph_fingerprints_forward.9} parent=0 // pred_fallthru
    _
  // Predicated region
  $region10: #{graph_fingerprints_forward.9} parent=0 // pred_check
    _
  $region11: #{graph_fingerprints_forward.9} parent=0 // pred_check_branch
    %23 = sbr.rel (0) target = $region13
  $region12: #{graph_fingerprints_forward.9} parent=0 // pred_region
    _
  $region13: #{graph_fingerprints_forward.9} parent=0 // pred_fallthru
    _
  // Predicated region
  $region14: #{graph_fingerprints_forward.9} parent=0 // pred_check
    _
  $region15: #{graph_fingerprints_forward.9} parent=0 // pred_check_branch
    %25 = sbr.rel (0) target = $region17
  $region16: #{graph_fingerprints_forward.9} parent=0 // pred_region
    _
  $region17: #{graph_fingerprints_forward.9} parent=0 // pred_fallthru
    _
  // Predicated region
  $region18: #{graph_fingerprints_forward.9} parent=0 // pred_check
    _
  $region19: #{graph_fingerprints_forward.9} parent=0 // pred_check_branch
    %27 = sbr.rel (0) target = $region21
  $region20: #{graph_fingerprints_forward.9} parent=0 // pred_region
    _
  $region21: #{graph_fingerprints_forward.9} parent=0 // pred_fallthru
    _
  // Predicated region
  $region22: #{graph_fingerprints_forward.9} parent=0 // pred_check
    _
  $region23: #{graph_fingerprints_forward.9} parent=0 // pred_check_branch
    %29 = sbr.rel (0) target = $region25
  $region24: #{graph_fingerprints_forward.9} parent=0 // pred_region
    _
  $region25: #{graph_fingerprints_forward.9} parent=0 // pred_fallthru
    _
  // Predicated region
  $region26: #{graph_fingerprints_forward.9} parent=0 // pred_check
    _
  $region27: #{graph_fingerprints_forward.9} parent=0 // pred_check_branch
    %31 = sbr.rel (0) target = $region29
  $region28: #{graph_fingerprints_forward.9} parent=0 // pred_region
    _
  $region29: #{graph_fingerprints_forward.9} parent=0 // pred_fallthru
    _
  // Predicated region
  $region30: #{graph_fingerprints_forward.9} parent=0 // pred_check
    _
  $region31: #{graph_fingerprints_forward.9} parent=0 // pred_check_branch
    %33 = sbr.rel (0) target = $region33
  $region32: #{graph_fingerprints_forward.9} parent=0 // pred_region
    _
  $region33: #{graph_fingerprints_forward.9} parent=0 // pred_fallthru
    _
  // Predicated region
  $region34: #{graph_fingerprints_forward.9} parent=0 // pred_check
    _
  $region35: #{graph_fingerprints_forward.9} parent=0 // pred_check_branch
    %35 = sbr.rel (0) target = $region37
  $region36: #{graph_fingerprints_forward.9} parent=0 // pred_region
    _
  $region37: #{graph_fingerprints_forward.9} parent=0 // pred_fallthru
    _
  // Predicated region
  $region38: #{graph_fingerprints_forward.9} parent=0 // pred_check
    _
  $region39: #{graph_fingerprints_forward.9} parent=0 // pred_check_branch
    %37 = sbr.rel (0) target = $region41
  $region40: #{graph_fingerprints_forward.9} parent=0 // pred_region
    _
  $region41: #{graph_fingerprints_forward.9} parent=0 // pred_fallthru
    _
  // Predicated region
  $region42: #{graph_fingerprints_forward.9} parent=0 // pred_check
    _
  $region43: #{graph_fingerprints_forward.9} parent=0 // pred_check_branch
    %39 = sbr.rel (0) target = $region45
  $region44: #{graph_fingerprints_forward.9} parent=0 // pred_region
    _
  $region45: #{graph_fingerprints_forward.9} parent=0 // pred_fallthru
    _
  %v40 = vld [vmem:[%s1] sm:$0x3]
  %v41 = vld [vmem:[%s2] sm:$0xff]
  %v42 = vld [vmem:[%s2 + $0x8] sm:$0xff]
  %v43 = vld [vmem:[%s2 + $0x10] sm:$0xff]
  %v44 = vld [vmem:[%s2 + $0x18] sm:$0xff]
  %v45 = vld [vmem:[%s2 + $0x20] sm:$0xff]
  %v46 = vld [vmem:[%s2 + $0x28] sm:$0xff]
  %v47 = vld [vmem:[%s3] sm:$0x3]
  %v49 = vperm.slane %v47, 0
  %v50 = vperm.slane %v47, 1
  %vm53 = vcmask 195584
  %v55 = vsel %vm53, %v40, 0
  %57 = vmatpush.msra.mxu0 0.0
  %58 = vmatpush.msra.mxu0 0.0
  %59 = vmatpush.msra.mxu0 0.0
  %60 = vmatpush.msra.mxu0 0.0
  %61 = vmatpush.msra.mxu0 0.0
  %62 = vmatpush.msra.mxu0 0.0
  %63 = vmatpush.msra.mxu0 0.0
  %64 = vmatpush.msra.mxu0 0.0
  %65 = vmatpush.msra.mxu0 0.0
  %66 = vmatpush.msra.mxu0 0.0
  %67 = vmatpush.msra.mxu0 0.0
  %68 = vmatpush.msra.mxu0 0.0
  %69 = vmatpush.msra.mxu0 0.0
  %70 = vmatpush.msra.mxu0 %v45
  %71 = vmatpush.msra.mxu0 %v43
  %72 = vmatpush.msra.mxu0 %v41
  %73 = vmatmul.f32.gmra.mxu0 %v55
  %v74 = vpop.f32.mrf.mxu0
  %v75 = vadd.f32 %v49, %v74
  %76 = vdwg.mxu0
  %77 = vmatpush.msra.mxu0 0.0
  %78 = vmatpush.msra.mxu0 0.0
  %79 = vmatpush.msra.mxu0 0.0
  %80 = vmatpush.msra.mxu0 0.0
  %81 = vmatpush.msra.mxu0 0.0
  %82 = vmatpush.msra.mxu0 0.0
  %83 = vmatpush.msra.mxu0 0.0
  %84 = vmatpush.msra.mxu0 0.0
  %85 = vmatpush.msra.mxu0 0.0
  %86 = vmatpush.msra.mxu0 0.0
  %87 = vmatpush.msra.mxu0 0.0
  %88 = vmatpush.msra.mxu0 0.0
  %89 = vmatpush.msra.mxu0 0.0
  %90 = vmatpush.msra.mxu0 %v46
  %91 = vmatpush.msra.mxu0 %v44
  %92 = vmatpush.msra.mxu0 %v42
  %93 = vmatmul.f32.gmra.mxu0 %v55
  %v94 = vpop.f32.mrf.mxu0
  %v95 = vadd.f32 %v50, %v94
  %96 = vdwg.mxu0
  %v97 = vmax.f32 %v75, 0.0
  %v98 = vmax.f32 %v95, 0.0
  %v99 = vld [vmem:[%s4] sm:$0xff]
  %v100 = vld [vmem:[%s4 + $0x8] sm:$0xff]
  %v101 = vld [vmem:[%s4 + $0x10] sm:$0xff]
  %v102 = vld [vmem:[%s4 + $0x18] sm:$0xff]
  %v103 = vld [vmem:[%s4 + $0x20] sm:$0xff]
  %v104 = vld [vmem:[%s4 + $0x28] sm:$0xff]
  %v105 = vld [vmem:[%s4 + $0x30] sm:$0xff]
  %v106 = vld [vmem:[%s4 + $0x38] sm:$0xff]
  %v107 = vld [vmem:[%s4 + $0x40] sm:$0xff]
  %v108 = vld [vmem:[%s4 + $0x48] sm:$0xff]
  %v109 = vld [vmem:[%s4 + $0x50] sm:$0xff]
  %v110 = vld [vmem:[%s4 + $0x58] sm:$0xff]
  %v111 = vld [vmem:[%s4 + $0x60] sm:$0xff]
  %v112 = vld [vmem:[%s4 + $0x68] sm:$0xff]
  %v113 = vld [vmem:[%s4 + $0x70] sm:$0xff]
  %v114 = vld [vmem:[%s4 + $0x78] sm:$0xff]
  %v115 = vld [vmem:[%s4 + $0x80] sm:$0xff]
  %v116 = vld [vmem:[%s4 + $0x88] sm:$0xff]
  %v117 = vld [vmem:[%s4 + $0x90] sm:$0xff]
  %v118 = vld [vmem:[%s4 + $0x98] sm:$0xff]
  %v119 = vld [vmem:[%s4 + $0xa0] sm:$0xff]
  %v120 = vld [vmem:[%s4 + $0xa8] sm:$0xff]
  %v121 = vld [vmem:[%s4 + $0xb0] sm:$0xff]
  %v122 = vld [vmem:[%s4 + $0xb8] sm:$0xff]
  %v123 = vld [vmem:[%s4 + $0xc0] sm:$0xff]
  %v124 = vld [vmem:[%s4 + $0xc8] sm:$0xff]
  %v125 = vld [vmem:[%s4 + $0xd0] sm:$0xff]
  %v126 = vld [vmem:[%s4 + $0xd8] sm:$0xff]
  %v127 = vld [vmem:[%s4 + $0xe0] sm:$0xff]
  %v128 = vld [vmem:[%s4 + $0xe8] sm:$0xff]
  %v129 = vld [vmem:[%s4 + $0xf0] sm:$0xff]
  %v130 = vld [vmem:[%s4 + $0xf8] sm:$0xff]
  %v131 = vld [vmem:[%s5] sm:$0x1]
  %v133 = vperm.slane %v131, 0
  %135 = vmatpush.msra.mxu0 %v114
  %136 = vmatpush.msra.mxu0 %v113
  %137 = vmatpush.msra.mxu0 %v112
  %138 = vmatpush.msra.mxu0 %v111
  %139 = vmatpush.msra.mxu0 %v110
  %140 = vmatpush.msra.mxu0 %v109
  %141 = vmatpush.msra.mxu0 %v108
  %142 = vmatpush.msra.mxu0 %v107
  %143 = vmatpush.msra.mxu0 %v106
  %144 = vmatpush.msra.mxu0 %v105
  %145 = vmatpush.msra.mxu0 %v104
  %146 = vmatpush.msra.mxu0 %v103
  %147 = vmatpush.msra.mxu0 %v102
  %148 = vmatpush.msra.mxu0 %v101
  %149 = vmatpush.msra.mxu0 %v100
  %150 = vmatpush.msra.mxu0 %v99
  %151 = vmatmul.f32.gmra.mxu0 %v97
  %v152 = vpop.f32.mrf.mxu0
  %v153 = vadd.f32 %v133, %v152
  %154 = vdwg.mxu0
  %155 = vmatpush.msra.mxu0 %v130
  %156 = vmatpush.msra.mxu0 %v129
  %157 = vmatpush.msra.mxu0 %v128
  %158 = vmatpush.msra.mxu0 %v127
  %159 = vmatpush.msra.mxu0 %v126
  %160 = vmatpush.msra.mxu0 %v125
  %161 = vmatpush.msra.mxu0 %v124
  %162 = vmatpush.msra.mxu0 %v123
  %163 = vmatpush.msra.mxu0 %v122
  %164 = vmatpush.msra.mxu0 %v121
  %165 = vmatpush.msra.mxu0 %v120
  %166 = vmatpush.msra.mxu0 %v119
  %167 = vmatpush.msra.mxu0 %v118
  %168 = vmatpush.msra.mxu0 %v117
  %169 = vmatpush.msra.mxu0 %v116
  %170 = vmatpush.msra.mxu0 %v115
  %171 = vmatmul.f32.gmra.mxu0 %v98
  %v172 = vpop.f32.mrf.mxu0
  %v173 = vadd.f32 %v153, %v172
  %174 = vdwg.mxu0
  %v175 = vld [vmem:[%s0] sm:$0x3]
  %v176 = vld [vmem:[%s6] sm:$0xff]
  %v177 = vld [vmem:[%s6 + $0x8] sm:$0xff]
  %v178 = vld [vmem:[%s6 + $0x10] sm:$0xff]
  %v179 = vld [vmem:[%s6 + $0x18] sm:$0xff]
  %v180 = vld [vmem:[%s7] sm:$0xff]
  %v181 = vld [vmem:[%s7 + $0x8] sm:$0xff]
  %v182 = vld [vmem:[%s7 + $0x10] sm:$0xff]
  %v183 = vld [vmem:[%s7 + $0x18] sm:$0xff]
  %vm184 = vcmask 261120
  %v186 = vsel %vm184, %v173, 0
  %188 = vmatpush.msra.mxu0 0.0
  %189 = vmatpush.msra.mxu0 0.0
  %190 = vmatpush.msra.mxu0 0.0
  %191 = vmatpush.msra.mxu0 0.0
  %192 = vmatpush.msra.mxu0 0.0
  %193 = vmatpush.msra.mxu0 0.0
  %194 = vmatpush.msra.mxu0 0.0
  %195 = vmatpush.msra.mxu0 0.0
  %196 = vmatpush.msra.mxu0 0.0
  %197 = vmatpush.msra.mxu0 0.0
  %198 = vmatpush.msra.mxu0 0.0
  %199 = vmatpush.msra.mxu0 0.0
  %200 = vmatpush.msra.mxu0 %v183
  %201 = vmatpush.msra.mxu0 %v182
  %202 = vmatpush.msra.mxu0 %v181
  %203 = vmatpush.msra.mxu0 %v180
  %204 = vmatmul.f32.gmra.mxu0 %v186
  %v205 = vpop.f32.mrf.mxu0
  %v206 = vadd.f32 0.0, %v205
  %207 = vdwg.mxu0
  %v209 = vsel %vm184, %v175, 0
  %211 = vmatpush.msra.mxu0 0.0
  %212 = vmatpush.msra.mxu0 0.0
  %213 = vmatpush.msra.mxu0 0.0
  %214 = vmatpush.msra.mxu0 0.0
  %215 = vmatpush.msra.mxu0 0.0
  %216 = vmatpush.msra.mxu0 0.0
  %217 = vmatpush.msra.mxu0 0.0
  %218 = vmatpush.msra.mxu0 0.0
  %219 = vmatpush.msra.mxu0 0.0
  %220 = vmatpush.msra.mxu0 0.0
  %221 = vmatpush.msra.mxu0 0.0
  %222 = vmatpush.msra.mxu0 0.0
  %223 = vmatpush.msra.mxu0 %v179
  %224 = vmatpush.msra.mxu0 %v178
  %225 = vmatpush.msra.mxu0 %v177
  %226 = vmatpush.msra.mxu0 %v176
  %227 = vmatmul.f32.gmra.mxu0 %v209
  %v228 = vpop.f32.mrf.mxu0
  %v229 = vadd.f32 %v206, %v228
  %230 = vdwg.mxu0
  %v231 = vld [vmem:[%s8] sm:$0x1]
  %v233 = vperm.slane %v231, 0
  %v235 = vadd.f32 %v229, %v233
  %v236 = vmax.f32 %v235, 0.0
  %v237 = vld [vmem:[%s9] sm:$0xff]
  %v238 = vld [vmem:[%s9 + $0x8] sm:$0xff]
  %v239 = vld [vmem:[%s9 + $0x10] sm:$0xff]
  %v240 = vld [vmem:[%s9 + $0x18] sm:$0xff]
  %v241 = vld [vmem:[%s9 + $0x20] sm:$0xff]
  %v242 = vld [vmem:[%s9 + $0x28] sm:$0xff]
  %v243 = vld [vmem:[%s9 + $0x30] sm:$0xff]
  %v244 = vld [vmem:[%s9 + $0x38] sm:$0xff]
  %v245 = vld [vmem:[%s9 + $0x40] sm:$0xff]
  %v246 = vld [vmem:[%s9 + $0x48] sm:$0xff]
  %v247 = vld [vmem:[%s9 + $0x50] sm:$0xff]
  %v248 = vld [vmem:[%s9 + $0x58] sm:$0xff]
  %v249 = vld [vmem:[%s9 + $0x60] sm:$0xff]
  %v250 = vld [vmem:[%s9 + $0x68] sm:$0xff]
  %v251 = vld [vmem:[%s9 + $0x70] sm:$0xff]
  %v252 = vld [vmem:[%s9 + $0x78] sm:$0xff]
  %v253 = vld [vmem:[#allocation2] sm:$0x1]
  %v255 = vperm.slane %v253, 0
  %257 = vmatpush.msra.mxu0 %v252
  %258 = vmatpush.msra.mxu0 %v251
  %259 = vmatpush.msra.mxu0 %v250
  %260 = vmatpush.msra.mxu0 %v249
  %261 = vmatpush.msra.mxu0 %v248
  %262 = vmatpush.msra.mxu0 %v247
  %263 = vmatpush.msra.mxu0 %v246
  %264 = vmatpush.msra.mxu0 %v245
  %265 = vmatpush.msra.mxu0 %v244
  %266 = vmatpush.msra.mxu0 %v243
  %267 = vmatpush.msra.mxu0 %v242
  %268 = vmatpush.msra.mxu0 %v241
  %269 = vmatpush.msra.mxu0 %v240
  %270 = vmatpush.msra.mxu0 %v239
  %271 = vmatpush.msra.mxu0 %v238
  %272 = vmatpush.msra.mxu0 %v237
  %273 = vmatmul.f32.gmra.mxu0 %v236
  %v274 = vpop.f32.mrf.mxu0
  %v275 = vadd.f32 %v255, %v274
  %276 = vdwg.mxu0
  %vm277 = vcmask 1024
  %278 = vst.msk [vmem:[%s11] sm:$0x3] %vm277, %v275
  // Predicated region
  $region46: #{graph_fingerprints_forward.9} parent=0 // pred_check
    _
  $region47: #{graph_fingerprints_forward.9} parent=0 // pred_check_branch
    %280 = sbr.rel (0) target = $region49
  $region48: #{graph_fingerprints_forward.9} parent=0 // pred_region
    _
  $region49: #{graph_fingerprints_forward.9} parent=0 // pred_fallthru
    _
  // Predicated region
  $region50: #{graph_fingerprints_forward.9} parent=0 // pred_check
    _
  $region51: #{graph_fingerprints_forward.9} parent=0 // pred_check_branch
    %282 = sbr.rel (0) target = $region53
  $region52: #{graph_fingerprints_forward.9} parent=0 // pred_region
    _
  $region53: #{graph_fingerprints_forward.9} parent=0 // pred_fallthru
    _

</llo_original>
